<compile_context>
chip_gen: v6e
topology: v6e:2x2x1
jax: 0.10.0
libtpu: 0.0.40
codegen_flags: <defaults>
</compile_context>

<pallas_src>
import numpy as np

import jax
import jax.numpy as jnp
from jax import lax
from jax.experimental import pallas as pl
from jax.experimental.pallas import tpu as pltpu


# ============================================================================
# Pallas kernels
# ============================================================================
def _conv_enc_kernel(p_ref, w_ref, b_ref, o_ref):
    """Encoder conv as GEMM: (32,16) @ (16,320) -> lane-dense (32,320), ReLU."""
    p = p_ref[0]                                                     # (16, HW)
    acc = jnp.dot(w_ref[...], p, preferred_element_type=jnp.float32)
    acc = jnp.maximum(acc + b_ref[...], 0.0)
    o_ref[0] = acc.astype(o_ref.dtype)


def _encoder_fused_kernel(x_ref, w1_ref, b1_ref, w2_ref, b2_ref,
                          wmu_ref, bmu_ref, wvar_ref, bvar_ref, eps_ref,
                          mu_ref, logvar_ref, z_ref, acc_ref):
    """Fused enc1 (K-tiled, bf16) + enc2 + latentMu/Var + reparametrize."""
    k = pl.program_id(0)

    @pl.when(k == 0)
    def _init():
        acc_ref[...] = jnp.zeros_like(acc_ref)

    # enc1 partial product: bf16 x bf16 on the MXU, f32 accumulate.
    acc_ref[...] += jnp.dot(x_ref[...], w1_ref[...],
                            preferred_element_type=jnp.float32)

    @pl.when(k == pl.num_programs(0) - 1)
    def _finalize():
        h1 = jnp.maximum(acc_ref[...] + b1_ref[...], 0.0)            # (B, 256)
        h2 = jnp.dot(h1, w2_ref[...], preferred_element_type=jnp.float32)
        h2 = jnp.maximum(h2 + b2_ref[...], 0.0)                      # (B, 128)
        mu = jnp.dot(h2, wmu_ref[...],
                     preferred_element_type=jnp.float32) + bmu_ref[...]
        logvar = jnp.dot(h2, wvar_ref[...],
                         preferred_element_type=jnp.float32) + bvar_ref[...]
        mu_ref[...] = mu
        logvar_ref[...] = logvar
        z_ref[...] = mu + eps_ref[...] * jnp.exp(0.5 * logvar)


def _decoder_fused_kernel(x_ref, w1_ref, b1_ref, w2_ref, b2_ref, o_ref):
    """Fused dec1 + dec2; dec1 ((B,24)x(24,256)) is recomputed per N-tile
    (trivial FLOPs) so the N axis can stay 'parallel' for megacore sharding."""
    h1 = jnp.dot(x_ref[...], w1_ref[...], preferred_element_type=jnp.float32)
    h1 = jnp.maximum(h1 + b1_ref[...], 0.0)                          # (B, 256)
    acc = jnp.dot(h1.astype(jnp.bfloat16), w2_ref[...],
                  preferred_element_type=jnp.float32)
    o_ref[...] = jnp.maximum(acc + b2_ref[...], 0.0).astype(o_ref.dtype)


def _deconv_kernel(p_ref, w_ref, b_ref, o_ref):
    """ConvTranspose2d as GEMM over lhs-dilated patches: (1,512)@(512,1280)."""
    p = p_ref[0]                                                     # (512, HW)
    acc = jnp.dot(w_ref[...], p, preferred_element_type=jnp.float32)  # (1, HW)
    acc = jnp.maximum(acc + b_ref[0], 0.0)                           # SMEM scalar bias
    o_ref[0] = acc.astype(o_ref.dtype)


def _outconv_kernel(p_ref, w_ref, b_ref, omu_ref, ovar_ref):
    """outConvMu + outConvVar as ONE stacked GEMM sharing the im2col patches."""
    p = p_ref[0]                                                     # (55, HW)
    acc = jnp.dot(w_ref[...], p, preferred_element_type=jnp.float32)  # (2, HW)
    omu_ref[0] = (acc[0:1, :] + b_ref[0]).astype(omu_ref.dtype)
    ovar_ref[0] = (acc[1:2, :] + b_ref[1]).astype(ovar_ref.dtype)


# ============================================================================
# pallas_call wrappers
# ============================================================================
def conv_encoder_pallas(patches, w_mat, b_col):
    # patches: (B, 16, 320) f32 -> (B, 32, 320) bf16 (lane-dense spatial axis)
    B, K, HW = patches.shape
    Cout = w_mat.shape[0]
    return pl.pallas_call(
        _conv_enc_kernel,
        out_shape=jax.ShapeDtypeStruct((B, Cout, HW), jnp.bfloat16),
        grid_spec=pltpu.PrefetchScalarGridSpec(
            num_scalar_prefetch=0,
            grid=(B,),
            in_specs=[
                pl.BlockSpec((1, K, HW), lambda b: (b, 0, 0)),
                pl.BlockSpec((Cout, K), lambda b: (0, 0)),
                pl.BlockSpec((Cout, 1), lambda b: (0, 0)),
            ],
            out_specs=pl.BlockSpec((1, Cout, HW), lambda b: (b, 0, 0)),
        ),
        compiler_params=pltpu.CompilerParams(
            dimension_semantics=("parallel",)),
    )(patches, w_mat, b_col)


def encoder_head_pallas(x_flat_bf16, prep, eps, *, tk=2560):
    # x_flat: (B, 10240) bf16 (NCHW-flattened conv output).
    B, K = x_flat_bf16.shape
    grid = (K // tk,)
    out16 = jax.ShapeDtypeStruct((B, 16), jnp.float32)
    return pl.pallas_call(
        _encoder_fused_kernel,
        out_shape=(out16, out16, out16),               # mu, logvar, z
        grid_spec=pltpu.PrefetchScalarGridSpec(
            num_scalar_prefetch=0,
            grid=grid,
            in_specs=[
                pl.BlockSpec((B, tk), lambda k: (0, k)),        # x (bf16)
                pl.BlockSpec((tk, 256), lambda k: (k, 0)),      # enc1 W (bf16)
                pl.BlockSpec((1, 256), lambda k: (0, 0)),       # enc1 b
                pl.BlockSpec((256, 128), lambda k: (0, 0)),     # enc2 W
                pl.BlockSpec((1, 128), lambda k: (0, 0)),       # enc2 b
                pl.BlockSpec((128, 16), lambda k: (0, 0)),      # mu W
                pl.BlockSpec((1, 16), lambda k: (0, 0)),        # mu b
                pl.BlockSpec((128, 16), lambda k: (0, 0)),      # var W
                pl.BlockSpec((1, 16), lambda k: (0, 0)),        # var b
                pl.BlockSpec((B, 16), lambda k: (0, 0)),        # eps
            ],
            out_specs=(
                pl.BlockSpec((B, 16), lambda k: (0, 0)),
                pl.BlockSpec((B, 16), lambda k: (0, 0)),
                pl.BlockSpec((B, 16), lambda k: (0, 0)),
            ),
            scratch_shapes=[pltpu.VMEM((B, 256), jnp.float32)],
        ),
        compiler_params=pltpu.CompilerParams(
            dimension_semantics=("arbitrary",)),
    )(x_flat_bf16, prep["enc1_w"], prep["enc1_b"], prep["enc2_w"],
      prep["enc2_b"], prep["mu_w"], prep["mu_b"], prep["var_w"],
      prep["var_b"], eps)


def decoder_mlp_pallas(dec_in, prep, *, nt=1024):
    # dec_in: (B, 24) f32 -> (B, 10240) bf16.  grid=(10,) lane-dense tiles.
    B = dec_in.shape[0]
    N = prep["dec2_w"].shape[1]
    return pl.pallas_call(
        _decoder_fused_kernel,
        out_shape=jax.ShapeDtypeStruct((B, N), jnp.bfloat16),
        grid_spec=pltpu.PrefetchScalarGridSpec(
            num_scalar_prefetch=0,
            grid=(N // nt,),
            in_specs=[
                pl.BlockSpec((B, 24), lambda j: (0, 0)),        # dec_in
                pl.BlockSpec((24, 256), lambda j: (0, 0)),      # dec1 W
                pl.BlockSpec((1, 256), lambda j: (0, 0)),       # dec1 b
                pl.BlockSpec((256, nt), lambda j: (0, j)),      # dec2 W (bf16)
                pl.BlockSpec((1, nt), lambda j: (0, j)),        # dec2 b
            ],
            out_specs=pl.BlockSpec((B, nt), lambda j: (0, j)),
        ),
        compiler_params=pltpu.CompilerParams(
            dimension_semantics=("parallel",)),
    )(dec_in, prep["dec1_w"], prep["dec1_b"], prep["dec2_w"], prep["dec2_b"])


def deconv_pallas(patches_bf16, w_row, b_scalar):
    # patches: (B, 512, 1280) bf16 -> (B, 1, 1280) f32 (lane-dense)
    B, K, HW = patches_bf16.shape
    return pl.pallas_call(
        _deconv_kernel,
        out_shape=jax.ShapeDtypeStruct((B, 1, HW), jnp.float32),
        grid_spec=pltpu.PrefetchScalarGridSpec(
            num_scalar_prefetch=0,
            grid=(B,),
            in_specs=[
                pl.BlockSpec((1, K, HW), lambda b: (b, 0, 0)),
                pl.BlockSpec((1, K), lambda b: (0, 0)),
                pl.BlockSpec(memory_space=pltpu.MemorySpace.SMEM),   # bias scalar
            ],
            out_specs=pl.BlockSpec((1, 1, HW), lambda b: (b, 0, 0)),
        ),
        compiler_params=pltpu.CompilerParams(
            dimension_semantics=("parallel",)),
    )(patches_bf16, w_row, b_scalar)


def outconv_pallas(patches, w_stack, b_vec):
    # patches: (B, 55, 1280) f32 -> two (B, 1, 1280) f32 outputs (mu, var)
    B, K, HW = patches.shape
    out = jax.ShapeDtypeStruct((B, 1, HW), jnp.float32)
    return pl.pallas_call(
        _outconv_kernel,
        out_shape=(out, out),
        grid_spec=pltpu.PrefetchScalarGridSpec(
            num_scalar_prefetch=0,
            grid=(B,),
            in_specs=[
                pl.BlockSpec((1, K, HW), lambda b: (b, 0, 0)),
                pl.BlockSpec((2, K), lambda b: (0, 0)),
                pl.BlockSpec(memory_space=pltpu.MemorySpace.SMEM),   # 2 bias scalars
            ],
            out_specs=(
                pl.BlockSpec((1, 1, HW), lambda b: (b, 0, 0)),
                pl.BlockSpec((1, 1, HW), lambda b: (b, 0, 0)),
            ),
        ),
        compiler_params=pltpu.CompilerParams(
            dimension_semantics=("parallel",)),
    )(patches, w_stack, b_vec)


# ============================================================================
# XLA glue: im2col patch extraction (patch order = (c, kh, kw), matching
# torch_weight.reshape(out, in*kh*kw)).  lhs_dilation folds the ConvTranspose
# zero-insertion into the patch op.
# ============================================================================
_DIMNUMS = ("NCHW", "OIHW", "NCHW")


def _patches_nchw(x, filter_shape, strides, padding, lhs_dilation=None):
    p = lax.conv_general_dilated_patches(
        x, filter_shape=filter_shape, window_strides=strides,
        padding=padding, lhs_dilation=lhs_dilation,
        dimension_numbers=_DIMNUMS)
    B, C, H, W = p.shape
    return p.reshape(B, C, H * W)


# ============================================================================
# Parameters (PyTorch layouts) + one-time kernel-layout preprocessing
# ============================================================================
def init_params(key):
    ks = jax.random.split(key, 16)
    s = 0.02
    return {
        "conv_w": jax.random.normal(ks[0], (32, 1, 4, 4), jnp.float32) * s,
        "conv_b": jax.random.normal(ks[1], (32,), jnp.float32) * s,
        "enc1_w": jax.random.normal(ks[2], (10240, 256), jnp.float32) * s,
        "enc1_b": jax.random.normal(ks[3], (256,), jnp.float32) * s,
        "enc2_w": jax.random.normal(ks[4], (256, 128), jnp.float32) * s,
        "enc2_b": jax.random.normal(ks[5], (128,), jnp.float32) * s,
        "mu_w": jax.random.normal(ks[6], (128, 16), jnp.float32) * s,
        "mu_b": jnp.zeros((16,), jnp.float32),
        "var_w": jax.random.normal(ks[7], (128, 16), jnp.float32) * s,
        "var_b": jnp.zeros((16,), jnp.float32),
        "dec1_w": jax.random.normal(ks[8], (24, 256), jnp.float32) * s,
        "dec1_b": jax.random.normal(ks[9], (256,), jnp.float32) * s,
        "dec2_w": jax.random.normal(ks[10], (256, 10240), jnp.float32) * s,
        "dec2_b": jax.random.normal(ks[11], (10240,), jnp.float32) * s,
        "deconv_w": jax.random.normal(ks[12], (32, 1, 4, 4), jnp.float32) * s,  # (in,out,kh,kw)
        "deconv_b": jnp.zeros((1,), jnp.float32),
        "outmu_w": jax.random.normal(ks[13], (1, 1, 11, 5), jnp.float32) * s,
        "outmu_b": jnp.zeros((1,), jnp.float32),
        "outvar_w": jax.random.normal(ks[14], (1, 1, 11, 5), jnp.float32) * s,
        "outvar_b": jnp.zeros((1,), jnp.float32),
    }


def preprocess_params(p):
    """One-time weight relayout / dtype prep (out of the forward hot path)."""
    # ConvTranspose(in,out,kh,kw) -> equivalent forward-conv kernel, flattened.
    w_dc = jnp.transpose(p["deconv_w"], (1, 0, 2, 3))[:, :, ::-1, ::-1]  # (1,32,4,4)
    return {
        "conv_w_mat": p["conv_w"].reshape(32, 16),               # (out, c*kh*kw)
        "conv_b_col": p["conv_b"].reshape(32, 1),
        "enc1_w": p["enc1_w"].astype(jnp.bfloat16),              # streamed bf16
        "enc1_b": p["enc1_b"].reshape(1, 256),
        "enc2_w": p["enc2_w"],
        "enc2_b": p["enc2_b"].reshape(1, 128),
        "mu_w": p["mu_w"], "mu_b": p["mu_b"].reshape(1, 16),
        "var_w": p["var_w"], "var_b": p["var_b"].reshape(1, 16),
        "dec1_w": p["dec1_w"], "dec1_b": p["dec1_b"].reshape(1, 256),
        "dec2_w": p["dec2_w"].astype(jnp.bfloat16),              # streamed bf16
        "dec2_b": p["dec2_b"].reshape(1, 10240),
        "deconv_w_row": w_dc.reshape(1, 32 * 16).astype(jnp.bfloat16),
        "deconv_b": p["deconv_b"],                               # (1,)  -> SMEM
        "outconv_w_stack": jnp.concatenate(
            [p["outmu_w"].reshape(1, 55), p["outvar_w"].reshape(1, 55)], axis=0),
        "outconv_b": jnp.concatenate([p["outmu_b"], p["outvar_b"]]),  # (2,) -> SMEM
    }


# ============================================================================
# VAE_AUDIO forward
# ============================================================================
def vae_audio_forward(prep, x, label, eps):
    B = x.shape[0]

    # ----- encoder -----
    p_enc = _patches_nchw(x, (4, 4), (2, 2), [(1, 1), (1, 1)])       # (B, 16, 320)
    h_conv = conv_encoder_pallas(p_enc, prep["conv_w_mat"], prep["conv_b_col"])
    h_flat = h_conv.reshape(B, 32 * 16 * 20)                         # (B,10240) bf16, NCHW order

    latent_mu, latent_logvar, z = encoder_head_pallas(h_flat, prep, eps)

    # ----- decoder -----
    dec_in = jnp.concatenate([z, label.astype(jnp.float32)], axis=1)  # (B, 24)
    h_dec = decoder_mlp_pallas(dec_in, prep)                          # (B,10240) bf16
    h_dec = h_dec.reshape(B, 32, 16, 20)                              # NCHW view (free)

    # ConvTranspose2d(32,1,4,s=2,p=1)+ReLU as dilated-input patches + GEMM.
    p_dec = _patches_nchw(h_dec, (4, 4), (1, 1), [(2, 2), (2, 2)],
                          lhs_dilation=(2, 2))                        # (B, 512, 1280) bf16
    h_deconv = deconv_pallas(p_dec, prep["deconv_w_row"], prep["deconv_b"])  # (B,1,1280)
    h_deconv_img = h_deconv.reshape(B, 1, 32, 40)

    # outConvMu / outConvVar: one shared im2col + one stacked GEMM.
    p_out = _patches_nchw(h_deconv_img, (11, 5), (1, 1), [(5, 5), (2, 2)])   # (B, 55, 1280)
    out_mu, out_var = outconv_pallas(p_out, prep["outconv_w_stack"],
                                     prep["outconv_b"])
    out_mu = out_mu.reshape(B, 1, 32, 40)
    out_var = out_var.reshape(B, 1, 32, 40)
    return out_mu, out_var, latent_mu, latent_logvar


# ============================================================================
# Pure-JAX reference (mirrors the kernels' bf16 storage decisions) for a
# runtime correctness check.
# ============================================================================
def reference_forward(params, x, label, eps):
    f32, bf16 = jnp.float32, jnp.bfloat16
    hi = lax.Precision.HIGHEST

    def rnd(a):  # mirror bf16 storage
        return a.astype(bf16).astype(f32)

    B = x.shape[0]
    h = lax.conv_general_dilated(x, params["conv_w"], (2, 2), [(1, 1), (1, 1)],
                                 dimension_numbers=_DIMNUMS, precision=hi)
    h = jnp.maximum(h + params["conv_b"].reshape(1, 32, 1, 1), 0.0)
    hf = rnd(h).reshape(B, 10240)
    h1 = jnp.maximum(jnp.matmul(hf, rnd(params["enc1_w"]), precision=hi)
                     + params["enc1_b"], 0.0)
    h2 = jnp.maximum(jnp.matmul(h1, params["enc2_w"], precision=hi)
                     + params["enc2_b"], 0.0)
    mu = jnp.matmul(h2, params["mu_w"], precision=hi) + params["mu_b"]
    logvar = jnp.matmul(h2, params["var_w"], precision=hi) + params["var_b"]
    z = mu + eps * jnp.exp(0.5 * logvar)

    d = jnp.concatenate([z, label], axis=1)
    g1 = jnp.maximum(jnp.matmul(d, params["dec1_w"], precision=hi)
                     + params["dec1_b"], 0.0)
    g2 = jnp.maximum(jnp.matmul(rnd(g1), rnd(params["dec2_w"]), precision=hi)
                     + params["dec2_b"], 0.0)
    gi = rnd(g2).reshape(B, 32, 16, 20)
    wdc = jnp.transpose(params["deconv_w"], (1, 0, 2, 3))[:, :, ::-1, ::-1]
    hd = lax.conv_general_dilated(gi, rnd(wdc), (1, 1), [(2, 2), (2, 2)],
                                  lhs_dilation=(2, 2),
                                  dimension_numbers=_DIMNUMS, precision=hi)
    hd = jnp.maximum(hd + params["deconv_b"].reshape(1, 1, 1, 1), 0.0)
    om = lax.conv_general_dilated(hd, params["outmu_w"], (1, 1), [(5, 5), (2, 2)],
                                  dimension_numbers=_DIMNUMS, precision=hi) \
        + params["outmu_b"].reshape(1, 1, 1, 1)
    ov = lax.conv_general_dilated(hd, params["outvar_w"], (1, 1), [(5, 5), (2, 2)],
                                  dimension_numbers=_DIMNUMS, precision=hi) \
        + params["outvar_b"].reshape(1, 1, 1, 1)
    return om, ov, mu, logvar


if __name__ == "__main__":
    key = jax.random.PRNGKey(0)
    k_param, k_x, k_lab, k_eps = jax.random.split(key, 4)

    params = init_params(k_param)
    prep = preprocess_params(params)

    B = 2
    x = jax.random.normal(k_x, (B, 1, 32, 40), dtype=jnp.float32)   # input_size = (32, 40)
    label = jax.random.normal(k_lab, (B, 8), dtype=jnp.float32)
    eps = jax.random.normal(k_eps, (B, 16), dtype=jnp.float32)      # D_z = 16

    fwd = jax.jit(vae_audio_forward)
    out_mu, out_var, latent_mu, latent_logvar = fwd(prep, x, label, eps)
    jax.block_until_ready((out_mu, out_var, latent_mu, latent_logvar))

    assert out_mu.shape == (B, 1, 32, 40)
    assert out_var.shape == (B, 1, 32, 40)
    assert latent_mu.shape == (B, 16)
    assert latent_logvar.shape == (B, 16)

    # Correctness check against a pure-JAX reference (same bf16 storage).
    r_mu, r_var, r_lmu, r_lvar = reference_forward(params, x, label, eps)
    np.testing.assert_allclose(np.asarray(latent_mu), np.asarray(r_lmu),
                               rtol=5e-2, atol=2e-4, err_msg="latent_mu")
    np.testing.assert_allclose(np.asarray(latent_logvar), np.asarray(r_lvar),
                               rtol=5e-2, atol=2e-4, err_msg="latent_logvar")
    np.testing.assert_allclose(np.asarray(out_mu), np.asarray(r_mu),
                               rtol=5e-2, atol=2e-4, err_msg="out_mu")
    np.testing.assert_allclose(np.asarray(out_var), np.asarray(r_var),
                               rtol=5e-2, atol=2e-4, err_msg="out_var")

    print("KERNEL_OK")
</pallas_src>

<mosaic_0001>
module attributes {stable_mosaic.version = 11 : i64} {
  func.func @_conv_enc_kernel(%arg0: i32, %arg1: memref<1x16x320xf32, #tpu.memory_space<vmem>>, %arg2: memref<32x16xf32, #tpu.memory_space<vmem>>, %arg3: memref<32x1xf32, #tpu.memory_space<vmem>>, %arg4: memref<1x32x320xbf16, #tpu.memory_space<vmem>>) attributes {dimension_semantics = [#tpu.dimension_semantics<parallel>], iteration_bounds = array<i64: 2>, scalar_prefetch = 0 : i64, scratch_operands = 0 : i64, tpu.core_type = #tpu.core_type<tc>, window_params = [{transform_indices = @transform_0, window_bounds = array<i64: 1, 16, 320>}, {pipeline_mode = #tpu.pipeline_mode<synchronous>, transform_indices = @transform_1, window_bounds = array<i64: 32, 16>}, {pipeline_mode = #tpu.pipeline_mode<synchronous>, transform_indices = @transform_2, window_bounds = array<i64: 32, 1>}, {transform_indices = @transform_3, window_bounds = array<i64: 1, 32, 320>}]} {
    %c0 = arith.constant 0 : index
    %c0_0 = arith.constant 0 : index
    %c0_1 = arith.constant 0 : index
    %0 = vector.load %arg1[%c0, %c0_0, %c0_1] : memref<1x16x320xf32, #tpu.memory_space<vmem>>, vector<1x16x320xf32>
    %1 = vector.shape_cast %0 : vector<1x16x320xf32> to vector<16x320xf32>
    %c0_2 = arith.constant 0 : index
    %c0_3 = arith.constant 0 : index
    %2 = vector.load %arg2[%c0_2, %c0_3] : memref<32x16xf32, #tpu.memory_space<vmem>>, vector<32x16xf32>
    %cst = arith.constant dense<0.000000e+00> : vector<32x320xf32>
    %3 = tpu.matmul %2, %1, %cst {dimension_numbers = #tpu.dot_dimension_numbers<[1], [0], [0], [1], [0, 0, 1, 1], [], []>} : vector<32x16xf32>, vector<16x320xf32>, vector<32x320xf32> -> vector<32x320xf32>
    %c0_4 = arith.constant 0 : index
    %c0_5 = arith.constant 0 : index
    %4 = vector.load %arg3[%c0_4, %c0_5] : memref<32x1xf32, #tpu.memory_space<vmem>>, vector<32x1xf32>
    %5 = vector.broadcast %4 : vector<32x1xf32> to vector<32x320xf32>
    %6 = arith.addf %3, %5 : vector<32x320xf32>
    %cst_6 = arith.constant 0.000000e+00 : f32
    %7 = vector.broadcast %cst_6 : f32 to vector<32x320xf32>
    %8 = arith.maximumf %6, %7 : vector<32x320xf32>
    %9 = arith.truncf %8 : vector<32x320xf32> to vector<32x320xbf16>
    %c0_7 = arith.constant 0 : index
    %c0_8 = arith.constant 0 : index
    %c0_9 = arith.constant 0 : index
    %10 = vector.load %arg4[%c0_7, %c0_8, %c0_9] : memref<1x32x320xbf16, #tpu.memory_space<vmem>>, vector<1x32x320xbf16>
    %11 = vector.shape_cast %10 : vector<1x32x320xbf16> to vector<32x320xbf16>
    %12 = vector.shape_cast %9 : vector<32x320xbf16> to vector<1x32x320xbf16>
    tpu.vector_store %arg4[%c0_7, %c0_8, %c0_9], %12 {strides = array<i32>} : memref<1x32x320xbf16, #tpu.memory_space<vmem>>, vector<1x32x320xbf16>,
    return
  }
  func.func @transform_0(%arg0: i32) -> (i32, i32, i32) {
    %c0_i32 = arith.constant 0 : i32
    %c0_i32_0 = arith.constant 0 : i32
    %c0_i32_1 = arith.constant 0 : i32
    return %arg0, %c0_i32, %c0_i32_0 : i32, i32, i32
  }
  func.func @transform_1(%arg0: i32) -> (i32, i32) {
    %c0_i32 = arith.constant 0 : i32
    %c0_i32_0 = arith.constant 0 : i32
    %c0_i32_1 = arith.constant 0 : i32
    return %c0_i32, %c0_i32_0 : i32, i32
  }
  func.func @transform_2(%arg0: i32) -> (i32, i32) {
    %c0_i32 = arith.constant 0 : i32
    %c0_i32_0 = arith.constant 0 : i32
    %c0_i32_1 = arith.constant 0 : i32
    return %c0_i32, %c0_i32_0 : i32, i32
  }
  func.func @transform_3(%arg0: i32) -> (i32, i32, i32) {
    %c0_i32 = arith.constant 0 : i32
    %c0_i32_0 = arith.constant 0 : i32
    %c0_i32_1 = arith.constant 0 : i32
    return %arg0, %c0_i32, %c0_i32_0 : i32, i32, i32
  }
}

module attributes {stable_mosaic.version = 11 : i64} {
  func.func @_encoder_fused_kernel(%arg0: i32, %arg1: memref<2x2560xbf16, #tpu.memory_space<vmem>>, %arg2: memref<2560x256xbf16, #tpu.memory_space<vmem>>, %arg3: memref<1x256xf32, #tpu.memory_space<vmem>>, %arg4: memref<256x128xf32, #tpu.memory_space<vmem>>, %arg5: memref<1x128xf32, #tpu.memory_space<vmem>>, %arg6: memref<128x16xf32, #tpu.memory_space<vmem>>, %arg7: memref<1x16xf32, #tpu.memory_space<vmem>>, %arg8: memref<128x16xf32, #tpu.memory_space<vmem>>, %arg9: memref<1x16xf32, #tpu.memory_space<vmem>>, %arg10: memref<2x16xf32, #tpu.memory_space<vmem>>, %arg11: memref<2x16xf32, #tpu.memory_space<vmem>>, %arg12: memref<2x16xf32, #tpu.memory_space<vmem>>, %arg13: memref<2x16xf32, #tpu.memory_space<vmem>>, %arg14: memref<2x256xf32, #tpu.memory_space<vmem>>) attributes {dimension_semantics = [#tpu.dimension_semantics<arbitrary>], iteration_bounds = array<i64: 4>, scalar_prefetch = 0 : i64, scratch_operands = 1 : i64, tpu.core_type = #tpu.core_type<tc>, window_params = [{transform_indices = @transform_0, window_bounds = array<i64: 2, 2560>}, {transform_indices = @transform_1, window_bounds = array<i64: 2560, 256>}, {pipeline_mode = #tpu.pipeline_mode<synchronous>, transform_indices = @transform_2, window_bounds = array<i64: 1, 256>}, {pipeline_mode = #tpu.pipeline_mode<synchronous>, transform_indices = @transform_3, window_bounds = array<i64: 256, 128>}, {pipeline_mode = #tpu.pipeline_mode<synchronous>, transform_indices = @transform_4, window_bounds = array<i64: 1, 128>}, {pipeline_mode = #tpu.pipeline_mode<synchronous>, transform_indices = @transform_5, window_bounds = array<i64: 128, 16>}, {pipeline_mode = #tpu.pipeline_mode<synchronous>, transform_indices = @transform_6, window_bounds = array<i64: 1, 16>}, {pipeline_mode = #tpu.pipeline_mode<synchronous>, transform_indices = @transform_7, window_bounds = array<i64: 128, 16>}, {pipeline_mode = #tpu.pipeline_mode<synchronous>, transform_indices = @transform_8, window_bounds = array<i64: 1, 16>}, {pipeline_mode = #tpu.pipeline_mode<synchronous>, transform_indices = @transform_9, window_bounds = array<i64: 2, 16>}, {pipeline_mode = #tpu.pipeline_mode<synchronous>, transform_indices = @transform_10, window_bounds = array<i64: 2, 16>}, {pipeline_mode = #tpu.pipeline_mode<synchronous>, transform_indices = @transform_11, window_bounds = array<i64: 2, 16>}, {pipeline_mode = #tpu.pipeline_mode<synchronous>, transform_indices = @transform_12, window_bounds = array<i64: 2, 16>}]} {
    %c0_i32 = arith.constant 0 : i32
    %0 = arith.cmpi eq, %arg0, %c0_i32 : i32
    %1 = arith.extui %0 : i1 to i32
    %c0_i32_0 = arith.constant 0 : i32
    %2 = arith.cmpi ne, %1, %c0_i32_0 : i32
    scf.if %2 {
      %cst_9 = arith.constant 0.000000e+00 : f32
      %12 = vector.broadcast %cst_9 : f32 to vector<2x256xf32>
      %c0_10 = arith.constant 0 : index
      %c0_11 = arith.constant 0 : index
      %13 = vector.load %arg14[%c0_10, %c0_11] : memref<2x256xf32, #tpu.memory_space<vmem>>, vector<2x256xf32>
      tpu.vector_store %arg14[%c0_10, %c0_11], %12 {strides = array<i32>} : memref<2x256xf32, #tpu.memory_space<vmem>>, vector<2x256xf32>,
    } else {
    }
    %c0 = arith.constant 0 : index
    %c0_1 = arith.constant 0 : index
    %3 = vector.load %arg14[%c0, %c0_1] : memref<2x256xf32, #tpu.memory_space<vmem>>, vector<2x256xf32>
    %c0_2 = arith.constant 0 : index
    %c0_3 = arith.constant 0 : index
    %4 = vector.load %arg1[%c0_2, %c0_3] : memref<2x2560xbf16, #tpu.memory_space<vmem>>, vector<2x2560xbf16>
    %c0_4 = arith.constant 0 : index
    %c0_5 = arith.constant 0 : index
    %5 = vector.load %arg2[%c0_4, %c0_5] : memref<2560x256xbf16, #tpu.memory_space<vmem>>, vector<2560x256xbf16>
    %cst = arith.constant dense<0.000000e+00> : vector<2x256xf32>
    %6 = tpu.matmul %4, %5, %cst {dimension_numbers = #tpu.dot_dimension_numbers<[1], [0], [0], [1], [0, 0, 1, 1], [], []>} : vector<2x2560xbf16>, vector<2560x256xbf16>, vector<2x256xf32> -> vector<2x256xf32>
    %7 = arith.addf %3, %6 : vector<2x256xf32>
    %c0_6 = arith.constant 0 : index
    %c0_7 = arith.constant 0 : index
    %8 = vector.load %arg14[%c0_6, %c0_7] : memref<2x256xf32, #tpu.memory_space<vmem>>, vector<2x256xf32>
    tpu.vector_store %arg14[%c0_6, %c0_7], %7 {strides = array<i32>} : memref<2x256xf32, #tpu.memory_space<vmem>>, vector<2x256xf32>,
    %c3_i32 = arith.constant 3 : i32
    %9 = arith.cmpi eq, %arg0, %c3_i32 : i32
    %10 = arith.extui %9 : i1 to i32
    %c0_i32_8 = arith.constant 0 : i32
    %11 = arith.cmpi ne, %10, %c0_i32_8 : i32
    scf.if %11 {
      %c0_9 = arith.constant 0 : index
      %c0_10 = arith.constant 0 : index
      %12 = vector.load %arg14[%c0_9, %c0_10] : memref<2x256xf32, #tpu.memory_space<vmem>>, vector<2x256xf32>
      %c0_11 = arith.constant 0 : index
      %c0_12 = arith.constant 0 : index
      %13 = vector.load %arg3[%c0_11, %c0_12] : memref<1x256xf32, #tpu.memory_space<vmem>>, vector<1x256xf32>
      %14 = vector.broadcast %13 : vector<1x256xf32> to vector<2x256xf32>
      %15 = arith.addf %12, %14 : vector<2x256xf32>
      %cst_13 = arith.constant 0.000000e+00 : f32
      %16 = vector.broadcast %cst_13 : f32 to vector<2x256xf32>
      %17 = arith.maximumf %15, %16 : vector<2x256xf32>
      %c0_14 = arith.constant 0 : index
      %c0_15 = arith.constant 0 : index
      %18 = vector.load %arg4[%c0_14, %c0_15] : memref<256x128xf32, #tpu.memory_space<vmem>>, vector<256x128xf32>
      %cst_16 = arith.constant dense<0.000000e+00> : vector<2x128xf32>
      %19 = tpu.matmul %17, %18, %cst_16 {dimension_numbers = #tpu.dot_dimension_numbers<[1], [0], [0], [1], [0, 0, 1, 1], [], []>} : vector<2x256xf32>, vector<256x128xf32>, vector<2x128xf32> -> vector<2x128xf32>
      %c0_17 = arith.constant 0 : index
      %c0_18 = arith.constant 0 : index
      %20 = vector.load %arg5[%c0_17, %c0_18] : memref<1x128xf32, #tpu.memory_space<vmem>>, vector<1x128xf32>
      %21 = vector.broadcast %20 : vector<1x128xf32> to vector<2x128xf32>
      %22 = arith.addf %19, %21 : vector<2x128xf32>
      %cst_19 = arith.constant 0.000000e+00 : f32
      %23 = vector.broadcast %cst_19 : f32 to vector<2x128xf32>
      %24 = arith.maximumf %22, %23 : vector<2x128xf32>
      %c0_20 = arith.constant 0 : index
      %c0_21 = arith.constant 0 : index
      %25 = vector.load %arg6[%c0_20, %c0_21] : memref<128x16xf32, #tpu.memory_space<vmem>>, vector<128x16xf32>
      %cst_22 = arith.constant dense<0.000000e+00> : vector<2x16xf32>
      %26 = tpu.matmul %24, %25, %cst_22 {dimension_numbers = #tpu.dot_dimension_numbers<[1], [0], [0], [1], [0, 0, 1, 1], [], []>} : vector<2x128xf32>, vector<128x16xf32>, vector<2x16xf32> -> vector<2x16xf32>
      %c0_23 = arith.constant 0 : index
      %c0_24 = arith.constant 0 : index
      %27 = vector.load %arg7[%c0_23, %c0_24] : memref<1x16xf32, #tpu.memory_space<vmem>>, vector<1x16xf32>
      %28 = vector.broadcast %27 : vector<1x16xf32> to vector<2x16xf32>
      %29 = arith.addf %26, %28 : vector<2x16xf32>
      %c0_25 = arith.constant 0 : index
      %c0_26 = arith.constant 0 : index
      %30 = vector.load %arg8[%c0_25, %c0_26] : memref<128x16xf32, #tpu.memory_space<vmem>>, vector<128x16xf32>
      %cst_27 = arith.constant dense<0.000000e+00> : vector<2x16xf32>
      %31 = tpu.matmul %24, %30, %cst_27 {dimension_numbers = #tpu.dot_dimension_numbers<[1], [0], [0], [1], [0, 0, 1, 1], [], []>} : vector<2x128xf32>, vector<128x16xf32>, vector<2x16xf32> -> vector<2x16xf32>
      %c0_28 = arith.constant 0 : index
      %c0_29 = arith.constant 0 : index
      %32 = vector.load %arg9[%c0_28, %c0_29] : memref<1x16xf32, #tpu.memory_space<vmem>>, vector<1x16xf32>
      %33 = vector.broadcast %32 : vector<1x16xf32> to vector<2x16xf32>
      %34 = arith.addf %31, %33 : vector<2x16xf32>
      %c0_30 = arith.constant 0 : index
      %c0_31 = arith.constant 0 : index
      %35 = vector.load %arg11[%c0_30, %c0_31] : memref<2x16xf32, #tpu.memory_space<vmem>>, vector<2x16xf32>
      tpu.vector_store %arg11[%c0_30, %c0_31], %29 {strides = array<i32>} : memref<2x16xf32, #tpu.memory_space<vmem>>, vector<2x16xf32>,
      %c0_32 = arith.constant 0 : index
      %c0_33 = arith.constant 0 : index
      %36 = vector.load %arg12[%c0_32, %c0_33] : memref<2x16xf32, #tpu.memory_space<vmem>>, vector<2x16xf32>
      tpu.vector_store %arg12[%c0_32, %c0_33], %34 {strides = array<i32>} : memref<2x16xf32, #tpu.memory_space<vmem>>, vector<2x16xf32>,
      %c0_34 = arith.constant 0 : index
      %c0_35 = arith.constant 0 : index
      %37 = vector.load %arg10[%c0_34, %c0_35] : memref<2x16xf32, #tpu.memory_space<vmem>>, vector<2x16xf32>
      %cst_36 = arith.constant 5.000000e-01 : f32
      %38 = vector.broadcast %cst_36 : f32 to vector<2x16xf32>
      %39 = arith.mulf %38, %34 : vector<2x16xf32>
      %40 = math.exp %39 : vector<2x16xf32>
      %41 = arith.mulf %37, %40 : vector<2x16xf32>
      %42 = arith.addf %29, %41 : vector<2x16xf32>
      %c0_37 = arith.constant 0 : index
      %c0_38 = arith.constant 0 : index
      %43 = vector.load %arg13[%c0_37, %c0_38] : memref<2x16xf32, #tpu.memory_space<vmem>>, vector<2x16xf32>
      tpu.vector_store %arg13[%c0_37, %c0_38], %42 {strides = array<i32>} : memref<2x16xf32, #tpu.memory_space<vmem>>, vector<2x16xf32>,
    } else {
    }
    return
  }
  func.func @transform_0(%arg0: i32) -> (i32, i32) {
    %c0_i32 = arith.constant 0 : i32
    %c0_i32_0 = arith.constant 0 : i32
    return %c0_i32, %arg0 : i32, i32
  }
  func.func @transform_1(%arg0: i32) -> (i32, i32) {
    %c0_i32 = arith.constant 0 : i32
    %c0_i32_0 = arith.constant 0 : i32
    return %arg0, %c0_i32 : i32, i32
  }
  func.func @transform_2(%arg0: i32) -> (i32, i32) {
    %c0_i32 = arith.constant 0 : i32
    %c0_i32_0 = arith.constant 0 : i32
    %c0_i32_1 = arith.constant 0 : i32
    return %c0_i32, %c0_i32_0 : i32, i32
  }
  func.func @transform_3(%arg0: i32) -> (i32, i32) {
    %c0_i32 = arith.constant 0 : i32
    %c0_i32_0 = arith.constant 0 : i32
    %c0_i32_1 = arith.constant 0 : i32
    return %c0_i32, %c0_i32_0 : i32, i32
  }
  func.func @transform_4(%arg0: i32) -> (i32, i32) {
    %c0_i32 = arith.constant 0 : i32
    %c0_i32_0 = arith.constant 0 : i32
    %c0_i32_1 = arith.constant 0 : i32
    return %c0_i32, %c0_i32_0 : i32, i32
  }
  func.func @transform_5(%arg0: i32) -> (i32, i32) {
    %c0_i32 = arith.constant 0 : i32
    %c0_i32_0 = arith.constant 0 : i32
    %c0_i32_1 = arith.constant 0 : i32
    return %c0_i32, %c0_i32_0 : i32, i32
  }
  func.func @transform_6(%arg0: i32) -> (i32, i32) {
    %c0_i32 = arith.constant 0 : i32
    %c0_i32_0 = arith.constant 0 : i32
    %c0_i32_1 = arith.constant 0 : i32
    return %c0_i32, %c0_i32_0 : i32, i32
  }
  func.func @transform_7(%arg0: i32) -> (i32, i32) {
    %c0_i32 = arith.constant 0 : i32
    %c0_i32_0 = arith.constant 0 : i32
    %c0_i32_1 = arith.constant 0 : i32
    return %c0_i32, %c0_i32_0 : i32, i32
  }
  func.func @transform_8(%arg0: i32) -> (i32, i32) {
    %c0_i32 = arith.constant 0 : i32
    %c0_i32_0 = arith.constant 0 : i32
    %c0_i32_1 = arith.constant 0 : i32
    return %c0_i32, %c0_i32_0 : i32, i32
  }
  func.func @transform_9(%arg0: i32) -> (i32, i32) {
    %c0_i32 = arith.constant 0 : i32
    %c0_i32_0 = arith.constant 0 : i32
    %c0_i32_1 = arith.constant 0 : i32
    return %c0_i32, %c0_i32_0 : i32, i32
  }
  func.func @transform_10(%arg0: i32) -> (i32, i32) {
    %c0_i32 = arith.constant 0 : i32
    %c0_i32_0 = arith.constant 0 : i32
    %c0_i32_1 = arith.constant 0 : i32
    return %c0_i32, %c0_i32_0 : i32, i32
  }
  func.func @transform_11(%arg0: i32) -> (i32, i32) {
    %c0_i32 = arith.constant 0 : i32
    %c0_i32_0 = arith.constant 0 : i32
    %c0_i32_1 = arith.constant 0 : i32
    return %c0_i32, %c0_i32_0 : i32, i32
  }
  func.func @transform_12(%arg0: i32) -> (i32, i32) {
    %c0_i32 = arith.constant 0 : i32
    %c0_i32_0 = arith.constant 0 : i32
    %c0_i32_1 = arith.constant 0 : i32
    return %c0_i32, %c0_i32_0 : i32, i32
  }
}

module attributes {stable_mosaic.version = 11 : i64} {
  func.func @_decoder_fused_kernel(%arg0: i32, %arg1: memref<2x24xf32, #tpu.memory_space<vmem>>, %arg2: memref<24x256xf32, #tpu.memory_space<vmem>>, %arg3: memref<1x256xf32, #tpu.memory_space<vmem>>, %arg4: memref<256x1024xbf16, #tpu.memory_space<vmem>>, %arg5: memref<1x1024xf32, #tpu.memory_space<vmem>>, %arg6: memref<2x1024xbf16, #tpu.memory_space<vmem>>) attributes {dimension_semantics = [#tpu.dimension_semantics<parallel>], iteration_bounds = array<i64: 10>, scalar_prefetch = 0 : i64, scratch_operands = 0 : i64, tpu.core_type = #tpu.core_type<tc>, window_params = [{pipeline_mode = #tpu.pipeline_mode<synchronous>, transform_indices = @transform_0, window_bounds = array<i64: 2, 24>}, {pipeline_mode = #tpu.pipeline_mode<synchronous>, transform_indices = @transform_1, window_bounds = array<i64: 24, 256>}, {pipeline_mode = #tpu.pipeline_mode<synchronous>, transform_indices = @transform_2, window_bounds = array<i64: 1, 256>}, {transform_indices = @transform_3, window_bounds = array<i64: 256, 1024>}, {transform_indices = @transform_4, window_bounds = array<i64: 1, 1024>}, {transform_indices = @transform_5, window_bounds = array<i64: 2, 1024>}]} {
    %c0 = arith.constant 0 : index
    %c0_0 = arith.constant 0 : index
    %0 = vector.load %arg1[%c0, %c0_0] : memref<2x24xf32, #tpu.memory_space<vmem>>, vector<2x24xf32>
    %c0_1 = arith.constant 0 : index
    %c0_2 = arith.constant 0 : index
    %1 = vector.load %arg2[%c0_1, %c0_2] : memref<24x256xf32, #tpu.memory_space<vmem>>, vector<24x256xf32>
    %cst = arith.constant dense<0.000000e+00> : vector<2x256xf32>
    %2 = tpu.matmul %0, %1, %cst {dimension_numbers = #tpu.dot_dimension_numbers<[1], [0], [0], [1], [0, 0, 1, 1], [], []>} : vector<2x24xf32>, vector<24x256xf32>, vector<2x256xf32> -> vector<2x256xf32>
    %c0_3 = arith.constant 0 : index
    %c0_4 = arith.constant 0 : index
    %3 = vector.load %arg3[%c0_3, %c0_4] : memref<1x256xf32, #tpu.memory_space<vmem>>, vector<1x256xf32>
    %4 = vector.broadcast %3 : vector<1x256xf32> to vector<2x256xf32>
    %5 = arith.addf %2, %4 : vector<2x256xf32>
    %cst_5 = arith.constant 0.000000e+00 : f32
    %6 = vector.broadcast %cst_5 : f32 to vector<2x256xf32>
    %7 = arith.maximumf %5, %6 : vector<2x256xf32>
    %8 = arith.truncf %7 : vector<2x256xf32> to vector<2x256xbf16>
    %c0_6 = arith.constant 0 : index
    %c0_7 = arith.constant 0 : index
    %9 = vector.load %arg4[%c0_6, %c0_7] : memref<256x1024xbf16, #tpu.memory_space<vmem>>, vector<256x1024xbf16>
    %cst_8 = arith.constant dense<0.000000e+00> : vector<2x1024xf32>
    %10 = tpu.matmul %8, %9, %cst_8 {dimension_numbers = #tpu.dot_dimension_numbers<[1], [0], [0], [1], [0, 0, 1, 1], [], []>} : vector<2x256xbf16>, vector<256x1024xbf16>, vector<2x1024xf32> -> vector<2x1024xf32>
    %c0_9 = arith.constant 0 : index
    %c0_10 = arith.constant 0 : index
    %11 = vector.load %arg5[%c0_9, %c0_10] : memref<1x1024xf32, #tpu.memory_space<vmem>>, vector<1x1024xf32>
    %12 = vector.broadcast %11 : vector<1x1024xf32> to vector<2x1024xf32>
    %13 = arith.addf %10, %12 : vector<2x1024xf32>
    %cst_11 = arith.constant 0.000000e+00 : f32
    %14 = vector.broadcast %cst_11 : f32 to vector<2x1024xf32>
    %15 = arith.maximumf %13, %14 : vector<2x1024xf32>
    %16 = arith.truncf %15 : vector<2x1024xf32> to vector<2x1024xbf16>
    %c0_12 = arith.constant 0 : index
    %c0_13 = arith.constant 0 : index
    %17 = vector.load %arg6[%c0_12, %c0_13] : memref<2x1024xbf16, #tpu.memory_space<vmem>>, vector<2x1024xbf16>
    tpu.vector_store %arg6[%c0_12, %c0_13], %16 {strides = array<i32>} : memref<2x1024xbf16, #tpu.memory_space<vmem>>, vector<2x1024xbf16>,
    return
  }
  func.func @transform_0(%arg0: i32) -> (i32, i32) {
    %c0_i32 = arith.constant 0 : i32
    %c0_i32_0 = arith.constant 0 : i32
    %c0_i32_1 = arith.constant 0 : i32
    return %c0_i32, %c0_i32_0 : i32, i32
  }
  func.func @transform_1(%arg0: i32) -> (i32, i32) {
    %c0_i32 = arith.constant 0 : i32
    %c0_i32_0 = arith.constant 0 : i32
    %c0_i32_1 = arith.constant 0 : i32
    return %c0_i32, %c0_i32_0 : i32, i32
  }
  func.func @transform_2(%arg0: i32) -> (i32, i32) {
    %c0_i32 = arith.constant 0 : i32
    %c0_i32_0 = arith.constant 0 : i32
    %c0_i32_1 = arith.constant 0 : i32
    return %c0_i32, %c0_i32_0 : i32, i32
  }
  func.func @transform_3(%arg0: i32) -> (i32, i32) {
    %c0_i32 = arith.constant 0 : i32
    %c0_i32_0 = arith.constant 0 : i32
    return %c0_i32, %arg0 : i32, i32
  }
  func.func @transform_4(%arg0: i32) -> (i32, i32) {
    %c0_i32 = arith.constant 0 : i32
    %c0_i32_0 = arith.constant 0 : i32
    return %c0_i32, %arg0 : i32, i32
  }
  func.func @transform_5(%arg0: i32) -> (i32, i32) {
    %c0_i32 = arith.constant 0 : i32
    %c0_i32_0 = arith.constant 0 : i32
    return %c0_i32, %arg0 : i32, i32
  }
}

module attributes {stable_mosaic.version = 11 : i64} {
  func.func @_deconv_kernel(%arg0: i32, %arg1: memref<1x512x1280xbf16, #tpu.memory_space<vmem>>, %arg2: memref<1x512xbf16, #tpu.memory_space<vmem>>, %arg3: memref<1xf32, #tpu.memory_space<smem>>, %arg4: memref<1x1x1280xf32, #tpu.memory_space<vmem>>) attributes {dimension_semantics = [#tpu.dimension_semantics<parallel>], iteration_bounds = array<i64: 2>, scalar_prefetch = 0 : i64, scratch_operands = 0 : i64, tpu.core_type = #tpu.core_type<tc>, window_params = [{transform_indices = @transform_0, window_bounds = array<i64: 1, 512, 1280>}, {pipeline_mode = #tpu.pipeline_mode<synchronous>, transform_indices = @transform_1, window_bounds = array<i64: 1, 512>}, {transform_indices = @transform_2, window_bounds = array<i64: 1>}, {transform_indices = @transform_3, window_bounds = array<i64: 1, 1, 1280>}]} {
    %c0 = arith.constant 0 : index
    %c0_0 = arith.constant 0 : index
    %c0_1 = arith.constant 0 : index
    %0 = vector.load %arg1[%c0, %c0_0, %c0_1] : memref<1x512x1280xbf16, #tpu.memory_space<vmem>>, vector<1x512x1280xbf16>
    %1 = vector.shape_cast %0 : vector<1x512x1280xbf16> to vector<512x1280xbf16>
    %c0_2 = arith.constant 0 : index
    %c0_3 = arith.constant 0 : index
    %2 = vector.load %arg2[%c0_2, %c0_3] : memref<1x512xbf16, #tpu.memory_space<vmem>>, vector<1x512xbf16>
    %cst = arith.constant dense<0.000000e+00> : vector<1x1280xf32>
    %3 = tpu.matmul %2, %1, %cst {dimension_numbers = #tpu.dot_dimension_numbers<[1], [0], [0], [1], [0, 0, 1, 1], [], []>} : vector<1x512xbf16>, vector<512x1280xbf16>, vector<1x1280xf32> -> vector<1x1280xf32>
    %c0_4 = arith.constant 0 : index
    %4 = memref.load %arg3[%c0_4] : memref<1xf32, #tpu.memory_space<smem>>
    %5 = vector.broadcast %4 : f32 to vector<1x1280xf32>
    %6 = arith.addf %3, %5 : vector<1x1280xf32>
    %cst_5 = arith.constant 0.000000e+00 : f32
    %7 = vector.broadcast %cst_5 : f32 to vector<1x1280xf32>
    %8 = arith.maximumf %6, %7 : vector<1x1280xf32>
    %c0_6 = arith.constant 0 : index
    %c0_7 = arith.constant 0 : index
    %c0_8 = arith.constant 0 : index
    %9 = vector.load %arg4[%c0_6, %c0_7, %c0_8] : memref<1x1x1280xf32, #tpu.memory_space<vmem>>, vector<1x1x1280xf32>
    %10 = vector.shape_cast %9 : vector<1x1x1280xf32> to vector<1x1280xf32>
    %11 = vector.shape_cast %8 : vector<1x1280xf32> to vector<1x1x1280xf32>
    tpu.vector_store %arg4[%c0_6, %c0_7, %c0_8], %11 {strides = array<i32>} : memref<1x1x1280xf32, #tpu.memory_space<vmem>>, vector<1x1x1280xf32>,
    return
  }
  func.func @transform_0(%arg0: i32) -> (i32, i32, i32) {
    %c0_i32 = arith.constant 0 : i32
    %c0_i32_0 = arith.constant 0 : i32
    %c0_i32_1 = arith.constant 0 : i32
    return %arg0, %c0_i32, %c0_i32_0 : i32, i32, i32
  }
  func.func @transform_1(%arg0: i32) -> (i32, i32) {
    %c0_i32 = arith.constant 0 : i32
    %c0_i32_0 = arith.constant 0 : i32
    %c0_i32_1 = arith.constant 0 : i32
    return %c0_i32, %c0_i32_0 : i32, i32
  }
  func.func @transform_2(%arg0: i32) -> i32 {
    %c0_i32 = arith.constant 0 : i32
    %c0_i32_0 = arith.constant 0 : i32
    return %c0_i32 : i32
  }
  func.func @transform_3(%arg0: i32) -> (i32, i32, i32) {
    %c0_i32 = arith.constant 0 : i32
    %c0_i32_0 = arith.constant 0 : i32
    %c0_i32_1 = arith.constant 0 : i32
    return %arg0, %c0_i32, %c0_i32_0 : i32, i32, i32
  }
}

module attributes {stable_mosaic.version = 11 : i64} {
  func.func @_outconv_kernel(%arg0: i32, %arg1: memref<1x55x1280xf32, #tpu.memory_space<vmem>>, %arg2: memref<2x55xf32, #tpu.memory_space<vmem>>, %arg3: memref<2xf32, #tpu.memory_space<smem>>, %arg4: memref<1x1x1280xf32, #tpu.memory_space<vmem>>, %arg5: memref<1x1x1280xf32, #tpu.memory_space<vmem>>) attributes {dimension_semantics = [#tpu.dimension_semantics<parallel>], iteration_bounds = array<i64: 2>, scalar_prefetch = 0 : i64, scratch_operands = 0 : i64, tpu.core_type = #tpu.core_type<tc>, window_params = [{transform_indices = @transform_0, window_bounds = array<i64: 1, 55, 1280>}, {pipeline_mode = #tpu.pipeline_mode<synchronous>, transform_indices = @transform_1, window_bounds = array<i64: 2, 55>}, {transform_indices = @transform_2, window_bounds = array<i64: 2>}, {transform_indices = @transform_3, window_bounds = array<i64: 1, 1, 1280>}, {transform_indices = @transform_4, window_bounds = array<i64: 1, 1, 1280>}]} {
    %c0 = arith.constant 0 : index
    %c0_0 = arith.constant 0 : index
    %c0_1 = arith.constant 0 : index
    %0 = vector.load %arg1[%c0, %c0_0, %c0_1] : memref<1x55x1280xf32, #tpu.memory_space<vmem>>, vector<1x55x1280xf32>
    %1 = vector.shape_cast %0 : vector<1x55x1280xf32> to vector<55x1280xf32>
    %c0_2 = arith.constant 0 : index
    %c0_3 = arith.constant 0 : index
    %2 = vector.load %arg2[%c0_2, %c0_3] : memref<2x55xf32, #tpu.memory_space<vmem>>, vector<2x55xf32>
    %cst = arith.constant dense<0.000000e+00> : vector<2x1280xf32>
    %3 = tpu.matmul %2, %1, %cst {dimension_numbers = #tpu.dot_dimension_numbers<[1], [0], [0], [1], [0, 0, 1, 1], [], []>} : vector<2x55xf32>, vector<55x1280xf32>, vector<2x1280xf32> -> vector<2x1280xf32>
    %4 = vector.extract_strided_slice %3 {offsets = [0, 0], sizes = [1, 1280], strides = [1, 1]} : vector<2x1280xf32> to vector<1x1280xf32>
    %c0_4 = arith.constant 0 : index
    %5 = memref.load %arg3[%c0_4] : memref<2xf32, #tpu.memory_space<smem>>
    %6 = vector.broadcast %5 : f32 to vector<1x1280xf32>
    %7 = arith.addf %4, %6 : vector<1x1280xf32>
    %c0_5 = arith.constant 0 : index
    %c0_6 = arith.constant 0 : index
    %c0_7 = arith.constant 0 : index
    %8 = vector.load %arg4[%c0_5, %c0_6, %c0_7] : memref<1x1x1280xf32, #tpu.memory_space<vmem>>, vector<1x1x1280xf32>
    %9 = vector.shape_cast %8 : vector<1x1x1280xf32> to vector<1x1280xf32>
    %10 = vector.shape_cast %7 : vector<1x1280xf32> to vector<1x1x1280xf32>
    tpu.vector_store %arg4[%c0_5, %c0_6, %c0_7], %10 {strides = array<i32>} : memref<1x1x1280xf32, #tpu.memory_space<vmem>>, vector<1x1x1280xf32>,
    %11 = vector.extract_strided_slice %3 {offsets = [1, 0], sizes = [1, 1280], strides = [1, 1]} : vector<2x1280xf32> to vector<1x1280xf32>
    %c1 = arith.constant 1 : index
    %12 = memref.load %arg3[%c1] : memref<2xf32, #tpu.memory_space<smem>>
    %13 = vector.broadcast %12 : f32 to vector<1x1280xf32>
    %14 = arith.addf %11, %13 : vector<1x1280xf32>
    %c0_8 = arith.constant 0 : index
    %c0_9 = arith.constant 0 : index
    %c0_10 = arith.constant 0 : index
    %15 = vector.load %arg5[%c0_8, %c0_9, %c0_10] : memref<1x1x1280xf32, #tpu.memory_space<vmem>>, vector<1x1x1280xf32>
    %16 = vector.shape_cast %15 : vector<1x1x1280xf32> to vector<1x1280xf32>
    %17 = vector.shape_cast %14 : vector<1x1280xf32> to vector<1x1x1280xf32>
    tpu.vector_store %arg5[%c0_8, %c0_9, %c0_10], %17 {strides = array<i32>} : memref<1x1x1280xf32, #tpu.memory_space<vmem>>, vector<1x1x1280xf32>,
    return
  }
  func.func @transform_0(%arg0: i32) -> (i32, i32, i32) {
    %c0_i32 = arith.constant 0 : i32
    %c0_i32_0 = arith.constant 0 : i32
    %c0_i32_1 = arith.constant 0 : i32
    return %arg0, %c0_i32, %c0_i32_0 : i32, i32, i32
  }
  func.func @transform_1(%arg0: i32) -> (i32, i32) {
    %c0_i32 = arith.constant 0 : i32
    %c0_i32_0 = arith.constant 0 : i32
    %c0_i32_1 = arith.constant 0 : i32
    return %c0_i32, %c0_i32_0 : i32, i32
  }
  func.func @transform_2(%arg0: i32) -> i32 {
    %c0_i32 = arith.constant 0 : i32
    %c0_i32_0 = arith.constant 0 : i32
    return %c0_i32 : i32
  }
  func.func @transform_3(%arg0: i32) -> (i32, i32, i32) {
    %c0_i32 = arith.constant 0 : i32
    %c0_i32_0 = arith.constant 0 : i32
    %c0_i32_1 = arith.constant 0 : i32
    return %arg0, %c0_i32, %c0_i32_0 : i32, i32, i32
  }
  func.func @transform_4(%arg0: i32) -> (i32, i32, i32) {
    %c0_i32 = arith.constant 0 : i32
    %c0_i32_0 = arith.constant 0 : i32
    %c0_i32_1 = arith.constant 0 : i32
    return %arg0, %c0_i32, %c0_i32_0 : i32, i32, i32
  }
}

</mosaic_0001>

<llo_original>
// kernel: vae_audio_forward.5
$region0: #{vae_audio_forward.5}
  #allocation0 [shape = 'u32[]', space=smem, size = 0x4, offset = 0x4, fixed_abs, tag = 'smem constant byte address 0x4 - core index']
  #allocation1 [shape = 'u32[144,128]{1,0:T(1,128)}', space=vmem, size = 0x12000, scoped, tag = 'internal scratch']
  %s0 = inlined_call_operand.vmem [shape: f32[2,16,320], index: 0, kind: input, shape index: {}]
  %s1 = inlined_call_operand.vmem [shape: f32[32,16], index: 1, kind: input, shape index: {}]
  %s2 = inlined_call_operand.vmem [shape: f32[32,1], index: 2, kind: input, shape index: {}]
  %s3 = inlined_call_operand.vmem [shape: bf16[2,32,320], index: 3, kind: output, shape index: {}]
  %s4 = sld [smem:[#allocation0]]
  $region45: #{vae_audio_forward.5} parent=0
    _
  %s6 = ssub.s32 1, %s4
  %s7 = scalar_select 0, %s6, %s4
  loop: start=0, step=1, limit=4
  $region2: #{vae_audio_forward.5} parent=0 // loop_pre_header
    _
  $region3: #{vae_audio_forward.5} parent=0 // loop_header
    %s9 = sphi 0, %s13
    %p10 = scmp.ge.s32.totalorder %s9, 4
    %s19 = sphi 0, %s21
    %s22 = sphi 0, %s19
    %s23 = sphi 0, %s22
    %s39 = sphi 0, %s23
    %s43 = sphi 0, %s43
    %s45 = sphi 0, %s43
    %s46 = sphi 0, %s45
    %s60 = sphi 0, %s46
    %s64 = sphi 0, %s64
    %s66 = sphi 0, %s64
    %s67 = sphi 0, %s66
    %s81 = sphi 0, %s67
    %s87 = sphi 0, %s89
    %s90 = sphi 0, %s87
    %s91 = sphi 0, %s90
    %s107 = sphi 0, %s91
  $region4: #{vae_audio_forward.5} parent=0 // loop_header_branch
    %12 = sbr.rel (%p10) target = $region8
  $region5: #{vae_audio_forward.5} parent=0 // loop_body
    %s14 = ssub.s32 %s9, 1
    %s15 = ssub.s32 %s9, 2
    %s16 = sadd.s32 %s9, 1
    %s17 = ssub.s32 %s9, %s16
    %p18 = scmp.eq.s32.totalorder %s17, 0
    %s20 = sadd.s32 %s19, 1
    %s21 = scalar_select %p18, %s19, %s20
    %p24 = pneg %p18
    %p25 = scmp.eq.s32.totalorder %s9, 1
    %p26 = por %p24, %p25
    %p27 = scmp.ne.s32.totalorder %s19, %s22
    %p28 = scmp.eq.s32.totalorder %s9, 0
    %p29 = por %p27, %p28
    %p30 = scmp.ne.s32.totalorder %s19, %s22
    %p31 = scmp.eq.s32.totalorder %s14, 1
    %p32 = por %p30, %p31
    %p33 = scmp.ne.s32.totalorder %s22, %s23
    %p34 = scmp.eq.s32.totalorder %s14, 0
    %p35 = por %p33, %p34
    %p36 = scmp.ne.s32.totalorder %s22, %s23
    %p37 = scmp.eq.s32.totalorder %s15, 1
    %p38 = por %p36, %p37
    %p40 = scmp.ne.s32.totalorder %s23, %s39
    %p41 = scmp.eq.s32.totalorder %s15, 0
    %p42 = por %p40, %p41
    %s44 = sadd.s32 %s43, 1
    %p47 = scmp.eq.s32.totalorder %s9, 1
    %p48 = scmp.ne.s32.totalorder %s43, %s45
    %p49 = scmp.eq.s32.totalorder %s9, 0
    %p50 = por %p48, %p49
    %p51 = scmp.ne.s32.totalorder %s43, %s45
    %p52 = scmp.eq.s32.totalorder %s14, 1
    %p53 = por %p51, %p52
    %p54 = scmp.ne.s32.totalorder %s45, %s46
    %p55 = scmp.eq.s32.totalorder %s14, 0
    %p56 = por %p54, %p55
    %p57 = scmp.ne.s32.totalorder %s45, %s46
    %p58 = scmp.eq.s32.totalorder %s15, 1
    %p59 = por %p57, %p58
    %p61 = scmp.ne.s32.totalorder %s46, %s60
    %p62 = scmp.eq.s32.totalorder %s15, 0
    %p63 = por %p61, %p62
    %s65 = sadd.s32 %s64, 1
    %p68 = scmp.eq.s32.totalorder %s9, 1
    %p69 = scmp.ne.s32.totalorder %s64, %s66
    %p70 = scmp.eq.s32.totalorder %s9, 0
    %p71 = por %p69, %p70
    %p72 = scmp.ne.s32.totalorder %s64, %s66
    %p73 = scmp.eq.s32.totalorder %s14, 1
    %p74 = por %p72, %p73
    %p75 = scmp.ne.s32.totalorder %s66, %s67
    %p76 = scmp.eq.s32.totalorder %s14, 0
    %p77 = por %p75, %p76
    %p78 = scmp.ne.s32.totalorder %s66, %s67
    %p79 = scmp.eq.s32.totalorder %s15, 1
    %p80 = por %p78, %p79
    %p82 = scmp.ne.s32.totalorder %s67, %s81
    %p83 = scmp.eq.s32.totalorder %s15, 0
    %p84 = por %p82, %p83
    %s85 = ssub.s32 %s9, %s16
    %p86 = scmp.eq.s32.totalorder %s85, 0
    %s88 = sadd.s32 %s87, 1
    %s89 = scalar_select %p86, %s87, %s88
    %p92 = pneg %p86
    %p93 = scmp.eq.s32.totalorder %s9, 1
    %p94 = por %p92, %p93
    %p95 = scmp.ne.s32.totalorder %s87, %s90
    %p96 = scmp.eq.s32.totalorder %s9, 0
    %p97 = por %p95, %p96
    %p98 = scmp.ne.s32.totalorder %s87, %s90
    %p99 = scmp.eq.s32.totalorder %s14, 1
    %p100 = por %p98, %p99
    %p101 = scmp.ne.s32.totalorder %s90, %s91
    %p102 = scmp.eq.s32.totalorder %s14, 0
    %p103 = por %p101, %p102
    %p104 = scmp.ne.s32.totalorder %s90, %s91
    %p105 = scmp.eq.s32.totalorder %s15, 1
    %p106 = por %p104, %p105
    %p108 = scmp.ne.s32.totalorder %s91, %s107
    %p109 = scmp.eq.s32.totalorder %s15, 0
    %p110 = por %p108, %p109
    %p111 = scmp.le.s32.totalorder 1, %s9
    %p112 = scmp.lt.s32.totalorder %s9, 3
    %p113 = pnand %p111, %p112
    %p114 = pneg %p113
    // Predicated region
    $region9: #{vae_audio_forward.5} parent=5 // pred_check
      _
    $region10: #{vae_audio_forward.5} parent=5 // pred_check_branch
      %116 = sbr.rel (%p113) target = $region12
    $region11: #{vae_audio_forward.5} parent=5 // pred_region
      %s117 = ssub.s32 %s9, 1
      // Predicated region
      $region13: #{vae_audio_forward.5} parent=11 // pred_check
        %p118 = pneg %p56
      $region14: #{vae_audio_forward.5} parent=11 // pred_check_branch
        %120 = sbr.rel (%p118) target = $region16
      $region15: #{vae_audio_forward.5} parent=11 // pred_region
        _
      $region16: #{vae_audio_forward.5} parent=11 // pred_fallthru
        _
      // Predicated region
      $region17: #{vae_audio_forward.5} parent=11 // pred_check
        %p121 = pneg %p77
      $region18: #{vae_audio_forward.5} parent=11 // pred_check_branch
        %123 = sbr.rel (%p121) target = $region20
      $region19: #{vae_audio_forward.5} parent=11 // pred_region
        _
      $region20: #{vae_audio_forward.5} parent=11 // pred_fallthru
        _
    $region12: #{vae_audio_forward.5} parent=5 // pred_fallthru
      _
    %p124 = scmp.lt.s32.totalorder %s9, 2
    // Predicated region
    $region21: #{vae_audio_forward.5} parent=5 // pred_check
      %p125 = pneg %p124
    $region22: #{vae_audio_forward.5} parent=5 // pred_check_branch
      %127 = sbr.rel (%p125) target = $region24
    $region23: #{vae_audio_forward.5} parent=5 // pred_region
      // Predicated region
      $region25: #{vae_audio_forward.5} parent=23 // pred_check
        %p128 = pneg %p29
      $region26: #{vae_audio_forward.5} parent=23 // pred_check_branch
        %130 = sbr.rel (%p128) target = $region28
      $region27: #{vae_audio_forward.5} parent=23 // pred_region
        %p131 = scmp.lt.s32.totalorder %s9, 1
        %s132 = scalar_select %p131, %s9, 1
        %s133 = smul.addr %s132, 6
        %s134 = smul.addr %s133, 8
        %s135 = scalar_lea.vmem %s0, %s134
      $region28: #{vae_audio_forward.5} parent=23 // pred_fallthru
        _
    $region24: #{vae_audio_forward.5} parent=5 // pred_fallthru
      _
    %p136 = scmp.le.s32.totalorder 1, %s9
    %p137 = scmp.lt.s32.totalorder %s9, 3
    %p138 = pnand %p136, %p137
    %p139 = pneg %p138
    // Predicated region
    $region29: #{vae_audio_forward.5} parent=5 // pred_check
      _
    $region30: #{vae_audio_forward.5} parent=5 // pred_check_branch
      %141 = sbr.rel (%p138) target = $region32
    $region31: #{vae_audio_forward.5} parent=5 // pred_region
      %s142 = ssub.s32 %s9, 1
      %p143 = scmp.lt.s32.totalorder %s14, 1
      %s144 = scalar_select %p143, %s14, 1
      %s145 = smul.addr %s144, 6
      %s146 = smul.addr %s145, 8
      %s147 = scalar_lea.vmem %s0, %s146
      %p148 = pneg %p35
      %p149 = pneg %p32
      %p150 = pneg %p56
      %p151 = pneg %p53
      %p152 = pneg %p77
      %p153 = pneg %p74
      %p154 = pneg %p103
      %p155 = pneg %p100
      %p156 = scmp.lt.s32.totalorder %s14, 1
      %s157 = scalar_select %p156, %s14, 1
      %s158 = smul.addr %s157, 12
      %s159 = smul.addr %s158, 4
      %s160 = scalar_lea.vmem %s3, %s159
      %p161 = scmp.lt.s32.totalorder %s14, 1
      %s162 = scalar_select %p161, %s14, 1
      %s163 = smul.addr %s162, 6
      %s164 = smul.addr %s163, 8
      %s165 = scalar_lea.vmem %s0, %s164
      %p166 = scmp.lt.s32.totalorder %s14, 1
      %s167 = scalar_select %p166, %s14, 1
      %s168 = smul.addr %s167, 12
      %s169 = smul.addr %s168, 4
      %s170 = scalar_lea.vmem %s3, %s169
      %v171 = vld [vmem:[%s165] sm:$0xff]
      %v172 = vld [vmem:[%s165 + $0x8] sm:$0xff]
      %v173 = vld [vmem:[%s165 + $0x10] sm:$0xff]
      %v174 = vld [vmem:[%s165 + $0x18] sm:$0xff]
      %v175 = vld [vmem:[%s165 + $0x20] sm:$0xff]
      %v176 = vld [vmem:[%s165 + $0x28] sm:$0xff]
      %v177 = vld [vmem:[%s1] sm:$0xff]
      %v178 = vld [vmem:[%s1 + $0x8] sm:$0xff]
      %v179 = vld [vmem:[%s1 + $0x10] sm:$0xff]
      %v180 = vld [vmem:[%s1 + $0x18] sm:$0xff]
      %v181 = vld [vmem:[%s2] sm:$0xff]
      %v182 = vld [vmem:[%s2 + $0x8] sm:$0xff]
      %v183 = vld [vmem:[%s2 + $0x10] sm:$0xff]
      %v184 = vld [vmem:[%s2 + $0x18] sm:$0xff]
      %186 = vset.pattern.permute.xlu0 0
      %187 = vperm.xlu0 %186, %v181
      %v188 = vpop.permute.xlu0 %187
      %191 = vset.pattern.permute.xlu0 0
      %192 = vperm.xlu0 %191, %v182
      %v193 = vpop.permute.xlu0 %192
      %196 = vset.pattern.permute.xlu0 0
      %197 = vperm.xlu0 %196, %v183
      %v198 = vpop.permute.xlu0 %197
      %201 = vset.pattern.permute.xlu0 0
      %202 = vperm.xlu0 %201, %v184
      %v203 = vpop.permute.xlu0 %202
      %vm205 = vcmask 130048
      %v207 = vsel %vm205, %v177, 0
      %v210 = vsel %vm205, %v178, 0
      %v213 = vsel %vm205, %v179, 0
      %v216 = vsel %vm205, %v180, 0
      %218 = vmatprep.subr.mxu0 0.0
      %219 = vmatpush1.msra.mxu0 0.0
      %220 = vmatprep.subr.mxu0 0.0
      %221 = vmatpush1.msra.mxu0 0.0
      %222 = vmatprep.subr.mxu0 0.0
      %223 = vmatpush1.msra.mxu0 0.0
      %224 = vmatprep.subr.mxu0 0.0
      %225 = vmatpush1.msra.mxu0 0.0
      %226 = vmatprep.subr.mxu0 0.0
      %227 = vmatpush1.msra.mxu0 0.0
      %228 = vmatprep.subr.mxu0 0.0
      %229 = vmatpush1.msra.mxu0 0.0
      %230 = vmatprep.subr.mxu0 0.0
      %231 = vmatpush1.msra.mxu0 0.0
      %232 = vmatprep.subr.mxu0 0.0
      %233 = vmatpush1.msra.mxu0 0.0
      %234 = vmatprep.subr.mxu0 0.0
      %235 = vmatpush1.msra.mxu0 0.0
      %236 = vmatprep.subr.mxu0 0.0
      %237 = vmatpush1.msra.mxu0 0.0
      %238 = vmatprep.subr.mxu0 0.0
      %239 = vmatpush1.msra.mxu0 0.0
      %240 = vmatprep.subr.mxu0 0.0
      %241 = vmatpush1.msra.mxu0 0.0
      %242 = vmatprep.subr.mxu0 0.0
      %243 = vmatpush1.msra.mxu0 0.0
      %244 = vmatprep.subr.mxu0 0.0
      %245 = vmatpush1.msra.mxu0 0.0
      %246 = vmatprep.subr.mxu0 %v175
      %247 = vmatpush1.msra.mxu0 %v174
      %248 = vmatprep.subr.mxu0 %v172
      %249 = vmatpush1.msra.mxu0 %v171
      %250 = vmatprep.subr.mxu0 0.0
      %251 = vmatpush2.msra.mxu0 0.0
      %252 = vmatprep.subr.mxu0 0.0
      %253 = vmatpush2.msra.mxu0 0.0
      %254 = vmatprep.subr.mxu0 0.0
      %255 = vmatpush2.msra.mxu0 0.0
      %256 = vmatprep.subr.mxu0 0.0
      %257 = vmatpush2.msra.mxu0 0.0
      %258 = vmatprep.subr.mxu0 0.0
      %259 = vmatpush2.msra.mxu0 0.0
      %260 = vmatprep.subr.mxu0 0.0
      %261 = vmatpush2.msra.mxu0 0.0
      %262 = vmatprep.subr.mxu0 0.0
      %263 = vmatpush2.msra.mxu0 0.0
      %264 = vmatprep.subr.mxu0 0.0
      %265 = vmatpush2.msra.mxu0 0.0
      %266 = vmatprep.subr.mxu0 0.0
      %267 = vmatpush2.msra.mxu0 0.0
      %268 = vmatprep.subr.mxu0 0.0
      %269 = vmatpush2.msra.mxu0 0.0
      %270 = vmatprep.subr.mxu0 0.0
      %271 = vmatpush2.msra.mxu0 0.0
      %272 = vmatprep.subr.mxu0 0.0
      %273 = vmatpush2.msra.mxu0 0.0
      %274 = vmatprep.subr.mxu0 0.0
      %275 = vmatpush2.msra.mxu0 0.0
      %276 = vmatprep.subr.mxu0 0.0
      %277 = vmatpush2.msra.mxu0 0.0
      %278 = vmatprep.subr.mxu0 0.0
      %279 = vmatpush2.msra.mxu0 0.0
      %280 = vmatprep.subr.mxu0 0.0
      %281 = vmatpush2.msra.mxu0 0.0
      %282 = vmatprep.mubr.f32.mxu0 0.0
      %283 = vmatmul.mubr.f32.gmra.mxu0 %v207
      %v284 = vpop.f32.mrf.mxu0
      %v285 = vadd.f32 %v188, %v284
      %v286 = vpop.f32.mrf.mxu0
      %v287 = vadd.f32 %v188, %v286
      %288 = vmatprep.mubr.f32.mxu0 0.0
      %289 = vmatmul.mubr.f32.gmra.mxu0 %v210
      %v290 = vpop.f32.mrf.mxu0
      %v291 = vadd.f32 %v193, %v290
      %v292 = vpop.f32.mrf.mxu0
      %v293 = vadd.f32 %v193, %v292
      %294 = vmatprep.mubr.f32.mxu0 0.0
      %295 = vmatmul.mubr.f32.gmra.mxu0 %v213
      %v296 = vpop.f32.mrf.mxu0
      %v297 = vadd.f32 %v198, %v296
      %v298 = vpop.f32.mrf.mxu0
      %v299 = vadd.f32 %v198, %v298
      %300 = vmatprep.mubr.f32.mxu0 0.0
      %301 = vmatmul.mubr.f32.gmra.mxu0 %v216
      %v302 = vpop.f32.mrf.mxu0
      %v303 = vadd.f32 %v203, %v302
      %v304 = vpop.f32.mrf.mxu0
      %v305 = vadd.f32 %v203, %v304
      %306 = vdwg.mxu0
      %307 = vmatprep.subr.mxu0 0.0
      %308 = vmatpush1.msra.mxu0 0.0
      %309 = vmatprep.subr.mxu0 0.0
      %310 = vmatpush1.msra.mxu0 0.0
      %311 = vmatprep.subr.mxu0 0.0
      %312 = vmatpush1.msra.mxu0 0.0
      %313 = vmatprep.subr.mxu0 0.0
      %314 = vmatpush1.msra.mxu0 0.0
      %315 = vmatprep.subr.mxu0 0.0
      %316 = vmatpush1.msra.mxu0 0.0
      %317 = vmatprep.subr.mxu0 0.0
      %318 = vmatpush1.msra.mxu0 0.0
      %319 = vmatprep.subr.mxu0 0.0
      %320 = vmatpush1.msra.mxu0 0.0
      %321 = vmatprep.subr.mxu0 0.0
      %322 = vmatpush1.msra.mxu0 0.0
      %323 = vmatprep.subr.mxu0 0.0
      %324 = vmatpush1.msra.mxu0 0.0
      %325 = vmatprep.subr.mxu0 0.0
      %326 = vmatpush1.msra.mxu0 0.0
      %327 = vmatprep.subr.mxu0 0.0
      %328 = vmatpush1.msra.mxu0 0.0
      %329 = vmatprep.subr.mxu0 0.0
      %330 = vmatpush1.msra.mxu0 0.0
      %331 = vmatprep.subr.mxu0 0.0
      %332 = vmatpush1.msra.mxu0 0.0
      %333 = vmatprep.subr.mxu0 0.0
      %334 = vmatpush1.msra.mxu0 0.0
      %335 = vmatprep.subr.mxu0 0.0
      %336 = vmatpush1.msra.mxu0 %v176
      %337 = vmatprep.subr.mxu0 0.0
      %338 = vmatpush1.msra.mxu0 %v173
      %339 = vmatprep.subr.mxu0 0.0
      %340 = vmatpush2.msra.mxu0 0.0
      %341 = vmatprep.subr.mxu0 0.0
      %342 = vmatpush2.msra.mxu0 0.0
      %343 = vmatprep.subr.mxu0 0.0
      %344 = vmatpush2.msra.mxu0 0.0
      %345 = vmatprep.subr.mxu0 0.0
      %346 = vmatpush2.msra.mxu0 0.0
      %347 = vmatprep.subr.mxu0 0.0
      %348 = vmatpush2.msra.mxu0 0.0
      %349 = vmatprep.subr.mxu0 0.0
      %350 = vmatpush2.msra.mxu0 0.0
      %351 = vmatprep.subr.mxu0 0.0
      %352 = vmatpush2.msra.mxu0 0.0
      %353 = vmatprep.subr.mxu0 0.0
      %354 = vmatpush2.msra.mxu0 0.0
      %355 = vmatprep.subr.mxu0 0.0
      %356 = vmatpush2.msra.mxu0 0.0
      %357 = vmatprep.subr.mxu0 0.0
      %358 = vmatpush2.msra.mxu0 0.0
      %359 = vmatprep.subr.mxu0 0.0
      %360 = vmatpush2.msra.mxu0 0.0
      %361 = vmatprep.subr.mxu0 0.0
      %362 = vmatpush2.msra.mxu0 0.0
      %363 = vmatprep.subr.mxu0 0.0
      %364 = vmatpush2.msra.mxu0 0.0
      %365 = vmatprep.subr.mxu0 0.0
      %366 = vmatpush2.msra.mxu0 0.0
      %367 = vmatprep.subr.mxu0 0.0
      %368 = vmatpush2.msra.mxu0 0.0
      %369 = vmatprep.subr.mxu0 0.0
      %370 = vmatpush2.msra.mxu0 0.0
      %371 = vmatprep.mubr.f32.mxu0 0.0
      %372 = vmatmul.mubr.f32.gmra.mxu0 %v207
      %v373 = vpop.f32.mrf.mxu0
      %v374 = vadd.f32 %v188, %v373
      %v375 = vpop.f32.mrf.mxu0
      %376 = vmatprep.mubr.f32.mxu0 0.0
      %377 = vmatmul.mubr.f32.gmra.mxu0 %v210
      %v378 = vpop.f32.mrf.mxu0
      %v379 = vadd.f32 %v193, %v378
      %v380 = vpop.f32.mrf.mxu0
      %381 = vmatprep.mubr.f32.mxu0 0.0
      %382 = vmatmul.mubr.f32.gmra.mxu0 %v213
      %v383 = vpop.f32.mrf.mxu0
      %v384 = vadd.f32 %v198, %v383
      %v385 = vpop.f32.mrf.mxu0
      %386 = vmatprep.mubr.f32.mxu0 0.0
      %387 = vmatmul.mubr.f32.gmra.mxu0 %v216
      %v388 = vpop.f32.mrf.mxu0
      %v389 = vadd.f32 %v203, %v388
      %v390 = vpop.f32.mrf.mxu0
      %391 = vdwg.mxu0
      %v392 = vmax.f32 %v285, 0.0
      %v393 = vmax.f32 %v287, 0.0
      %v394 = vmax.f32 %v374, 0.0
      %v395 = vmax.f32 %v291, 0.0
      %v396 = vmax.f32 %v293, 0.0
      %v397 = vmax.f32 %v379, 0.0
      %v398 = vmax.f32 %v297, 0.0
      %v399 = vmax.f32 %v299, 0.0
      %v400 = vmax.f32 %v384, 0.0
      %v401 = vmax.f32 %v303, 0.0
      %v402 = vmax.f32 %v305, 0.0
      %v403 = vmax.f32 %v389, 0.0
      %v404 = vpack.c.bf16 %v395, %v392
      %v405 = vpack.c.bf16 %v396, %v393
      %v406 = vpack.c.bf16 %v397, %v394
      %v407 = vpack.c.bf16 %v401, %v398
      %v408 = vpack.c.bf16 %v402, %v399
      %v409 = vpack.c.bf16 %v403, %v400
      %v416 = vunpack.c.l.b16 %v404
      %v417 = vunpack.c.l.b16 %v405
      %v418 = vunpack.c.l.b16 %v406
      %v419 = vunpack.c.h.b16 %v404
      %v420 = vunpack.c.h.b16 %v405
      %v421 = vunpack.c.h.b16 %v406
      %v422 = vunpack.c.l.b16 %v407
      %v423 = vunpack.c.l.b16 %v408
      %v424 = vunpack.c.l.b16 %v409
      %v425 = vunpack.c.h.b16 %v407
      %v426 = vunpack.c.h.b16 %v408
      %v427 = vunpack.c.h.b16 %v409
      %v428 = vpack.c.b16 %v417, %v416
      %v429 = vpack.c.b16 %v418, %v418
      %v430 = vpack.c.b16 %v420, %v419
      %v431 = vpack.c.b16 %v421, %v421
      %v432 = vpack.c.b16 %v423, %v422
      %v433 = vpack.c.b16 %v424, %v424
      %v434 = vpack.c.b16 %v426, %v425
      %v435 = vpack.c.b16 %v427, %v427
      %444 = vst [vmem:[%s170] sm:$0xff] %v428
      %vm445 = vcmask 519168
      %446 = vst.msk [vmem:[%s170 + $0x8] sm:$0xf] %vm445, %v429
      %447 = vst [vmem:[%s170 + $0xc] sm:$0xff] %v430
      %448 = vst.msk [vmem:[%s170 + $0x14] sm:$0xf] %vm445, %v431
      %449 = vst [vmem:[%s170 + $0x18] sm:$0xff] %v432
      %450 = vst.msk [vmem:[%s170 + $0x20] sm:$0xf] %vm445, %v433
      %451 = vst [vmem:[%s170 + $0x24] sm:$0xff] %v434
      %452 = vst.msk [vmem:[%s170 + $0x2c] sm:$0xf] %vm445, %v435
      %p453 = scmp.lt.s32.totalorder %s14, 1
      %s454 = scalar_select %p453, %s14, 1
      %s455 = smul.addr %s454, 12
      %s456 = smul.addr %s455, 4
      %s457 = scalar_lea.vmem %s3, %s456
      // Predicated region
      $region33: #{vae_audio_forward.5} parent=31 // pred_check
        %p458 = pneg %p100
      $region34: #{vae_audio_forward.5} parent=31 // pred_check_branch
        %460 = sbr.rel (%p458) target = $region36
      $region35: #{vae_audio_forward.5} parent=31 // pred_region
        _
      $region36: #{vae_audio_forward.5} parent=31 // pred_fallthru
        _
    $region32: #{vae_audio_forward.5} parent=5 // pred_fallthru
      _
    %p461 = scmp.le.s32.totalorder 2, %s9
    // Predicated region
    $region37: #{vae_audio_forward.5} parent=5 // pred_check
      %p462 = pneg %p461
    $region38: #{vae_audio_forward.5} parent=5 // pred_check_branch
      %464 = sbr.rel (%p462) target = $region40
    $region39: #{vae_audio_forward.5} parent=5 // pred_region
      %s465 = ssub.s32 %s9, 2
      // Predicated region
      $region41: #{vae_audio_forward.5} parent=39 // pred_check
        %p466 = pneg %p106
      $region42: #{vae_audio_forward.5} parent=39 // pred_check_branch
        %468 = sbr.rel (%p466) target = $region44
      $region43: #{vae_audio_forward.5} parent=39 // pred_region
        %p469 = scmp.lt.s32.totalorder %s15, 1
        %s470 = scalar_select %p469, %s15, 1
        %s471 = smul.addr %s470, 12
        %s472 = smul.addr %s471, 4
        %s473 = scalar_lea.vmem %s3, %s472
      $region44: #{vae_audio_forward.5} parent=39 // pred_fallthru
        _
    $region40: #{vae_audio_forward.5} parent=5 // pred_fallthru
      _
  $region6: #{vae_audio_forward.5} parent=0 // loop_footer
    %s13 = sadd.s32 1, %s9
  $region7: #{vae_audio_forward.5} parent=0 // loop_footer_branch
    %8 = sbr.rel target = $region3
  $region8: #{vae_audio_forward.5} parent=0 // loop_exit
    _

// kernel: vae_audio_forward.7
$region0: #{vae_audio_forward.7}
  #allocation0 [shape = 'u32[]', space=smem, size = 0x4, offset = 0x4, fixed_abs, tag = 'smem constant byte address 0x4 - core index']
  #allocation1 [shape = 'u32[144,128]{1,0:T(1,128)}', space=vmem, size = 0x12000, scoped, tag = 'internal scratch']
  %s0 = inlined_call_operand.vmem [shape: f32[2,24], index: 0, kind: input, shape index: {}]
  %s1 = inlined_call_operand.vmem [shape: f32[24,256], index: 1, kind: input, shape index: {}]
  %s2 = inlined_call_operand.vmem [shape: f32[1,256], index: 2, kind: input, shape index: {}]
  %s3 = inlined_call_operand.vmem [shape: bf16[256,10240], index: 3, kind: input, shape index: {}]
  %s4 = inlined_call_operand.vmem [shape: f32[1,10240], index: 4, kind: input, shape index: {}]
  %s5 = inlined_call_operand.vmem [shape: bf16[2,10240], index: 5, kind: output, shape index: {}]
  %s6 = sld [smem:[#allocation0]]
  $region76: #{vae_audio_forward.7} parent=0
    _
  %s8 = ssub.s32 1, %s6
  %s9 = scalar_select 0, %s8, %s6
  $region1: #{vae_audio_forward.7} parent=0
    #allocation2 [shape = 'u8[1048576]{0}', space=vmem, size = 0x100000, scoped, tag = 'input window, operand 3']
    loop: start=0, step=1, limit=12
    $region2: #{vae_audio_forward.7} parent=1 // loop_pre_header
      _
    $region3: #{vae_audio_forward.7} parent=1 // loop_header
      %s11 = sphi 0, %s15
      %p12 = scmp.ge.s32.totalorder %s11, 12
      %s19 = sphi 0, %s19
      %s21 = sphi 0, %s19
      %s22 = sphi 0, %s21
      %s36 = sphi 0, %s22
      %s40 = sphi 0, %s40
      %s42 = sphi 0, %s40
      %s43 = sphi 0, %s42
      %s57 = sphi 0, %s43
      %s61 = sphi 0, %s61
      %s63 = sphi 0, %s61
      %s64 = sphi 0, %s63
      %s78 = sphi 0, %s64
      %s84 = sphi 0, %s86
      %s87 = sphi 0, %s84
      %s88 = sphi 0, %s87
      %s104 = sphi 0, %s88
      %s110 = sphi 0, %s112
      %s113 = sphi 0, %s110
      %s114 = sphi 0, %s113
      %s130 = sphi 0, %s114
      %s136 = sphi 0, %s138
      %s139 = sphi 0, %s136
      %s140 = sphi 0, %s139
      %s156 = sphi 0, %s140
    $region4: #{vae_audio_forward.7} parent=1 // loop_header_branch
      %14 = sbr.rel (%p12) target = $region8
    $region5: #{vae_audio_forward.7} parent=1 // loop_body
      %s16 = ssub.s32 %s11, 1
      %s17 = ssub.s32 %s11, 2
      %s18 = sadd.s32 %s11, 1
      %s20 = sadd.s32 %s19, 1
      %p23 = scmp.eq.s32.totalorder %s11, 9
      %p24 = scmp.ne.s32.totalorder %s19, %s21
      %p25 = scmp.eq.s32.totalorder %s11, 0
      %p26 = por %p24, %p25
      %p27 = scmp.ne.s32.totalorder %s19, %s21
      %p28 = scmp.eq.s32.totalorder %s16, 9
      %p29 = por %p27, %p28
      %p30 = scmp.ne.s32.totalorder %s21, %s22
      %p31 = scmp.eq.s32.totalorder %s16, 0
      %p32 = por %p30, %p31
      %p33 = scmp.ne.s32.totalorder %s21, %s22
      %p34 = scmp.eq.s32.totalorder %s17, 9
      %p35 = por %p33, %p34
      %p37 = scmp.ne.s32.totalorder %s22, %s36
      %p38 = scmp.eq.s32.totalorder %s17, 0
      %p39 = por %p37, %p38
      %s41 = sadd.s32 %s40, 1
      %p44 = scmp.eq.s32.totalorder %s11, 9
      %p45 = scmp.ne.s32.totalorder %s40, %s42
      %p46 = scmp.eq.s32.totalorder %s11, 0
      %p47 = por %p45, %p46
      %p48 = scmp.ne.s32.totalorder %s40, %s42
      %p49 = scmp.eq.s32.totalorder %s16, 9
      %p50 = por %p48, %p49
      %p51 = scmp.ne.s32.totalorder %s42, %s43
      %p52 = scmp.eq.s32.totalorder %s16, 0
      %p53 = por %p51, %p52
      %p54 = scmp.ne.s32.totalorder %s42, %s43
      %p55 = scmp.eq.s32.totalorder %s17, 9
      %p56 = por %p54, %p55
      %p58 = scmp.ne.s32.totalorder %s43, %s57
      %p59 = scmp.eq.s32.totalorder %s17, 0
      %p60 = por %p58, %p59
      %s62 = sadd.s32 %s61, 1
      %p65 = scmp.eq.s32.totalorder %s11, 9
      %p66 = scmp.ne.s32.totalorder %s61, %s63
      %p67 = scmp.eq.s32.totalorder %s11, 0
      %p68 = por %p66, %p67
      %p69 = scmp.ne.s32.totalorder %s61, %s63
      %p70 = scmp.eq.s32.totalorder %s16, 9
      %p71 = por %p69, %p70
      %p72 = scmp.ne.s32.totalorder %s63, %s64
      %p73 = scmp.eq.s32.totalorder %s16, 0
      %p74 = por %p72, %p73
      %p75 = scmp.ne.s32.totalorder %s63, %s64
      %p76 = scmp.eq.s32.totalorder %s17, 9
      %p77 = por %p75, %p76
      %p79 = scmp.ne.s32.totalorder %s64, %s78
      %p80 = scmp.eq.s32.totalorder %s17, 0
      %p81 = por %p79, %p80
      %s82 = ssub.s32 %s11, %s18
      %p83 = scmp.eq.s32.totalorder %s82, 0
      %s85 = sadd.s32 %s84, 1
      %s86 = scalar_select %p83, %s84, %s85
      %p89 = pneg %p83
      %p90 = scmp.eq.s32.totalorder %s11, 9
      %p91 = por %p89, %p90
      %p92 = scmp.ne.s32.totalorder %s84, %s87
      %p93 = scmp.eq.s32.totalorder %s11, 0
      %p94 = por %p92, %p93
      %p95 = scmp.ne.s32.totalorder %s84, %s87
      %p96 = scmp.eq.s32.totalorder %s16, 9
      %p97 = por %p95, %p96
      %p98 = scmp.ne.s32.totalorder %s87, %s88
      %p99 = scmp.eq.s32.totalorder %s16, 0
      %p100 = por %p98, %p99
      %p101 = scmp.ne.s32.totalorder %s87, %s88
      %p102 = scmp.eq.s32.totalorder %s17, 9
      %p103 = por %p101, %p102
      %p105 = scmp.ne.s32.totalorder %s88, %s104
      %p106 = scmp.eq.s32.totalorder %s17, 0
      %p107 = por %p105, %p106
      %s108 = ssub.s32 %s11, %s18
      %p109 = scmp.eq.s32.totalorder %s108, 0
      %s111 = sadd.s32 %s110, 1
      %s112 = scalar_select %p109, %s110, %s111
      %p115 = pneg %p109
      %p116 = scmp.eq.s32.totalorder %s11, 9
      %p117 = por %p115, %p116
      %p118 = scmp.ne.s32.totalorder %s110, %s113
      %p119 = scmp.eq.s32.totalorder %s11, 0
      %p120 = por %p118, %p119
      %p121 = scmp.ne.s32.totalorder %s110, %s113
      %p122 = scmp.eq.s32.totalorder %s16, 9
      %p123 = por %p121, %p122
      %p124 = scmp.ne.s32.totalorder %s113, %s114
      %p125 = scmp.eq.s32.totalorder %s16, 0
      %p126 = por %p124, %p125
      %p127 = scmp.ne.s32.totalorder %s113, %s114
      %p128 = scmp.eq.s32.totalorder %s17, 9
      %p129 = por %p127, %p128
      %p131 = scmp.ne.s32.totalorder %s114, %s130
      %p132 = scmp.eq.s32.totalorder %s17, 0
      %p133 = por %p131, %p132
      %s134 = ssub.s32 %s11, %s18
      %p135 = scmp.eq.s32.totalorder %s134, 0
      %s137 = sadd.s32 %s136, 1
      %s138 = scalar_select %p135, %s136, %s137
      %p141 = pneg %p135
      %p142 = scmp.eq.s32.totalorder %s11, 9
      %p143 = por %p141, %p142
      %p144 = scmp.ne.s32.totalorder %s136, %s139
      %p145 = scmp.eq.s32.totalorder %s11, 0
      %p146 = por %p144, %p145
      %p147 = scmp.ne.s32.totalorder %s136, %s139
      %p148 = scmp.eq.s32.totalorder %s16, 9
      %p149 = por %p147, %p148
      %p150 = scmp.ne.s32.totalorder %s139, %s140
      %p151 = scmp.eq.s32.totalorder %s16, 0
      %p152 = por %p150, %p151
      %p153 = scmp.ne.s32.totalorder %s139, %s140
      %p154 = scmp.eq.s32.totalorder %s17, 9
      %p155 = por %p153, %p154
      %p157 = scmp.ne.s32.totalorder %s140, %s156
      %p158 = scmp.eq.s32.totalorder %s17, 0
      %p159 = por %p157, %p158
      %p160 = scmp.le.s32.totalorder 1, %s11
      %p161 = scmp.lt.s32.totalorder %s11, 11
      %p162 = pnand %p160, %p161
      %p163 = pneg %p162
      // Predicated region
      $region9: #{vae_audio_forward.7} parent=5 // pred_check
        _
      $region10: #{vae_audio_forward.7} parent=5 // pred_check_branch
        %165 = sbr.rel (%p162) target = $region12
      $region11: #{vae_audio_forward.7} parent=5 // pred_region
        %s166 = ssub.s32 %s11, 1
        // Predicated region
        $region13: #{vae_audio_forward.7} parent=11 // pred_check
          %p167 = pneg %p32
        $region14: #{vae_audio_forward.7} parent=11 // pred_check_branch
          %169 = sbr.rel (%p167) target = $region16
        $region15: #{vae_audio_forward.7} parent=11 // pred_region
          _
        $region16: #{vae_audio_forward.7} parent=11 // pred_fallthru
          _
        // Predicated region
        $region17: #{vae_audio_forward.7} parent=11 // pred_check
          %p170 = pneg %p53
        $region18: #{vae_audio_forward.7} parent=11 // pred_check_branch
          %172 = sbr.rel (%p170) target = $region20
        $region19: #{vae_audio_forward.7} parent=11 // pred_region
          _
        $region20: #{vae_audio_forward.7} parent=11 // pred_fallthru
          _
        // Predicated region
        $region21: #{vae_audio_forward.7} parent=11 // pred_check
          %p173 = pneg %p74
        $region22: #{vae_audio_forward.7} parent=11 // pred_check_branch
          %175 = sbr.rel (%p173) target = $region24
        $region23: #{vae_audio_forward.7} parent=11 // pred_region
          _
        $region24: #{vae_audio_forward.7} parent=11 // pred_fallthru
          _
      $region12: #{vae_audio_forward.7} parent=5 // pred_fallthru
        _
      %p176 = scmp.lt.s32.totalorder %s11, 10
      // Predicated region
      $region25: #{vae_audio_forward.7} parent=5 // pred_check
        %p177 = pneg %p176
      $region26: #{vae_audio_forward.7} parent=5 // pred_check_branch
        %179 = sbr.rel (%p177) target = $region28
      $region27: #{vae_audio_forward.7} parent=5 // pred_region
        // Predicated region
        $region29: #{vae_audio_forward.7} parent=27 // pred_check
          %p180 = pneg %p94
        $region30: #{vae_audio_forward.7} parent=27 // pred_check_branch
          %182 = sbr.rel (%p180) target = $region32
        $region31: #{vae_audio_forward.7} parent=27 // pred_region
          %s183 = sand.u32 %s84, 1
          %s184 = sand.u32 %s84, 1
          %s185 = smul.addr %s184, 1024
          %s186 = scalar_lea.vmem [#allocation2], %s185
          %s187 = smul.u32 8, %s11
          %s188 = smul.addr %s187, 4
          %s189 = scalar_lea.vmem %s3, %s188
          // Predicated region
          $region33: #{vae_audio_forward.7} parent=31 // pred_check
            _
          $region34: #{vae_audio_forward.7} parent=31 // pred_check_branch
            %191 = sbr.rel (0) target = $region36
          $region35: #{vae_audio_forward.7} parent=31 // pred_region
            // Predicated region
            $region37: #{vae_audio_forward.7} parent=35 // pred_check
              _
            $region38: #{vae_audio_forward.7} parent=35 // pred_check_branch
              %193 = sbr.rel (0) target = $region40
            $region39: #{vae_audio_forward.7} parent=35 // pred_region
              loop: start=0, step=1, limit=1
              $region41: #{vae_audio_forward.7} parent=39 // loop_pre_header
                _
              $region42: #{vae_audio_forward.7} parent=39 // loop_header
                %s195 = sphi 0, %s199
                %p196 = scmp.ge.s32.totalorder %s195, 1
                %s200 = sphi %s189, %s189
                %s201 = sphi %s186, %s186
              $region43: #{vae_audio_forward.7} parent=39 // loop_header_branch
                %198 = sbr.rel (%p196) target = $region47
              $region44: #{vae_audio_forward.7} parent=39 // loop_body
                %v202 = vld [vmem:[%s200] sm:$0xff]
                %203 = vst [vmem:[%s201] sm:$0xff] %v202
                %v204 = vld [vmem:[%s200 + $0x8] sm:$0xff]
                %205 = vst [vmem:[%s201 + $0x8] sm:$0xff] %v204
                %v206 = vld [vmem:[%s200 + $0x10] sm:$0xff]
                %207 = vst [vmem:[%s201 + $0x10] sm:$0xff] %v206
                %v208 = vld [vmem:[%s200 + $0x18] sm:$0xff]
                %209 = vst [vmem:[%s201 + $0x18] sm:$0xff] %v208
                %v210 = vld [vmem:[%s200 + $0x140] sm:$0xff]
                %211 = vst [vmem:[%s201 + $0x20] sm:$0xff] %v210
                %v212 = vld [vmem:[%s200 + $0x148] sm:$0xff]
                %213 = vst [vmem:[%s201 + $0x28] sm:$0xff] %v212
                %v214 = vld [vmem:[%s200 + $0x150] sm:$0xff]
                %215 = vst [vmem:[%s201 + $0x30] sm:$0xff] %v214
                %v216 = vld [vmem:[%s200 + $0x158] sm:$0xff]
                %217 = vst [vmem:[%s201 + $0x38] sm:$0xff] %v216
                %v218 = vld [vmem:[%s200 + $0x280] sm:$0xff]
                %219 = vst [vmem:[%s201 + $0x40] sm:$0xff] %v218
                %v220 = vld [vmem:[%s200 + $0x288] sm:$0xff]
                %221 = vst [vmem:[%s201 + $0x48] sm:$0xff] %v220
                %v222 = vld [vmem:[%s200 + $0x290] sm:$0xff]
                %223 = vst [vmem:[%s201 + $0x50] sm:$0xff] %v222
                %v224 = vld [vmem:[%s200 + $0x298] sm:$0xff]
                %225 = vst [vmem:[%s201 + $0x58] sm:$0xff] %v224
                %v226 = vld [vmem:[%s200 + $0x3c0] sm:$0xff]
                %227 = vst [vmem:[%s201 + $0x60] sm:$0xff] %v226
                %v228 = vld [vmem:[%s200 + $0x3c8] sm:$0xff]
                %229 = vst [vmem:[%s201 + $0x68] sm:$0xff] %v228
                %v230 = vld [vmem:[%s200 + $0x3d0] sm:$0xff]
                %231 = vst [vmem:[%s201 + $0x70] sm:$0xff] %v230
                %v232 = vld [vmem:[%s200 + $0x3d8] sm:$0xff]
                %233 = vst [vmem:[%s201 + $0x78] sm:$0xff] %v232
                %v234 = vld [vmem:[%s200 + $0x500] sm:$0xff]
                %235 = vst [vmem:[%s201 + $0x80] sm:$0xff] %v234
                %v236 = vld [vmem:[%s200 + $0x508] sm:$0xff]
                %237 = vst [vmem:[%s201 + $0x88] sm:$0xff] %v236
                %v238 = vld [vmem:[%s200 + $0x510] sm:$0xff]
                %239 = vst [vmem:[%s201 + $0x90] sm:$0xff] %v238
                %v240 = vld [vmem:[%s200 + $0x518] sm:$0xff]
                %241 = vst [vmem:[%s201 + $0x98] sm:$0xff] %v240
                %v242 = vld [vmem:[%s200 + $0x640] sm:$0xff]
                %243 = vst [vmem:[%s201 + $0xa0] sm:$0xff] %v242
                %v244 = vld [vmem:[%s200 + $0x648] sm:$0xff]
                %245 = vst [vmem:[%s201 + $0xa8] sm:$0xff] %v244
                %v246 = vld [vmem:[%s200 + $0x650] sm:$0xff]
                %247 = vst [vmem:[%s201 + $0xb0] sm:$0xff] %v246
                %v248 = vld [vmem:[%s200 + $0x658] sm:$0xff]
                %249 = vst [vmem:[%s201 + $0xb8] sm:$0xff] %v248
                %v250 = vld [vmem:[%s200 + $0x780] sm:$0xff]
                %251 = vst [vmem:[%s201 + $0xc0] sm:$0xff] %v250
                %v252 = vld [vmem:[%s200 + $0x788] sm:$0xff]
                %253 = vst [vmem:[%s201 + $0xc8] sm:$0xff] %v252
                %v254 = vld [vmem:[%s200 + $0x790] sm:$0xff]
                %255 = vst [vmem:[%s201 + $0xd0] sm:$0xff] %v254
                %v256 = vld [vmem:[%s200 + $0x798] sm:$0xff]
                %257 = vst [vmem:[%s201 + $0xd8] sm:$0xff] %v256
                %v258 = vld [vmem:[%s200 + $0x8c0] sm:$0xff]
                %259 = vst [vmem:[%s201 + $0xe0] sm:$0xff] %v258
                %v260 = vld [vmem:[%s200 + $0x8c8] sm:$0xff]
                %261 = vst [vmem:[%s201 + $0xe8] sm:$0xff] %v260
                %v262 = vld [vmem:[%s200 + $0x8d0] sm:$0xff]
                %263 = vst [vmem:[%s201 + $0xf0] sm:$0xff] %v262
                %v264 = vld [vmem:[%s200 + $0x8d8] sm:$0xff]
                %265 = vst [vmem:[%s201 + $0xf8] sm:$0xff] %v264
                %v266 = vld [vmem:[%s200 + $0xa00] sm:$0xff]
                %267 = vst [vmem:[%s201 + $0x100] sm:$0xff] %v266
                %v268 = vld [vmem:[%s200 + $0xa08] sm:$0xff]
                %269 = vst [vmem:[%s201 + $0x108] sm:$0xff] %v268
                %v270 = vld [vmem:[%s200 + $0xa10] sm:$0xff]
                %271 = vst [vmem:[%s201 + $0x110] sm:$0xff] %v270
                %v272 = vld [vmem:[%s200 + $0xa18] sm:$0xff]
                %273 = vst [vmem:[%s201 + $0x118] sm:$0xff] %v272
                %v274 = vld [vmem:[%s200 + $0xb40] sm:$0xff]
                %275 = vst [vmem:[%s201 + $0x120] sm:$0xff] %v274
                %v276 = vld [vmem:[%s200 + $0xb48] sm:$0xff]
                %277 = vst [vmem:[%s201 + $0x128] sm:$0xff] %v276
                %v278 = vld [vmem:[%s200 + $0xb50] sm:$0xff]
                %279 = vst [vmem:[%s201 + $0x130] sm:$0xff] %v278
                %v280 = vld [vmem:[%s200 + $0xb58] sm:$0xff]
                %281 = vst [vmem:[%s201 + $0x138] sm:$0xff] %v280
                %v282 = vld [vmem:[%s200 + $0xc80] sm:$0xff]
                %283 = vst [vmem:[%s201 + $0x140] sm:$0xff] %v282
                %v284 = vld [vmem:[%s200 + $0xc88] sm:$0xff]
                %285 = vst [vmem:[%s201 + $0x148] sm:$0xff] %v284
                %v286 = vld [vmem:[%s200 + $0xc90] sm:$0xff]
                %287 = vst [vmem:[%s201 + $0x150] sm:$0xff] %v286
                %v288 = vld [vmem:[%s200 + $0xc98] sm:$0xff]
                %289 = vst [vmem:[%s201 + $0x158] sm:$0xff] %v288
                %v290 = vld [vmem:[%s200 + $0xdc0] sm:$0xff]
                %291 = vst [vmem:[%s201 + $0x160] sm:$0xff] %v290
                %v292 = vld [vmem:[%s200 + $0xdc8] sm:$0xff]
                %293 = vst [vmem:[%s201 + $0x168] sm:$0xff] %v292
                %v294 = vld [vmem:[%s200 + $0xdd0] sm:$0xff]
                %295 = vst [vmem:[%s201 + $0x170] sm:$0xff] %v294
                %v296 = vld [vmem:[%s200 + $0xdd8] sm:$0xff]
                %297 = vst [vmem:[%s201 + $0x178] sm:$0xff] %v296
                %v298 = vld [vmem:[%s200 + $0xf00] sm:$0xff]
                %299 = vst [vmem:[%s201 + $0x180] sm:$0xff] %v298
                %v300 = vld [vmem:[%s200 + $0xf08] sm:$0xff]
                %301 = vst [vmem:[%s201 + $0x188] sm:$0xff] %v300
                %v302 = vld [vmem:[%s200 + $0xf10] sm:$0xff]
                %303 = vst [vmem:[%s201 + $0x190] sm:$0xff] %v302
                %v304 = vld [vmem:[%s200 + $0xf18] sm:$0xff]
                %305 = vst [vmem:[%s201 + $0x198] sm:$0xff] %v304
                %v306 = vld [vmem:[%s200 + $0x1040] sm:$0xff]
                %307 = vst [vmem:[%s201 + $0x1a0] sm:$0xff] %v306
                %v308 = vld [vmem:[%s200 + $0x1048] sm:$0xff]
                %309 = vst [vmem:[%s201 + $0x1a8] sm:$0xff] %v308
                %v310 = vld [vmem:[%s200 + $0x1050] sm:$0xff]
                %311 = vst [vmem:[%s201 + $0x1b0] sm:$0xff] %v310
                %v312 = vld [vmem:[%s200 + $0x1058] sm:$0xff]
                %313 = vst [vmem:[%s201 + $0x1b8] sm:$0xff] %v312
                %v314 = vld [vmem:[%s200 + $0x1180] sm:$0xff]
                %315 = vst [vmem:[%s201 + $0x1c0] sm:$0xff] %v314
                %v316 = vld [vmem:[%s200 + $0x1188] sm:$0xff]
                %317 = vst [vmem:[%s201 + $0x1c8] sm:$0xff] %v316
                %v318 = vld [vmem:[%s200 + $0x1190] sm:$0xff]
                %319 = vst [vmem:[%s201 + $0x1d0] sm:$0xff] %v318
                %v320 = vld [vmem:[%s200 + $0x1198] sm:$0xff]
                %321 = vst [vmem:[%s201 + $0x1d8] sm:$0xff] %v320
                %v322 = vld [vmem:[%s200 + $0x12c0] sm:$0xff]
                %323 = vst [vmem:[%s201 + $0x1e0] sm:$0xff] %v322
                %v324 = vld [vmem:[%s200 + $0x12c8] sm:$0xff]
                %325 = vst [vmem:[%s201 + $0x1e8] sm:$0xff] %v324
                %v326 = vld [vmem:[%s200 + $0x12d0] sm:$0xff]
                %327 = vst [vmem:[%s201 + $0x1f0] sm:$0xff] %v326
                %v328 = vld [vmem:[%s200 + $0x12d8] sm:$0xff]
                %329 = vst [vmem:[%s201 + $0x1f8] sm:$0xff] %v328
                %v330 = vld [vmem:[%s200 + $0x1400] sm:$0xff]
                %331 = vst [vmem:[%s201 + $0x200] sm:$0xff] %v330
                %v332 = vld [vmem:[%s200 + $0x1408] sm:$0xff]
                %333 = vst [vmem:[%s201 + $0x208] sm:$0xff] %v332
                %v334 = vld [vmem:[%s200 + $0x1410] sm:$0xff]
                %335 = vst [vmem:[%s201 + $0x210] sm:$0xff] %v334
                %v336 = vld [vmem:[%s200 + $0x1418] sm:$0xff]
                %337 = vst [vmem:[%s201 + $0x218] sm:$0xff] %v336
                %v338 = vld [vmem:[%s200 + $0x1540] sm:$0xff]
                %339 = vst [vmem:[%s201 + $0x220] sm:$0xff] %v338
                %v340 = vld [vmem:[%s200 + $0x1548] sm:$0xff]
                %341 = vst [vmem:[%s201 + $0x228] sm:$0xff] %v340
                %v342 = vld [vmem:[%s200 + $0x1550] sm:$0xff]
                %343 = vst [vmem:[%s201 + $0x230] sm:$0xff] %v342
                %v344 = vld [vmem:[%s200 + $0x1558] sm:$0xff]
                %345 = vst [vmem:[%s201 + $0x238] sm:$0xff] %v344
                %v346 = vld [vmem:[%s200 + $0x1680] sm:$0xff]
                %347 = vst [vmem:[%s201 + $0x240] sm:$0xff] %v346
                %v348 = vld [vmem:[%s200 + $0x1688] sm:$0xff]
                %349 = vst [vmem:[%s201 + $0x248] sm:$0xff] %v348
                %v350 = vld [vmem:[%s200 + $0x1690] sm:$0xff]
                %351 = vst [vmem:[%s201 + $0x250] sm:$0xff] %v350
                %v352 = vld [vmem:[%s200 + $0x1698] sm:$0xff]
                %353 = vst [vmem:[%s201 + $0x258] sm:$0xff] %v352
                %v354 = vld [vmem:[%s200 + $0x17c0] sm:$0xff]
                %355 = vst [vmem:[%s201 + $0x260] sm:$0xff] %v354
                %v356 = vld [vmem:[%s200 + $0x17c8] sm:$0xff]
                %357 = vst [vmem:[%s201 + $0x268] sm:$0xff] %v356
                %v358 = vld [vmem:[%s200 + $0x17d0] sm:$0xff]
                %359 = vst [vmem:[%s201 + $0x270] sm:$0xff] %v358
                %v360 = vld [vmem:[%s200 + $0x17d8] sm:$0xff]
                %361 = vst [vmem:[%s201 + $0x278] sm:$0xff] %v360
                %v362 = vld [vmem:[%s200 + $0x1900] sm:$0xff]
                %363 = vst [vmem:[%s201 + $0x280] sm:$0xff] %v362
                %v364 = vld [vmem:[%s200 + $0x1908] sm:$0xff]
                %365 = vst [vmem:[%s201 + $0x288] sm:$0xff] %v364
                %v366 = vld [vmem:[%s200 + $0x1910] sm:$0xff]
                %367 = vst [vmem:[%s201 + $0x290] sm:$0xff] %v366
                %v368 = vld [vmem:[%s200 + $0x1918] sm:$0xff]
                %369 = vst [vmem:[%s201 + $0x298] sm:$0xff] %v368
                %v370 = vld [vmem:[%s200 + $0x1a40] sm:$0xff]
                %371 = vst [vmem:[%s201 + $0x2a0] sm:$0xff] %v370
                %v372 = vld [vmem:[%s200 + $0x1a48] sm:$0xff]
                %373 = vst [vmem:[%s201 + $0x2a8] sm:$0xff] %v372
                %v374 = vld [vmem:[%s200 + $0x1a50] sm:$0xff]
                %375 = vst [vmem:[%s201 + $0x2b0] sm:$0xff] %v374
                %v376 = vld [vmem:[%s200 + $0x1a58] sm:$0xff]
                %377 = vst [vmem:[%s201 + $0x2b8] sm:$0xff] %v376
                %v378 = vld [vmem:[%s200 + $0x1b80] sm:$0xff]
                %379 = vst [vmem:[%s201 + $0x2c0] sm:$0xff] %v378
                %v380 = vld [vmem:[%s200 + $0x1b88] sm:$0xff]
                %381 = vst [vmem:[%s201 + $0x2c8] sm:$0xff] %v380
                %v382 = vld [vmem:[%s200 + $0x1b90] sm:$0xff]
                %383 = vst [vmem:[%s201 + $0x2d0] sm:$0xff] %v382
                %v384 = vld [vmem:[%s200 + $0x1b98] sm:$0xff]
                %385 = vst [vmem:[%s201 + $0x2d8] sm:$0xff] %v384
                %v386 = vld [vmem:[%s200 + $0x1cc0] sm:$0xff]
                %387 = vst [vmem:[%s201 + $0x2e0] sm:$0xff] %v386
                %v388 = vld [vmem:[%s200 + $0x1cc8] sm:$0xff]
                %389 = vst [vmem:[%s201 + $0x2e8] sm:$0xff] %v388
                %v390 = vld [vmem:[%s200 + $0x1cd0] sm:$0xff]
                %391 = vst [vmem:[%s201 + $0x2f0] sm:$0xff] %v390
                %v392 = vld [vmem:[%s200 + $0x1cd8] sm:$0xff]
                %393 = vst [vmem:[%s201 + $0x2f8] sm:$0xff] %v392
                %v394 = vld [vmem:[%s200 + $0x1e00] sm:$0xff]
                %395 = vst [vmem:[%s201 + $0x300] sm:$0xff] %v394
                %v396 = vld [vmem:[%s200 + $0x1e08] sm:$0xff]
                %397 = vst [vmem:[%s201 + $0x308] sm:$0xff] %v396
                %v398 = vld [vmem:[%s200 + $0x1e10] sm:$0xff]
                %399 = vst [vmem:[%s201 + $0x310] sm:$0xff] %v398
                %v400 = vld [vmem:[%s200 + $0x1e18] sm:$0xff]
                %401 = vst [vmem:[%s201 + $0x318] sm:$0xff] %v400
                %v402 = vld [vmem:[%s200 + $0x1f40] sm:$0xff]
                %403 = vst [vmem:[%s201 + $0x320] sm:$0xff] %v402
                %v404 = vld [vmem:[%s200 + $0x1f48] sm:$0xff]
                %405 = vst [vmem:[%s201 + $0x328] sm:$0xff] %v404
                %v406 = vld [vmem:[%s200 + $0x1f50] sm:$0xff]
                %407 = vst [vmem:[%s201 + $0x330] sm:$0xff] %v406
                %v408 = vld [vmem:[%s200 + $0x1f58] sm:$0xff]
                %409 = vst [vmem:[%s201 + $0x338] sm:$0xff] %v408
                %v410 = vld [vmem:[%s200 + $0x2080] sm:$0xff]
                %411 = vst [vmem:[%s201 + $0x340] sm:$0xff] %v410
                %v412 = vld [vmem:[%s200 + $0x2088] sm:$0xff]
                %413 = vst [vmem:[%s201 + $0x348] sm:$0xff] %v412
                %v414 = vld [vmem:[%s200 + $0x2090] sm:$0xff]
                %415 = vst [vmem:[%s201 + $0x350] sm:$0xff] %v414
                %v416 = vld [vmem:[%s200 + $0x2098] sm:$0xff]
                %417 = vst [vmem:[%s201 + $0x358] sm:$0xff] %v416
                %v418 = vld [vmem:[%s200 + $0x21c0] sm:$0xff]
                %419 = vst [vmem:[%s201 + $0x360] sm:$0xff] %v418
                %v420 = vld [vmem:[%s200 + $0x21c8] sm:$0xff]
                %421 = vst [vmem:[%s201 + $0x368] sm:$0xff] %v420
                %v422 = vld [vmem:[%s200 + $0x21d0] sm:$0xff]
                %423 = vst [vmem:[%s201 + $0x370] sm:$0xff] %v422
                %v424 = vld [vmem:[%s200 + $0x21d8] sm:$0xff]
                %425 = vst [vmem:[%s201 + $0x378] sm:$0xff] %v424
                %v426 = vld [vmem:[%s200 + $0x2300] sm:$0xff]
                %427 = vst [vmem:[%s201 + $0x380] sm:$0xff] %v426
                %v428 = vld [vmem:[%s200 + $0x2308] sm:$0xff]
                %429 = vst [vmem:[%s201 + $0x388] sm:$0xff] %v428
                %v430 = vld [vmem:[%s200 + $0x2310] sm:$0xff]
                %431 = vst [vmem:[%s201 + $0x390] sm:$0xff] %v430
                %v432 = vld [vmem:[%s200 + $0x2318] sm:$0xff]
                %433 = vst [vmem:[%s201 + $0x398] sm:$0xff] %v432
                %v434 = vld [vmem:[%s200 + $0x2440] sm:$0xff]
                %435 = vst [vmem:[%s201 + $0x3a0] sm:$0xff] %v434
                %v436 = vld [vmem:[%s200 + $0x2448] sm:$0xff]
                %437 = vst [vmem:[%s201 + $0x3a8] sm:$0xff] %v436
                %v438 = vld [vmem:[%s200 + $0x2450] sm:$0xff]
                %439 = vst [vmem:[%s201 + $0x3b0] sm:$0xff] %v438
                %v440 = vld [vmem:[%s200 + $0x2458] sm:$0xff]
                %441 = vst [vmem:[%s201 + $0x3b8] sm:$0xff] %v440
                %v442 = vld [vmem:[%s200 + $0x2580] sm:$0xff]
                %443 = vst [vmem:[%s201 + $0x3c0] sm:$0xff] %v442
                %v444 = vld [vmem:[%s200 + $0x2588] sm:$0xff]
                %445 = vst [vmem:[%s201 + $0x3c8] sm:$0xff] %v444
                %v446 = vld [vmem:[%s200 + $0x2590] sm:$0xff]
                %447 = vst [vmem:[%s201 + $0x3d0] sm:$0xff] %v446
                %v448 = vld [vmem:[%s200 + $0x2598] sm:$0xff]
                %449 = vst [vmem:[%s201 + $0x3d8] sm:$0xff] %v448
                %v450 = vld [vmem:[%s200 + $0x26c0] sm:$0xff]
                %451 = vst [vmem:[%s201 + $0x3e0] sm:$0xff] %v450
                %v452 = vld [vmem:[%s200 + $0x26c8] sm:$0xff]
                %453 = vst [vmem:[%s201 + $0x3e8] sm:$0xff] %v452
                %v454 = vld [vmem:[%s200 + $0x26d0] sm:$0xff]
                %455 = vst [vmem:[%s201 + $0x3f0] sm:$0xff] %v454
                %v456 = vld [vmem:[%s200 + $0x26d8] sm:$0xff]
                %457 = vst [vmem:[%s201 + $0x3f8] sm:$0xff] %v456
              $region45: #{vae_audio_forward.7} parent=39 // loop_footer
                %s199 = sadd.s32 1, %s195
              $region46: #{vae_audio_forward.7} parent=39 // loop_footer_branch
                %194 = sbr.rel target = $region42
              $region47: #{vae_audio_forward.7} parent=39 // loop_exit
                _
            $region40: #{vae_audio_forward.7} parent=35 // pred_fallthru
              _
            // Predicated region
            $region48: #{vae_audio_forward.7} parent=35 // pred_check
              _
            $region49: #{vae_audio_forward.7} parent=35 // pred_check_branch
              %459 = sbr.rel target = $region51
            $region50: #{vae_audio_forward.7} parent=35 // pred_region
              _
            $region51: #{vae_audio_forward.7} parent=35 // pred_fallthru
              _
          $region36: #{vae_audio_forward.7} parent=31 // pred_fallthru
            _
          %460 = vnop
        $region32: #{vae_audio_forward.7} parent=27 // pred_fallthru
          _
        // Predicated region
        $region52: #{vae_audio_forward.7} parent=27 // pred_check
          %p461 = pneg %p120
        $region53: #{vae_audio_forward.7} parent=27 // pred_check_branch
          %463 = sbr.rel (%p461) target = $region55
        $region54: #{vae_audio_forward.7} parent=27 // pred_region
          %s464 = smul.u32 8, %s11
          %p465 = scmp.lt.s32.totalorder %s464, 79
          %s466 = scalar_select %p465, %s464, 79
          %s467 = scalar_lea.vmem %s4, %s466
          %s468 = smul.u32 8, %s11
        $region55: #{vae_audio_forward.7} parent=27 // pred_fallthru
          _
      $region28: #{vae_audio_forward.7} parent=5 // pred_fallthru
        _
      %p469 = scmp.le.s32.totalorder 1, %s11
      %p470 = scmp.lt.s32.totalorder %s11, 11
      %p471 = pnand %p469, %p470
      %p472 = pneg %p471
      // Predicated region
      $region56: #{vae_audio_forward.7} parent=5 // pred_check
        _
      $region57: #{vae_audio_forward.7} parent=5 // pred_check_branch
        %474 = sbr.rel (%p471) target = $region59
      $region58: #{vae_audio_forward.7} parent=5 // pred_region
        %s475 = ssub.s32 %s11, 1
        %s476 = sand.u32 %s87, 1
        %s477 = sand.u32 %s87, 1
        %s478 = smul.addr %s477, 1024
        %s479 = scalar_lea.vmem [#allocation2], %s478
        // Predicated region
        $region60: #{vae_audio_forward.7} parent=58 // pred_check
          %p480 = pneg %p100
        $region61: #{vae_audio_forward.7} parent=58 // pred_check_branch
          %482 = sbr.rel (%p480) target = $region63
        $region62: #{vae_audio_forward.7} parent=58 // pred_region
          _
        $region63: #{vae_audio_forward.7} parent=58 // pred_fallthru
          _
        %p483 = pneg %p32
        %p484 = pneg %p29
        %p485 = pneg %p53
        %p486 = pneg %p50
        %p487 = pneg %p74
        %p488 = pneg %p71
        %s489 = sand.u32 %s87, 1
        %s490 = sand.u32 %s87, 1
        %s491 = smul.addr %s490, 1024
        %s492 = scalar_lea.vmem [#allocation2], %s491
        %p493 = pneg %p100
        %p494 = pneg %p97
        %s495 = smul.u32 8, %s16
        %p496 = scmp.lt.s32.totalorder %s495, 79
        %s497 = scalar_select %p496, %s495, 79
        %s498 = scalar_lea.vmem %s4, %s497
        %p499 = pneg %p126
        %p500 = pneg %p123
        %p501 = pneg %p152
        %p502 = pneg %p149
        %s503 = smul.u32 8, %s16
        %p504 = scmp.lt.s32.totalorder %s503, 79
        %s505 = scalar_select %p504, %s503, 79
        %s506 = scalar_lea.vmem %s5, %s505
        %s507 = smul.u32 8, %s16
        %s508 = smul.u32 8, %s16
        %p509 = scmp.lt.s32.totalorder %s508, 79
        %s510 = scalar_select %p509, %s508, 79
        %s511 = scalar_lea.vmem %s4, %s510
        %s512 = smul.u32 8, %s16
        %s513 = smul.u32 8, %s16
        %p514 = scmp.lt.s32.totalorder %s513, 79
        %s515 = scalar_select %p514, %s513, 79
        %s516 = scalar_lea.vmem %s5, %s515
        %s517 = smul.u32 8, %s16
        %v518 = vld [vmem:[%s0] sm:$0x3]
        %v519 = vld [vmem:[%s1] sm:$0xff]
        %v520 = vld [vmem:[%s1 + $0x8] sm:$0xff]
        %v521 = vld [vmem:[%s1 + $0x10] sm:$0xff]
        %v522 = vld [vmem:[%s1 + $0x18] sm:$0xff]
        %v523 = vld [vmem:[%s1 + $0x20] sm:$0xff]
        %v524 = vld [vmem:[%s1 + $0x28] sm:$0xff]
        %v525 = vld [vmem:[%s2] sm:$0x3]
        %v527 = vlaneseq
        %v528 = vshrl.u32 %v527, 7
        %v529 = vsub.s32 0, %v528
        %v530 = vrot.slane %v525, %v529
        %v531 = vlaneseq
        %v532 = vshrl.u32 %v531, 7
        %v533 = vsub.s32 1, %v532
        %v534 = vrot.slane %v525, %v533
        %vm537 = vcmask 195584
        %v539 = vsel %vm537, %v518, 0
        %541 = vmatprep.subr.mxu0 0.0
        %542 = vmatpush1.msra.mxu0 0.0
        %543 = vmatprep.subr.mxu0 0.0
        %544 = vmatpush1.msra.mxu0 0.0
        %545 = vmatprep.subr.mxu0 0.0
        %546 = vmatpush1.msra.mxu0 0.0
        %547 = vmatprep.subr.mxu0 0.0
        %548 = vmatpush1.msra.mxu0 0.0
        %549 = vmatprep.subr.mxu0 0.0
        %550 = vmatpush1.msra.mxu0 0.0
        %551 = vmatprep.subr.mxu0 0.0
        %552 = vmatpush1.msra.mxu0 0.0
        %553 = vmatprep.subr.mxu0 0.0
        %554 = vmatpush1.msra.mxu0 0.0
        %555 = vmatprep.subr.mxu0 0.0
        %556 = vmatpush1.msra.mxu0 0.0
        %557 = vmatprep.subr.mxu0 0.0
        %558 = vmatpush1.msra.mxu0 0.0
        %559 = vmatprep.subr.mxu0 0.0
        %560 = vmatpush1.msra.mxu0 0.0
        %561 = vmatprep.subr.mxu0 0.0
        %562 = vmatpush1.msra.mxu0 0.0
        %563 = vmatprep.subr.mxu0 0.0
        %564 = vmatpush1.msra.mxu0 0.0
        %565 = vmatprep.subr.mxu0 0.0
        %566 = vmatpush1.msra.mxu0 0.0
        %567 = vmatprep.subr.mxu0 %v524
        %568 = vmatpush1.msra.mxu0 %v523
        %569 = vmatprep.subr.mxu0 %v522
        %570 = vmatpush1.msra.mxu0 %v521
        %571 = vmatprep.subr.mxu0 %v520
        %572 = vmatpush1.msra.mxu0 %v519
        %573 = vmatprep.subr.mxu0 0.0
        %574 = vmatpush2.msra.mxu0 0.0
        %575 = vmatprep.subr.mxu0 0.0
        %576 = vmatpush2.msra.mxu0 0.0
        %577 = vmatprep.subr.mxu0 0.0
        %578 = vmatpush2.msra.mxu0 0.0
        %579 = vmatprep.subr.mxu0 0.0
        %580 = vmatpush2.msra.mxu0 0.0
        %581 = vmatprep.subr.mxu0 0.0
        %582 = vmatpush2.msra.mxu0 0.0
        %583 = vmatprep.subr.mxu0 0.0
        %584 = vmatpush2.msra.mxu0 0.0
        %585 = vmatprep.subr.mxu0 0.0
        %586 = vmatpush2.msra.mxu0 0.0
        %587 = vmatprep.subr.mxu0 0.0
        %588 = vmatpush2.msra.mxu0 0.0
        %589 = vmatprep.subr.mxu0 0.0
        %590 = vmatpush2.msra.mxu0 0.0
        %591 = vmatprep.subr.mxu0 0.0
        %592 = vmatpush2.msra.mxu0 0.0
        %593 = vmatprep.subr.mxu0 0.0
        %594 = vmatpush2.msra.mxu0 0.0
        %595 = vmatprep.subr.mxu0 0.0
        %596 = vmatpush2.msra.mxu0 0.0
        %597 = vmatprep.subr.mxu0 0.0
        %598 = vmatpush2.msra.mxu0 0.0
        %599 = vmatprep.subr.mxu0 0.0
        %600 = vmatpush2.msra.mxu0 0.0
        %601 = vmatprep.subr.mxu0 0.0
        %602 = vmatpush2.msra.mxu0 0.0
        %603 = vmatprep.subr.mxu0 0.0
        %604 = vmatpush2.msra.mxu0 0.0
        %605 = vmatprep.mubr.f32.mxu0 0.0
        %606 = vmatmul.mubr.f32.gmra.mxu0 %v539
        %v607 = vpop.f32.mrf.mxu0
        %v608 = vadd.f32 %v530, %v607
        %v609 = vpop.f32.mrf.mxu0
        %v610 = vadd.f32 %v534, %v609
        %611 = vdwg.mxu0
        %v612 = vmax.f32 %v608, 0.0
        %v613 = vmax.f32 %v610, 0.0
        %v614 = vpack.c.bf16 %v612, %v612
        %v615 = vpack.c.bf16 %v613, %v613
        %v616 = vld [vmem:[%s479] sm:$0xff]
        %v617 = vld [vmem:[%s479 + $0x8] sm:$0xff]
        %v618 = vld [vmem:[%s479 + $0x10] sm:$0xff]
        %v619 = vld [vmem:[%s479 + $0x18] sm:$0xff]
        %v620 = vld [vmem:[%s479 + $0x20] sm:$0xff]
        %v621 = vld [vmem:[%s479 + $0x28] sm:$0xff]
        %v622 = vld [vmem:[%s479 + $0x30] sm:$0xff]
        %v623 = vld [vmem:[%s479 + $0x38] sm:$0xff]
        %v624 = vld [vmem:[%s479 + $0x40] sm:$0xff]
        %v625 = vld [vmem:[%s479 + $0x48] sm:$0xff]
        %v626 = vld [vmem:[%s479 + $0x50] sm:$0xff]
        %v627 = vld [vmem:[%s479 + $0x58] sm:$0xff]
        %v628 = vld [vmem:[%s479 + $0x60] sm:$0xff]
        %v629 = vld [vmem:[%s479 + $0x68] sm:$0xff]
        %v630 = vld [vmem:[%s479 + $0x70] sm:$0xff]
        %v631 = vld [vmem:[%s479 + $0x78] sm:$0xff]
        %v632 = vld [vmem:[%s479 + $0x80] sm:$0xff]
        %v633 = vld [vmem:[%s479 + $0x88] sm:$0xff]
        %v634 = vld [vmem:[%s479 + $0x90] sm:$0xff]
        %v635 = vld [vmem:[%s479 + $0x98] sm:$0xff]
        %v636 = vld [vmem:[%s479 + $0xa0] sm:$0xff]
        %v637 = vld [vmem:[%s479 + $0xa8] sm:$0xff]
        %v638 = vld [vmem:[%s479 + $0xb0] sm:$0xff]
        %v639 = vld [vmem:[%s479 + $0xb8] sm:$0xff]
        %v640 = vld [vmem:[%s479 + $0xc0] sm:$0xff]
        %v641 = vld [vmem:[%s479 + $0xc8] sm:$0xff]
        %v642 = vld [vmem:[%s479 + $0xd0] sm:$0xff]
        %v643 = vld [vmem:[%s479 + $0xd8] sm:$0xff]
        %v644 = vld [vmem:[%s479 + $0xe0] sm:$0xff]
        %v645 = vld [vmem:[%s479 + $0xe8] sm:$0xff]
        %v646 = vld [vmem:[%s479 + $0xf0] sm:$0xff]
        %v647 = vld [vmem:[%s479 + $0xf8] sm:$0xff]
        %v648 = vld [vmem:[%s479 + $0x100] sm:$0xff]
        %v649 = vld [vmem:[%s479 + $0x108] sm:$0xff]
        %v650 = vld [vmem:[%s479 + $0x110] sm:$0xff]
        %v651 = vld [vmem:[%s479 + $0x118] sm:$0xff]
        %v652 = vld [vmem:[%s479 + $0x120] sm:$0xff]
        %v653 = vld [vmem:[%s479 + $0x128] sm:$0xff]
        %v654 = vld [vmem:[%s479 + $0x130] sm:$0xff]
        %v655 = vld [vmem:[%s479 + $0x138] sm:$0xff]
        %v656 = vld [vmem:[%s479 + $0x140] sm:$0xff]
        %v657 = vld [vmem:[%s479 + $0x148] sm:$0xff]
        %v658 = vld [vmem:[%s479 + $0x150] sm:$0xff]
        %v659 = vld [vmem:[%s479 + $0x158] sm:$0xff]
        %v660 = vld [vmem:[%s479 + $0x160] sm:$0xff]
        %v661 = vld [vmem:[%s479 + $0x168] sm:$0xff]
        %v662 = vld [vmem:[%s479 + $0x170] sm:$0xff]
        %v663 = vld [vmem:[%s479 + $0x178] sm:$0xff]
        %v664 = vld [vmem:[%s479 + $0x180] sm:$0xff]
        %v665 = vld [vmem:[%s479 + $0x188] sm:$0xff]
        %v666 = vld [vmem:[%s479 + $0x190] sm:$0xff]
        %v667 = vld [vmem:[%s479 + $0x198] sm:$0xff]
        %v668 = vld [vmem:[%s479 + $0x1a0] sm:$0xff]
        %v669 = vld [vmem:[%s479 + $0x1a8] sm:$0xff]
        %v670 = vld [vmem:[%s479 + $0x1b0] sm:$0xff]
        %v671 = vld [vmem:[%s479 + $0x1b8] sm:$0xff]
        %v672 = vld [vmem:[%s479 + $0x1c0] sm:$0xff]
        %v673 = vld [vmem:[%s479 + $0x1c8] sm:$0xff]
        %v674 = vld [vmem:[%s479 + $0x1d0] sm:$0xff]
        %v675 = vld [vmem:[%s479 + $0x1d8] sm:$0xff]
        %v676 = vld [vmem:[%s479 + $0x1e0] sm:$0xff]
        %v677 = vld [vmem:[%s479 + $0x1e8] sm:$0xff]
        %v678 = vld [vmem:[%s479 + $0x1f0] sm:$0xff]
        %v679 = vld [vmem:[%s479 + $0x1f8] sm:$0xff]
        %v680 = vld [vmem:[%s479 + $0x200] sm:$0xff]
        %v681 = vld [vmem:[%s479 + $0x208] sm:$0xff]
        %v682 = vld [vmem:[%s479 + $0x210] sm:$0xff]
        %v683 = vld [vmem:[%s479 + $0x218] sm:$0xff]
        %v684 = vld [vmem:[%s479 + $0x220] sm:$0xff]
        %v685 = vld [vmem:[%s479 + $0x228] sm:$0xff]
        %v686 = vld [vmem:[%s479 + $0x230] sm:$0xff]
        %v687 = vld [vmem:[%s479 + $0x238] sm:$0xff]
        %v688 = vld [vmem:[%s479 + $0x240] sm:$0xff]
        %v689 = vld [vmem:[%s479 + $0x248] sm:$0xff]
        %v690 = vld [vmem:[%s479 + $0x250] sm:$0xff]
        %v691 = vld [vmem:[%s479 + $0x258] sm:$0xff]
        %v692 = vld [vmem:[%s479 + $0x260] sm:$0xff]
        %v693 = vld [vmem:[%s479 + $0x268] sm:$0xff]
        %v694 = vld [vmem:[%s479 + $0x270] sm:$0xff]
        %v695 = vld [vmem:[%s479 + $0x278] sm:$0xff]
        %v696 = vld [vmem:[%s479 + $0x280] sm:$0xff]
        %v697 = vld [vmem:[%s479 + $0x288] sm:$0xff]
        %v698 = vld [vmem:[%s479 + $0x290] sm:$0xff]
        %v699 = vld [vmem:[%s479 + $0x298] sm:$0xff]
        %v700 = vld [vmem:[%s479 + $0x2a0] sm:$0xff]
        %v701 = vld [vmem:[%s479 + $0x2a8] sm:$0xff]
        %v702 = vld [vmem:[%s479 + $0x2b0] sm:$0xff]
        %v703 = vld [vmem:[%s479 + $0x2b8] sm:$0xff]
        %v704 = vld [vmem:[%s479 + $0x2c0] sm:$0xff]
        %v705 = vld [vmem:[%s479 + $0x2c8] sm:$0xff]
        %v706 = vld [vmem:[%s479 + $0x2d0] sm:$0xff]
        %v707 = vld [vmem:[%s479 + $0x2d8] sm:$0xff]
        %v708 = vld [vmem:[%s479 + $0x2e0] sm:$0xff]
        %v709 = vld [vmem:[%s479 + $0x2e8] sm:$0xff]
        %v710 = vld [vmem:[%s479 + $0x2f0] sm:$0xff]
        %v711 = vld [vmem:[%s479 + $0x2f8] sm:$0xff]
        %v712 = vld [vmem:[%s479 + $0x300] sm:$0xff]
        %v713 = vld [vmem:[%s479 + $0x308] sm:$0xff]
        %v714 = vld [vmem:[%s479 + $0x310] sm:$0xff]
        %v715 = vld [vmem:[%s479 + $0x318] sm:$0xff]
        %v716 = vld [vmem:[%s479 + $0x320] sm:$0xff]
        %v717 = vld [vmem:[%s479 + $0x328] sm:$0xff]
        %v718 = vld [vmem:[%s479 + $0x330] sm:$0xff]
        %v719 = vld [vmem:[%s479 + $0x338] sm:$0xff]
        %v720 = vld [vmem:[%s479 + $0x340] sm:$0xff]
        %v721 = vld [vmem:[%s479 + $0x348] sm:$0xff]
        %v722 = vld [vmem:[%s479 + $0x350] sm:$0xff]
        %v723 = vld [vmem:[%s479 + $0x358] sm:$0xff]
        %v724 = vld [vmem:[%s479 + $0x360] sm:$0xff]
        %v725 = vld [vmem:[%s479 + $0x368] sm:$0xff]
        %v726 = vld [vmem:[%s479 + $0x370] sm:$0xff]
        %v727 = vld [vmem:[%s479 + $0x378] sm:$0xff]
        %v728 = vld [vmem:[%s479 + $0x380] sm:$0xff]
        %v729 = vld [vmem:[%s479 + $0x388] sm:$0xff]
        %v730 = vld [vmem:[%s479 + $0x390] sm:$0xff]
        %v731 = vld [vmem:[%s479 + $0x398] sm:$0xff]
        %v732 = vld [vmem:[%s479 + $0x3a0] sm:$0xff]
        %v733 = vld [vmem:[%s479 + $0x3a8] sm:$0xff]
        %v734 = vld [vmem:[%s479 + $0x3b0] sm:$0xff]
        %v735 = vld [vmem:[%s479 + $0x3b8] sm:$0xff]
        %v736 = vld [vmem:[%s479 + $0x3c0] sm:$0xff]
        %v737 = vld [vmem:[%s479 + $0x3c8] sm:$0xff]
        %v738 = vld [vmem:[%s479 + $0x3d0] sm:$0xff]
        %v739 = vld [vmem:[%s479 + $0x3d8] sm:$0xff]
        %v740 = vld [vmem:[%s479 + $0x3e0] sm:$0xff]
        %v741 = vld [vmem:[%s479 + $0x3e8] sm:$0xff]
        %v742 = vld [vmem:[%s479 + $0x3f0] sm:$0xff]
        %v743 = vld [vmem:[%s479 + $0x3f8] sm:$0xff]
        %v744 = vld [vmem:[%s511] sm:$0xff]
        %v746 = vlaneseq
        %v747 = vshrl.u32 %v746, 7
        %v748 = vsub.s32 0, %v747
        %v749 = vrot.slane %v744, %v748
        %v750 = vlaneseq
        %v751 = vshrl.u32 %v750, 7
        %v752 = vsub.s32 1, %v751
        %v753 = vrot.slane %v744, %v752
        %v754 = vlaneseq
        %v755 = vshrl.u32 %v754, 7
        %v756 = vsub.s32 2, %v755
        %v757 = vrot.slane %v744, %v756
        %v758 = vlaneseq
        %v759 = vshrl.u32 %v758, 7
        %v760 = vsub.s32 3, %v759
        %v761 = vrot.slane %v744, %v760
        %v762 = vlaneseq
        %v763 = vshrl.u32 %v762, 7
        %v764 = vsub.s32 4, %v763
        %v765 = vrot.slane %v744, %v764
        %v766 = vlaneseq
        %v767 = vshrl.u32 %v766, 7
        %v768 = vsub.s32 5, %v767
        %v769 = vrot.slane %v744, %v768
        %v770 = vlaneseq
        %v771 = vshrl.u32 %v770, 7
        %v772 = vsub.s32 6, %v771
        %v773 = vrot.slane %v744, %v772
        %v774 = vlaneseq
        %v775 = vshrl.u32 %v774, 7
        %v776 = vsub.s32 7, %v775
        %v777 = vrot.slane %v744, %v776
        %v914 = vunpack.c.l.b16 %v616
        %v915 = vunpack.c.h.b16 %v616
        %v916 = vunpack.c.l.b16 %v617
        %v917 = vunpack.c.h.b16 %v617
        %v918 = vunpack.c.l.b16 %v618
        %v919 = vunpack.c.h.b16 %v618
        %v920 = vunpack.c.l.b16 %v619
        %v921 = vunpack.c.h.b16 %v619
        %v922 = vunpack.c.l.b16 %v620
        %v923 = vunpack.c.h.b16 %v620
        %v924 = vunpack.c.l.b16 %v621
        %v925 = vunpack.c.h.b16 %v621
        %v926 = vunpack.c.l.b16 %v622
        %v927 = vunpack.c.h.b16 %v622
        %v928 = vunpack.c.l.b16 %v623
        %v929 = vunpack.c.h.b16 %v623
        %v930 = vunpack.c.l.b16 %v624
        %v931 = vunpack.c.h.b16 %v624
        %v932 = vunpack.c.l.b16 %v625
        %v933 = vunpack.c.h.b16 %v625
        %v934 = vunpack.c.l.b16 %v626
        %v935 = vunpack.c.h.b16 %v626
        %v936 = vunpack.c.l.b16 %v627
        %v937 = vunpack.c.h.b16 %v627
        %v938 = vunpack.c.l.b16 %v628
        %v939 = vunpack.c.h.b16 %v628
        %v940 = vunpack.c.l.b16 %v629
        %v941 = vunpack.c.h.b16 %v629
        %v942 = vunpack.c.l.b16 %v630
        %v943 = vunpack.c.h.b16 %v630
        %v944 = vunpack.c.l.b16 %v631
        %v945 = vunpack.c.h.b16 %v631
        %v946 = vunpack.c.l.b16 %v632
        %v947 = vunpack.c.h.b16 %v632
        %v948 = vunpack.c.l.b16 %v633
        %v949 = vunpack.c.h.b16 %v633
        %v950 = vunpack.c.l.b16 %v634
        %v951 = vunpack.c.h.b16 %v634
        %v952 = vunpack.c.l.b16 %v635
        %v953 = vunpack.c.h.b16 %v635
        %v954 = vunpack.c.l.b16 %v636
        %v955 = vunpack.c.h.b16 %v636
        %v956 = vunpack.c.l.b16 %v637
        %v957 = vunpack.c.h.b16 %v637
        %v958 = vunpack.c.l.b16 %v638
        %v959 = vunpack.c.h.b16 %v638
        %v960 = vunpack.c.l.b16 %v639
        %v961 = vunpack.c.h.b16 %v639
        %v962 = vunpack.c.l.b16 %v640
        %v963 = vunpack.c.h.b16 %v640
        %v964 = vunpack.c.l.b16 %v641
        %v965 = vunpack.c.h.b16 %v641
        %v966 = vunpack.c.l.b16 %v642
        %v967 = vunpack.c.h.b16 %v642
        %v968 = vunpack.c.l.b16 %v643
        %v969 = vunpack.c.h.b16 %v643
        %v970 = vunpack.c.l.b16 %v644
        %v971 = vunpack.c.h.b16 %v644
        %v972 = vunpack.c.l.b16 %v645
        %v973 = vunpack.c.h.b16 %v645
        %v974 = vunpack.c.l.b16 %v646
        %v975 = vunpack.c.h.b16 %v646
        %v976 = vunpack.c.l.b16 %v647
        %v977 = vunpack.c.h.b16 %v647
        %v978 = vunpack.c.l.b16 %v648
        %v979 = vunpack.c.h.b16 %v648
        %v980 = vunpack.c.l.b16 %v649
        %v981 = vunpack.c.h.b16 %v649
        %v982 = vunpack.c.l.b16 %v650
        %v983 = vunpack.c.h.b16 %v650
        %v984 = vunpack.c.l.b16 %v651
        %v985 = vunpack.c.h.b16 %v651
        %v986 = vunpack.c.l.b16 %v652
        %v987 = vunpack.c.h.b16 %v652
        %v988 = vunpack.c.l.b16 %v653
        %v989 = vunpack.c.h.b16 %v653
        %v990 = vunpack.c.l.b16 %v654
        %v991 = vunpack.c.h.b16 %v654
        %v992 = vunpack.c.l.b16 %v655
        %v993 = vunpack.c.h.b16 %v655
        %v994 = vunpack.c.l.b16 %v656
        %v995 = vunpack.c.h.b16 %v656
        %v996 = vunpack.c.l.b16 %v657
        %v997 = vunpack.c.h.b16 %v657
        %v998 = vunpack.c.l.b16 %v658
        %v999 = vunpack.c.h.b16 %v658
        %v1000 = vunpack.c.l.b16 %v659
        %v1001 = vunpack.c.h.b16 %v659
        %v1002 = vunpack.c.l.b16 %v660
        %v1003 = vunpack.c.h.b16 %v660
        %v1004 = vunpack.c.l.b16 %v661
        %v1005 = vunpack.c.h.b16 %v661
        %v1006 = vunpack.c.l.b16 %v662
        %v1007 = vunpack.c.h.b16 %v662
        %v1008 = vunpack.c.l.b16 %v663
        %v1009 = vunpack.c.h.b16 %v663
        %v1010 = vunpack.c.l.b16 %v664
        %v1011 = vunpack.c.h.b16 %v664
        %v1012 = vunpack.c.l.b16 %v665
        %v1013 = vunpack.c.h.b16 %v665
        %v1014 = vunpack.c.l.b16 %v666
        %v1015 = vunpack.c.h.b16 %v666
        %v1016 = vunpack.c.l.b16 %v667
        %v1017 = vunpack.c.h.b16 %v667
        %v1018 = vunpack.c.l.b16 %v668
        %v1019 = vunpack.c.h.b16 %v668
        %v1020 = vunpack.c.l.b16 %v669
        %v1021 = vunpack.c.h.b16 %v669
        %v1022 = vunpack.c.l.b16 %v670
        %v1023 = vunpack.c.h.b16 %v670
        %v1024 = vunpack.c.l.b16 %v671
        %v1025 = vunpack.c.h.b16 %v671
        %v1026 = vunpack.c.l.b16 %v672
        %v1027 = vunpack.c.h.b16 %v672
        %v1028 = vunpack.c.l.b16 %v673
        %v1029 = vunpack.c.h.b16 %v673
        %v1030 = vunpack.c.l.b16 %v674
        %v1031 = vunpack.c.h.b16 %v674
        %v1032 = vunpack.c.l.b16 %v675
        %v1033 = vunpack.c.h.b16 %v675
        %v1034 = vunpack.c.l.b16 %v676
        %v1035 = vunpack.c.h.b16 %v676
        %v1036 = vunpack.c.l.b16 %v677
        %v1037 = vunpack.c.h.b16 %v677
        %v1038 = vunpack.c.l.b16 %v678
        %v1039 = vunpack.c.h.b16 %v678
        %v1040 = vunpack.c.l.b16 %v679
        %v1041 = vunpack.c.h.b16 %v679
        %v1042 = vunpack.c.l.b16 %v680
        %v1043 = vunpack.c.h.b16 %v680
        %v1044 = vunpack.c.l.b16 %v681
        %v1045 = vunpack.c.h.b16 %v681
        %v1046 = vunpack.c.l.b16 %v682
        %v1047 = vunpack.c.h.b16 %v682
        %v1048 = vunpack.c.l.b16 %v683
        %v1049 = vunpack.c.h.b16 %v683
        %v1050 = vunpack.c.l.b16 %v684
        %v1051 = vunpack.c.h.b16 %v684
        %v1052 = vunpack.c.l.b16 %v685
        %v1053 = vunpack.c.h.b16 %v685
        %v1054 = vunpack.c.l.b16 %v686
        %v1055 = vunpack.c.h.b16 %v686
        %v1056 = vunpack.c.l.b16 %v687
        %v1057 = vunpack.c.h.b16 %v687
        %v1058 = vunpack.c.l.b16 %v688
        %v1059 = vunpack.c.h.b16 %v688
        %v1060 = vunpack.c.l.b16 %v689
        %v1061 = vunpack.c.h.b16 %v689
        %v1062 = vunpack.c.l.b16 %v690
        %v1063 = vunpack.c.h.b16 %v690
        %v1064 = vunpack.c.l.b16 %v691
        %v1065 = vunpack.c.h.b16 %v691
        %v1066 = vunpack.c.l.b16 %v692
        %v1067 = vunpack.c.h.b16 %v692
        %v1068 = vunpack.c.l.b16 %v693
        %v1069 = vunpack.c.h.b16 %v693
        %v1070 = vunpack.c.l.b16 %v694
        %v1071 = vunpack.c.h.b16 %v694
        %v1072 = vunpack.c.l.b16 %v695
        %v1073 = vunpack.c.h.b16 %v695
        %v1074 = vunpack.c.l.b16 %v696
        %v1075 = vunpack.c.h.b16 %v696
        %v1076 = vunpack.c.l.b16 %v697
        %v1077 = vunpack.c.h.b16 %v697
        %v1078 = vunpack.c.l.b16 %v698
        %v1079 = vunpack.c.h.b16 %v698
        %v1080 = vunpack.c.l.b16 %v699
        %v1081 = vunpack.c.h.b16 %v699
        %v1082 = vunpack.c.l.b16 %v700
        %v1083 = vunpack.c.h.b16 %v700
        %v1084 = vunpack.c.l.b16 %v701
        %v1085 = vunpack.c.h.b16 %v701
        %v1086 = vunpack.c.l.b16 %v702
        %v1087 = vunpack.c.h.b16 %v702
        %v1088 = vunpack.c.l.b16 %v703
        %v1089 = vunpack.c.h.b16 %v703
        %v1090 = vunpack.c.l.b16 %v704
        %v1091 = vunpack.c.h.b16 %v704
        %v1092 = vunpack.c.l.b16 %v705
        %v1093 = vunpack.c.h.b16 %v705
        %v1094 = vunpack.c.l.b16 %v706
        %v1095 = vunpack.c.h.b16 %v706
        %v1096 = vunpack.c.l.b16 %v707
        %v1097 = vunpack.c.h.b16 %v707
        %v1098 = vunpack.c.l.b16 %v708
        %v1099 = vunpack.c.h.b16 %v708
        %v1100 = vunpack.c.l.b16 %v709
        %v1101 = vunpack.c.h.b16 %v709
        %v1102 = vunpack.c.l.b16 %v710
        %v1103 = vunpack.c.h.b16 %v710
        %v1104 = vunpack.c.l.b16 %v711
        %v1105 = vunpack.c.h.b16 %v711
        %v1106 = vunpack.c.l.b16 %v712
        %v1107 = vunpack.c.h.b16 %v712
        %v1108 = vunpack.c.l.b16 %v713
        %v1109 = vunpack.c.h.b16 %v713
        %v1110 = vunpack.c.l.b16 %v714
        %v1111 = vunpack.c.h.b16 %v714
        %v1112 = vunpack.c.l.b16 %v715
        %v1113 = vunpack.c.h.b16 %v715
        %v1114 = vunpack.c.l.b16 %v716
        %v1115 = vunpack.c.h.b16 %v716
        %v1116 = vunpack.c.l.b16 %v717
        %v1117 = vunpack.c.h.b16 %v717
        %v1118 = vunpack.c.l.b16 %v718
        %v1119 = vunpack.c.h.b16 %v718
        %v1120 = vunpack.c.l.b16 %v719
        %v1121 = vunpack.c.h.b16 %v719
        %v1122 = vunpack.c.l.b16 %v720
        %v1123 = vunpack.c.h.b16 %v720
        %v1124 = vunpack.c.l.b16 %v721
        %v1125 = vunpack.c.h.b16 %v721
        %v1126 = vunpack.c.l.b16 %v722
        %v1127 = vunpack.c.h.b16 %v722
        %v1128 = vunpack.c.l.b16 %v723
        %v1129 = vunpack.c.h.b16 %v723
        %v1130 = vunpack.c.l.b16 %v724
        %v1131 = vunpack.c.h.b16 %v724
        %v1132 = vunpack.c.l.b16 %v725
        %v1133 = vunpack.c.h.b16 %v725
        %v1134 = vunpack.c.l.b16 %v726
        %v1135 = vunpack.c.h.b16 %v726
        %v1136 = vunpack.c.l.b16 %v727
        %v1137 = vunpack.c.h.b16 %v727
        %v1138 = vunpack.c.l.b16 %v728
        %v1139 = vunpack.c.h.b16 %v728
        %v1140 = vunpack.c.l.b16 %v729
        %v1141 = vunpack.c.h.b16 %v729
        %v1142 = vunpack.c.l.b16 %v730
        %v1143 = vunpack.c.h.b16 %v730
        %v1144 = vunpack.c.l.b16 %v731
        %v1145 = vunpack.c.h.b16 %v731
        %v1146 = vunpack.c.l.b16 %v732
        %v1147 = vunpack.c.h.b16 %v732
        %v1148 = vunpack.c.l.b16 %v733
        %v1149 = vunpack.c.h.b16 %v733
        %v1150 = vunpack.c.l.b16 %v734
        %v1151 = vunpack.c.h.b16 %v734
        %v1152 = vunpack.c.l.b16 %v735
        %v1153 = vunpack.c.h.b16 %v735
        %v1154 = vunpack.c.l.b16 %v736
        %v1155 = vunpack.c.h.b16 %v736
        %v1156 = vunpack.c.l.b16 %v737
        %v1157 = vunpack.c.h.b16 %v737
        %v1158 = vunpack.c.l.b16 %v738
        %v1159 = vunpack.c.h.b16 %v738
        %v1160 = vunpack.c.l.b16 %v739
        %v1161 = vunpack.c.h.b16 %v739
        %v1162 = vunpack.c.l.b16 %v740
        %v1163 = vunpack.c.h.b16 %v740
        %v1164 = vunpack.c.l.b16 %v741
        %v1165 = vunpack.c.h.b16 %v741
        %v1166 = vunpack.c.l.b16 %v742
        %v1167 = vunpack.c.h.b16 %v742
        %v1168 = vunpack.c.l.b16 %v743
        %v1169 = vunpack.c.h.b16 %v743
        %v1170 = vpack.c.b16 %v922, %v914
        %v1171 = vpack.c.b16 %v923, %v915
        %v1172 = vpack.c.b16 %v924, %v916
        %v1173 = vpack.c.b16 %v925, %v917
        %v1174 = vpack.c.b16 %v926, %v918
        %v1175 = vpack.c.b16 %v927, %v919
        %v1176 = vpack.c.b16 %v928, %v920
        %v1177 = vpack.c.b16 %v929, %v921
        %v1178 = vpack.c.b16 %v938, %v930
        %v1179 = vpack.c.b16 %v939, %v931
        %v1180 = vpack.c.b16 %v940, %v932
        %v1181 = vpack.c.b16 %v941, %v933
        %v1182 = vpack.c.b16 %v942, %v934
        %v1183 = vpack.c.b16 %v943, %v935
        %v1184 = vpack.c.b16 %v944, %v936
        %v1185 = vpack.c.b16 %v945, %v937
        %v1186 = vpack.c.b16 %v954, %v946
        %v1187 = vpack.c.b16 %v955, %v947
        %v1188 = vpack.c.b16 %v956, %v948
        %v1189 = vpack.c.b16 %v957, %v949
        %v1190 = vpack.c.b16 %v958, %v950
        %v1191 = vpack.c.b16 %v959, %v951
        %v1192 = vpack.c.b16 %v960, %v952
        %v1193 = vpack.c.b16 %v961, %v953
        %v1194 = vpack.c.b16 %v970, %v962
        %v1195 = vpack.c.b16 %v971, %v963
        %v1196 = vpack.c.b16 %v972, %v964
        %v1197 = vpack.c.b16 %v973, %v965
        %v1198 = vpack.c.b16 %v974, %v966
        %v1199 = vpack.c.b16 %v975, %v967
        %v1200 = vpack.c.b16 %v976, %v968
        %v1201 = vpack.c.b16 %v977, %v969
        %v1202 = vpack.c.b16 %v986, %v978
        %v1203 = vpack.c.b16 %v987, %v979
        %v1204 = vpack.c.b16 %v988, %v980
        %v1205 = vpack.c.b16 %v989, %v981
        %v1206 = vpack.c.b16 %v990, %v982
        %v1207 = vpack.c.b16 %v991, %v983
        %v1208 = vpack.c.b16 %v992, %v984
        %v1209 = vpack.c.b16 %v993, %v985
        %v1210 = vpack.c.b16 %v1002, %v994
        %v1211 = vpack.c.b16 %v1003, %v995
        %v1212 = vpack.c.b16 %v1004, %v996
        %v1213 = vpack.c.b16 %v1005, %v997
        %v1214 = vpack.c.b16 %v1006, %v998
        %v1215 = vpack.c.b16 %v1007, %v999
        %v1216 = vpack.c.b16 %v1008, %v1000
        %v1217 = vpack.c.b16 %v1009, %v1001
        %v1218 = vpack.c.b16 %v1018, %v1010
        %v1219 = vpack.c.b16 %v1019, %v1011
        %v1220 = vpack.c.b16 %v1020, %v1012
        %v1221 = vpack.c.b16 %v1021, %v1013
        %v1222 = vpack.c.b16 %v1022, %v1014
        %v1223 = vpack.c.b16 %v1023, %v1015
        %v1224 = vpack.c.b16 %v1024, %v1016
        %v1225 = vpack.c.b16 %v1025, %v1017
        %v1226 = vpack.c.b16 %v1034, %v1026
        %v1227 = vpack.c.b16 %v1035, %v1027
        %v1228 = vpack.c.b16 %v1036, %v1028
        %v1229 = vpack.c.b16 %v1037, %v1029
        %v1230 = vpack.c.b16 %v1038, %v1030
        %v1231 = vpack.c.b16 %v1039, %v1031
        %v1232 = vpack.c.b16 %v1040, %v1032
        %v1233 = vpack.c.b16 %v1041, %v1033
        %v1234 = vpack.c.b16 %v1050, %v1042
        %v1235 = vpack.c.b16 %v1051, %v1043
        %v1236 = vpack.c.b16 %v1052, %v1044
        %v1237 = vpack.c.b16 %v1053, %v1045
        %v1238 = vpack.c.b16 %v1054, %v1046
        %v1239 = vpack.c.b16 %v1055, %v1047
        %v1240 = vpack.c.b16 %v1056, %v1048
        %v1241 = vpack.c.b16 %v1057, %v1049
        %v1242 = vpack.c.b16 %v1066, %v1058
        %v1243 = vpack.c.b16 %v1067, %v1059
        %v1244 = vpack.c.b16 %v1068, %v1060
        %v1245 = vpack.c.b16 %v1069, %v1061
        %v1246 = vpack.c.b16 %v1070, %v1062
        %v1247 = vpack.c.b16 %v1071, %v1063
        %v1248 = vpack.c.b16 %v1072, %v1064
        %v1249 = vpack.c.b16 %v1073, %v1065
        %v1250 = vpack.c.b16 %v1082, %v1074
        %v1251 = vpack.c.b16 %v1083, %v1075
        %v1252 = vpack.c.b16 %v1084, %v1076
        %v1253 = vpack.c.b16 %v1085, %v1077
        %v1254 = vpack.c.b16 %v1086, %v1078
        %v1255 = vpack.c.b16 %v1087, %v1079
        %v1256 = vpack.c.b16 %v1088, %v1080
        %v1257 = vpack.c.b16 %v1089, %v1081
        %v1258 = vpack.c.b16 %v1098, %v1090
        %v1259 = vpack.c.b16 %v1099, %v1091
        %v1260 = vpack.c.b16 %v1100, %v1092
        %v1261 = vpack.c.b16 %v1101, %v1093
        %v1262 = vpack.c.b16 %v1102, %v1094
        %v1263 = vpack.c.b16 %v1103, %v1095
        %v1264 = vpack.c.b16 %v1104, %v1096
        %v1265 = vpack.c.b16 %v1105, %v1097
        %v1266 = vpack.c.b16 %v1114, %v1106
        %v1267 = vpack.c.b16 %v1115, %v1107
        %v1268 = vpack.c.b16 %v1116, %v1108
        %v1269 = vpack.c.b16 %v1117, %v1109
        %v1270 = vpack.c.b16 %v1118, %v1110
        %v1271 = vpack.c.b16 %v1119, %v1111
        %v1272 = vpack.c.b16 %v1120, %v1112
        %v1273 = vpack.c.b16 %v1121, %v1113
        %v1274 = vpack.c.b16 %v1130, %v1122
        %v1275 = vpack.c.b16 %v1131, %v1123
        %v1276 = vpack.c.b16 %v1132, %v1124
        %v1277 = vpack.c.b16 %v1133, %v1125
        %v1278 = vpack.c.b16 %v1134, %v1126
        %v1279 = vpack.c.b16 %v1135, %v1127
        %v1280 = vpack.c.b16 %v1136, %v1128
        %v1281 = vpack.c.b16 %v1137, %v1129
        %v1282 = vpack.c.b16 %v1146, %v1138
        %v1283 = vpack.c.b16 %v1147, %v1139
        %v1284 = vpack.c.b16 %v1148, %v1140
        %v1285 = vpack.c.b16 %v1149, %v1141
        %v1286 = vpack.c.b16 %v1150, %v1142
        %v1287 = vpack.c.b16 %v1151, %v1143
        %v1288 = vpack.c.b16 %v1152, %v1144
        %v1289 = vpack.c.b16 %v1153, %v1145
        %v1290 = vpack.c.b16 %v1162, %v1154
        %v1291 = vpack.c.b16 %v1163, %v1155
        %v1292 = vpack.c.b16 %v1164, %v1156
        %v1293 = vpack.c.b16 %v1165, %v1157
        %v1294 = vpack.c.b16 %v1166, %v1158
        %v1295 = vpack.c.b16 %v1167, %v1159
        %v1296 = vpack.c.b16 %v1168, %v1160
        %v1297 = vpack.c.b16 %v1169, %v1161
        %1426 = vmatprep.subr.bf16.mxu0 %v1227
        %1427 = vmatpush1.bf16.msra.mxu0 %v1226
        %1428 = vmatprep.subr.bf16.mxu0 %v1219
        %1429 = vmatpush1.bf16.msra.mxu0 %v1218
        %1430 = vmatprep.subr.bf16.mxu0 %v1211
        %1431 = vmatpush1.bf16.msra.mxu0 %v1210
        %1432 = vmatprep.subr.bf16.mxu0 %v1203
        %1433 = vmatpush1.bf16.msra.mxu0 %v1202
        %1434 = vmatprep.subr.bf16.mxu0 %v1195
        %1435 = vmatpush1.bf16.msra.mxu0 %v1194
        %1436 = vmatprep.subr.bf16.mxu0 %v1187
        %1437 = vmatpush1.bf16.msra.mxu0 %v1186
        %1438 = vmatprep.subr.bf16.mxu0 %v1179
        %1439 = vmatpush1.bf16.msra.mxu0 %v1178
        %1440 = vmatprep.subr.bf16.mxu0 %v1171
        %1441 = vmatpush1.bf16.msra.mxu0 %v1170
        %1442 = vmatprep.subr.bf16.mxu0 %v1291
        %1443 = vmatpush2.bf16.msra.mxu0 %v1290
        %1444 = vmatprep.subr.bf16.mxu0 %v1283
        %1445 = vmatpush2.bf16.msra.mxu0 %v1282
        %1446 = vmatprep.subr.bf16.mxu0 %v1275
        %1447 = vmatpush2.bf16.msra.mxu0 %v1274
        %1448 = vmatprep.subr.bf16.mxu0 %v1267
        %1449 = vmatpush2.bf16.msra.mxu0 %v1266
        %1450 = vmatprep.subr.bf16.mxu0 %v1259
        %1451 = vmatpush2.bf16.msra.mxu0 %v1258
        %1452 = vmatprep.subr.bf16.mxu0 %v1251
        %1453 = vmatpush2.bf16.msra.mxu0 %v1250
        %1454 = vmatprep.subr.bf16.mxu0 %v1243
        %1455 = vmatpush2.bf16.msra.mxu0 %v1242
        %1456 = vmatprep.subr.bf16.mxu0 %v1235
        %1457 = vmatpush2.bf16.msra.mxu0 %v1234
        %1458 = vmatprep.mubr.bf16.mxu0 %v615
        %1459 = vmatmul.mubr.bf16.gmra.mxu0 %v614
        %v1460 = vpop.f32.mrf.mxu0
        %v1461 = vadd.f32 %v749, %v1460
        %v1462 = vpop.f32.mrf.mxu0
        %v1463 = vadd.f32 %v753, %v1462
        %v1464 = vpop.f32.mrf.mxu0
        %v1465 = vpop.f32.mrf.mxu0
        %1466 = vdwg.mxu0
        %1467 = vmatprep.subr.bf16.mxu0 %v1229
        %1468 = vmatpush1.bf16.msra.mxu0 %v1228
        %1469 = vmatprep.subr.bf16.mxu0 %v1221
        %1470 = vmatpush1.bf16.msra.mxu0 %v1220
        %1471 = vmatprep.subr.bf16.mxu0 %v1213
        %1472 = vmatpush1.bf16.msra.mxu0 %v1212
        %1473 = vmatprep.subr.bf16.mxu0 %v1205
        %1474 = vmatpush1.bf16.msra.mxu0 %v1204
        %1475 = vmatprep.subr.bf16.mxu0 %v1197
        %1476 = vmatpush1.bf16.msra.mxu0 %v1196
        %1477 = vmatprep.subr.bf16.mxu0 %v1189
        %1478 = vmatpush1.bf16.msra.mxu0 %v1188
        %1479 = vmatprep.subr.bf16.mxu0 %v1181
        %1480 = vmatpush1.bf16.msra.mxu0 %v1180
        %1481 = vmatprep.subr.bf16.mxu0 %v1173
        %1482 = vmatpush1.bf16.msra.mxu0 %v1172
        %1483 = vmatprep.subr.bf16.mxu0 %v1293
        %1484 = vmatpush2.bf16.msra.mxu0 %v1292
        %1485 = vmatprep.subr.bf16.mxu0 %v1285
        %1486 = vmatpush2.bf16.msra.mxu0 %v1284
        %1487 = vmatprep.subr.bf16.mxu0 %v1277
        %1488 = vmatpush2.bf16.msra.mxu0 %v1276
        %1489 = vmatprep.subr.bf16.mxu0 %v1269
        %1490 = vmatpush2.bf16.msra.mxu0 %v1268
        %1491 = vmatprep.subr.bf16.mxu0 %v1261
        %1492 = vmatpush2.bf16.msra.mxu0 %v1260
        %1493 = vmatprep.subr.bf16.mxu0 %v1253
        %1494 = vmatpush2.bf16.msra.mxu0 %v1252
        %1495 = vmatprep.subr.bf16.mxu0 %v1245
        %1496 = vmatpush2.bf16.msra.mxu0 %v1244
        %1497 = vmatprep.subr.bf16.mxu0 %v1237
        %1498 = vmatpush2.bf16.msra.mxu0 %v1236
        %1499 = vmatprep.mubr.bf16.mxu0 %v615
        %1500 = vmatmul.mubr.bf16.gmra.mxu0 %v614
        %v1501 = vpop.f32.mrf.mxu0
        %v1502 = vadd.f32 %v757, %v1501
        %v1503 = vpop.f32.mrf.mxu0
        %v1504 = vadd.f32 %v761, %v1503
        %v1505 = vpop.f32.mrf.mxu0
        %v1506 = vpop.f32.mrf.mxu0
        %1507 = vdwg.mxu0
        %1508 = vmatprep.subr.bf16.mxu0 %v1231
        %1509 = vmatpush1.bf16.msra.mxu0 %v1230
        %1510 = vmatprep.subr.bf16.mxu0 %v1223
        %1511 = vmatpush1.bf16.msra.mxu0 %v1222
        %1512 = vmatprep.subr.bf16.mxu0 %v1215
        %1513 = vmatpush1.bf16.msra.mxu0 %v1214
        %1514 = vmatprep.subr.bf16.mxu0 %v1207
        %1515 = vmatpush1.bf16.msra.mxu0 %v1206
        %1516 = vmatprep.subr.bf16.mxu0 %v1199
        %1517 = vmatpush1.bf16.msra.mxu0 %v1198
        %1518 = vmatprep.subr.bf16.mxu0 %v1191
        %1519 = vmatpush1.bf16.msra.mxu0 %v1190
        %1520 = vmatprep.subr.bf16.mxu0 %v1183
        %1521 = vmatpush1.bf16.msra.mxu0 %v1182
        %1522 = vmatprep.subr.bf16.mxu0 %v1175
        %1523 = vmatpush1.bf16.msra.mxu0 %v1174
        %1524 = vmatprep.subr.bf16.mxu0 %v1295
        %1525 = vmatpush2.bf16.msra.mxu0 %v1294
        %1526 = vmatprep.subr.bf16.mxu0 %v1287
        %1527 = vmatpush2.bf16.msra.mxu0 %v1286
        %1528 = vmatprep.subr.bf16.mxu0 %v1279
        %1529 = vmatpush2.bf16.msra.mxu0 %v1278
        %1530 = vmatprep.subr.bf16.mxu0 %v1271
        %1531 = vmatpush2.bf16.msra.mxu0 %v1270
        %1532 = vmatprep.subr.bf16.mxu0 %v1263
        %1533 = vmatpush2.bf16.msra.mxu0 %v1262
        %1534 = vmatprep.subr.bf16.mxu0 %v1255
        %1535 = vmatpush2.bf16.msra.mxu0 %v1254
        %1536 = vmatprep.subr.bf16.mxu0 %v1247
        %1537 = vmatpush2.bf16.msra.mxu0 %v1246
        %1538 = vmatprep.subr.bf16.mxu0 %v1239
        %1539 = vmatpush2.bf16.msra.mxu0 %v1238
        %1540 = vmatprep.mubr.bf16.mxu0 %v615
        %1541 = vmatmul.mubr.bf16.gmra.mxu0 %v614
        %v1542 = vpop.f32.mrf.mxu0
        %v1543 = vadd.f32 %v765, %v1542
        %v1544 = vpop.f32.mrf.mxu0
        %v1545 = vadd.f32 %v769, %v1544
        %v1546 = vpop.f32.mrf.mxu0
        %v1547 = vpop.f32.mrf.mxu0
        %1548 = vdwg.mxu0
        %1549 = vmatprep.subr.bf16.mxu0 %v1233
        %1550 = vmatpush1.bf16.msra.mxu0 %v1232
        %1551 = vmatprep.subr.bf16.mxu0 %v1225
        %1552 = vmatpush1.bf16.msra.mxu0 %v1224
        %1553 = vmatprep.subr.bf16.mxu0 %v1217
        %1554 = vmatpush1.bf16.msra.mxu0 %v1216
        %1555 = vmatprep.subr.bf16.mxu0 %v1209
        %1556 = vmatpush1.bf16.msra.mxu0 %v1208
        %1557 = vmatprep.subr.bf16.mxu0 %v1201
        %1558 = vmatpush1.bf16.msra.mxu0 %v1200
        %1559 = vmatprep.subr.bf16.mxu0 %v1193
        %1560 = vmatpush1.bf16.msra.mxu0 %v1192
        %1561 = vmatprep.subr.bf16.mxu0 %v1185
        %1562 = vmatpush1.bf16.msra.mxu0 %v1184
        %1563 = vmatprep.subr.bf16.mxu0 %v1177
        %1564 = vmatpush1.bf16.msra.mxu0 %v1176
        %1565 = vmatprep.subr.bf16.mxu0 %v1297
        %1566 = vmatpush2.bf16.msra.mxu0 %v1296
        %1567 = vmatprep.subr.bf16.mxu0 %v1289
        %1568 = vmatpush2.bf16.msra.mxu0 %v1288
        %1569 = vmatprep.subr.bf16.mxu0 %v1281
        %1570 = vmatpush2.bf16.msra.mxu0 %v1280
        %1571 = vmatprep.subr.bf16.mxu0 %v1273
        %1572 = vmatpush2.bf16.msra.mxu0 %v1272
        %1573 = vmatprep.subr.bf16.mxu0 %v1265
        %1574 = vmatpush2.bf16.msra.mxu0 %v1264
        %1575 = vmatprep.subr.bf16.mxu0 %v1257
        %1576 = vmatpush2.bf16.msra.mxu0 %v1256
        %1577 = vmatprep.subr.bf16.mxu0 %v1249
        %1578 = vmatpush2.bf16.msra.mxu0 %v1248
        %1579 = vmatprep.subr.bf16.mxu0 %v1241
        %1580 = vmatpush2.bf16.msra.mxu0 %v1240
        %1581 = vmatprep.mubr.bf16.mxu0 %v615
        %1582 = vmatmul.mubr.bf16.gmra.mxu0 %v614
        %v1583 = vpop.f32.mrf.mxu0
        %v1584 = vadd.f32 %v773, %v1583
        %v1585 = vpop.f32.mrf.mxu0
        %v1586 = vadd.f32 %v777, %v1585
        %v1587 = vpop.f32.mrf.mxu0
        %v1588 = vpop.f32.mrf.mxu0
        %1589 = vdwg.mxu0
        %v1590 = vmax.f32 %v1461, 0.0
        %v1591 = vmax.f32 %v1463, 0.0
        %v1592 = vmax.f32 %v1502, 0.0
        %v1593 = vmax.f32 %v1504, 0.0
        %v1594 = vmax.f32 %v1543, 0.0
        %v1595 = vmax.f32 %v1545, 0.0
        %v1596 = vmax.f32 %v1584, 0.0
        %v1597 = vmax.f32 %v1586, 0.0
        %v1598 = vpack.c.bf16 %v1590, %v1590
        %v1599 = vpack.c.bf16 %v1591, %v1591
        %v1600 = vpack.c.bf16 %v1592, %v1592
        %v1601 = vpack.c.bf16 %v1593, %v1593
        %v1602 = vpack.c.bf16 %v1594, %v1594
        %v1603 = vpack.c.bf16 %v1595, %v1595
        %v1604 = vpack.c.bf16 %v1596, %v1596
        %v1605 = vpack.c.bf16 %v1597, %v1597
        %v1614 = vcombine.low %v1598, %v1599
        %v1615 = vcombine.low %v1600, %v1601
        %v1616 = vcombine.low %v1602, %v1603
        %v1617 = vcombine.low %v1604, %v1605
        %v1619 = vunpack.c.l.s4 1966171168
        %v1620 = vunpack.c.0.s8 %v1619
        %v1621 = vlaneseq
        %v1622 = vshrl.u32 %v1621, 7
        %v1623 = vsub.s32 %v1620, %v1622
        %v1624 = vrot.slane %v1614, %v1623
        %v1626 = vunpack.c.l.s4 1966171168
        %v1627 = vunpack.c.0.s8 %v1626
        %v1628 = vlaneseq
        %v1629 = vshrl.u32 %v1628, 7
        %v1630 = vsub.s32 %v1627, %v1629
        %v1631 = vrot.slane %v1615, %v1630
        %v1633 = vunpack.c.l.s4 1966171168
        %v1634 = vunpack.c.0.s8 %v1633
        %v1635 = vlaneseq
        %v1636 = vshrl.u32 %v1635, 7
        %v1637 = vsub.s32 %v1634, %v1636
        %v1638 = vrot.slane %v1616, %v1637
        %v1640 = vunpack.c.l.s4 1966171168
        %v1641 = vunpack.c.0.s8 %v1640
        %v1642 = vlaneseq
        %v1643 = vshrl.u32 %v1642, 7
        %v1644 = vsub.s32 %v1641, %v1643
        %v1645 = vrot.slane %v1617, %v1644
        %v1646 = vcombine.low %v1624, %v1631
        %v1647 = vcombine.low %v1638, %v1645
        %v1649 = vunpack.c.l.s4 1966171168
        %v1650 = vunpack.c.0.s8 %v1649
        %v1651 = vlaneseq
        %v1652 = vshrl.u32 %v1651, 7
        %v1653 = vsub.s32 %v1650, %v1652
        %v1654 = vrot.slane %v1646, %v1653
        %v1656 = vunpack.c.l.s4 1966171168
        %v1657 = vunpack.c.0.s8 %v1656
        %v1658 = vlaneseq
        %v1659 = vshrl.u32 %v1658, 7
        %v1660 = vsub.s32 %v1657, %v1659
        %v1661 = vrot.slane %v1647, %v1660
        %v1662 = vcombine.low %v1654, %v1661
        %1664 = vst [vmem:[%s516] sm:$0xff] %v1662
        %s1665 = smul.u32 8, %s16
        %p1666 = scmp.lt.s32.totalorder %s1665, 79
        %s1667 = scalar_select %p1666, %s1665, 79
        %s1668 = scalar_lea.vmem %s5, %s1667
        // Predicated region
        $region64: #{vae_audio_forward.7} parent=58 // pred_check
          %p1669 = pneg %p149
        $region65: #{vae_audio_forward.7} parent=58 // pred_check_branch
          %1671 = sbr.rel (%p1669) target = $region67
        $region66: #{vae_audio_forward.7} parent=58 // pred_region
          %s1672 = smul.u32 8, %s16
        $region67: #{vae_audio_forward.7} parent=58 // pred_fallthru
          _
      $region59: #{vae_audio_forward.7} parent=5 // pred_fallthru
        _
      %p1673 = scmp.le.s32.totalorder 2, %s11
      // Predicated region
      $region68: #{vae_audio_forward.7} parent=5 // pred_check
        %p1674 = pneg %p1673
      $region69: #{vae_audio_forward.7} parent=5 // pred_check_branch
        %1676 = sbr.rel (%p1674) target = $region71
      $region70: #{vae_audio_forward.7} parent=5 // pred_region
        %s1677 = ssub.s32 %s11, 2
        // Predicated region
        $region72: #{vae_audio_forward.7} parent=70 // pred_check
          %p1678 = pneg %p155
        $region73: #{vae_audio_forward.7} parent=70 // pred_check_branch
          %1680 = sbr.rel (%p1678) target = $region75
        $region74: #{vae_audio_forward.7} parent=70 // pred_region
          %s1681 = smul.u32 8, %s17
          %p1682 = scmp.lt.s32.totalorder %s1681, 79
          %s1683 = scalar_select %p1682, %s1681, 79
          %s1684 = scalar_lea.vmem %s5, %s1683
        $region75: #{vae_audio_forward.7} parent=70 // pred_fallthru
          _
      $region71: #{vae_audio_forward.7} parent=5 // pred_fallthru
        _
    $region6: #{vae_audio_forward.7} parent=1 // loop_footer
      %s15 = sadd.s32 1, %s11
    $region7: #{vae_audio_forward.7} parent=1 // loop_footer_branch
      %10 = sbr.rel target = $region3
    $region8: #{vae_audio_forward.7} parent=1 // loop_exit
      _

// kernel: vae_audio_forward.6
$region0: #{vae_audio_forward.6}
  #allocation0 [shape = 'u32[]', space=smem, size = 0x4, offset = 0x4, fixed_abs, tag = 'smem constant byte address 0x4 - core index']
  #allocation1 [shape = 'u32[144,128]{1,0:T(1,128)}', space=vmem, size = 0x12000, scoped, tag = 'internal scratch']
  #allocation2 [shape = 'f32[2,256]{1,0:T(2,128)}', space=vmem, size = 0x800, scoped, tag = 'scratch operand']
  %s0 = inlined_call_operand.vmem [shape: bf16[2,10240], index: 0, kind: input, shape index: {}]
  %s1 = inlined_call_operand.hbm [shape: bf16[10240,256], index: 1, kind: input, shape index: {}]
  %s2 = inlined_call_operand.hbm [shape: f32[1,256], index: 2, kind: input, shape index: {}]
  %s3 = inlined_call_operand.hbm [shape: f32[256,128], index: 3, kind: input, shape index: {}]
  %s4 = inlined_call_operand.hbm [shape: f32[1,128], index: 4, kind: input, shape index: {}]
  %s5 = inlined_call_operand.vmem [shape: f32[128,16], index: 5, kind: input, shape index: {}]
  %s6 = inlined_call_operand.hbm [shape: f32[1,16], index: 6, kind: input, shape index: {}]
  %s7 = inlined_call_operand.vmem [shape: f32[128,16], index: 7, kind: input, shape index: {}]
  %s8 = inlined_call_operand.hbm [shape: f32[1,16], index: 8, kind: input, shape index: {}]
  %s9 = inlined_call_operand.hbm [shape: f32[2,16], index: 9, kind: input, shape index: {}]
  %s10 = inlined_call_operand.hbm [shape: f32[2,16], index: 10, kind: output, shape index: {0}]
  %s11 = inlined_call_operand.hbm [shape: f32[2,16], index: 11, kind: output, shape index: {1}]
  %s12 = inlined_call_operand.vmem [shape: f32[2,16], index: 12, kind: output, shape index: {2}]
  %13 = xla_tuple %s10, %s11, %s12
  %s14 = sld [smem:[#allocation0]]
  $region125: #{vae_audio_forward.6} parent=0
    _
  %s16 = ssub.s32 1, %s14
  %s17 = scalar_select 0, %s16, %s14
  $region1: #{vae_audio_forward.6} parent=0
    #allocation3 [shape = 'u8[2621440]{0}', space=vmem, size = 0x280000, scoped, tag = 'input window, operand 1']
    #allocation4 [shape = 's32[2]{0}', space=sflag, size = 0x8, scoped, tag = 'scoped memory for vae_audio_forward.6']
    #allocation5 [shape = 's32[2]{0}', space=sflag, size = 0x8, scoped, tag = 'scoped memory for vae_audio_forward.6']
    #allocation6 [shape = 'u8[1024]{0}', space=vmem, size = 0x400, scoped, tag = 'input window, operand 2, single buffered']
    #allocation7 [shape = 's32[1]{0}', space=sflag, size = 0x4, scoped, tag = 'scoped memory for vae_audio_forward.6']
    #allocation8 [shape = 'u8[131072]{0}', space=vmem, size = 0x20000, scoped, tag = 'input window, operand 3, single buffered']
    #allocation9 [shape = 'u8[512]{0}', space=vmem, size = 0x400, scoped, tag = 'input window, operand 4, single buffered']
    #allocation10 [shape = 's32[1]{0}', space=sflag, size = 0x4, scoped, tag = 'scoped memory for vae_audio_forward.6']
    #allocation11 [shape = 'u8[512]{0}', space=vmem, size = 0x400, scoped, tag = 'input window, operand 6, single buffered']
    #allocation12 [shape = 'u8[512]{0}', space=vmem, size = 0x400, scoped, tag = 'input window, operand 8, single buffered']
    #allocation13 [shape = 's32[1]{0}', space=sflag, size = 0x4, scoped, tag = 'scoped memory for vae_audio_forward.6']
    #allocation14 [shape = 'u8[1024]{0}', space=vmem, size = 0x400, scoped, tag = 'input window, operand 9, single buffered']
    #allocation15 [shape = 'u8[1024]{0}', space=vmem, size = 0x400, scoped, tag = 'output window, operand 0, single buffered']
    #allocation16 [shape = 'u8[1024]{0}', space=vmem, size = 0x400, scoped, tag = 'output window, operand 1, single buffered']
    #allocation17 [shape = 's32[1]{0}', space=sflag, size = 0x4, scoped, tag = 'scoped memory for vae_audio_forward.6']
    %18 = vsyncpa [#allocation4], 0
    %s19 = scalar_lea.sflag [#allocation4], 1
    %20 = vsyncpa %s19, 0
    %21 = vsyncpa [#allocation7], 0
    %22 = vsyncpa [#allocation10], 0
    %23 = vsyncpa [#allocation13], 0
    %24 = vsyncpa [#allocation5], 0
    %25 = vsyncpa [#allocation17], 0
    loop: start=0, step=1, limit=6
    $region2: #{vae_audio_forward.6} parent=1 // loop_pre_header
      _
    $region3: #{vae_audio_forward.6} parent=1 // loop_header
      %s27 = sphi 0, %s31
      %p28 = scmp.ge.s32.totalorder %s27, 6
      %s37 = sphi 0, %s39
      %s40 = sphi 0, %s37
      %s41 = sphi 0, %s40
      %s57 = sphi 0, %s41
      %s63 = sphi 0, %s65
      %s66 = sphi 0, %s63
      %s67 = sphi 0, %s66
      %s83 = sphi 0, %s67
      %s87 = sphi 0, %s87
      %s89 = sphi 0, %s87
      %s90 = sphi 0, %s89
      %s104 = sphi 0, %s90
      %s108 = sphi 0, %s108
      %s110 = sphi 0, %s108
      %s111 = sphi 0, %s110
      %s125 = sphi 0, %s111
      %s129 = sphi 0, %s129
      %s131 = sphi 0, %s129
      %s132 = sphi 0, %s131
      %s146 = sphi 0, %s132
      %s150 = sphi 0, %s150
      %s152 = sphi 0, %s150
      %s153 = sphi 0, %s152
      %s167 = sphi 0, %s153
      %s171 = sphi 0, %s171
      %s173 = sphi 0, %s171
      %s174 = sphi 0, %s173
      %s188 = sphi 0, %s174
      %s192 = sphi 0, %s192
      %s194 = sphi 0, %s192
      %s195 = sphi 0, %s194
      %s209 = sphi 0, %s195
      %s213 = sphi 0, %s213
      %s215 = sphi 0, %s213
      %s216 = sphi 0, %s215
      %s230 = sphi 0, %s216
      %s234 = sphi 0, %s234
      %s236 = sphi 0, %s234
      %s237 = sphi 0, %s236
      %s251 = sphi 0, %s237
      %s255 = sphi 0, %s255
      %s257 = sphi 0, %s255
      %s258 = sphi 0, %s257
      %s272 = sphi 0, %s258
      %s276 = sphi 0, %s276
      %s278 = sphi 0, %s276
      %s279 = sphi 0, %s278
      %s293 = sphi 0, %s279
      %s297 = sphi 0, %s297
      %s299 = sphi 0, %s297
      %s300 = sphi 0, %s299
      %s314 = sphi 0, %s300
    $region4: #{vae_audio_forward.6} parent=1 // loop_header_branch
      %30 = sbr.rel (%p28) target = $region8
    $region5: #{vae_audio_forward.6} parent=1 // loop_body
      %s32 = ssub.s32 %s27, 1
      %s33 = ssub.s32 %s27, 2
      %s34 = sadd.s32 %s27, 1
      %s35 = ssub.s32 %s27, %s34
      %p36 = scmp.eq.s32.totalorder %s35, 0
      %s38 = sadd.s32 %s37, 1
      %s39 = scalar_select %p36, %s37, %s38
      %p42 = pneg %p36
      %p43 = scmp.eq.s32.totalorder %s27, 3
      %p44 = por %p42, %p43
      %p45 = scmp.ne.s32.totalorder %s37, %s40
      %p46 = scmp.eq.s32.totalorder %s27, 0
      %p47 = por %p45, %p46
      %p48 = scmp.ne.s32.totalorder %s37, %s40
      %p49 = scmp.eq.s32.totalorder %s32, 3
      %p50 = por %p48, %p49
      %p51 = scmp.ne.s32.totalorder %s40, %s41
      %p52 = scmp.eq.s32.totalorder %s32, 0
      %p53 = por %p51, %p52
      %p54 = scmp.ne.s32.totalorder %s40, %s41
      %p55 = scmp.eq.s32.totalorder %s33, 3
      %p56 = por %p54, %p55
      %p58 = scmp.ne.s32.totalorder %s41, %s57
      %p59 = scmp.eq.s32.totalorder %s33, 0
      %p60 = por %p58, %p59
      %s61 = ssub.s32 %s27, %s34
      %p62 = scmp.eq.s32.totalorder %s61, 0
      %s64 = sadd.s32 %s63, 1
      %s65 = scalar_select %p62, %s63, %s64
      %p68 = pneg %p62
      %p69 = scmp.eq.s32.totalorder %s27, 3
      %p70 = por %p68, %p69
      %p71 = scmp.ne.s32.totalorder %s63, %s66
      %p72 = scmp.eq.s32.totalorder %s27, 0
      %p73 = por %p71, %p72
      %p74 = scmp.ne.s32.totalorder %s63, %s66
      %p75 = scmp.eq.s32.totalorder %s32, 3
      %p76 = por %p74, %p75
      %p77 = scmp.ne.s32.totalorder %s66, %s67
      %p78 = scmp.eq.s32.totalorder %s32, 0
      %p79 = por %p77, %p78
      %p80 = scmp.ne.s32.totalorder %s66, %s67
      %p81 = scmp.eq.s32.totalorder %s33, 3
      %p82 = por %p80, %p81
      %p84 = scmp.ne.s32.totalorder %s67, %s83
      %p85 = scmp.eq.s32.totalorder %s33, 0
      %p86 = por %p84, %p85
      %s88 = sadd.s32 %s87, 1
      %p91 = scmp.eq.s32.totalorder %s27, 3
      %p92 = scmp.ne.s32.totalorder %s87, %s89
      %p93 = scmp.eq.s32.totalorder %s27, 0
      %p94 = por %p92, %p93
      %p95 = scmp.ne.s32.totalorder %s87, %s89
      %p96 = scmp.eq.s32.totalorder %s32, 3
      %p97 = por %p95, %p96
      %p98 = scmp.ne.s32.totalorder %s89, %s90
      %p99 = scmp.eq.s32.totalorder %s32, 0
      %p100 = por %p98, %p99
      %p101 = scmp.ne.s32.totalorder %s89, %s90
      %p102 = scmp.eq.s32.totalorder %s33, 3
      %p103 = por %p101, %p102
      %p105 = scmp.ne.s32.totalorder %s90, %s104
      %p106 = scmp.eq.s32.totalorder %s33, 0
      %p107 = por %p105, %p106
      %s109 = sadd.s32 %s108, 1
      %p112 = scmp.eq.s32.totalorder %s27, 3
      %p113 = scmp.ne.s32.totalorder %s108, %s110
      %p114 = scmp.eq.s32.totalorder %s27, 0
      %p115 = por %p113, %p114
      %p116 = scmp.ne.s32.totalorder %s108, %s110
      %p117 = scmp.eq.s32.totalorder %s32, 3
      %p118 = por %p116, %p117
      %p119 = scmp.ne.s32.totalorder %s110, %s111
      %p120 = scmp.eq.s32.totalorder %s32, 0
      %p121 = por %p119, %p120
      %p122 = scmp.ne.s32.totalorder %s110, %s111
      %p123 = scmp.eq.s32.totalorder %s33, 3
      %p124 = por %p122, %p123
      %p126 = scmp.ne.s32.totalorder %s111, %s125
      %p127 = scmp.eq.s32.totalorder %s33, 0
      %p128 = por %p126, %p127
      %s130 = sadd.s32 %s129, 1
      %p133 = scmp.eq.s32.totalorder %s27, 3
      %p134 = scmp.ne.s32.totalorder %s129, %s131
      %p135 = scmp.eq.s32.totalorder %s27, 0
      %p136 = por %p134, %p135
      %p137 = scmp.ne.s32.totalorder %s129, %s131
      %p138 = scmp.eq.s32.totalorder %s32, 3
      %p139 = por %p137, %p138
      %p140 = scmp.ne.s32.totalorder %s131, %s132
      %p141 = scmp.eq.s32.totalorder %s32, 0
      %p142 = por %p140, %p141
      %p143 = scmp.ne.s32.totalorder %s131, %s132
      %p144 = scmp.eq.s32.totalorder %s33, 3
      %p145 = por %p143, %p144
      %p147 = scmp.ne.s32.totalorder %s132, %s146
      %p148 = scmp.eq.s32.totalorder %s33, 0
      %p149 = por %p147, %p148
      %s151 = sadd.s32 %s150, 1
      %p154 = scmp.eq.s32.totalorder %s27, 3
      %p155 = scmp.ne.s32.totalorder %s150, %s152
      %p156 = scmp.eq.s32.totalorder %s27, 0
      %p157 = por %p155, %p156
      %p158 = scmp.ne.s32.totalorder %s150, %s152
      %p159 = scmp.eq.s32.totalorder %s32, 3
      %p160 = por %p158, %p159
      %p161 = scmp.ne.s32.totalorder %s152, %s153
      %p162 = scmp.eq.s32.totalorder %s32, 0
      %p163 = por %p161, %p162
      %p164 = scmp.ne.s32.totalorder %s152, %s153
      %p165 = scmp.eq.s32.totalorder %s33, 3
      %p166 = por %p164, %p165
      %p168 = scmp.ne.s32.totalorder %s153, %s167
      %p169 = scmp.eq.s32.totalorder %s33, 0
      %p170 = por %p168, %p169
      %s172 = sadd.s32 %s171, 1
      %p175 = scmp.eq.s32.totalorder %s27, 3
      %p176 = scmp.ne.s32.totalorder %s171, %s173
      %p177 = scmp.eq.s32.totalorder %s27, 0
      %p178 = por %p176, %p177
      %p179 = scmp.ne.s32.totalorder %s171, %s173
      %p180 = scmp.eq.s32.totalorder %s32, 3
      %p181 = por %p179, %p180
      %p182 = scmp.ne.s32.totalorder %s173, %s174
      %p183 = scmp.eq.s32.totalorder %s32, 0
      %p184 = por %p182, %p183
      %p185 = scmp.ne.s32.totalorder %s173, %s174
      %p186 = scmp.eq.s32.totalorder %s33, 3
      %p187 = por %p185, %p186
      %p189 = scmp.ne.s32.totalorder %s174, %s188
      %p190 = scmp.eq.s32.totalorder %s33, 0
      %p191 = por %p189, %p190
      %s193 = sadd.s32 %s192, 1
      %p196 = scmp.eq.s32.totalorder %s27, 3
      %p197 = scmp.ne.s32.totalorder %s192, %s194
      %p198 = scmp.eq.s32.totalorder %s27, 0
      %p199 = por %p197, %p198
      %p200 = scmp.ne.s32.totalorder %s192, %s194
      %p201 = scmp.eq.s32.totalorder %s32, 3
      %p202 = por %p200, %p201
      %p203 = scmp.ne.s32.totalorder %s194, %s195
      %p204 = scmp.eq.s32.totalorder %s32, 0
      %p205 = por %p203, %p204
      %p206 = scmp.ne.s32.totalorder %s194, %s195
      %p207 = scmp.eq.s32.totalorder %s33, 3
      %p208 = por %p206, %p207
      %p210 = scmp.ne.s32.totalorder %s195, %s209
      %p211 = scmp.eq.s32.totalorder %s33, 0
      %p212 = por %p210, %p211
      %s214 = sadd.s32 %s213, 1
      %p217 = scmp.eq.s32.totalorder %s27, 3
      %p218 = scmp.ne.s32.totalorder %s213, %s215
      %p219 = scmp.eq.s32.totalorder %s27, 0
      %p220 = por %p218, %p219
      %p221 = scmp.ne.s32.totalorder %s213, %s215
      %p222 = scmp.eq.s32.totalorder %s32, 3
      %p223 = por %p221, %p222
      %p224 = scmp.ne.s32.totalorder %s215, %s216
      %p225 = scmp.eq.s32.totalorder %s32, 0
      %p226 = por %p224, %p225
      %p227 = scmp.ne.s32.totalorder %s215, %s216
      %p228 = scmp.eq.s32.totalorder %s33, 3
      %p229 = por %p227, %p228
      %p231 = scmp.ne.s32.totalorder %s216, %s230
      %p232 = scmp.eq.s32.totalorder %s33, 0
      %p233 = por %p231, %p232
      %s235 = sadd.s32 %s234, 1
      %p238 = scmp.eq.s32.totalorder %s27, 3
      %p239 = scmp.ne.s32.totalorder %s234, %s236
      %p240 = scmp.eq.s32.totalorder %s27, 0
      %p241 = por %p239, %p240
      %p242 = scmp.ne.s32.totalorder %s234, %s236
      %p243 = scmp.eq.s32.totalorder %s32, 3
      %p244 = por %p242, %p243
      %p245 = scmp.ne.s32.totalorder %s236, %s237
      %p246 = scmp.eq.s32.totalorder %s32, 0
      %p247 = por %p245, %p246
      %p248 = scmp.ne.s32.totalorder %s236, %s237
      %p249 = scmp.eq.s32.totalorder %s33, 3
      %p250 = por %p248, %p249
      %p252 = scmp.ne.s32.totalorder %s237, %s251
      %p253 = scmp.eq.s32.totalorder %s33, 0
      %p254 = por %p252, %p253
      %s256 = sadd.s32 %s255, 1
      %p259 = scmp.eq.s32.totalorder %s27, 3
      %p260 = scmp.ne.s32.totalorder %s255, %s257
      %p261 = scmp.eq.s32.totalorder %s27, 0
      %p262 = por %p260, %p261
      %p263 = scmp.ne.s32.totalorder %s255, %s257
      %p264 = scmp.eq.s32.totalorder %s32, 3
      %p265 = por %p263, %p264
      %p266 = scmp.ne.s32.totalorder %s257, %s258
      %p267 = scmp.eq.s32.totalorder %s32, 0
      %p268 = por %p266, %p267
      %p269 = scmp.ne.s32.totalorder %s257, %s258
      %p270 = scmp.eq.s32.totalorder %s33, 3
      %p271 = por %p269, %p270
      %p273 = scmp.ne.s32.totalorder %s258, %s272
      %p274 = scmp.eq.s32.totalorder %s33, 0
      %p275 = por %p273, %p274
      %s277 = sadd.s32 %s276, 1
      %p280 = scmp.eq.s32.totalorder %s27, 3
      %p281 = scmp.ne.s32.totalorder %s276, %s278
      %p282 = scmp.eq.s32.totalorder %s27, 0
      %p283 = por %p281, %p282
      %p284 = scmp.ne.s32.totalorder %s276, %s278
      %p285 = scmp.eq.s32.totalorder %s32, 3
      %p286 = por %p284, %p285
      %p287 = scmp.ne.s32.totalorder %s278, %s279
      %p288 = scmp.eq.s32.totalorder %s32, 0
      %p289 = por %p287, %p288
      %p290 = scmp.ne.s32.totalorder %s278, %s279
      %p291 = scmp.eq.s32.totalorder %s33, 3
      %p292 = por %p290, %p291
      %p294 = scmp.ne.s32.totalorder %s279, %s293
      %p295 = scmp.eq.s32.totalorder %s33, 0
      %p296 = por %p294, %p295
      %s298 = sadd.s32 %s297, 1
      %p301 = scmp.eq.s32.totalorder %s27, 3
      %p302 = scmp.ne.s32.totalorder %s297, %s299
      %p303 = scmp.eq.s32.totalorder %s27, 0
      %p304 = por %p302, %p303
      %p305 = scmp.ne.s32.totalorder %s297, %s299
      %p306 = scmp.eq.s32.totalorder %s32, 3
      %p307 = por %p305, %p306
      %p308 = scmp.ne.s32.totalorder %s299, %s300
      %p309 = scmp.eq.s32.totalorder %s32, 0
      %p310 = por %p308, %p309
      %p311 = scmp.ne.s32.totalorder %s299, %s300
      %p312 = scmp.eq.s32.totalorder %s33, 3
      %p313 = por %p311, %p312
      %p315 = scmp.ne.s32.totalorder %s300, %s314
      %p316 = scmp.eq.s32.totalorder %s33, 0
      %p317 = por %p315, %p316
      %p318 = scmp.le.s32.totalorder 1, %s27
      %p319 = scmp.lt.s32.totalorder %s27, 5
      %p320 = pnand %p318, %p319
      %p321 = pneg %p320
      // Predicated region
      $region9: #{vae_audio_forward.6} parent=5 // pred_check
        _
      $region10: #{vae_audio_forward.6} parent=5 // pred_check_branch
        %323 = sbr.rel (%p320) target = $region12
      $region11: #{vae_audio_forward.6} parent=5 // pred_region
        %s324 = ssub.s32 %s27, 1
        // Predicated region
        $region13: #{vae_audio_forward.6} parent=11 // pred_check
          %p325 = pneg %p100
        $region14: #{vae_audio_forward.6} parent=11 // pred_check_branch
          %327 = sbr.rel (%p325) target = $region16
        $region15: #{vae_audio_forward.6} parent=11 // pred_region
          %s329 = ssub.s32 32, 32
          %330 = vsyncadd [#allocation7], %s329
          %s332 = sshll.u32 [#allocation6], 4
          %s333 = int_to_ptr.vmem [resolvable:$true] %s332
          %335 = dma.hbm_to_vmem [thread:$0]  %s2, 32, %s333, [#allocation7]
        $region16: #{vae_audio_forward.6} parent=11 // pred_fallthru
          _
        // Predicated region
        $region17: #{vae_audio_forward.6} parent=11 // pred_check
          %p336 = pneg %p121
        $region18: #{vae_audio_forward.6} parent=11 // pred_check_branch
          %338 = sbr.rel (%p336) target = $region20
        $region19: #{vae_audio_forward.6} parent=11 // pred_region
          %s340 = ssub.s32 4096, 4096
          %341 = vsyncadd [#allocation7], %s340
          %s342 = sshll.u32 [#allocation8], 4
          %s343 = int_to_ptr.vmem [resolvable:$true] %s342
          %348 = dma.hbm_to_vmem [thread:$0]  %s3, 4096, %s343, [#allocation7], 128, 128, 8
        $region20: #{vae_audio_forward.6} parent=11 // pred_fallthru
          _
        // Predicated region
        $region21: #{vae_audio_forward.6} parent=11 // pred_check
          %p349 = pneg %p142
        $region22: #{vae_audio_forward.6} parent=11 // pred_check_branch
          %351 = sbr.rel (%p349) target = $region24
        $region23: #{vae_audio_forward.6} parent=11 // pred_region
          %s353 = ssub.s32 16, 16
          %354 = vsyncadd [#allocation10], %s353
          %s356 = sshll.u32 [#allocation9], 4
          %s357 = int_to_ptr.vmem [resolvable:$true] %s356
          %359 = dma.hbm_to_vmem [thread:$0]  %s4, 16, %s357, [#allocation10]
        $region24: #{vae_audio_forward.6} parent=11 // pred_fallthru
          _
        // Predicated region
        $region25: #{vae_audio_forward.6} parent=11 // pred_check
          %p360 = pneg %p163
        $region26: #{vae_audio_forward.6} parent=11 // pred_check_branch
          %362 = sbr.rel (%p360) target = $region28
        $region27: #{vae_audio_forward.6} parent=11 // pred_region
          _
        $region28: #{vae_audio_forward.6} parent=11 // pred_fallthru
          _
        // Predicated region
        $region29: #{vae_audio_forward.6} parent=11 // pred_check
          %p363 = pneg %p184
        $region30: #{vae_audio_forward.6} parent=11 // pred_check_branch
          %365 = sbr.rel (%p363) target = $region32
        $region31: #{vae_audio_forward.6} parent=11 // pred_region
          %s367 = ssub.s32 16, 16
          %368 = vsyncadd [#allocation10], %s367
          %s370 = sshll.u32 [#allocation11], 4
          %s371 = int_to_ptr.vmem [resolvable:$true] %s370
          %373 = dma.hbm_to_vmem [thread:$0]  %s6, 16, %s371, [#allocation10]
        $region32: #{vae_audio_forward.6} parent=11 // pred_fallthru
          _
        // Predicated region
        $region33: #{vae_audio_forward.6} parent=11 // pred_check
          %p374 = pneg %p205
        $region34: #{vae_audio_forward.6} parent=11 // pred_check_branch
          %376 = sbr.rel (%p374) target = $region36
        $region35: #{vae_audio_forward.6} parent=11 // pred_region
          _
        $region36: #{vae_audio_forward.6} parent=11 // pred_fallthru
          _
        // Predicated region
        $region37: #{vae_audio_forward.6} parent=11 // pred_check
          %p377 = pneg %p226
        $region38: #{vae_audio_forward.6} parent=11 // pred_check_branch
          %379 = sbr.rel (%p377) target = $region40
        $region39: #{vae_audio_forward.6} parent=11 // pred_region
          %s381 = ssub.s32 16, 16
          %382 = vsyncadd [#allocation13], %s381
          %s384 = sshll.u32 [#allocation12], 4
          %s385 = int_to_ptr.vmem [resolvable:$true] %s384
          %387 = dma.hbm_to_vmem [thread:$0]  %s8, 16, %s385, [#allocation13]
        $region40: #{vae_audio_forward.6} parent=11 // pred_fallthru
          _
        // Predicated region
        $region41: #{vae_audio_forward.6} parent=11 // pred_check
          %p388 = pneg %p247
        $region42: #{vae_audio_forward.6} parent=11 // pred_check_branch
          %390 = sbr.rel (%p388) target = $region44
        $region43: #{vae_audio_forward.6} parent=11 // pred_region
          %s392 = ssub.s32 32, 32
          %393 = vsyncadd [#allocation13], %s392
          %s395 = sshll.u32 [#allocation14], 4
          %s396 = int_to_ptr.vmem [resolvable:$true] %s395
          %398 = dma.hbm_to_vmem [thread:$0]  %s9, 32, %s396, [#allocation13]
        $region44: #{vae_audio_forward.6} parent=11 // pred_fallthru
          _
      $region12: #{vae_audio_forward.6} parent=5 // pred_fallthru
        _
      %p399 = scmp.lt.s32.totalorder %s27, 4
      // Predicated region
      $region45: #{vae_audio_forward.6} parent=5 // pred_check
        %p400 = pneg %p399
      $region46: #{vae_audio_forward.6} parent=5 // pred_check_branch
        %402 = sbr.rel (%p400) target = $region48
      $region47: #{vae_audio_forward.6} parent=5 // pred_region
        // Predicated region
        $region49: #{vae_audio_forward.6} parent=47 // pred_check
          %p403 = pneg %p47
        $region50: #{vae_audio_forward.6} parent=47 // pred_check_branch
          %405 = sbr.rel (%p403) target = $region52
        $region51: #{vae_audio_forward.6} parent=47 // pred_region
          %s406 = smul.u32 20, %s27
          %p407 = scmp.lt.s32.totalorder %s406, 79
          %s408 = scalar_select %p407, %s406, 79
          %s409 = scalar_lea.vmem %s0, %s408
          %s410 = smul.u32 20, %s27
        $region52: #{vae_audio_forward.6} parent=47 // pred_fallthru
          _
        // Predicated region
        $region53: #{vae_audio_forward.6} parent=47 // pred_check
          %p411 = pneg %p73
        $region54: #{vae_audio_forward.6} parent=47 // pred_check_branch
          %413 = sbr.rel (%p411) target = $region56
        $region55: #{vae_audio_forward.6} parent=47 // pred_region
          %s414 = sand.u32 %s63, 1
          %s415 = scalar_lea.sflag [#allocation4], %s414
          %s416 = sand.u32 %s63, 1
          %s417 = smul.addr %s416, 2560
          %s418 = scalar_lea.vmem [#allocation3], %s417
          %s419 = smul.u32 320, %s27
          %s421 = ssub.s32 40960, 40960
          %422 = vsyncadd %s415, %s421
          %s423 = smul.addr %s419, 2
          %s424 = smul.addr %s423, 64
          %s425 = scalar_lea.hbm %s1, %s424
          %s426 = sshll.u32 %s418, 4
          %s427 = int_to_ptr.vmem [resolvable:$true] %s426
          %432 = dma.hbm_to_vmem [thread:$0]  %s425, 40960, %s427, %s415, 128, 128, 8
        $region56: #{vae_audio_forward.6} parent=47 // pred_fallthru
          _
      $region48: #{vae_audio_forward.6} parent=5 // pred_fallthru
        _
      %p433 = scmp.le.s32.totalorder 1, %s27
      %p434 = scmp.lt.s32.totalorder %s27, 5
      %p435 = pnand %p433, %p434
      %p436 = pneg %p435
      // Predicated region
      $region57: #{vae_audio_forward.6} parent=5 // pred_check
        _
      $region58: #{vae_audio_forward.6} parent=5 // pred_check_branch
        %438 = sbr.rel (%p435) target = $region60
      $region59: #{vae_audio_forward.6} parent=5 // pred_region
        %s439 = ssub.s32 %s27, 1
        %s440 = sand.u32 %s66, 1
        %s441 = scalar_lea.sflag [#allocation4], %s440
        %s442 = sand.u32 %s66, 1
        %s443 = smul.addr %s442, 2560
        %s444 = scalar_lea.vmem [#allocation3], %s443
        // Predicated region
        $region61: #{vae_audio_forward.6} parent=59 // pred_check
          %p445 = pneg %p79
        $region62: #{vae_audio_forward.6} parent=59 // pred_check_branch
          %447 = sbr.rel (%p445) target = $region64
        $region63: #{vae_audio_forward.6} parent=59 // pred_region
          %448 = dma.done %s441, 40960
        $region64: #{vae_audio_forward.6} parent=59 // pred_fallthru
          _
        // Predicated region
        $region65: #{vae_audio_forward.6} parent=59 // pred_check
          %p449 = pneg %p100
        $region66: #{vae_audio_forward.6} parent=59 // pred_check_branch
          %451 = sbr.rel (%p449) target = $region68
        $region67: #{vae_audio_forward.6} parent=59 // pred_region
          %452 = dma.done [#allocation7], 32
        $region68: #{vae_audio_forward.6} parent=59 // pred_fallthru
          _
        // Predicated region
        $region69: #{vae_audio_forward.6} parent=59 // pred_check
          %p453 = pneg %p121
        $region70: #{vae_audio_forward.6} parent=59 // pred_check_branch
          %455 = sbr.rel (%p453) target = $region72
        $region71: #{vae_audio_forward.6} parent=59 // pred_region
          %456 = dma.done [#allocation7], 4096
        $region72: #{vae_audio_forward.6} parent=59 // pred_fallthru
          _
        // Predicated region
        $region73: #{vae_audio_forward.6} parent=59 // pred_check
          %p457 = pneg %p142
        $region74: #{vae_audio_forward.6} parent=59 // pred_check_branch
          %459 = sbr.rel (%p457) target = $region76
        $region75: #{vae_audio_forward.6} parent=59 // pred_region
          %460 = dma.done [#allocation10], 16
        $region76: #{vae_audio_forward.6} parent=59 // pred_fallthru
          _
        // Predicated region
        $region77: #{vae_audio_forward.6} parent=59 // pred_check
          %p461 = pneg %p184
        $region78: #{vae_audio_forward.6} parent=59 // pred_check_branch
          %463 = sbr.rel (%p461) target = $region80
        $region79: #{vae_audio_forward.6} parent=59 // pred_region
          %464 = dma.done [#allocation10], 16
        $region80: #{vae_audio_forward.6} parent=59 // pred_fallthru
          _
        // Predicated region
        $region81: #{vae_audio_forward.6} parent=59 // pred_check
          %p465 = pneg %p226
        $region82: #{vae_audio_forward.6} parent=59 // pred_check_branch
          %467 = sbr.rel (%p465) target = $region84
        $region83: #{vae_audio_forward.6} parent=59 // pred_region
          %468 = dma.done [#allocation13], 16
        $region84: #{vae_audio_forward.6} parent=59 // pred_fallthru
          _
        // Predicated region
        $region85: #{vae_audio_forward.6} parent=59 // pred_check
          %p469 = pneg %p247
        $region86: #{vae_audio_forward.6} parent=59 // pred_check_branch
          %471 = sbr.rel (%p469) target = $region88
        $region87: #{vae_audio_forward.6} parent=59 // pred_region
          %472 = dma.done [#allocation13], 32
        $region88: #{vae_audio_forward.6} parent=59 // pred_fallthru
          _
        %s473 = smul.u32 20, %s32
        %p474 = scmp.lt.s32.totalorder %s473, 79
        %s475 = scalar_select %p474, %s473, 79
        %s476 = scalar_lea.vmem %s0, %s475
        %p477 = pneg %p53
        %p478 = pneg %p50
        %s479 = sand.u32 %s66, 1
        %s480 = scalar_lea.sflag [#allocation4], %s479
        %s481 = sand.u32 %s66, 1
        %s482 = smul.addr %s481, 2560
        %s483 = scalar_lea.vmem [#allocation3], %s482
        %p484 = pneg %p79
        %p485 = pneg %p76
        %p486 = pneg %p100
        %p487 = pneg %p97
        %p488 = pneg %p121
        %p489 = pneg %p118
        %p490 = pneg %p142
        %p491 = pneg %p139
        %p492 = pneg %p163
        %p493 = pneg %p160
        %p494 = pneg %p184
        %p495 = pneg %p181
        %p496 = pneg %p205
        %p497 = pneg %p202
        %p498 = pneg %p226
        %p499 = pneg %p223
        %p500 = pneg %p247
        %p501 = pneg %p244
        %p502 = pneg %p268
        %p503 = pneg %p265
        %p504 = pneg %p289
        %p505 = pneg %p286
        %p506 = pneg %p310
        %p507 = pneg %p307
        %s508 = smul.u32 20, %s32
        %p509 = scmp.lt.s32.totalorder %s508, 79
        %s510 = scalar_select %p509, %s508, 79
        %s511 = scalar_lea.vmem %s0, %s510
        %s512 = smul.u32 20, %s32
        %s513 = smul.u32 320, %s32
        %p514 = scmp.eq.s32.totalorder %s32, 0
        // Predicated region
        $region89: #{vae_audio_forward.6} parent=59 // pred_check
          %p515 = pneg %p514
        $region90: #{vae_audio_forward.6} parent=59 // pred_check_branch
          %517 = sbr.rel (%p515) target = $region92
        $region91: #{vae_audio_forward.6} parent=59 // pred_region
          %518 = vst [vmem:[#allocation2] sm:$0xf] 0.0
        $region92: #{vae_audio_forward.6} parent=59 // pred_fallthru
          _
        %v519 = vld [vmem:[#allocation2] sm:$0xf]
        %v520 = vld [vmem:[%s511] sm:$0xff]
        %v521 = vld [vmem:[%s511 + $0x8] sm:$0xff]
        %v522 = vld [vmem:[%s511 + $0x10] sm:$0xf]
        %v523 = vld [vmem:[%s444] sm:$0xff]
        %v524 = vld [vmem:[%s444 + $0x8] sm:$0xff]
        %v525 = vld [vmem:[%s444 + $0x10] sm:$0xff]
        %v526 = vld [vmem:[%s444 + $0x18] sm:$0xff]
        %v527 = vld [vmem:[%s444 + $0x20] sm:$0xff]
        %v528 = vld [vmem:[%s444 + $0x28] sm:$0xff]
        %v529 = vld [vmem:[%s444 + $0x30] sm:$0xff]
        %v530 = vld [vmem:[%s444 + $0x38] sm:$0xff]
        %v531 = vld [vmem:[%s444 + $0x40] sm:$0xff]
        %v532 = vld [vmem:[%s444 + $0x48] sm:$0xff]
        %v533 = vld [vmem:[%s444 + $0x50] sm:$0xff]
        %v534 = vld [vmem:[%s444 + $0x58] sm:$0xff]
        %v535 = vld [vmem:[%s444 + $0x60] sm:$0xff]
        %v536 = vld [vmem:[%s444 + $0x68] sm:$0xff]
        %v537 = vld [vmem:[%s444 + $0x70] sm:$0xff]
        %v538 = vld [vmem:[%s444 + $0x78] sm:$0xff]
        %v539 = vld [vmem:[%s444 + $0x80] sm:$0xff]
        %v540 = vld [vmem:[%s444 + $0x88] sm:$0xff]
        %v541 = vld [vmem:[%s444 + $0x90] sm:$0xff]
        %v542 = vld [vmem:[%s444 + $0x98] sm:$0xff]
        %v543 = vld [vmem:[%s444 + $0xa0] sm:$0xff]
        %v544 = vld [vmem:[%s444 + $0xa8] sm:$0xff]
        %v545 = vld [vmem:[%s444 + $0xb0] sm:$0xff]
        %v546 = vld [vmem:[%s444 + $0xb8] sm:$0xff]
        %v547 = vld [vmem:[%s444 + $0xc0] sm:$0xff]
        %v548 = vld [vmem:[%s444 + $0xc8] sm:$0xff]
        %v549 = vld [vmem:[%s444 + $0xd0] sm:$0xff]
        %v550 = vld [vmem:[%s444 + $0xd8] sm:$0xff]
        %v551 = vld [vmem:[%s444 + $0xe0] sm:$0xff]
        %v552 = vld [vmem:[%s444 + $0xe8] sm:$0xff]
        %v553 = vld [vmem:[%s444 + $0xf0] sm:$0xff]
        %v554 = vld [vmem:[%s444 + $0xf8] sm:$0xff]
        %v555 = vld [vmem:[%s444 + $0x100] sm:$0xff]
        %v556 = vld [vmem:[%s444 + $0x108] sm:$0xff]
        %v557 = vld [vmem:[%s444 + $0x110] sm:$0xff]
        %v558 = vld [vmem:[%s444 + $0x118] sm:$0xff]
        %v559 = vld [vmem:[%s444 + $0x120] sm:$0xff]
        %v560 = vld [vmem:[%s444 + $0x128] sm:$0xff]
        %v561 = vld [vmem:[%s444 + $0x130] sm:$0xff]
        %v562 = vld [vmem:[%s444 + $0x138] sm:$0xff]
        %v563 = vld [vmem:[%s444 + $0x140] sm:$0xff]
        %v564 = vld [vmem:[%s444 + $0x148] sm:$0xff]
        %v565 = vld [vmem:[%s444 + $0x150] sm:$0xff]
        %v566 = vld [vmem:[%s444 + $0x158] sm:$0xff]
        %v567 = vld [vmem:[%s444 + $0x160] sm:$0xff]
        %v568 = vld [vmem:[%s444 + $0x168] sm:$0xff]
        %v569 = vld [vmem:[%s444 + $0x170] sm:$0xff]
        %v570 = vld [vmem:[%s444 + $0x178] sm:$0xff]
        %v571 = vld [vmem:[%s444 + $0x180] sm:$0xff]
        %v572 = vld [vmem:[%s444 + $0x188] sm:$0xff]
        %v573 = vld [vmem:[%s444 + $0x190] sm:$0xff]
        %v574 = vld [vmem:[%s444 + $0x198] sm:$0xff]
        %v575 = vld [vmem:[%s444 + $0x1a0] sm:$0xff]
        %v576 = vld [vmem:[%s444 + $0x1a8] sm:$0xff]
        %v577 = vld [vmem:[%s444 + $0x1b0] sm:$0xff]
        %v578 = vld [vmem:[%s444 + $0x1b8] sm:$0xff]
        %v579 = vld [vmem:[%s444 + $0x1c0] sm:$0xff]
        %v580 = vld [vmem:[%s444 + $0x1c8] sm:$0xff]
        %v581 = vld [vmem:[%s444 + $0x1d0] sm:$0xff]
        %v582 = vld [vmem:[%s444 + $0x1d8] sm:$0xff]
        %v583 = vld [vmem:[%s444 + $0x1e0] sm:$0xff]
        %v584 = vld [vmem:[%s444 + $0x1e8] sm:$0xff]
        %v585 = vld [vmem:[%s444 + $0x1f0] sm:$0xff]
        %v586 = vld [vmem:[%s444 + $0x1f8] sm:$0xff]
        %v587 = vld [vmem:[%s444 + $0x200] sm:$0xff]
        %v588 = vld [vmem:[%s444 + $0x208] sm:$0xff]
        %v589 = vld [vmem:[%s444 + $0x210] sm:$0xff]
        %v590 = vld [vmem:[%s444 + $0x218] sm:$0xff]
        %v591 = vld [vmem:[%s444 + $0x220] sm:$0xff]
        %v592 = vld [vmem:[%s444 + $0x228] sm:$0xff]
        %v593 = vld [vmem:[%s444 + $0x230] sm:$0xff]
        %v594 = vld [vmem:[%s444 + $0x238] sm:$0xff]
        %v595 = vld [vmem:[%s444 + $0x240] sm:$0xff]
        %v596 = vld [vmem:[%s444 + $0x248] sm:$0xff]
        %v597 = vld [vmem:[%s444 + $0x250] sm:$0xff]
        %v598 = vld [vmem:[%s444 + $0x258] sm:$0xff]
        %v599 = vld [vmem:[%s444 + $0x260] sm:$0xff]
        %v600 = vld [vmem:[%s444 + $0x268] sm:$0xff]
        %v601 = vld [vmem:[%s444 + $0x270] sm:$0xff]
        %v602 = vld [vmem:[%s444 + $0x278] sm:$0xff]
        %v603 = vld [vmem:[%s444 + $0x280] sm:$0xff]
        %v604 = vld [vmem:[%s444 + $0x288] sm:$0xff]
        %v605 = vld [vmem:[%s444 + $0x290] sm:$0xff]
        %v606 = vld [vmem:[%s444 + $0x298] sm:$0xff]
        %v607 = vld [vmem:[%s444 + $0x2a0] sm:$0xff]
        %v608 = vld [vmem:[%s444 + $0x2a8] sm:$0xff]
        %v609 = vld [vmem:[%s444 + $0x2b0] sm:$0xff]
        %v610 = vld [vmem:[%s444 + $0x2b8] sm:$0xff]
        %v611 = vld [vmem:[%s444 + $0x2c0] sm:$0xff]
        %v612 = vld [vmem:[%s444 + $0x2c8] sm:$0xff]
        %v613 = vld [vmem:[%s444 + $0x2d0] sm:$0xff]
        %v614 = vld [vmem:[%s444 + $0x2d8] sm:$0xff]
        %v615 = vld [vmem:[%s444 + $0x2e0] sm:$0xff]
        %v616 = vld [vmem:[%s444 + $0x2e8] sm:$0xff]
        %v617 = vld [vmem:[%s444 + $0x2f0] sm:$0xff]
        %v618 = vld [vmem:[%s444 + $0x2f8] sm:$0xff]
        %v619 = vld [vmem:[%s444 + $0x300] sm:$0xff]
        %v620 = vld [vmem:[%s444 + $0x308] sm:$0xff]
        %v621 = vld [vmem:[%s444 + $0x310] sm:$0xff]
        %v622 = vld [vmem:[%s444 + $0x318] sm:$0xff]
        %v623 = vld [vmem:[%s444 + $0x320] sm:$0xff]
        %v624 = vld [vmem:[%s444 + $0x328] sm:$0xff]
        %v625 = vld [vmem:[%s444 + $0x330] sm:$0xff]
        %v626 = vld [vmem:[%s444 + $0x338] sm:$0xff]
        %v627 = vld [vmem:[%s444 + $0x340] sm:$0xff]
        %v628 = vld [vmem:[%s444 + $0x348] sm:$0xff]
        %v629 = vld [vmem:[%s444 + $0x350] sm:$0xff]
        %v630 = vld [vmem:[%s444 + $0x358] sm:$0xff]
        %v631 = vld [vmem:[%s444 + $0x360] sm:$0xff]
        %v632 = vld [vmem:[%s444 + $0x368] sm:$0xff]
        %v633 = vld [vmem:[%s444 + $0x370] sm:$0xff]
        %v634 = vld [vmem:[%s444 + $0x378] sm:$0xff]
        %v635 = vld [vmem:[%s444 + $0x380] sm:$0xff]
        %v636 = vld [vmem:[%s444 + $0x388] sm:$0xff]
        %v637 = vld [vmem:[%s444 + $0x390] sm:$0xff]
        %v638 = vld [vmem:[%s444 + $0x398] sm:$0xff]
        %v639 = vld [vmem:[%s444 + $0x3a0] sm:$0xff]
        %v640 = vld [vmem:[%s444 + $0x3a8] sm:$0xff]
        %v641 = vld [vmem:[%s444 + $0x3b0] sm:$0xff]
        %v642 = vld [vmem:[%s444 + $0x3b8] sm:$0xff]
        %v643 = vld [vmem:[%s444 + $0x3c0] sm:$0xff]
        %v644 = vld [vmem:[%s444 + $0x3c8] sm:$0xff]
        %v645 = vld [vmem:[%s444 + $0x3d0] sm:$0xff]
        %v646 = vld [vmem:[%s444 + $0x3d8] sm:$0xff]
        %v647 = vld [vmem:[%s444 + $0x3e0] sm:$0xff]
        %v648 = vld [vmem:[%s444 + $0x3e8] sm:$0xff]
        %v649 = vld [vmem:[%s444 + $0x3f0] sm:$0xff]
        %v650 = vld [vmem:[%s444 + $0x3f8] sm:$0xff]
        %v651 = vld [vmem:[%s444 + $0x400] sm:$0xff]
        %v652 = vld [vmem:[%s444 + $0x408] sm:$0xff]
        %v653 = vld [vmem:[%s444 + $0x410] sm:$0xff]
        %v654 = vld [vmem:[%s444 + $0x418] sm:$0xff]
        %v655 = vld [vmem:[%s444 + $0x420] sm:$0xff]
        %v656 = vld [vmem:[%s444 + $0x428] sm:$0xff]
        %v657 = vld [vmem:[%s444 + $0x430] sm:$0xff]
        %v658 = vld [vmem:[%s444 + $0x438] sm:$0xff]
        %v659 = vld [vmem:[%s444 + $0x440] sm:$0xff]
        %v660 = vld [vmem:[%s444 + $0x448] sm:$0xff]
        %v661 = vld [vmem:[%s444 + $0x450] sm:$0xff]
        %v662 = vld [vmem:[%s444 + $0x458] sm:$0xff]
        %v663 = vld [vmem:[%s444 + $0x460] sm:$0xff]
        %v664 = vld [vmem:[%s444 + $0x468] sm:$0xff]
        %v665 = vld [vmem:[%s444 + $0x470] sm:$0xff]
        %v666 = vld [vmem:[%s444 + $0x478] sm:$0xff]
        %v667 = vld [vmem:[%s444 + $0x480] sm:$0xff]
        %v668 = vld [vmem:[%s444 + $0x488] sm:$0xff]
        %v669 = vld [vmem:[%s444 + $0x490] sm:$0xff]
        %v670 = vld [vmem:[%s444 + $0x498] sm:$0xff]
        %v671 = vld [vmem:[%s444 + $0x4a0] sm:$0xff]
        %v672 = vld [vmem:[%s444 + $0x4a8] sm:$0xff]
        %v673 = vld [vmem:[%s444 + $0x4b0] sm:$0xff]
        %v674 = vld [vmem:[%s444 + $0x4b8] sm:$0xff]
        %v675 = vld [vmem:[%s444 + $0x4c0] sm:$0xff]
        %v676 = vld [vmem:[%s444 + $0x4c8] sm:$0xff]
        %v677 = vld [vmem:[%s444 + $0x4d0] sm:$0xff]
        %v678 = vld [vmem:[%s444 + $0x4d8] sm:$0xff]
        %v679 = vld [vmem:[%s444 + $0x4e0] sm:$0xff]
        %v680 = vld [vmem:[%s444 + $0x4e8] sm:$0xff]
        %v681 = vld [vmem:[%s444 + $0x4f0] sm:$0xff]
        %v682 = vld [vmem:[%s444 + $0x4f8] sm:$0xff]
        %v683 = vld [vmem:[%s444 + $0x500] sm:$0xff]
        %v684 = vld [vmem:[%s444 + $0x508] sm:$0xff]
        %v685 = vld [vmem:[%s444 + $0x510] sm:$0xff]
        %v686 = vld [vmem:[%s444 + $0x518] sm:$0xff]
        %v687 = vld [vmem:[%s444 + $0x520] sm:$0xff]
        %v688 = vld [vmem:[%s444 + $0x528] sm:$0xff]
        %v689 = vld [vmem:[%s444 + $0x530] sm:$0xff]
        %v690 = vld [vmem:[%s444 + $0x538] sm:$0xff]
        %v691 = vld [vmem:[%s444 + $0x540] sm:$0xff]
        %v692 = vld [vmem:[%s444 + $0x548] sm:$0xff]
        %v693 = vld [vmem:[%s444 + $0x550] sm:$0xff]
        %v694 = vld [vmem:[%s444 + $0x558] sm:$0xff]
        %v695 = vld [vmem:[%s444 + $0x560] sm:$0xff]
        %v696 = vld [vmem:[%s444 + $0x568] sm:$0xff]
        %v697 = vld [vmem:[%s444 + $0x570] sm:$0xff]
        %v698 = vld [vmem:[%s444 + $0x578] sm:$0xff]
        %v699 = vld [vmem:[%s444 + $0x580] sm:$0xff]
        %v700 = vld [vmem:[%s444 + $0x588] sm:$0xff]
        %v701 = vld [vmem:[%s444 + $0x590] sm:$0xff]
        %v702 = vld [vmem:[%s444 + $0x598] sm:$0xff]
        %v703 = vld [vmem:[%s444 + $0x5a0] sm:$0xff]
        %v704 = vld [vmem:[%s444 + $0x5a8] sm:$0xff]
        %v705 = vld [vmem:[%s444 + $0x5b0] sm:$0xff]
        %v706 = vld [vmem:[%s444 + $0x5b8] sm:$0xff]
        %v707 = vld [vmem:[%s444 + $0x5c0] sm:$0xff]
        %v708 = vld [vmem:[%s444 + $0x5c8] sm:$0xff]
        %v709 = vld [vmem:[%s444 + $0x5d0] sm:$0xff]
        %v710 = vld [vmem:[%s444 + $0x5d8] sm:$0xff]
        %v711 = vld [vmem:[%s444 + $0x5e0] sm:$0xff]
        %v712 = vld [vmem:[%s444 + $0x5e8] sm:$0xff]
        %v713 = vld [vmem:[%s444 + $0x5f0] sm:$0xff]
        %v714 = vld [vmem:[%s444 + $0x5f8] sm:$0xff]
        %v715 = vld [vmem:[%s444 + $0x600] sm:$0xff]
        %v716 = vld [vmem:[%s444 + $0x608] sm:$0xff]
        %v717 = vld [vmem:[%s444 + $0x610] sm:$0xff]
        %v718 = vld [vmem:[%s444 + $0x618] sm:$0xff]
        %v719 = vld [vmem:[%s444 + $0x620] sm:$0xff]
        %v720 = vld [vmem:[%s444 + $0x628] sm:$0xff]
        %v721 = vld [vmem:[%s444 + $0x630] sm:$0xff]
        %v722 = vld [vmem:[%s444 + $0x638] sm:$0xff]
        %v723 = vld [vmem:[%s444 + $0x640] sm:$0xff]
        %v724 = vld [vmem:[%s444 + $0x648] sm:$0xff]
        %v725 = vld [vmem:[%s444 + $0x650] sm:$0xff]
        %v726 = vld [vmem:[%s444 + $0x658] sm:$0xff]
        %v727 = vld [vmem:[%s444 + $0x660] sm:$0xff]
        %v728 = vld [vmem:[%s444 + $0x668] sm:$0xff]
        %v729 = vld [vmem:[%s444 + $0x670] sm:$0xff]
        %v730 = vld [vmem:[%s444 + $0x678] sm:$0xff]
        %v731 = vld [vmem:[%s444 + $0x680] sm:$0xff]
        %v732 = vld [vmem:[%s444 + $0x688] sm:$0xff]
        %v733 = vld [vmem:[%s444 + $0x690] sm:$0xff]
        %v734 = vld [vmem:[%s444 + $0x698] sm:$0xff]
        %v735 = vld [vmem:[%s444 + $0x6a0] sm:$0xff]
        %v736 = vld [vmem:[%s444 + $0x6a8] sm:$0xff]
        %v737 = vld [vmem:[%s444 + $0x6b0] sm:$0xff]
        %v738 = vld [vmem:[%s444 + $0x6b8] sm:$0xff]
        %v739 = vld [vmem:[%s444 + $0x6c0] sm:$0xff]
        %v740 = vld [vmem:[%s444 + $0x6c8] sm:$0xff]
        %v741 = vld [vmem:[%s444 + $0x6d0] sm:$0xff]
        %v742 = vld [vmem:[%s444 + $0x6d8] sm:$0xff]
        %v743 = vld [vmem:[%s444 + $0x6e0] sm:$0xff]
        %v744 = vld [vmem:[%s444 + $0x6e8] sm:$0xff]
        %v745 = vld [vmem:[%s444 + $0x6f0] sm:$0xff]
        %v746 = vld [vmem:[%s444 + $0x6f8] sm:$0xff]
        %v747 = vld [vmem:[%s444 + $0x700] sm:$0xff]
        %v748 = vld [vmem:[%s444 + $0x708] sm:$0xff]
        %v749 = vld [vmem:[%s444 + $0x710] sm:$0xff]
        %v750 = vld [vmem:[%s444 + $0x718] sm:$0xff]
        %v751 = vld [vmem:[%s444 + $0x720] sm:$0xff]
        %v752 = vld [vmem:[%s444 + $0x728] sm:$0xff]
        %v753 = vld [vmem:[%s444 + $0x730] sm:$0xff]
        %v754 = vld [vmem:[%s444 + $0x738] sm:$0xff]
        %v755 = vld [vmem:[%s444 + $0x740] sm:$0xff]
        %v756 = vld [vmem:[%s444 + $0x748] sm:$0xff]
        %v757 = vld [vmem:[%s444 + $0x750] sm:$0xff]
        %v758 = vld [vmem:[%s444 + $0x758] sm:$0xff]
        %v759 = vld [vmem:[%s444 + $0x760] sm:$0xff]
        %v760 = vld [vmem:[%s444 + $0x768] sm:$0xff]
        %v761 = vld [vmem:[%s444 + $0x770] sm:$0xff]
        %v762 = vld [vmem:[%s444 + $0x778] sm:$0xff]
        %v763 = vld [vmem:[%s444 + $0x780] sm:$0xff]
        %v764 = vld [vmem:[%s444 + $0x788] sm:$0xff]
        %v765 = vld [vmem:[%s444 + $0x790] sm:$0xff]
        %v766 = vld [vmem:[%s444 + $0x798] sm:$0xff]
        %v767 = vld [vmem:[%s444 + $0x7a0] sm:$0xff]
        %v768 = vld [vmem:[%s444 + $0x7a8] sm:$0xff]
        %v769 = vld [vmem:[%s444 + $0x7b0] sm:$0xff]
        %v770 = vld [vmem:[%s444 + $0x7b8] sm:$0xff]
        %v771 = vld [vmem:[%s444 + $0x7c0] sm:$0xff]
        %v772 = vld [vmem:[%s444 + $0x7c8] sm:$0xff]
        %v773 = vld [vmem:[%s444 + $0x7d0] sm:$0xff]
        %v774 = vld [vmem:[%s444 + $0x7d8] sm:$0xff]
        %v775 = vld [vmem:[%s444 + $0x7e0] sm:$0xff]
        %v776 = vld [vmem:[%s444 + $0x7e8] sm:$0xff]
        %v777 = vld [vmem:[%s444 + $0x7f0] sm:$0xff]
        %v778 = vld [vmem:[%s444 + $0x7f8] sm:$0xff]
        %v779 = vld [vmem:[%s444 + $0x800] sm:$0xff]
        %v780 = vld [vmem:[%s444 + $0x808] sm:$0xff]
        %v781 = vld [vmem:[%s444 + $0x810] sm:$0xff]
        %v782 = vld [vmem:[%s444 + $0x818] sm:$0xff]
        %v783 = vld [vmem:[%s444 + $0x820] sm:$0xff]
        %v784 = vld [vmem:[%s444 + $0x828] sm:$0xff]
        %v785 = vld [vmem:[%s444 + $0x830] sm:$0xff]
        %v786 = vld [vmem:[%s444 + $0x838] sm:$0xff]
        %v787 = vld [vmem:[%s444 + $0x840] sm:$0xff]
        %v788 = vld [vmem:[%s444 + $0x848] sm:$0xff]
        %v789 = vld [vmem:[%s444 + $0x850] sm:$0xff]
        %v790 = vld [vmem:[%s444 + $0x858] sm:$0xff]
        %v791 = vld [vmem:[%s444 + $0x860] sm:$0xff]
        %v792 = vld [vmem:[%s444 + $0x868] sm:$0xff]
        %v793 = vld [vmem:[%s444 + $0x870] sm:$0xff]
        %v794 = vld [vmem:[%s444 + $0x878] sm:$0xff]
        %v795 = vld [vmem:[%s444 + $0x880] sm:$0xff]
        %v796 = vld [vmem:[%s444 + $0x888] sm:$0xff]
        %v797 = vld [vmem:[%s444 + $0x890] sm:$0xff]
        %v798 = vld [vmem:[%s444 + $0x898] sm:$0xff]
        %v799 = vld [vmem:[%s444 + $0x8a0] sm:$0xff]
        %v800 = vld [vmem:[%s444 + $0x8a8] sm:$0xff]
        %v801 = vld [vmem:[%s444 + $0x8b0] sm:$0xff]
        %v802 = vld [vmem:[%s444 + $0x8b8] sm:$0xff]
        %v803 = vld [vmem:[%s444 + $0x8c0] sm:$0xff]
        %v804 = vld [vmem:[%s444 + $0x8c8] sm:$0xff]
        %v805 = vld [vmem:[%s444 + $0x8d0] sm:$0xff]
        %v806 = vld [vmem:[%s444 + $0x8d8] sm:$0xff]
        %v807 = vld [vmem:[%s444 + $0x8e0] sm:$0xff]
        %v808 = vld [vmem:[%s444 + $0x8e8] sm:$0xff]
        %v809 = vld [vmem:[%s444 + $0x8f0] sm:$0xff]
        %v810 = vld [vmem:[%s444 + $0x8f8] sm:$0xff]
        %v811 = vld [vmem:[%s444 + $0x900] sm:$0xff]
        %v812 = vld [vmem:[%s444 + $0x908] sm:$0xff]
        %v813 = vld [vmem:[%s444 + $0x910] sm:$0xff]
        %v814 = vld [vmem:[%s444 + $0x918] sm:$0xff]
        %v815 = vld [vmem:[%s444 + $0x920] sm:$0xff]
        %v816 = vld [vmem:[%s444 + $0x928] sm:$0xff]
        %v817 = vld [vmem:[%s444 + $0x930] sm:$0xff]
        %v818 = vld [vmem:[%s444 + $0x938] sm:$0xff]
        %v819 = vld [vmem:[%s444 + $0x940] sm:$0xff]
        %v820 = vld [vmem:[%s444 + $0x948] sm:$0xff]
        %v821 = vld [vmem:[%s444 + $0x950] sm:$0xff]
        %v822 = vld [vmem:[%s444 + $0x958] sm:$0xff]
        %v823 = vld [vmem:[%s444 + $0x960] sm:$0xff]
        %v824 = vld [vmem:[%s444 + $0x968] sm:$0xff]
        %v825 = vld [vmem:[%s444 + $0x970] sm:$0xff]
        %v826 = vld [vmem:[%s444 + $0x978] sm:$0xff]
        %v827 = vld [vmem:[%s444 + $0x980] sm:$0xff]
        %v828 = vld [vmem:[%s444 + $0x988] sm:$0xff]
        %v829 = vld [vmem:[%s444 + $0x990] sm:$0xff]
        %v830 = vld [vmem:[%s444 + $0x998] sm:$0xff]
        %v831 = vld [vmem:[%s444 + $0x9a0] sm:$0xff]
        %v832 = vld [vmem:[%s444 + $0x9a8] sm:$0xff]
        %v833 = vld [vmem:[%s444 + $0x9b0] sm:$0xff]
        %v834 = vld [vmem:[%s444 + $0x9b8] sm:$0xff]
        %v835 = vld [vmem:[%s444 + $0x9c0] sm:$0xff]
        %v836 = vld [vmem:[%s444 + $0x9c8] sm:$0xff]
        %v837 = vld [vmem:[%s444 + $0x9d0] sm:$0xff]
        %v838 = vld [vmem:[%s444 + $0x9d8] sm:$0xff]
        %v839 = vld [vmem:[%s444 + $0x9e0] sm:$0xff]
        %v840 = vld [vmem:[%s444 + $0x9e8] sm:$0xff]
        %v841 = vld [vmem:[%s444 + $0x9f0] sm:$0xff]
        %v842 = vld [vmem:[%s444 + $0x9f8] sm:$0xff]
        %v846 = vcombine.high %v520, %v520
        %v848 = vunpack.c.l.s4 1966171168
        %v849 = vunpack.c.0.s8 %v848
        %v850 = vlaneseq
        %v851 = vshrl.u32 %v850, 7
        %v852 = vsub.s32 %v849, %v851
        %v853 = vrot.slane %v520, %v852
        %v855 = vunpack.c.l.s4 1966171168
        %v856 = vunpack.c.0.s8 %v855
        %v857 = vlaneseq
        %v858 = vshrl.u32 %v857, 7
        %v859 = vsub.s32 %v856, %v858
        %v860 = vrot.slane %v846, %v859
        %v861 = vcombine.high %v853, %v853
        %v862 = vcombine.high %v860, %v860
        %v864 = vunpack.c.l.s4 1966171168
        %v865 = vunpack.c.0.s8 %v864
        %v866 = vlaneseq
        %v867 = vshrl.u32 %v866, 7
        %v868 = vsub.s32 %v865, %v867
        %v869 = vrot.slane %v853, %v868
        %v871 = vunpack.c.l.s4 1966171168
        %v872 = vunpack.c.0.s8 %v871
        %v873 = vlaneseq
        %v874 = vshrl.u32 %v873, 7
        %v875 = vsub.s32 %v872, %v874
        %v876 = vrot.slane %v860, %v875
        %v878 = vunpack.c.l.s4 1966171168
        %v879 = vunpack.c.0.s8 %v878
        %v880 = vlaneseq
        %v881 = vshrl.u32 %v880, 7
        %v882 = vsub.s32 %v879, %v881
        %v883 = vrot.slane %v861, %v882
        %v885 = vunpack.c.l.s4 1966171168
        %v886 = vunpack.c.0.s8 %v885
        %v887 = vlaneseq
        %v888 = vshrl.u32 %v887, 7
        %v889 = vsub.s32 %v886, %v888
        %v890 = vrot.slane %v862, %v889
        %v891 = vcombine.high %v869, %v869
        %v892 = vcombine.high %v876, %v876
        %v893 = vcombine.high %v883, %v883
        %v894 = vcombine.high %v890, %v890
        %v895 = vcombine.high %v521, %v521
        %v897 = vunpack.c.l.s4 1966171168
        %v898 = vunpack.c.0.s8 %v897
        %v899 = vlaneseq
        %v900 = vshrl.u32 %v899, 7
        %v901 = vsub.s32 %v898, %v900
        %v902 = vrot.slane %v521, %v901
        %v904 = vunpack.c.l.s4 1966171168
        %v905 = vunpack.c.0.s8 %v904
        %v906 = vlaneseq
        %v907 = vshrl.u32 %v906, 7
        %v908 = vsub.s32 %v905, %v907
        %v909 = vrot.slane %v895, %v908
        %v910 = vcombine.high %v902, %v902
        %v911 = vcombine.high %v909, %v909
        %v913 = vunpack.c.l.s4 1966171168
        %v914 = vunpack.c.0.s8 %v913
        %v915 = vlaneseq
        %v916 = vshrl.u32 %v915, 7
        %v917 = vsub.s32 %v914, %v916
        %v918 = vrot.slane %v902, %v917
        %v920 = vunpack.c.l.s4 1966171168
        %v921 = vunpack.c.0.s8 %v920
        %v922 = vlaneseq
        %v923 = vshrl.u32 %v922, 7
        %v924 = vsub.s32 %v921, %v923
        %v925 = vrot.slane %v909, %v924
        %v927 = vunpack.c.l.s4 1966171168
        %v928 = vunpack.c.0.s8 %v927
        %v929 = vlaneseq
        %v930 = vshrl.u32 %v929, 7
        %v931 = vsub.s32 %v928, %v930
        %v932 = vrot.slane %v910, %v931
        %v934 = vunpack.c.l.s4 1966171168
        %v935 = vunpack.c.0.s8 %v934
        %v936 = vlaneseq
        %v937 = vshrl.u32 %v936, 7
        %v938 = vsub.s32 %v935, %v937
        %v939 = vrot.slane %v911, %v938
        %v940 = vcombine.high %v918, %v918
        %v941 = vcombine.high %v925, %v925
        %v942 = vcombine.high %v932, %v932
        %v943 = vcombine.high %v939, %v939
        %v945 = vunpack.c.l.s4 1966171168
        %v946 = vunpack.c.0.s8 %v945
        %v947 = vlaneseq
        %v948 = vshrl.u32 %v947, 7
        %v949 = vsub.s32 %v946, %v948
        %v950 = vrot.slane %v522, %v949
        %v951 = vcombine.high %v950, %v950
        %v953 = vunpack.c.l.s4 1966171168
        %v954 = vunpack.c.0.s8 %v953
        %v955 = vlaneseq
        %v956 = vshrl.u32 %v955, 7
        %v957 = vsub.s32 %v954, %v956
        %v958 = vrot.slane %v950, %v957
        %v960 = vunpack.c.l.s4 1966171168
        %v961 = vunpack.c.0.s8 %v960
        %v962 = vlaneseq
        %v963 = vshrl.u32 %v962, 7
        %v964 = vsub.s32 %v961, %v963
        %v965 = vrot.slane %v951, %v964
        %v966 = vcombine.high %v958, %v958
        %v967 = vcombine.high %v965, %v965
        %v1308 = vunpack.c.l.b16 %v523
        %v1309 = vunpack.c.h.b16 %v523
        %v1310 = vunpack.c.l.b16 %v524
        %v1311 = vunpack.c.h.b16 %v524
        %v1312 = vunpack.c.l.b16 %v525
        %v1313 = vunpack.c.h.b16 %v525
        %v1314 = vunpack.c.l.b16 %v526
        %v1315 = vunpack.c.h.b16 %v526
        %v1316 = vunpack.c.l.b16 %v527
        %v1317 = vunpack.c.h.b16 %v527
        %v1318 = vunpack.c.l.b16 %v528
        %v1319 = vunpack.c.h.b16 %v528
        %v1320 = vunpack.c.l.b16 %v529
        %v1321 = vunpack.c.h.b16 %v529
        %v1322 = vunpack.c.l.b16 %v530
        %v1323 = vunpack.c.h.b16 %v530
        %v1324 = vunpack.c.l.b16 %v531
        %v1325 = vunpack.c.h.b16 %v531
        %v1326 = vunpack.c.l.b16 %v532
        %v1327 = vunpack.c.h.b16 %v532
        %v1328 = vunpack.c.l.b16 %v533
        %v1329 = vunpack.c.h.b16 %v533
        %v1330 = vunpack.c.l.b16 %v534
        %v1331 = vunpack.c.h.b16 %v534
        %v1332 = vunpack.c.l.b16 %v535
        %v1333 = vunpack.c.h.b16 %v535
        %v1334 = vunpack.c.l.b16 %v536
        %v1335 = vunpack.c.h.b16 %v536
        %v1336 = vunpack.c.l.b16 %v537
        %v1337 = vunpack.c.h.b16 %v537
        %v1338 = vunpack.c.l.b16 %v538
        %v1339 = vunpack.c.h.b16 %v538
        %v1340 = vunpack.c.l.b16 %v539
        %v1341 = vunpack.c.h.b16 %v539
        %v1342 = vunpack.c.l.b16 %v540
        %v1343 = vunpack.c.h.b16 %v540
        %v1344 = vunpack.c.l.b16 %v541
        %v1345 = vunpack.c.h.b16 %v541
        %v1346 = vunpack.c.l.b16 %v542
        %v1347 = vunpack.c.h.b16 %v542
        %v1348 = vunpack.c.l.b16 %v543
        %v1349 = vunpack.c.h.b16 %v543
        %v1350 = vunpack.c.l.b16 %v544
        %v1351 = vunpack.c.h.b16 %v544
        %v1352 = vunpack.c.l.b16 %v545
        %v1353 = vunpack.c.h.b16 %v545
        %v1354 = vunpack.c.l.b16 %v546
        %v1355 = vunpack.c.h.b16 %v546
        %v1356 = vunpack.c.l.b16 %v547
        %v1357 = vunpack.c.h.b16 %v547
        %v1358 = vunpack.c.l.b16 %v548
        %v1359 = vunpack.c.h.b16 %v548
        %v1360 = vunpack.c.l.b16 %v549
        %v1361 = vunpack.c.h.b16 %v549
        %v1362 = vunpack.c.l.b16 %v550
        %v1363 = vunpack.c.h.b16 %v550
        %v1364 = vunpack.c.l.b16 %v551
        %v1365 = vunpack.c.h.b16 %v551
        %v1366 = vunpack.c.l.b16 %v552
        %v1367 = vunpack.c.h.b16 %v552
        %v1368 = vunpack.c.l.b16 %v553
        %v1369 = vunpack.c.h.b16 %v553
        %v1370 = vunpack.c.l.b16 %v554
        %v1371 = vunpack.c.h.b16 %v554
        %v1372 = vunpack.c.l.b16 %v555
        %v1373 = vunpack.c.h.b16 %v555
        %v1374 = vunpack.c.l.b16 %v556
        %v1375 = vunpack.c.h.b16 %v556
        %v1376 = vunpack.c.l.b16 %v557
        %v1377 = vunpack.c.h.b16 %v557
        %v1378 = vunpack.c.l.b16 %v558
        %v1379 = vunpack.c.h.b16 %v558
        %v1380 = vunpack.c.l.b16 %v559
        %v1381 = vunpack.c.h.b16 %v559
        %v1382 = vunpack.c.l.b16 %v560
        %v1383 = vunpack.c.h.b16 %v560
        %v1384 = vunpack.c.l.b16 %v561
        %v1385 = vunpack.c.h.b16 %v561
        %v1386 = vunpack.c.l.b16 %v562
        %v1387 = vunpack.c.h.b16 %v562
        %v1388 = vunpack.c.l.b16 %v563
        %v1389 = vunpack.c.h.b16 %v563
        %v1390 = vunpack.c.l.b16 %v564
        %v1391 = vunpack.c.h.b16 %v564
        %v1392 = vunpack.c.l.b16 %v565
        %v1393 = vunpack.c.h.b16 %v565
        %v1394 = vunpack.c.l.b16 %v566
        %v1395 = vunpack.c.h.b16 %v566
        %v1396 = vunpack.c.l.b16 %v567
        %v1397 = vunpack.c.h.b16 %v567
        %v1398 = vunpack.c.l.b16 %v568
        %v1399 = vunpack.c.h.b16 %v568
        %v1400 = vunpack.c.l.b16 %v569
        %v1401 = vunpack.c.h.b16 %v569
        %v1402 = vunpack.c.l.b16 %v570
        %v1403 = vunpack.c.h.b16 %v570
        %v1404 = vunpack.c.l.b16 %v571
        %v1405 = vunpack.c.h.b16 %v571
        %v1406 = vunpack.c.l.b16 %v572
        %v1407 = vunpack.c.h.b16 %v572
        %v1408 = vunpack.c.l.b16 %v573
        %v1409 = vunpack.c.h.b16 %v573
        %v1410 = vunpack.c.l.b16 %v574
        %v1411 = vunpack.c.h.b16 %v574
        %v1412 = vunpack.c.l.b16 %v575
        %v1413 = vunpack.c.h.b16 %v575
        %v1414 = vunpack.c.l.b16 %v576
        %v1415 = vunpack.c.h.b16 %v576
        %v1416 = vunpack.c.l.b16 %v577
        %v1417 = vunpack.c.h.b16 %v577
        %v1418 = vunpack.c.l.b16 %v578
        %v1419 = vunpack.c.h.b16 %v578
        %v1420 = vunpack.c.l.b16 %v579
        %v1421 = vunpack.c.h.b16 %v579
        %v1422 = vunpack.c.l.b16 %v580
        %v1423 = vunpack.c.h.b16 %v580
        %v1424 = vunpack.c.l.b16 %v581
        %v1425 = vunpack.c.h.b16 %v581
        %v1426 = vunpack.c.l.b16 %v582
        %v1427 = vunpack.c.h.b16 %v582
        %v1428 = vunpack.c.l.b16 %v583
        %v1429 = vunpack.c.h.b16 %v583
        %v1430 = vunpack.c.l.b16 %v584
        %v1431 = vunpack.c.h.b16 %v584
        %v1432 = vunpack.c.l.b16 %v585
        %v1433 = vunpack.c.h.b16 %v585
        %v1434 = vunpack.c.l.b16 %v586
        %v1435 = vunpack.c.h.b16 %v586
        %v1436 = vunpack.c.l.b16 %v587
        %v1437 = vunpack.c.h.b16 %v587
        %v1438 = vunpack.c.l.b16 %v588
        %v1439 = vunpack.c.h.b16 %v588
        %v1440 = vunpack.c.l.b16 %v589
        %v1441 = vunpack.c.h.b16 %v589
        %v1442 = vunpack.c.l.b16 %v590
        %v1443 = vunpack.c.h.b16 %v590
        %v1444 = vunpack.c.l.b16 %v591
        %v1445 = vunpack.c.h.b16 %v591
        %v1446 = vunpack.c.l.b16 %v592
        %v1447 = vunpack.c.h.b16 %v592
        %v1448 = vunpack.c.l.b16 %v593
        %v1449 = vunpack.c.h.b16 %v593
        %v1450 = vunpack.c.l.b16 %v594
        %v1451 = vunpack.c.h.b16 %v594
        %v1452 = vunpack.c.l.b16 %v595
        %v1453 = vunpack.c.h.b16 %v595
        %v1454 = vunpack.c.l.b16 %v596
        %v1455 = vunpack.c.h.b16 %v596
        %v1456 = vunpack.c.l.b16 %v597
        %v1457 = vunpack.c.h.b16 %v597
        %v1458 = vunpack.c.l.b16 %v598
        %v1459 = vunpack.c.h.b16 %v598
        %v1460 = vunpack.c.l.b16 %v599
        %v1461 = vunpack.c.h.b16 %v599
        %v1462 = vunpack.c.l.b16 %v600
        %v1463 = vunpack.c.h.b16 %v600
        %v1464 = vunpack.c.l.b16 %v601
        %v1465 = vunpack.c.h.b16 %v601
        %v1466 = vunpack.c.l.b16 %v602
        %v1467 = vunpack.c.h.b16 %v602
        %v1468 = vunpack.c.l.b16 %v603
        %v1469 = vunpack.c.h.b16 %v603
        %v1470 = vunpack.c.l.b16 %v604
        %v1471 = vunpack.c.h.b16 %v604
        %v1472 = vunpack.c.l.b16 %v605
        %v1473 = vunpack.c.h.b16 %v605
        %v1474 = vunpack.c.l.b16 %v606
        %v1475 = vunpack.c.h.b16 %v606
        %v1476 = vunpack.c.l.b16 %v607
        %v1477 = vunpack.c.h.b16 %v607
        %v1478 = vunpack.c.l.b16 %v608
        %v1479 = vunpack.c.h.b16 %v608
        %v1480 = vunpack.c.l.b16 %v609
        %v1481 = vunpack.c.h.b16 %v609
        %v1482 = vunpack.c.l.b16 %v610
        %v1483 = vunpack.c.h.b16 %v610
        %v1484 = vunpack.c.l.b16 %v611
        %v1485 = vunpack.c.h.b16 %v611
        %v1486 = vunpack.c.l.b16 %v612
        %v1487 = vunpack.c.h.b16 %v612
        %v1488 = vunpack.c.l.b16 %v613
        %v1489 = vunpack.c.h.b16 %v613
        %v1490 = vunpack.c.l.b16 %v614
        %v1491 = vunpack.c.h.b16 %v614
        %v1492 = vunpack.c.l.b16 %v615
        %v1493 = vunpack.c.h.b16 %v615
        %v1494 = vunpack.c.l.b16 %v616
        %v1495 = vunpack.c.h.b16 %v616
        %v1496 = vunpack.c.l.b16 %v617
        %v1497 = vunpack.c.h.b16 %v617
        %v1498 = vunpack.c.l.b16 %v618
        %v1499 = vunpack.c.h.b16 %v618
        %v1500 = vunpack.c.l.b16 %v619
        %v1501 = vunpack.c.h.b16 %v619
        %v1502 = vunpack.c.l.b16 %v620
        %v1503 = vunpack.c.h.b16 %v620
        %v1504 = vunpack.c.l.b16 %v621
        %v1505 = vunpack.c.h.b16 %v621
        %v1506 = vunpack.c.l.b16 %v622
        %v1507 = vunpack.c.h.b16 %v622
        %v1508 = vunpack.c.l.b16 %v623
        %v1509 = vunpack.c.h.b16 %v623
        %v1510 = vunpack.c.l.b16 %v624
        %v1511 = vunpack.c.h.b16 %v624
        %v1512 = vunpack.c.l.b16 %v625
        %v1513 = vunpack.c.h.b16 %v625
        %v1514 = vunpack.c.l.b16 %v626
        %v1515 = vunpack.c.h.b16 %v626
        %v1516 = vunpack.c.l.b16 %v627
        %v1517 = vunpack.c.h.b16 %v627
        %v1518 = vunpack.c.l.b16 %v628
        %v1519 = vunpack.c.h.b16 %v628
        %v1520 = vunpack.c.l.b16 %v629
        %v1521 = vunpack.c.h.b16 %v629
        %v1522 = vunpack.c.l.b16 %v630
        %v1523 = vunpack.c.h.b16 %v630
        %v1524 = vunpack.c.l.b16 %v631
        %v1525 = vunpack.c.h.b16 %v631
        %v1526 = vunpack.c.l.b16 %v632
        %v1527 = vunpack.c.h.b16 %v632
        %v1528 = vunpack.c.l.b16 %v633
        %v1529 = vunpack.c.h.b16 %v633
        %v1530 = vunpack.c.l.b16 %v634
        %v1531 = vunpack.c.h.b16 %v634
        %v1532 = vunpack.c.l.b16 %v635
        %v1533 = vunpack.c.h.b16 %v635
        %v1534 = vunpack.c.l.b16 %v636
        %v1535 = vunpack.c.h.b16 %v636
        %v1536 = vunpack.c.l.b16 %v637
        %v1537 = vunpack.c.h.b16 %v637
        %v1538 = vunpack.c.l.b16 %v638
        %v1539 = vunpack.c.h.b16 %v638
        %v1540 = vunpack.c.l.b16 %v639
        %v1541 = vunpack.c.h.b16 %v639
        %v1542 = vunpack.c.l.b16 %v640
        %v1543 = vunpack.c.h.b16 %v640
        %v1544 = vunpack.c.l.b16 %v641
        %v1545 = vunpack.c.h.b16 %v641
        %v1546 = vunpack.c.l.b16 %v642
        %v1547 = vunpack.c.h.b16 %v642
        %v1548 = vunpack.c.l.b16 %v643
        %v1549 = vunpack.c.h.b16 %v643
        %v1550 = vunpack.c.l.b16 %v644
        %v1551 = vunpack.c.h.b16 %v644
        %v1552 = vunpack.c.l.b16 %v645
        %v1553 = vunpack.c.h.b16 %v645
        %v1554 = vunpack.c.l.b16 %v646
        %v1555 = vunpack.c.h.b16 %v646
        %v1556 = vunpack.c.l.b16 %v647
        %v1557 = vunpack.c.h.b16 %v647
        %v1558 = vunpack.c.l.b16 %v648
        %v1559 = vunpack.c.h.b16 %v648
        %v1560 = vunpack.c.l.b16 %v649
        %v1561 = vunpack.c.h.b16 %v649
        %v1562 = vunpack.c.l.b16 %v650
        %v1563 = vunpack.c.h.b16 %v650
        %v1564 = vunpack.c.l.b16 %v651
        %v1565 = vunpack.c.h.b16 %v651
        %v1566 = vunpack.c.l.b16 %v652
        %v1567 = vunpack.c.h.b16 %v652
        %v1568 = vunpack.c.l.b16 %v653
        %v1569 = vunpack.c.h.b16 %v653
        %v1570 = vunpack.c.l.b16 %v654
        %v1571 = vunpack.c.h.b16 %v654
        %v1572 = vunpack.c.l.b16 %v655
        %v1573 = vunpack.c.h.b16 %v655
        %v1574 = vunpack.c.l.b16 %v656
        %v1575 = vunpack.c.h.b16 %v656
        %v1576 = vunpack.c.l.b16 %v657
        %v1577 = vunpack.c.h.b16 %v657
        %v1578 = vunpack.c.l.b16 %v658
        %v1579 = vunpack.c.h.b16 %v658
        %v1580 = vunpack.c.l.b16 %v659
        %v1581 = vunpack.c.h.b16 %v659
        %v1582 = vunpack.c.l.b16 %v660
        %v1583 = vunpack.c.h.b16 %v660
        %v1584 = vunpack.c.l.b16 %v661
        %v1585 = vunpack.c.h.b16 %v661
        %v1586 = vunpack.c.l.b16 %v662
        %v1587 = vunpack.c.h.b16 %v662
        %v1588 = vunpack.c.l.b16 %v663
        %v1589 = vunpack.c.h.b16 %v663
        %v1590 = vunpack.c.l.b16 %v664
        %v1591 = vunpack.c.h.b16 %v664
        %v1592 = vunpack.c.l.b16 %v665
        %v1593 = vunpack.c.h.b16 %v665
        %v1594 = vunpack.c.l.b16 %v666
        %v1595 = vunpack.c.h.b16 %v666
        %v1596 = vunpack.c.l.b16 %v667
        %v1597 = vunpack.c.h.b16 %v667
        %v1598 = vunpack.c.l.b16 %v668
        %v1599 = vunpack.c.h.b16 %v668
        %v1600 = vunpack.c.l.b16 %v669
        %v1601 = vunpack.c.h.b16 %v669
        %v1602 = vunpack.c.l.b16 %v670
        %v1603 = vunpack.c.h.b16 %v670
        %v1604 = vunpack.c.l.b16 %v671
        %v1605 = vunpack.c.h.b16 %v671
        %v1606 = vunpack.c.l.b16 %v672
        %v1607 = vunpack.c.h.b16 %v672
        %v1608 = vunpack.c.l.b16 %v673
        %v1609 = vunpack.c.h.b16 %v673
        %v1610 = vunpack.c.l.b16 %v674
        %v1611 = vunpack.c.h.b16 %v674
        %v1612 = vunpack.c.l.b16 %v675
        %v1613 = vunpack.c.h.b16 %v675
        %v1614 = vunpack.c.l.b16 %v676
        %v1615 = vunpack.c.h.b16 %v676
        %v1616 = vunpack.c.l.b16 %v677
        %v1617 = vunpack.c.h.b16 %v677
        %v1618 = vunpack.c.l.b16 %v678
        %v1619 = vunpack.c.h.b16 %v678
        %v1620 = vunpack.c.l.b16 %v679
        %v1621 = vunpack.c.h.b16 %v679
        %v1622 = vunpack.c.l.b16 %v680
        %v1623 = vunpack.c.h.b16 %v680
        %v1624 = vunpack.c.l.b16 %v681
        %v1625 = vunpack.c.h.b16 %v681
        %v1626 = vunpack.c.l.b16 %v682
        %v1627 = vunpack.c.h.b16 %v682
        %v1628 = vunpack.c.l.b16 %v683
        %v1629 = vunpack.c.h.b16 %v683
        %v1630 = vunpack.c.l.b16 %v684
        %v1631 = vunpack.c.h.b16 %v684
        %v1632 = vunpack.c.l.b16 %v685
        %v1633 = vunpack.c.h.b16 %v685
        %v1634 = vunpack.c.l.b16 %v686
        %v1635 = vunpack.c.h.b16 %v686
        %v1636 = vunpack.c.l.b16 %v687
        %v1637 = vunpack.c.h.b16 %v687
        %v1638 = vunpack.c.l.b16 %v688
        %v1639 = vunpack.c.h.b16 %v688
        %v1640 = vunpack.c.l.b16 %v689
        %v1641 = vunpack.c.h.b16 %v689
        %v1642 = vunpack.c.l.b16 %v690
        %v1643 = vunpack.c.h.b16 %v690
        %v1644 = vunpack.c.l.b16 %v691
        %v1645 = vunpack.c.h.b16 %v691
        %v1646 = vunpack.c.l.b16 %v692
        %v1647 = vunpack.c.h.b16 %v692
        %v1648 = vunpack.c.l.b16 %v693
        %v1649 = vunpack.c.h.b16 %v693
        %v1650 = vunpack.c.l.b16 %v694
        %v1651 = vunpack.c.h.b16 %v694
        %v1652 = vunpack.c.l.b16 %v695
        %v1653 = vunpack.c.h.b16 %v695
        %v1654 = vunpack.c.l.b16 %v696
        %v1655 = vunpack.c.h.b16 %v696
        %v1656 = vunpack.c.l.b16 %v697
        %v1657 = vunpack.c.h.b16 %v697
        %v1658 = vunpack.c.l.b16 %v698
        %v1659 = vunpack.c.h.b16 %v698
        %v1660 = vunpack.c.l.b16 %v699
        %v1661 = vunpack.c.h.b16 %v699
        %v1662 = vunpack.c.l.b16 %v700
        %v1663 = vunpack.c.h.b16 %v700
        %v1664 = vunpack.c.l.b16 %v701
        %v1665 = vunpack.c.h.b16 %v701
        %v1666 = vunpack.c.l.b16 %v702
        %v1667 = vunpack.c.h.b16 %v702
        %v1668 = vunpack.c.l.b16 %v703
        %v1669 = vunpack.c.h.b16 %v703
        %v1670 = vunpack.c.l.b16 %v704
        %v1671 = vunpack.c.h.b16 %v704
        %v1672 = vunpack.c.l.b16 %v705
        %v1673 = vunpack.c.h.b16 %v705
        %v1674 = vunpack.c.l.b16 %v706
        %v1675 = vunpack.c.h.b16 %v706
        %v1676 = vunpack.c.l.b16 %v707
        %v1677 = vunpack.c.h.b16 %v707
        %v1678 = vunpack.c.l.b16 %v708
        %v1679 = vunpack.c.h.b16 %v708
        %v1680 = vunpack.c.l.b16 %v709
        %v1681 = vunpack.c.h.b16 %v709
        %v1682 = vunpack.c.l.b16 %v710
        %v1683 = vunpack.c.h.b16 %v710
        %v1684 = vunpack.c.l.b16 %v711
        %v1685 = vunpack.c.h.b16 %v711
        %v1686 = vunpack.c.l.b16 %v712
        %v1687 = vunpack.c.h.b16 %v712
        %v1688 = vunpack.c.l.b16 %v713
        %v1689 = vunpack.c.h.b16 %v713
        %v1690 = vunpack.c.l.b16 %v714
        %v1691 = vunpack.c.h.b16 %v714
        %v1692 = vunpack.c.l.b16 %v715
        %v1693 = vunpack.c.h.b16 %v715
        %v1694 = vunpack.c.l.b16 %v716
        %v1695 = vunpack.c.h.b16 %v716
        %v1696 = vunpack.c.l.b16 %v717
        %v1697 = vunpack.c.h.b16 %v717
        %v1698 = vunpack.c.l.b16 %v718
        %v1699 = vunpack.c.h.b16 %v718
        %v1700 = vunpack.c.l.b16 %v719
        %v1701 = vunpack.c.h.b16 %v719
        %v1702 = vunpack.c.l.b16 %v720
        %v1703 = vunpack.c.h.b16 %v720
        %v1704 = vunpack.c.l.b16 %v721
        %v1705 = vunpack.c.h.b16 %v721
        %v1706 = vunpack.c.l.b16 %v722
        %v1707 = vunpack.c.h.b16 %v722
        %v1708 = vunpack.c.l.b16 %v723
        %v1709 = vunpack.c.h.b16 %v723
        %v1710 = vunpack.c.l.b16 %v724
        %v1711 = vunpack.c.h.b16 %v724
        %v1712 = vunpack.c.l.b16 %v725
        %v1713 = vunpack.c.h.b16 %v725
        %v1714 = vunpack.c.l.b16 %v726
        %v1715 = vunpack.c.h.b16 %v726
        %v1716 = vunpack.c.l.b16 %v727
        %v1717 = vunpack.c.h.b16 %v727
        %v1718 = vunpack.c.l.b16 %v728
        %v1719 = vunpack.c.h.b16 %v728
        %v1720 = vunpack.c.l.b16 %v729
        %v1721 = vunpack.c.h.b16 %v729
        %v1722 = vunpack.c.l.b16 %v730
        %v1723 = vunpack.c.h.b16 %v730
        %v1724 = vunpack.c.l.b16 %v731
        %v1725 = vunpack.c.h.b16 %v731
        %v1726 = vunpack.c.l.b16 %v732
        %v1727 = vunpack.c.h.b16 %v732
        %v1728 = vunpack.c.l.b16 %v733
        %v1729 = vunpack.c.h.b16 %v733
        %v1730 = vunpack.c.l.b16 %v734
        %v1731 = vunpack.c.h.b16 %v734
        %v1732 = vunpack.c.l.b16 %v735
        %v1733 = vunpack.c.h.b16 %v735
        %v1734 = vunpack.c.l.b16 %v736
        %v1735 = vunpack.c.h.b16 %v736
        %v1736 = vunpack.c.l.b16 %v737
        %v1737 = vunpack.c.h.b16 %v737
        %v1738 = vunpack.c.l.b16 %v738
        %v1739 = vunpack.c.h.b16 %v738
        %v1740 = vunpack.c.l.b16 %v739
        %v1741 = vunpack.c.h.b16 %v739
        %v1742 = vunpack.c.l.b16 %v740
        %v1743 = vunpack.c.h.b16 %v740
        %v1744 = vunpack.c.l.b16 %v741
        %v1745 = vunpack.c.h.b16 %v741
        %v1746 = vunpack.c.l.b16 %v742
        %v1747 = vunpack.c.h.b16 %v742
        %v1748 = vunpack.c.l.b16 %v743
        %v1749 = vunpack.c.h.b16 %v743
        %v1750 = vunpack.c.l.b16 %v744
        %v1751 = vunpack.c.h.b16 %v744
        %v1752 = vunpack.c.l.b16 %v745
        %v1753 = vunpack.c.h.b16 %v745
        %v1754 = vunpack.c.l.b16 %v746
        %v1755 = vunpack.c.h.b16 %v746
        %v1756 = vunpack.c.l.b16 %v747
        %v1757 = vunpack.c.h.b16 %v747
        %v1758 = vunpack.c.l.b16 %v748
        %v1759 = vunpack.c.h.b16 %v748
        %v1760 = vunpack.c.l.b16 %v749
        %v1761 = vunpack.c.h.b16 %v749
        %v1762 = vunpack.c.l.b16 %v750
        %v1763 = vunpack.c.h.b16 %v750
        %v1764 = vunpack.c.l.b16 %v751
        %v1765 = vunpack.c.h.b16 %v751
        %v1766 = vunpack.c.l.b16 %v752
        %v1767 = vunpack.c.h.b16 %v752
        %v1768 = vunpack.c.l.b16 %v753
        %v1769 = vunpack.c.h.b16 %v753
        %v1770 = vunpack.c.l.b16 %v754
        %v1771 = vunpack.c.h.b16 %v754
        %v1772 = vunpack.c.l.b16 %v755
        %v1773 = vunpack.c.h.b16 %v755
        %v1774 = vunpack.c.l.b16 %v756
        %v1775 = vunpack.c.h.b16 %v756
        %v1776 = vunpack.c.l.b16 %v757
        %v1777 = vunpack.c.h.b16 %v757
        %v1778 = vunpack.c.l.b16 %v758
        %v1779 = vunpack.c.h.b16 %v758
        %v1780 = vunpack.c.l.b16 %v759
        %v1781 = vunpack.c.h.b16 %v759
        %v1782 = vunpack.c.l.b16 %v760
        %v1783 = vunpack.c.h.b16 %v760
        %v1784 = vunpack.c.l.b16 %v761
        %v1785 = vunpack.c.h.b16 %v761
        %v1786 = vunpack.c.l.b16 %v762
        %v1787 = vunpack.c.h.b16 %v762
        %v1788 = vunpack.c.l.b16 %v763
        %v1789 = vunpack.c.h.b16 %v763
        %v1790 = vunpack.c.l.b16 %v764
        %v1791 = vunpack.c.h.b16 %v764
        %v1792 = vunpack.c.l.b16 %v765
        %v1793 = vunpack.c.h.b16 %v765
        %v1794 = vunpack.c.l.b16 %v766
        %v1795 = vunpack.c.h.b16 %v766
        %v1796 = vunpack.c.l.b16 %v767
        %v1797 = vunpack.c.h.b16 %v767
        %v1798 = vunpack.c.l.b16 %v768
        %v1799 = vunpack.c.h.b16 %v768
        %v1800 = vunpack.c.l.b16 %v769
        %v1801 = vunpack.c.h.b16 %v769
        %v1802 = vunpack.c.l.b16 %v770
        %v1803 = vunpack.c.h.b16 %v770
        %v1804 = vunpack.c.l.b16 %v771
        %v1805 = vunpack.c.h.b16 %v771
        %v1806 = vunpack.c.l.b16 %v772
        %v1807 = vunpack.c.h.b16 %v772
        %v1808 = vunpack.c.l.b16 %v773
        %v1809 = vunpack.c.h.b16 %v773
        %v1810 = vunpack.c.l.b16 %v774
        %v1811 = vunpack.c.h.b16 %v774
        %v1812 = vunpack.c.l.b16 %v775
        %v1813 = vunpack.c.h.b16 %v775
        %v1814 = vunpack.c.l.b16 %v776
        %v1815 = vunpack.c.h.b16 %v776
        %v1816 = vunpack.c.l.b16 %v777
        %v1817 = vunpack.c.h.b16 %v777
        %v1818 = vunpack.c.l.b16 %v778
        %v1819 = vunpack.c.h.b16 %v778
        %v1820 = vunpack.c.l.b16 %v779
        %v1821 = vunpack.c.h.b16 %v779
        %v1822 = vunpack.c.l.b16 %v780
        %v1823 = vunpack.c.h.b16 %v780
        %v1824 = vunpack.c.l.b16 %v781
        %v1825 = vunpack.c.h.b16 %v781
        %v1826 = vunpack.c.l.b16 %v782
        %v1827 = vunpack.c.h.b16 %v782
        %v1828 = vunpack.c.l.b16 %v783
        %v1829 = vunpack.c.h.b16 %v783
        %v1830 = vunpack.c.l.b16 %v784
        %v1831 = vunpack.c.h.b16 %v784
        %v1832 = vunpack.c.l.b16 %v785
        %v1833 = vunpack.c.h.b16 %v785
        %v1834 = vunpack.c.l.b16 %v786
        %v1835 = vunpack.c.h.b16 %v786
        %v1836 = vunpack.c.l.b16 %v787
        %v1837 = vunpack.c.h.b16 %v787
        %v1838 = vunpack.c.l.b16 %v788
        %v1839 = vunpack.c.h.b16 %v788
        %v1840 = vunpack.c.l.b16 %v789
        %v1841 = vunpack.c.h.b16 %v789
        %v1842 = vunpack.c.l.b16 %v790
        %v1843 = vunpack.c.h.b16 %v790
        %v1844 = vunpack.c.l.b16 %v791
        %v1845 = vunpack.c.h.b16 %v791
        %v1846 = vunpack.c.l.b16 %v792
        %v1847 = vunpack.c.h.b16 %v792
        %v1848 = vunpack.c.l.b16 %v793
        %v1849 = vunpack.c.h.b16 %v793
        %v1850 = vunpack.c.l.b16 %v794
        %v1851 = vunpack.c.h.b16 %v794
        %v1852 = vunpack.c.l.b16 %v795
        %v1853 = vunpack.c.h.b16 %v795
        %v1854 = vunpack.c.l.b16 %v796
        %v1855 = vunpack.c.h.b16 %v796
        %v1856 = vunpack.c.l.b16 %v797
        %v1857 = vunpack.c.h.b16 %v797
        %v1858 = vunpack.c.l.b16 %v798
        %v1859 = vunpack.c.h.b16 %v798
        %v1860 = vunpack.c.l.b16 %v799
        %v1861 = vunpack.c.h.b16 %v799
        %v1862 = vunpack.c.l.b16 %v800
        %v1863 = vunpack.c.h.b16 %v800
        %v1864 = vunpack.c.l.b16 %v801
        %v1865 = vunpack.c.h.b16 %v801
        %v1866 = vunpack.c.l.b16 %v802
        %v1867 = vunpack.c.h.b16 %v802
        %v1868 = vunpack.c.l.b16 %v803
        %v1869 = vunpack.c.h.b16 %v803
        %v1870 = vunpack.c.l.b16 %v804
        %v1871 = vunpack.c.h.b16 %v804
        %v1872 = vunpack.c.l.b16 %v805
        %v1873 = vunpack.c.h.b16 %v805
        %v1874 = vunpack.c.l.b16 %v806
        %v1875 = vunpack.c.h.b16 %v806
        %v1876 = vunpack.c.l.b16 %v807
        %v1877 = vunpack.c.h.b16 %v807
        %v1878 = vunpack.c.l.b16 %v808
        %v1879 = vunpack.c.h.b16 %v808
        %v1880 = vunpack.c.l.b16 %v809
        %v1881 = vunpack.c.h.b16 %v809
        %v1882 = vunpack.c.l.b16 %v810
        %v1883 = vunpack.c.h.b16 %v810
        %v1884 = vunpack.c.l.b16 %v811
        %v1885 = vunpack.c.h.b16 %v811
        %v1886 = vunpack.c.l.b16 %v812
        %v1887 = vunpack.c.h.b16 %v812
        %v1888 = vunpack.c.l.b16 %v813
        %v1889 = vunpack.c.h.b16 %v813
        %v1890 = vunpack.c.l.b16 %v814
        %v1891 = vunpack.c.h.b16 %v814
        %v1892 = vunpack.c.l.b16 %v815
        %v1893 = vunpack.c.h.b16 %v815
        %v1894 = vunpack.c.l.b16 %v816
        %v1895 = vunpack.c.h.b16 %v816
        %v1896 = vunpack.c.l.b16 %v817
        %v1897 = vunpack.c.h.b16 %v817
        %v1898 = vunpack.c.l.b16 %v818
        %v1899 = vunpack.c.h.b16 %v818
        %v1900 = vunpack.c.l.b16 %v819
        %v1901 = vunpack.c.h.b16 %v819
        %v1902 = vunpack.c.l.b16 %v820
        %v1903 = vunpack.c.h.b16 %v820
        %v1904 = vunpack.c.l.b16 %v821
        %v1905 = vunpack.c.h.b16 %v821
        %v1906 = vunpack.c.l.b16 %v822
        %v1907 = vunpack.c.h.b16 %v822
        %v1908 = vunpack.c.l.b16 %v823
        %v1909 = vunpack.c.h.b16 %v823
        %v1910 = vunpack.c.l.b16 %v824
        %v1911 = vunpack.c.h.b16 %v824
        %v1912 = vunpack.c.l.b16 %v825
        %v1913 = vunpack.c.h.b16 %v825
        %v1914 = vunpack.c.l.b16 %v826
        %v1915 = vunpack.c.h.b16 %v826
        %v1916 = vunpack.c.l.b16 %v827
        %v1917 = vunpack.c.h.b16 %v827
        %v1918 = vunpack.c.l.b16 %v828
        %v1919 = vunpack.c.h.b16 %v828
        %v1920 = vunpack.c.l.b16 %v829
        %v1921 = vunpack.c.h.b16 %v829
        %v1922 = vunpack.c.l.b16 %v830
        %v1923 = vunpack.c.h.b16 %v830
        %v1924 = vunpack.c.l.b16 %v831
        %v1925 = vunpack.c.h.b16 %v831
        %v1926 = vunpack.c.l.b16 %v832
        %v1927 = vunpack.c.h.b16 %v832
        %v1928 = vunpack.c.l.b16 %v833
        %v1929 = vunpack.c.h.b16 %v833
        %v1930 = vunpack.c.l.b16 %v834
        %v1931 = vunpack.c.h.b16 %v834
        %v1932 = vunpack.c.l.b16 %v835
        %v1933 = vunpack.c.h.b16 %v835
        %v1934 = vunpack.c.l.b16 %v836
        %v1935 = vunpack.c.h.b16 %v836
        %v1936 = vunpack.c.l.b16 %v837
        %v1937 = vunpack.c.h.b16 %v837
        %v1938 = vunpack.c.l.b16 %v838
        %v1939 = vunpack.c.h.b16 %v838
        %v1940 = vunpack.c.l.b16 %v839
        %v1941 = vunpack.c.h.b16 %v839
        %v1942 = vunpack.c.l.b16 %v840
        %v1943 = vunpack.c.h.b16 %v840
        %v1944 = vunpack.c.l.b16 %v841
        %v1945 = vunpack.c.h.b16 %v841
        %v1946 = vunpack.c.l.b16 %v842
        %v1947 = vunpack.c.h.b16 %v842
        %v1948 = vpack.c.b16 %v1310, %v1308
        %v1949 = vpack.c.b16 %v1311, %v1309
        %v1950 = vpack.c.b16 %v1314, %v1312
        %v1951 = vpack.c.b16 %v1315, %v1313
        %v1952 = vpack.c.b16 %v1318, %v1316
        %v1953 = vpack.c.b16 %v1319, %v1317
        %v1954 = vpack.c.b16 %v1322, %v1320
        %v1955 = vpack.c.b16 %v1323, %v1321
        %v1956 = vpack.c.b16 %v1326, %v1324
        %v1957 = vpack.c.b16 %v1327, %v1325
        %v1958 = vpack.c.b16 %v1330, %v1328
        %v1959 = vpack.c.b16 %v1331, %v1329
        %v1960 = vpack.c.b16 %v1334, %v1332
        %v1961 = vpack.c.b16 %v1335, %v1333
        %v1962 = vpack.c.b16 %v1338, %v1336
        %v1963 = vpack.c.b16 %v1339, %v1337
        %v1964 = vpack.c.b16 %v1342, %v1340
        %v1965 = vpack.c.b16 %v1343, %v1341
        %v1966 = vpack.c.b16 %v1346, %v1344
        %v1967 = vpack.c.b16 %v1347, %v1345
        %v1968 = vpack.c.b16 %v1350, %v1348
        %v1969 = vpack.c.b16 %v1351, %v1349
        %v1970 = vpack.c.b16 %v1354, %v1352
        %v1971 = vpack.c.b16 %v1355, %v1353
        %v1972 = vpack.c.b16 %v1358, %v1356
        %v1973 = vpack.c.b16 %v1359, %v1357
        %v1974 = vpack.c.b16 %v1362, %v1360
        %v1975 = vpack.c.b16 %v1363, %v1361
        %v1976 = vpack.c.b16 %v1366, %v1364
        %v1977 = vpack.c.b16 %v1367, %v1365
        %v1978 = vpack.c.b16 %v1370, %v1368
        %v1979 = vpack.c.b16 %v1371, %v1369
        %v1980 = vpack.c.b16 %v1374, %v1372
        %v1981 = vpack.c.b16 %v1375, %v1373
        %v1982 = vpack.c.b16 %v1378, %v1376
        %v1983 = vpack.c.b16 %v1379, %v1377
        %v1984 = vpack.c.b16 %v1382, %v1380
        %v1985 = vpack.c.b16 %v1383, %v1381
        %v1986 = vpack.c.b16 %v1386, %v1384
        %v1987 = vpack.c.b16 %v1387, %v1385
        %v1988 = vpack.c.b16 %v1390, %v1388
        %v1989 = vpack.c.b16 %v1391, %v1389
        %v1990 = vpack.c.b16 %v1394, %v1392
        %v1991 = vpack.c.b16 %v1395, %v1393
        %v1992 = vpack.c.b16 %v1398, %v1396
        %v1993 = vpack.c.b16 %v1399, %v1397
        %v1994 = vpack.c.b16 %v1402, %v1400
        %v1995 = vpack.c.b16 %v1403, %v1401
        %v1996 = vpack.c.b16 %v1406, %v1404
        %v1997 = vpack.c.b16 %v1407, %v1405
        %v1998 = vpack.c.b16 %v1410, %v1408
        %v1999 = vpack.c.b16 %v1411, %v1409
        %v2000 = vpack.c.b16 %v1414, %v1412
        %v2001 = vpack.c.b16 %v1415, %v1413
        %v2002 = vpack.c.b16 %v1418, %v1416
        %v2003 = vpack.c.b16 %v1419, %v1417
        %v2004 = vpack.c.b16 %v1422, %v1420
        %v2005 = vpack.c.b16 %v1423, %v1421
        %v2006 = vpack.c.b16 %v1426, %v1424
        %v2007 = vpack.c.b16 %v1427, %v1425
        %v2008 = vpack.c.b16 %v1430, %v1428
        %v2009 = vpack.c.b16 %v1431, %v1429
        %v2010 = vpack.c.b16 %v1434, %v1432
        %v2011 = vpack.c.b16 %v1435, %v1433
        %v2012 = vpack.c.b16 %v1438, %v1436
        %v2013 = vpack.c.b16 %v1439, %v1437
        %v2014 = vpack.c.b16 %v1442, %v1440
        %v2015 = vpack.c.b16 %v1443, %v1441
        %v2016 = vpack.c.b16 %v1446, %v1444
        %v2017 = vpack.c.b16 %v1447, %v1445
        %v2018 = vpack.c.b16 %v1450, %v1448
        %v2019 = vpack.c.b16 %v1451, %v1449
        %v2020 = vpack.c.b16 %v1454, %v1452
        %v2021 = vpack.c.b16 %v1455, %v1453
        %v2022 = vpack.c.b16 %v1458, %v1456
        %v2023 = vpack.c.b16 %v1459, %v1457
        %v2024 = vpack.c.b16 %v1462, %v1460
        %v2025 = vpack.c.b16 %v1463, %v1461
        %v2026 = vpack.c.b16 %v1466, %v1464
        %v2027 = vpack.c.b16 %v1467, %v1465
        %v2028 = vpack.c.b16 %v1470, %v1468
        %v2029 = vpack.c.b16 %v1471, %v1469
        %v2030 = vpack.c.b16 %v1474, %v1472
        %v2031 = vpack.c.b16 %v1475, %v1473
        %v2032 = vpack.c.b16 %v1478, %v1476
        %v2033 = vpack.c.b16 %v1479, %v1477
        %v2034 = vpack.c.b16 %v1482, %v1480
        %v2035 = vpack.c.b16 %v1483, %v1481
        %v2036 = vpack.c.b16 %v1486, %v1484
        %v2037 = vpack.c.b16 %v1487, %v1485
        %v2038 = vpack.c.b16 %v1490, %v1488
        %v2039 = vpack.c.b16 %v1491, %v1489
        %v2040 = vpack.c.b16 %v1494, %v1492
        %v2041 = vpack.c.b16 %v1495, %v1493
        %v2042 = vpack.c.b16 %v1498, %v1496
        %v2043 = vpack.c.b16 %v1499, %v1497
        %v2044 = vpack.c.b16 %v1502, %v1500
        %v2045 = vpack.c.b16 %v1503, %v1501
        %v2046 = vpack.c.b16 %v1506, %v1504
        %v2047 = vpack.c.b16 %v1507, %v1505
        %v2048 = vpack.c.b16 %v1510, %v1508
        %v2049 = vpack.c.b16 %v1511, %v1509
        %v2050 = vpack.c.b16 %v1514, %v1512
        %v2051 = vpack.c.b16 %v1515, %v1513
        %v2052 = vpack.c.b16 %v1518, %v1516
        %v2053 = vpack.c.b16 %v1519, %v1517
        %v2054 = vpack.c.b16 %v1522, %v1520
        %v2055 = vpack.c.b16 %v1523, %v1521
        %v2056 = vpack.c.b16 %v1526, %v1524
        %v2057 = vpack.c.b16 %v1527, %v1525
        %v2058 = vpack.c.b16 %v1530, %v1528
        %v2059 = vpack.c.b16 %v1531, %v1529
        %v2060 = vpack.c.b16 %v1534, %v1532
        %v2061 = vpack.c.b16 %v1535, %v1533
        %v2062 = vpack.c.b16 %v1538, %v1536
        %v2063 = vpack.c.b16 %v1539, %v1537
        %v2064 = vpack.c.b16 %v1542, %v1540
        %v2065 = vpack.c.b16 %v1543, %v1541
        %v2066 = vpack.c.b16 %v1546, %v1544
        %v2067 = vpack.c.b16 %v1547, %v1545
        %v2068 = vpack.c.b16 %v1550, %v1548
        %v2069 = vpack.c.b16 %v1551, %v1549
        %v2070 = vpack.c.b16 %v1554, %v1552
        %v2071 = vpack.c.b16 %v1555, %v1553
        %v2072 = vpack.c.b16 %v1558, %v1556
        %v2073 = vpack.c.b16 %v1559, %v1557
        %v2074 = vpack.c.b16 %v1562, %v1560
        %v2075 = vpack.c.b16 %v1563, %v1561
        %v2076 = vpack.c.b16 %v1566, %v1564
        %v2077 = vpack.c.b16 %v1567, %v1565
        %v2078 = vpack.c.b16 %v1570, %v1568
        %v2079 = vpack.c.b16 %v1571, %v1569
        %v2080 = vpack.c.b16 %v1574, %v1572
        %v2081 = vpack.c.b16 %v1575, %v1573
        %v2082 = vpack.c.b16 %v1578, %v1576
        %v2083 = vpack.c.b16 %v1579, %v1577
        %v2084 = vpack.c.b16 %v1582, %v1580
        %v2085 = vpack.c.b16 %v1583, %v1581
        %v2086 = vpack.c.b16 %v1586, %v1584
        %v2087 = vpack.c.b16 %v1587, %v1585
        %v2088 = vpack.c.b16 %v1590, %v1588
        %v2089 = vpack.c.b16 %v1591, %v1589
        %v2090 = vpack.c.b16 %v1594, %v1592
        %v2091 = vpack.c.b16 %v1595, %v1593
        %v2092 = vpack.c.b16 %v1598, %v1596
        %v2093 = vpack.c.b16 %v1599, %v1597
        %v2094 = vpack.c.b16 %v1602, %v1600
        %v2095 = vpack.c.b16 %v1603, %v1601
        %v2096 = vpack.c.b16 %v1606, %v1604
        %v2097 = vpack.c.b16 %v1607, %v1605
        %v2098 = vpack.c.b16 %v1610, %v1608
        %v2099 = vpack.c.b16 %v1611, %v1609
        %v2100 = vpack.c.b16 %v1614, %v1612
        %v2101 = vpack.c.b16 %v1615, %v1613
        %v2102 = vpack.c.b16 %v1618, %v1616
        %v2103 = vpack.c.b16 %v1619, %v1617
        %v2104 = vpack.c.b16 %v1622, %v1620
        %v2105 = vpack.c.b16 %v1623, %v1621
        %v2106 = vpack.c.b16 %v1626, %v1624
        %v2107 = vpack.c.b16 %v1627, %v1625
        %v2108 = vpack.c.b16 %v1630, %v1628
        %v2109 = vpack.c.b16 %v1631, %v1629
        %v2110 = vpack.c.b16 %v1634, %v1632
        %v2111 = vpack.c.b16 %v1635, %v1633
        %v2112 = vpack.c.b16 %v1638, %v1636
        %v2113 = vpack.c.b16 %v1639, %v1637
        %v2114 = vpack.c.b16 %v1642, %v1640
        %v2115 = vpack.c.b16 %v1643, %v1641
        %v2116 = vpack.c.b16 %v1646, %v1644
        %v2117 = vpack.c.b16 %v1647, %v1645
        %v2118 = vpack.c.b16 %v1650, %v1648
        %v2119 = vpack.c.b16 %v1651, %v1649
        %v2120 = vpack.c.b16 %v1654, %v1652
        %v2121 = vpack.c.b16 %v1655, %v1653
        %v2122 = vpack.c.b16 %v1658, %v1656
        %v2123 = vpack.c.b16 %v1659, %v1657
        %v2124 = vpack.c.b16 %v1662, %v1660
        %v2125 = vpack.c.b16 %v1663, %v1661
        %v2126 = vpack.c.b16 %v1666, %v1664
        %v2127 = vpack.c.b16 %v1667, %v1665
        %v2128 = vpack.c.b16 %v1670, %v1668
        %v2129 = vpack.c.b16 %v1671, %v1669
        %v2130 = vpack.c.b16 %v1674, %v1672
        %v2131 = vpack.c.b16 %v1675, %v1673
        %v2132 = vpack.c.b16 %v1678, %v1676
        %v2133 = vpack.c.b16 %v1679, %v1677
        %v2134 = vpack.c.b16 %v1682, %v1680
        %v2135 = vpack.c.b16 %v1683, %v1681
        %v2136 = vpack.c.b16 %v1686, %v1684
        %v2137 = vpack.c.b16 %v1687, %v1685
        %v2138 = vpack.c.b16 %v1690, %v1688
        %v2139 = vpack.c.b16 %v1691, %v1689
        %v2140 = vpack.c.b16 %v1694, %v1692
        %v2141 = vpack.c.b16 %v1695, %v1693
        %v2142 = vpack.c.b16 %v1698, %v1696
        %v2143 = vpack.c.b16 %v1699, %v1697
        %v2144 = vpack.c.b16 %v1702, %v1700
        %v2145 = vpack.c.b16 %v1703, %v1701
        %v2146 = vpack.c.b16 %v1706, %v1704
        %v2147 = vpack.c.b16 %v1707, %v1705
        %v2148 = vpack.c.b16 %v1710, %v1708
        %v2149 = vpack.c.b16 %v1711, %v1709
        %v2150 = vpack.c.b16 %v1714, %v1712
        %v2151 = vpack.c.b16 %v1715, %v1713
        %v2152 = vpack.c.b16 %v1718, %v1716
        %v2153 = vpack.c.b16 %v1719, %v1717
        %v2154 = vpack.c.b16 %v1722, %v1720
        %v2155 = vpack.c.b16 %v1723, %v1721
        %v2156 = vpack.c.b16 %v1726, %v1724
        %v2157 = vpack.c.b16 %v1727, %v1725
        %v2158 = vpack.c.b16 %v1730, %v1728
        %v2159 = vpack.c.b16 %v1731, %v1729
        %v2160 = vpack.c.b16 %v1734, %v1732
        %v2161 = vpack.c.b16 %v1735, %v1733
        %v2162 = vpack.c.b16 %v1738, %v1736
        %v2163 = vpack.c.b16 %v1739, %v1737
        %v2164 = vpack.c.b16 %v1742, %v1740
        %v2165 = vpack.c.b16 %v1743, %v1741
        %v2166 = vpack.c.b16 %v1746, %v1744
        %v2167 = vpack.c.b16 %v1747, %v1745
        %v2168 = vpack.c.b16 %v1750, %v1748
        %v2169 = vpack.c.b16 %v1751, %v1749
        %v2170 = vpack.c.b16 %v1754, %v1752
        %v2171 = vpack.c.b16 %v1755, %v1753
        %v2172 = vpack.c.b16 %v1758, %v1756
        %v2173 = vpack.c.b16 %v1759, %v1757
        %v2174 = vpack.c.b16 %v1762, %v1760
        %v2175 = vpack.c.b16 %v1763, %v1761
        %v2176 = vpack.c.b16 %v1766, %v1764
        %v2177 = vpack.c.b16 %v1767, %v1765
        %v2178 = vpack.c.b16 %v1770, %v1768
        %v2179 = vpack.c.b16 %v1771, %v1769
        %v2180 = vpack.c.b16 %v1774, %v1772
        %v2181 = vpack.c.b16 %v1775, %v1773
        %v2182 = vpack.c.b16 %v1778, %v1776
        %v2183 = vpack.c.b16 %v1779, %v1777
        %v2184 = vpack.c.b16 %v1782, %v1780
        %v2185 = vpack.c.b16 %v1783, %v1781
        %v2186 = vpack.c.b16 %v1786, %v1784
        %v2187 = vpack.c.b16 %v1787, %v1785
        %v2188 = vpack.c.b16 %v1790, %v1788
        %v2189 = vpack.c.b16 %v1791, %v1789
        %v2190 = vpack.c.b16 %v1794, %v1792
        %v2191 = vpack.c.b16 %v1795, %v1793
        %v2192 = vpack.c.b16 %v1798, %v1796
        %v2193 = vpack.c.b16 %v1799, %v1797
        %v2194 = vpack.c.b16 %v1802, %v1800
        %v2195 = vpack.c.b16 %v1803, %v1801
        %v2196 = vpack.c.b16 %v1806, %v1804
        %v2197 = vpack.c.b16 %v1807, %v1805
        %v2198 = vpack.c.b16 %v1810, %v1808
        %v2199 = vpack.c.b16 %v1811, %v1809
        %v2200 = vpack.c.b16 %v1814, %v1812
        %v2201 = vpack.c.b16 %v1815, %v1813
        %v2202 = vpack.c.b16 %v1818, %v1816
        %v2203 = vpack.c.b16 %v1819, %v1817
        %v2204 = vpack.c.b16 %v1822, %v1820
        %v2205 = vpack.c.b16 %v1823, %v1821
        %v2206 = vpack.c.b16 %v1826, %v1824
        %v2207 = vpack.c.b16 %v1827, %v1825
        %v2208 = vpack.c.b16 %v1830, %v1828
        %v2209 = vpack.c.b16 %v1831, %v1829
        %v2210 = vpack.c.b16 %v1834, %v1832
        %v2211 = vpack.c.b16 %v1835, %v1833
        %v2212 = vpack.c.b16 %v1838, %v1836
        %v2213 = vpack.c.b16 %v1839, %v1837
        %v2214 = vpack.c.b16 %v1842, %v1840
        %v2215 = vpack.c.b16 %v1843, %v1841
        %v2216 = vpack.c.b16 %v1846, %v1844
        %v2217 = vpack.c.b16 %v1847, %v1845
        %v2218 = vpack.c.b16 %v1850, %v1848
        %v2219 = vpack.c.b16 %v1851, %v1849
        %v2220 = vpack.c.b16 %v1854, %v1852
        %v2221 = vpack.c.b16 %v1855, %v1853
        %v2222 = vpack.c.b16 %v1858, %v1856
        %v2223 = vpack.c.b16 %v1859, %v1857
        %v2224 = vpack.c.b16 %v1862, %v1860
        %v2225 = vpack.c.b16 %v1863, %v1861
        %v2226 = vpack.c.b16 %v1866, %v1864
        %v2227 = vpack.c.b16 %v1867, %v1865
        %v2228 = vpack.c.b16 %v1870, %v1868
        %v2229 = vpack.c.b16 %v1871, %v1869
        %v2230 = vpack.c.b16 %v1874, %v1872
        %v2231 = vpack.c.b16 %v1875, %v1873
        %v2232 = vpack.c.b16 %v1878, %v1876
        %v2233 = vpack.c.b16 %v1879, %v1877
        %v2234 = vpack.c.b16 %v1882, %v1880
        %v2235 = vpack.c.b16 %v1883, %v1881
        %v2236 = vpack.c.b16 %v1886, %v1884
        %v2237 = vpack.c.b16 %v1887, %v1885
        %v2238 = vpack.c.b16 %v1890, %v1888
        %v2239 = vpack.c.b16 %v1891, %v1889
        %v2240 = vpack.c.b16 %v1894, %v1892
        %v2241 = vpack.c.b16 %v1895, %v1893
        %v2242 = vpack.c.b16 %v1898, %v1896
        %v2243 = vpack.c.b16 %v1899, %v1897
        %v2244 = vpack.c.b16 %v1902, %v1900
        %v2245 = vpack.c.b16 %v1903, %v1901
        %v2246 = vpack.c.b16 %v1906, %v1904
        %v2247 = vpack.c.b16 %v1907, %v1905
        %v2248 = vpack.c.b16 %v1910, %v1908
        %v2249 = vpack.c.b16 %v1911, %v1909
        %v2250 = vpack.c.b16 %v1914, %v1912
        %v2251 = vpack.c.b16 %v1915, %v1913
        %v2252 = vpack.c.b16 %v1918, %v1916
        %v2253 = vpack.c.b16 %v1919, %v1917
        %v2254 = vpack.c.b16 %v1922, %v1920
        %v2255 = vpack.c.b16 %v1923, %v1921
        %v2256 = vpack.c.b16 %v1926, %v1924
        %v2257 = vpack.c.b16 %v1927, %v1925
        %v2258 = vpack.c.b16 %v1930, %v1928
        %v2259 = vpack.c.b16 %v1931, %v1929
        %v2260 = vpack.c.b16 %v1934, %v1932
        %v2261 = vpack.c.b16 %v1935, %v1933
        %v2262 = vpack.c.b16 %v1938, %v1936
        %v2263 = vpack.c.b16 %v1939, %v1937
        %v2264 = vpack.c.b16 %v1942, %v1940
        %v2265 = vpack.c.b16 %v1943, %v1941
        %v2266 = vpack.c.b16 %v1946, %v1944
        %v2267 = vpack.c.b16 %v1947, %v1945
        %2588 = vmatprep.subr.bf16.mxu0 %v1963
        %2589 = vmatpush1.bf16.msra.mxu0 %v1962
        %2590 = vmatprep.subr.bf16.mxu0 %v1961
        %2591 = vmatpush1.bf16.msra.mxu0 %v1960
        %2592 = vmatprep.subr.bf16.mxu0 %v1959
        %2593 = vmatpush1.bf16.msra.mxu0 %v1958
        %2594 = vmatprep.subr.bf16.mxu0 %v1957
        %2595 = vmatpush1.bf16.msra.mxu0 %v1956
        %2596 = vmatprep.subr.bf16.mxu0 %v1955
        %2597 = vmatpush1.bf16.msra.mxu0 %v1954
        %2598 = vmatprep.subr.bf16.mxu0 %v1953
        %2599 = vmatpush1.bf16.msra.mxu0 %v1952
        %2600 = vmatprep.subr.bf16.mxu0 %v1951
        %2601 = vmatpush1.bf16.msra.mxu0 %v1950
        %2602 = vmatprep.subr.bf16.mxu0 %v1949
        %2603 = vmatpush1.bf16.msra.mxu0 %v1948
        %2604 = vmatprep.subr.bf16.mxu0 %v1979
        %2605 = vmatpush2.bf16.msra.mxu0 %v1978
        %2606 = vmatprep.subr.bf16.mxu0 %v1977
        %2607 = vmatpush2.bf16.msra.mxu0 %v1976
        %2608 = vmatprep.subr.bf16.mxu0 %v1975
        %2609 = vmatpush2.bf16.msra.mxu0 %v1974
        %2610 = vmatprep.subr.bf16.mxu0 %v1973
        %2611 = vmatpush2.bf16.msra.mxu0 %v1972
        %2612 = vmatprep.subr.bf16.mxu0 %v1971
        %2613 = vmatpush2.bf16.msra.mxu0 %v1970
        %2614 = vmatprep.subr.bf16.mxu0 %v1969
        %2615 = vmatpush2.bf16.msra.mxu0 %v1968
        %2616 = vmatprep.subr.bf16.mxu0 %v1967
        %2617 = vmatpush2.bf16.msra.mxu0 %v1966
        %2618 = vmatprep.subr.bf16.mxu0 %v1965
        %2619 = vmatpush2.bf16.msra.mxu0 %v1964
        %2620 = vmatprep.mubr.bf16.mxu0 %v883
        %2621 = vmatmul.mubr.bf16.gmra.mxu0 %v869
        %v2622 = vpop.f32.mrf.mxu0
        %v2623 = vadd.f32 0.0, %v2622
        %v2624 = vpop.f32.mrf.mxu0
        %v2625 = vadd.f32 0.0, %v2624
        %v2626 = vpop.f32.mrf.mxu0
        %v2627 = vpop.f32.mrf.mxu0
        %2628 = vdwg.mxu0
        %2629 = vmatprep.subr.bf16.mxu0 %v1995
        %2630 = vmatpush1.bf16.msra.mxu0 %v1994
        %2631 = vmatprep.subr.bf16.mxu0 %v1993
        %2632 = vmatpush1.bf16.msra.mxu0 %v1992
        %2633 = vmatprep.subr.bf16.mxu0 %v1991
        %2634 = vmatpush1.bf16.msra.mxu0 %v1990
        %2635 = vmatprep.subr.bf16.mxu0 %v1989
        %2636 = vmatpush1.bf16.msra.mxu0 %v1988
        %2637 = vmatprep.subr.bf16.mxu0 %v1987
        %2638 = vmatpush1.bf16.msra.mxu0 %v1986
        %2639 = vmatprep.subr.bf16.mxu0 %v1985
        %2640 = vmatpush1.bf16.msra.mxu0 %v1984
        %2641 = vmatprep.subr.bf16.mxu0 %v1983
        %2642 = vmatpush1.bf16.msra.mxu0 %v1982
        %2643 = vmatprep.subr.bf16.mxu0 %v1981
        %2644 = vmatpush1.bf16.msra.mxu0 %v1980
        %2645 = vmatprep.subr.bf16.mxu0 %v2011
        %2646 = vmatpush2.bf16.msra.mxu0 %v2010
        %2647 = vmatprep.subr.bf16.mxu0 %v2009
        %2648 = vmatpush2.bf16.msra.mxu0 %v2008
        %2649 = vmatprep.subr.bf16.mxu0 %v2007
        %2650 = vmatpush2.bf16.msra.mxu0 %v2006
        %2651 = vmatprep.subr.bf16.mxu0 %v2005
        %2652 = vmatpush2.bf16.msra.mxu0 %v2004
        %2653 = vmatprep.subr.bf16.mxu0 %v2003
        %2654 = vmatpush2.bf16.msra.mxu0 %v2002
        %2655 = vmatprep.subr.bf16.mxu0 %v2001
        %2656 = vmatpush2.bf16.msra.mxu0 %v2000
        %2657 = vmatprep.subr.bf16.mxu0 %v1999
        %2658 = vmatpush2.bf16.msra.mxu0 %v1998
        %2659 = vmatprep.subr.bf16.mxu0 %v1997
        %2660 = vmatpush2.bf16.msra.mxu0 %v1996
        %2661 = vmatprep.mubr.bf16.mxu0 %v893
        %2662 = vmatmul.mubr.bf16.gmra.mxu0 %v891
        %v2663 = vpop.f32.mrf.mxu0
        %v2664 = vadd.f32 %v2623, %v2663
        %v2665 = vpop.f32.mrf.mxu0
        %v2666 = vadd.f32 %v2625, %v2665
        %v2667 = vpop.f32.mrf.mxu0
        %v2668 = vpop.f32.mrf.mxu0
        %2669 = vdwg.mxu0
        %2670 = vmatprep.subr.bf16.mxu0 %v2027
        %2671 = vmatpush1.bf16.msra.mxu0 %v2026
        %2672 = vmatprep.subr.bf16.mxu0 %v2025
        %2673 = vmatpush1.bf16.msra.mxu0 %v2024
        %2674 = vmatprep.subr.bf16.mxu0 %v2023
        %2675 = vmatpush1.bf16.msra.mxu0 %v2022
        %2676 = vmatprep.subr.bf16.mxu0 %v2021
        %2677 = vmatpush1.bf16.msra.mxu0 %v2020
        %2678 = vmatprep.subr.bf16.mxu0 %v2019
        %2679 = vmatpush1.bf16.msra.mxu0 %v2018
        %2680 = vmatprep.subr.bf16.mxu0 %v2017
        %2681 = vmatpush1.bf16.msra.mxu0 %v2016
        %2682 = vmatprep.subr.bf16.mxu0 %v2015
        %2683 = vmatpush1.bf16.msra.mxu0 %v2014
        %2684 = vmatprep.subr.bf16.mxu0 %v2013
        %2685 = vmatpush1.bf16.msra.mxu0 %v2012
        %2686 = vmatprep.subr.bf16.mxu0 %v2043
        %2687 = vmatpush2.bf16.msra.mxu0 %v2042
        %2688 = vmatprep.subr.bf16.mxu0 %v2041
        %2689 = vmatpush2.bf16.msra.mxu0 %v2040
        %2690 = vmatprep.subr.bf16.mxu0 %v2039
        %2691 = vmatpush2.bf16.msra.mxu0 %v2038
        %2692 = vmatprep.subr.bf16.mxu0 %v2037
        %2693 = vmatpush2.bf16.msra.mxu0 %v2036
        %2694 = vmatprep.subr.bf16.mxu0 %v2035
        %2695 = vmatpush2.bf16.msra.mxu0 %v2034
        %2696 = vmatprep.subr.bf16.mxu0 %v2033
        %2697 = vmatpush2.bf16.msra.mxu0 %v2032
        %2698 = vmatprep.subr.bf16.mxu0 %v2031
        %2699 = vmatpush2.bf16.msra.mxu0 %v2030
        %2700 = vmatprep.subr.bf16.mxu0 %v2029
        %2701 = vmatpush2.bf16.msra.mxu0 %v2028
        %2702 = vmatprep.mubr.bf16.mxu0 %v890
        %2703 = vmatmul.mubr.bf16.gmra.mxu0 %v876
        %v2704 = vpop.f32.mrf.mxu0
        %v2705 = vadd.f32 %v2664, %v2704
        %v2706 = vpop.f32.mrf.mxu0
        %v2707 = vadd.f32 %v2666, %v2706
        %v2708 = vpop.f32.mrf.mxu0
        %v2709 = vpop.f32.mrf.mxu0
        %2710 = vdwg.mxu0
        %2711 = vmatprep.subr.bf16.mxu0 %v2059
        %2712 = vmatpush1.bf16.msra.mxu0 %v2058
        %2713 = vmatprep.subr.bf16.mxu0 %v2057
        %2714 = vmatpush1.bf16.msra.mxu0 %v2056
        %2715 = vmatprep.subr.bf16.mxu0 %v2055
        %2716 = vmatpush1.bf16.msra.mxu0 %v2054
        %2717 = vmatprep.subr.bf16.mxu0 %v2053
        %2718 = vmatpush1.bf16.msra.mxu0 %v2052
        %2719 = vmatprep.subr.bf16.mxu0 %v2051
        %2720 = vmatpush1.bf16.msra.mxu0 %v2050
        %2721 = vmatprep.subr.bf16.mxu0 %v2049
        %2722 = vmatpush1.bf16.msra.mxu0 %v2048
        %2723 = vmatprep.subr.bf16.mxu0 %v2047
        %2724 = vmatpush1.bf16.msra.mxu0 %v2046
        %2725 = vmatprep.subr.bf16.mxu0 %v2045
        %2726 = vmatpush1.bf16.msra.mxu0 %v2044
        %2727 = vmatprep.subr.bf16.mxu0 %v2075
        %2728 = vmatpush2.bf16.msra.mxu0 %v2074
        %2729 = vmatprep.subr.bf16.mxu0 %v2073
        %2730 = vmatpush2.bf16.msra.mxu0 %v2072
        %2731 = vmatprep.subr.bf16.mxu0 %v2071
        %2732 = vmatpush2.bf16.msra.mxu0 %v2070
        %2733 = vmatprep.subr.bf16.mxu0 %v2069
        %2734 = vmatpush2.bf16.msra.mxu0 %v2068
        %2735 = vmatprep.subr.bf16.mxu0 %v2067
        %2736 = vmatpush2.bf16.msra.mxu0 %v2066
        %2737 = vmatprep.subr.bf16.mxu0 %v2065
        %2738 = vmatpush2.bf16.msra.mxu0 %v2064
        %2739 = vmatprep.subr.bf16.mxu0 %v2063
        %2740 = vmatpush2.bf16.msra.mxu0 %v2062
        %2741 = vmatprep.subr.bf16.mxu0 %v2061
        %2742 = vmatpush2.bf16.msra.mxu0 %v2060
        %2743 = vmatprep.mubr.bf16.mxu0 %v894
        %2744 = vmatmul.mubr.bf16.gmra.mxu0 %v892
        %v2745 = vpop.f32.mrf.mxu0
        %v2746 = vadd.f32 %v2705, %v2745
        %v2747 = vpop.f32.mrf.mxu0
        %v2748 = vadd.f32 %v2707, %v2747
        %v2749 = vpop.f32.mrf.mxu0
        %v2750 = vpop.f32.mrf.mxu0
        %2751 = vdwg.mxu0
        %2752 = vmatprep.subr.bf16.mxu0 %v2091
        %2753 = vmatpush1.bf16.msra.mxu0 %v2090
        %2754 = vmatprep.subr.bf16.mxu0 %v2089
        %2755 = vmatpush1.bf16.msra.mxu0 %v2088
        %2756 = vmatprep.subr.bf16.mxu0 %v2087
        %2757 = vmatpush1.bf16.msra.mxu0 %v2086
        %2758 = vmatprep.subr.bf16.mxu0 %v2085
        %2759 = vmatpush1.bf16.msra.mxu0 %v2084
        %2760 = vmatprep.subr.bf16.mxu0 %v2083
        %2761 = vmatpush1.bf16.msra.mxu0 %v2082
        %2762 = vmatprep.subr.bf16.mxu0 %v2081
        %2763 = vmatpush1.bf16.msra.mxu0 %v2080
        %2764 = vmatprep.subr.bf16.mxu0 %v2079
        %2765 = vmatpush1.bf16.msra.mxu0 %v2078
        %2766 = vmatprep.subr.bf16.mxu0 %v2077
        %2767 = vmatpush1.bf16.msra.mxu0 %v2076
        %2768 = vmatprep.subr.bf16.mxu0 %v2107
        %2769 = vmatpush2.bf16.msra.mxu0 %v2106
        %2770 = vmatprep.subr.bf16.mxu0 %v2105
        %2771 = vmatpush2.bf16.msra.mxu0 %v2104
        %2772 = vmatprep.subr.bf16.mxu0 %v2103
        %2773 = vmatpush2.bf16.msra.mxu0 %v2102
        %2774 = vmatprep.subr.bf16.mxu0 %v2101
        %2775 = vmatpush2.bf16.msra.mxu0 %v2100
        %2776 = vmatprep.subr.bf16.mxu0 %v2099
        %2777 = vmatpush2.bf16.msra.mxu0 %v2098
        %2778 = vmatprep.subr.bf16.mxu0 %v2097
        %2779 = vmatpush2.bf16.msra.mxu0 %v2096
        %2780 = vmatprep.subr.bf16.mxu0 %v2095
        %2781 = vmatpush2.bf16.msra.mxu0 %v2094
        %2782 = vmatprep.subr.bf16.mxu0 %v2093
        %2783 = vmatpush2.bf16.msra.mxu0 %v2092
        %2784 = vmatprep.mubr.bf16.mxu0 %v932
        %2785 = vmatmul.mubr.bf16.gmra.mxu0 %v918
        %v2786 = vpop.f32.mrf.mxu0
        %v2787 = vadd.f32 %v2746, %v2786
        %v2788 = vpop.f32.mrf.mxu0
        %v2789 = vadd.f32 %v2748, %v2788
        %v2790 = vpop.f32.mrf.mxu0
        %v2791 = vpop.f32.mrf.mxu0
        %2792 = vdwg.mxu0
        %2793 = vmatprep.subr.bf16.mxu0 %v2123
        %2794 = vmatpush1.bf16.msra.mxu0 %v2122
        %2795 = vmatprep.subr.bf16.mxu0 %v2121
        %2796 = vmatpush1.bf16.msra.mxu0 %v2120
        %2797 = vmatprep.subr.bf16.mxu0 %v2119
        %2798 = vmatpush1.bf16.msra.mxu0 %v2118
        %2799 = vmatprep.subr.bf16.mxu0 %v2117
        %2800 = vmatpush1.bf16.msra.mxu0 %v2116
        %2801 = vmatprep.subr.bf16.mxu0 %v2115
        %2802 = vmatpush1.bf16.msra.mxu0 %v2114
        %2803 = vmatprep.subr.bf16.mxu0 %v2113
        %2804 = vmatpush1.bf16.msra.mxu0 %v2112
        %2805 = vmatprep.subr.bf16.mxu0 %v2111
        %2806 = vmatpush1.bf16.msra.mxu0 %v2110
        %2807 = vmatprep.subr.bf16.mxu0 %v2109
        %2808 = vmatpush1.bf16.msra.mxu0 %v2108
        %2809 = vmatprep.subr.bf16.mxu0 %v2139
        %2810 = vmatpush2.bf16.msra.mxu0 %v2138
        %2811 = vmatprep.subr.bf16.mxu0 %v2137
        %2812 = vmatpush2.bf16.msra.mxu0 %v2136
        %2813 = vmatprep.subr.bf16.mxu0 %v2135
        %2814 = vmatpush2.bf16.msra.mxu0 %v2134
        %2815 = vmatprep.subr.bf16.mxu0 %v2133
        %2816 = vmatpush2.bf16.msra.mxu0 %v2132
        %2817 = vmatprep.subr.bf16.mxu0 %v2131
        %2818 = vmatpush2.bf16.msra.mxu0 %v2130
        %2819 = vmatprep.subr.bf16.mxu0 %v2129
        %2820 = vmatpush2.bf16.msra.mxu0 %v2128
        %2821 = vmatprep.subr.bf16.mxu0 %v2127
        %2822 = vmatpush2.bf16.msra.mxu0 %v2126
        %2823 = vmatprep.subr.bf16.mxu0 %v2125
        %2824 = vmatpush2.bf16.msra.mxu0 %v2124
        %2825 = vmatprep.mubr.bf16.mxu0 %v942
        %2826 = vmatmul.mubr.bf16.gmra.mxu0 %v940
        %v2827 = vpop.f32.mrf.mxu0
        %v2828 = vadd.f32 %v2787, %v2827
        %v2829 = vpop.f32.mrf.mxu0
        %v2830 = vadd.f32 %v2789, %v2829
        %v2831 = vpop.f32.mrf.mxu0
        %v2832 = vpop.f32.mrf.mxu0
        %2833 = vdwg.mxu0
        %2834 = vmatprep.subr.bf16.mxu0 %v2155
        %2835 = vmatpush1.bf16.msra.mxu0 %v2154
        %2836 = vmatprep.subr.bf16.mxu0 %v2153
        %2837 = vmatpush1.bf16.msra.mxu0 %v2152
        %2838 = vmatprep.subr.bf16.mxu0 %v2151
        %2839 = vmatpush1.bf16.msra.mxu0 %v2150
        %2840 = vmatprep.subr.bf16.mxu0 %v2149
        %2841 = vmatpush1.bf16.msra.mxu0 %v2148
        %2842 = vmatprep.subr.bf16.mxu0 %v2147
        %2843 = vmatpush1.bf16.msra.mxu0 %v2146
        %2844 = vmatprep.subr.bf16.mxu0 %v2145
        %2845 = vmatpush1.bf16.msra.mxu0 %v2144
        %2846 = vmatprep.subr.bf16.mxu0 %v2143
        %2847 = vmatpush1.bf16.msra.mxu0 %v2142
        %2848 = vmatprep.subr.bf16.mxu0 %v2141
        %2849 = vmatpush1.bf16.msra.mxu0 %v2140
        %2850 = vmatprep.subr.bf16.mxu0 %v2171
        %2851 = vmatpush2.bf16.msra.mxu0 %v2170
        %2852 = vmatprep.subr.bf16.mxu0 %v2169
        %2853 = vmatpush2.bf16.msra.mxu0 %v2168
        %2854 = vmatprep.subr.bf16.mxu0 %v2167
        %2855 = vmatpush2.bf16.msra.mxu0 %v2166
        %2856 = vmatprep.subr.bf16.mxu0 %v2165
        %2857 = vmatpush2.bf16.msra.mxu0 %v2164
        %2858 = vmatprep.subr.bf16.mxu0 %v2163
        %2859 = vmatpush2.bf16.msra.mxu0 %v2162
        %2860 = vmatprep.subr.bf16.mxu0 %v2161
        %2861 = vmatpush2.bf16.msra.mxu0 %v2160
        %2862 = vmatprep.subr.bf16.mxu0 %v2159
        %2863 = vmatpush2.bf16.msra.mxu0 %v2158
        %2864 = vmatprep.subr.bf16.mxu0 %v2157
        %2865 = vmatpush2.bf16.msra.mxu0 %v2156
        %2866 = vmatprep.mubr.bf16.mxu0 %v939
        %2867 = vmatmul.mubr.bf16.gmra.mxu0 %v925
        %v2868 = vpop.f32.mrf.mxu0
        %v2869 = vadd.f32 %v2828, %v2868
        %v2870 = vpop.f32.mrf.mxu0
        %v2871 = vadd.f32 %v2830, %v2870
        %v2872 = vpop.f32.mrf.mxu0
        %v2873 = vpop.f32.mrf.mxu0
        %2874 = vdwg.mxu0
        %2875 = vmatprep.subr.bf16.mxu0 %v2187
        %2876 = vmatpush1.bf16.msra.mxu0 %v2186
        %2877 = vmatprep.subr.bf16.mxu0 %v2185
        %2878 = vmatpush1.bf16.msra.mxu0 %v2184
        %2879 = vmatprep.subr.bf16.mxu0 %v2183
        %2880 = vmatpush1.bf16.msra.mxu0 %v2182
        %2881 = vmatprep.subr.bf16.mxu0 %v2181
        %2882 = vmatpush1.bf16.msra.mxu0 %v2180
        %2883 = vmatprep.subr.bf16.mxu0 %v2179
        %2884 = vmatpush1.bf16.msra.mxu0 %v2178
        %2885 = vmatprep.subr.bf16.mxu0 %v2177
        %2886 = vmatpush1.bf16.msra.mxu0 %v2176
        %2887 = vmatprep.subr.bf16.mxu0 %v2175
        %2888 = vmatpush1.bf16.msra.mxu0 %v2174
        %2889 = vmatprep.subr.bf16.mxu0 %v2173
        %2890 = vmatpush1.bf16.msra.mxu0 %v2172
        %2891 = vmatprep.subr.bf16.mxu0 %v2203
        %2892 = vmatpush2.bf16.msra.mxu0 %v2202
        %2893 = vmatprep.subr.bf16.mxu0 %v2201
        %2894 = vmatpush2.bf16.msra.mxu0 %v2200
        %2895 = vmatprep.subr.bf16.mxu0 %v2199
        %2896 = vmatpush2.bf16.msra.mxu0 %v2198
        %2897 = vmatprep.subr.bf16.mxu0 %v2197
        %2898 = vmatpush2.bf16.msra.mxu0 %v2196
        %2899 = vmatprep.subr.bf16.mxu0 %v2195
        %2900 = vmatpush2.bf16.msra.mxu0 %v2194
        %2901 = vmatprep.subr.bf16.mxu0 %v2193
        %2902 = vmatpush2.bf16.msra.mxu0 %v2192
        %2903 = vmatprep.subr.bf16.mxu0 %v2191
        %2904 = vmatpush2.bf16.msra.mxu0 %v2190
        %2905 = vmatprep.subr.bf16.mxu0 %v2189
        %2906 = vmatpush2.bf16.msra.mxu0 %v2188
        %2907 = vmatprep.mubr.bf16.mxu0 %v943
        %2908 = vmatmul.mubr.bf16.gmra.mxu0 %v941
        %v2909 = vpop.f32.mrf.mxu0
        %v2910 = vadd.f32 %v2869, %v2909
        %v2911 = vpop.f32.mrf.mxu0
        %v2912 = vadd.f32 %v2871, %v2911
        %v2913 = vpop.f32.mrf.mxu0
        %v2914 = vpop.f32.mrf.mxu0
        %2915 = vdwg.mxu0
        %2916 = vmatprep.subr.bf16.mxu0 %v2219
        %2917 = vmatpush1.bf16.msra.mxu0 %v2218
        %2918 = vmatprep.subr.bf16.mxu0 %v2217
        %2919 = vmatpush1.bf16.msra.mxu0 %v2216
        %2920 = vmatprep.subr.bf16.mxu0 %v2215
        %2921 = vmatpush1.bf16.msra.mxu0 %v2214
        %2922 = vmatprep.subr.bf16.mxu0 %v2213
        %2923 = vmatpush1.bf16.msra.mxu0 %v2212
        %2924 = vmatprep.subr.bf16.mxu0 %v2211
        %2925 = vmatpush1.bf16.msra.mxu0 %v2210
        %2926 = vmatprep.subr.bf16.mxu0 %v2209
        %2927 = vmatpush1.bf16.msra.mxu0 %v2208
        %2928 = vmatprep.subr.bf16.mxu0 %v2207
        %2929 = vmatpush1.bf16.msra.mxu0 %v2206
        %2930 = vmatprep.subr.bf16.mxu0 %v2205
        %2931 = vmatpush1.bf16.msra.mxu0 %v2204
        %2932 = vmatprep.subr.bf16.mxu0 %v2235
        %2933 = vmatpush2.bf16.msra.mxu0 %v2234
        %2934 = vmatprep.subr.bf16.mxu0 %v2233
        %2935 = vmatpush2.bf16.msra.mxu0 %v2232
        %2936 = vmatprep.subr.bf16.mxu0 %v2231
        %2937 = vmatpush2.bf16.msra.mxu0 %v2230
        %2938 = vmatprep.subr.bf16.mxu0 %v2229
        %2939 = vmatpush2.bf16.msra.mxu0 %v2228
        %2940 = vmatprep.subr.bf16.mxu0 %v2227
        %2941 = vmatpush2.bf16.msra.mxu0 %v2226
        %2942 = vmatprep.subr.bf16.mxu0 %v2225
        %2943 = vmatpush2.bf16.msra.mxu0 %v2224
        %2944 = vmatprep.subr.bf16.mxu0 %v2223
        %2945 = vmatpush2.bf16.msra.mxu0 %v2222
        %2946 = vmatprep.subr.bf16.mxu0 %v2221
        %2947 = vmatpush2.bf16.msra.mxu0 %v2220
        %2948 = vmatprep.mubr.bf16.mxu0 %v965
        %2949 = vmatmul.mubr.bf16.gmra.mxu0 %v958
        %v2950 = vpop.f32.mrf.mxu0
        %v2951 = vadd.f32 %v2910, %v2950
        %v2952 = vpop.f32.mrf.mxu0
        %v2953 = vadd.f32 %v2912, %v2952
        %v2954 = vpop.f32.mrf.mxu0
        %v2955 = vpop.f32.mrf.mxu0
        %2956 = vdwg.mxu0
        %2957 = vmatprep.subr.bf16.mxu0 %v2251
        %2958 = vmatpush1.bf16.msra.mxu0 %v2250
        %2959 = vmatprep.subr.bf16.mxu0 %v2249
        %2960 = vmatpush1.bf16.msra.mxu0 %v2248
        %2961 = vmatprep.subr.bf16.mxu0 %v2247
        %2962 = vmatpush1.bf16.msra.mxu0 %v2246
        %2963 = vmatprep.subr.bf16.mxu0 %v2245
        %2964 = vmatpush1.bf16.msra.mxu0 %v2244
        %2965 = vmatprep.subr.bf16.mxu0 %v2243
        %2966 = vmatpush1.bf16.msra.mxu0 %v2242
        %2967 = vmatprep.subr.bf16.mxu0 %v2241
        %2968 = vmatpush1.bf16.msra.mxu0 %v2240
        %2969 = vmatprep.subr.bf16.mxu0 %v2239
        %2970 = vmatpush1.bf16.msra.mxu0 %v2238
        %2971 = vmatprep.subr.bf16.mxu0 %v2237
        %2972 = vmatpush1.bf16.msra.mxu0 %v2236
        %2973 = vmatprep.subr.bf16.mxu0 %v2267
        %2974 = vmatpush2.bf16.msra.mxu0 %v2266
        %2975 = vmatprep.subr.bf16.mxu0 %v2265
        %2976 = vmatpush2.bf16.msra.mxu0 %v2264
        %2977 = vmatprep.subr.bf16.mxu0 %v2263
        %2978 = vmatpush2.bf16.msra.mxu0 %v2262
        %2979 = vmatprep.subr.bf16.mxu0 %v2261
        %2980 = vmatpush2.bf16.msra.mxu0 %v2260
        %2981 = vmatprep.subr.bf16.mxu0 %v2259
        %2982 = vmatpush2.bf16.msra.mxu0 %v2258
        %2983 = vmatprep.subr.bf16.mxu0 %v2257
        %2984 = vmatpush2.bf16.msra.mxu0 %v2256
        %2985 = vmatprep.subr.bf16.mxu0 %v2255
        %2986 = vmatpush2.bf16.msra.mxu0 %v2254
        %2987 = vmatprep.subr.bf16.mxu0 %v2253
        %2988 = vmatpush2.bf16.msra.mxu0 %v2252
        %2989 = vmatprep.mubr.bf16.mxu0 %v967
        %2990 = vmatmul.mubr.bf16.gmra.mxu0 %v966
        %v2991 = vpop.f32.mrf.mxu0
        %v2992 = vadd.f32 %v2951, %v2991
        %v2993 = vpop.f32.mrf.mxu0
        %v2994 = vadd.f32 %v2953, %v2993
        %v2995 = vpop.f32.mrf.mxu0
        %v2996 = vpop.f32.mrf.mxu0
        %2997 = vdwg.mxu0
        %v3000 = vcombine.low %v2992, %v2994
        %v3002 = vunpack.c.l.s4 1983009808
        %v3003 = vunpack.c.0.s8 %v3002
        %v3004 = vlaneseq
        %v3005 = vshrl.u32 %v3004, 7
        %v3006 = vsub.s32 %v3003, %v3005
        %v3007 = vrot.slane %v3000, %v3006
        %v3009 = vadd.f32 %v519, %v3007
        %3010 = vst [vmem:[#allocation2] sm:$0xf] %v3009
        %p3011 = scmp.eq.s32.totalorder %s32, 3
        // Predicated region
        $region93: #{vae_audio_forward.6} parent=59 // pred_check
          %p3012 = pneg %p3011
        $region94: #{vae_audio_forward.6} parent=59 // pred_check_branch
          %3014 = sbr.rel (%p3012) target = $region96
        $region95: #{vae_audio_forward.6} parent=59 // pred_region
          %v3015 = vld [vmem:[#allocation2] sm:$0xf]
          %v3016 = vld [vmem:[#allocation6] sm:$0x3]
          %v3018 = vlaneseq
          %v3019 = vshrl.u32 %v3018, 7
          %v3020 = vsub.s32 0, %v3019
          %v3021 = vrot.slane %v3016, %v3020
          %v3022 = vlaneseq
          %v3023 = vshrl.u32 %v3022, 7
          %v3024 = vsub.s32 1, %v3023
          %v3025 = vrot.slane %v3016, %v3024
          %v3026 = vcombine.low %v3021, %v3025
          %v3028 = vunpack.c.l.s4 1983009808
          %v3029 = vunpack.c.0.s8 %v3028
          %v3030 = vlaneseq
          %v3031 = vshrl.u32 %v3030, 7
          %v3032 = vsub.s32 %v3029, %v3031
          %v3033 = vrot.slane %v3026, %v3032
          %v3035 = vadd.f32 %v3015, %v3033
          %v3036 = vmax.f32 %v3035, 0.0
          %v3037 = vld [vmem:[#allocation8] sm:$0xff]
          %v3038 = vld [vmem:[#allocation8 + $0x8] sm:$0xff]
          %v3039 = vld [vmem:[#allocation8 + $0x10] sm:$0xff]
          %v3040 = vld [vmem:[#allocation8 + $0x18] sm:$0xff]
          %v3041 = vld [vmem:[#allocation8 + $0x20] sm:$0xff]
          %v3042 = vld [vmem:[#allocation8 + $0x28] sm:$0xff]
          %v3043 = vld [vmem:[#allocation8 + $0x30] sm:$0xff]
          %v3044 = vld [vmem:[#allocation8 + $0x38] sm:$0xff]
          %v3045 = vld [vmem:[#allocation8 + $0x40] sm:$0xff]
          %v3046 = vld [vmem:[#allocation8 + $0x48] sm:$0xff]
          %v3047 = vld [vmem:[#allocation8 + $0x50] sm:$0xff]
          %v3048 = vld [vmem:[#allocation8 + $0x58] sm:$0xff]
          %v3049 = vld [vmem:[#allocation8 + $0x60] sm:$0xff]
          %v3050 = vld [vmem:[#allocation8 + $0x68] sm:$0xff]
          %v3051 = vld [vmem:[#allocation8 + $0x70] sm:$0xff]
          %v3052 = vld [vmem:[#allocation8 + $0x78] sm:$0xff]
          %v3053 = vld [vmem:[#allocation8 + $0x80] sm:$0xff]
          %v3054 = vld [vmem:[#allocation8 + $0x88] sm:$0xff]
          %v3055 = vld [vmem:[#allocation8 + $0x90] sm:$0xff]
          %v3056 = vld [vmem:[#allocation8 + $0x98] sm:$0xff]
          %v3057 = vld [vmem:[#allocation8 + $0xa0] sm:$0xff]
          %v3058 = vld [vmem:[#allocation8 + $0xa8] sm:$0xff]
          %v3059 = vld [vmem:[#allocation8 + $0xb0] sm:$0xff]
          %v3060 = vld [vmem:[#allocation8 + $0xb8] sm:$0xff]
          %v3061 = vld [vmem:[#allocation8 + $0xc0] sm:$0xff]
          %v3062 = vld [vmem:[#allocation8 + $0xc8] sm:$0xff]
          %v3063 = vld [vmem:[#allocation8 + $0xd0] sm:$0xff]
          %v3064 = vld [vmem:[#allocation8 + $0xd8] sm:$0xff]
          %v3065 = vld [vmem:[#allocation8 + $0xe0] sm:$0xff]
          %v3066 = vld [vmem:[#allocation8 + $0xe8] sm:$0xff]
          %v3067 = vld [vmem:[#allocation8 + $0xf0] sm:$0xff]
          %v3068 = vld [vmem:[#allocation8 + $0xf8] sm:$0xff]
          %v3069 = vld [vmem:[#allocation9] sm:$0x1]
          %v3071 = vlaneseq
          %v3072 = vshrl.u32 %v3071, 7
          %v3073 = vsub.s32 0, %v3072
          %v3074 = vrot.slane %v3069, %v3073
          %v3078 = vunpack.c.l.s4 1983009808
          %v3079 = vunpack.c.0.s8 %v3078
          %v3080 = vlaneseq
          %v3081 = vshrl.u32 %v3080, 7
          %v3082 = vsub.s32 %v3079, %v3081
          %v3083 = vrot.slane %v3036, %v3082
          %v3084 = vcombine.high %v3083, %v3083
          %3087 = vmatprep.subr.mxu0 0.0
          %3088 = vmatpush1.msra.mxu0 %v3052
          %3089 = vmatprep.subr.mxu0 0.0
          %3090 = vmatpush1.msra.mxu0 %v3051
          %3091 = vmatprep.subr.mxu0 0.0
          %3092 = vmatpush1.msra.mxu0 %v3050
          %3093 = vmatprep.subr.mxu0 0.0
          %3094 = vmatpush1.msra.mxu0 %v3049
          %3095 = vmatprep.subr.mxu0 0.0
          %3096 = vmatpush1.msra.mxu0 %v3048
          %3097 = vmatprep.subr.mxu0 0.0
          %3098 = vmatpush1.msra.mxu0 %v3047
          %3099 = vmatprep.subr.mxu0 0.0
          %3100 = vmatpush1.msra.mxu0 %v3046
          %3101 = vmatprep.subr.mxu0 0.0
          %3102 = vmatpush1.msra.mxu0 %v3045
          %3103 = vmatprep.subr.mxu0 0.0
          %3104 = vmatpush1.msra.mxu0 %v3044
          %3105 = vmatprep.subr.mxu0 0.0
          %3106 = vmatpush1.msra.mxu0 %v3043
          %3107 = vmatprep.subr.mxu0 0.0
          %3108 = vmatpush1.msra.mxu0 %v3042
          %3109 = vmatprep.subr.mxu0 0.0
          %3110 = vmatpush1.msra.mxu0 %v3041
          %3111 = vmatprep.subr.mxu0 0.0
          %3112 = vmatpush1.msra.mxu0 %v3040
          %3113 = vmatprep.subr.mxu0 0.0
          %3114 = vmatpush1.msra.mxu0 %v3039
          %3115 = vmatprep.subr.mxu0 0.0
          %3116 = vmatpush1.msra.mxu0 %v3038
          %3117 = vmatprep.subr.mxu0 0.0
          %3118 = vmatpush1.msra.mxu0 %v3037
          %3119 = vmatprep.subr.mxu0 0.0
          %3120 = vmatpush2.msra.mxu0 %v3068
          %3121 = vmatprep.subr.mxu0 0.0
          %3122 = vmatpush2.msra.mxu0 %v3067
          %3123 = vmatprep.subr.mxu0 0.0
          %3124 = vmatpush2.msra.mxu0 %v3066
          %3125 = vmatprep.subr.mxu0 0.0
          %3126 = vmatpush2.msra.mxu0 %v3065
          %3127 = vmatprep.subr.mxu0 0.0
          %3128 = vmatpush2.msra.mxu0 %v3064
          %3129 = vmatprep.subr.mxu0 0.0
          %3130 = vmatpush2.msra.mxu0 %v3063
          %3131 = vmatprep.subr.mxu0 0.0
          %3132 = vmatpush2.msra.mxu0 %v3062
          %3133 = vmatprep.subr.mxu0 0.0
          %3134 = vmatpush2.msra.mxu0 %v3061
          %3135 = vmatprep.subr.mxu0 0.0
          %3136 = vmatpush2.msra.mxu0 %v3060
          %3137 = vmatprep.subr.mxu0 0.0
          %3138 = vmatpush2.msra.mxu0 %v3059
          %3139 = vmatprep.subr.mxu0 0.0
          %3140 = vmatpush2.msra.mxu0 %v3058
          %3141 = vmatprep.subr.mxu0 0.0
          %3142 = vmatpush2.msra.mxu0 %v3057
          %3143 = vmatprep.subr.mxu0 0.0
          %3144 = vmatpush2.msra.mxu0 %v3056
          %3145 = vmatprep.subr.mxu0 0.0
          %3146 = vmatpush2.msra.mxu0 %v3055
          %3147 = vmatprep.subr.mxu0 0.0
          %3148 = vmatpush2.msra.mxu0 %v3054
          %3149 = vmatprep.subr.mxu0 0.0
          %3150 = vmatpush2.msra.mxu0 %v3053
          %3151 = vmatprep.mubr.f32.mxu0 %v3084
          %3152 = vmatmul.mubr.f32.gmra.mxu0 %v3083
          %v3153 = vpop.f32.mrf.mxu0
          %v3154 = vadd.f32 %v3074, %v3153
          %v3155 = vpop.f32.mrf.mxu0
          %3156 = vdwg.mxu0
          %v3157 = vmax.f32 %v3154, 0.0
          %v3158 = vld [vmem:[%s5] sm:$0xff]
          %v3159 = vld [vmem:[%s5 + $0x8] sm:$0xff]
          %v3160 = vld [vmem:[%s5 + $0x10] sm:$0xff]
          %v3161 = vld [vmem:[%s5 + $0x18] sm:$0xff]
          %v3162 = vld [vmem:[%s5 + $0x20] sm:$0xff]
          %v3163 = vld [vmem:[%s5 + $0x28] sm:$0xff]
          %v3164 = vld [vmem:[%s5 + $0x30] sm:$0xff]
          %v3165 = vld [vmem:[%s5 + $0x38] sm:$0xff]
          %v3166 = vld [vmem:[%s5 + $0x40] sm:$0xff]
          %v3167 = vld [vmem:[%s5 + $0x48] sm:$0xff]
          %v3168 = vld [vmem:[%s5 + $0x50] sm:$0xff]
          %v3169 = vld [vmem:[%s5 + $0x58] sm:$0xff]
          %v3170 = vld [vmem:[%s5 + $0x60] sm:$0xff]
          %v3171 = vld [vmem:[%s5 + $0x68] sm:$0xff]
          %v3172 = vld [vmem:[%s5 + $0x70] sm:$0xff]
          %v3173 = vld [vmem:[%s5 + $0x78] sm:$0xff]
          %v3174 = vld [vmem:[#allocation11] sm:$0x1]
          %v3176 = vlaneseq
          %v3177 = vshrl.u32 %v3176, 7
          %v3178 = vsub.s32 0, %v3177
          %v3179 = vrot.slane %v3174, %v3178
          %3181 = vmatprep.subr.mxu0 0.0
          %3182 = vmatpush1.msra.mxu0 %v3173
          %3183 = vmatprep.subr.mxu0 0.0
          %3184 = vmatpush1.msra.mxu0 %v3172
          %3185 = vmatprep.subr.mxu0 0.0
          %3186 = vmatpush1.msra.mxu0 %v3171
          %3187 = vmatprep.subr.mxu0 0.0
          %3188 = vmatpush1.msra.mxu0 %v3170
          %3189 = vmatprep.subr.mxu0 0.0
          %3190 = vmatpush1.msra.mxu0 %v3169
          %3191 = vmatprep.subr.mxu0 0.0
          %3192 = vmatpush1.msra.mxu0 %v3168
          %3193 = vmatprep.subr.mxu0 0.0
          %3194 = vmatpush1.msra.mxu0 %v3167
          %3195 = vmatprep.subr.mxu0 0.0
          %3196 = vmatpush1.msra.mxu0 %v3166
          %3197 = vmatprep.subr.mxu0 0.0
          %3198 = vmatpush1.msra.mxu0 %v3165
          %3199 = vmatprep.subr.mxu0 0.0
          %3200 = vmatpush1.msra.mxu0 %v3164
          %3201 = vmatprep.subr.mxu0 0.0
          %3202 = vmatpush1.msra.mxu0 %v3163
          %3203 = vmatprep.subr.mxu0 0.0
          %3204 = vmatpush1.msra.mxu0 %v3162
          %3205 = vmatprep.subr.mxu0 0.0
          %3206 = vmatpush1.msra.mxu0 %v3161
          %3207 = vmatprep.subr.mxu0 0.0
          %3208 = vmatpush1.msra.mxu0 %v3160
          %3209 = vmatprep.subr.mxu0 0.0
          %3210 = vmatpush1.msra.mxu0 %v3159
          %3211 = vmatprep.subr.mxu0 0.0
          %3212 = vmatpush1.msra.mxu0 %v3158
          %3213 = vmatprep.subr.mxu0 0.0
          %3214 = vmatpush2.msra.mxu0 0.0
          %3215 = vmatprep.subr.mxu0 0.0
          %3216 = vmatpush2.msra.mxu0 0.0
          %3217 = vmatprep.subr.mxu0 0.0
          %3218 = vmatpush2.msra.mxu0 0.0
          %3219 = vmatprep.subr.mxu0 0.0
          %3220 = vmatpush2.msra.mxu0 0.0
          %3221 = vmatprep.subr.mxu0 0.0
          %3222 = vmatpush2.msra.mxu0 0.0
          %3223 = vmatprep.subr.mxu0 0.0
          %3224 = vmatpush2.msra.mxu0 0.0
          %3225 = vmatprep.subr.mxu0 0.0
          %3226 = vmatpush2.msra.mxu0 0.0
          %3227 = vmatprep.subr.mxu0 0.0
          %3228 = vmatpush2.msra.mxu0 0.0
          %3229 = vmatprep.subr.mxu0 0.0
          %3230 = vmatpush2.msra.mxu0 0.0
          %3231 = vmatprep.subr.mxu0 0.0
          %3232 = vmatpush2.msra.mxu0 0.0
          %3233 = vmatprep.subr.mxu0 0.0
          %3234 = vmatpush2.msra.mxu0 0.0
          %3235 = vmatprep.subr.mxu0 0.0
          %3236 = vmatpush2.msra.mxu0 0.0
          %3237 = vmatprep.subr.mxu0 0.0
          %3238 = vmatpush2.msra.mxu0 0.0
          %3239 = vmatprep.subr.mxu0 0.0
          %3240 = vmatpush2.msra.mxu0 0.0
          %3241 = vmatprep.subr.mxu0 0.0
          %3242 = vmatpush2.msra.mxu0 0.0
          %3243 = vmatprep.subr.mxu0 0.0
          %3244 = vmatpush2.msra.mxu0 0.0
          %3245 = vmatprep.mubr.f32.mxu0 0.0
          %3246 = vmatmul.mubr.f32.gmra.mxu0 %v3157
          %v3247 = vpop.f32.mrf.mxu0
          %v3248 = vadd.f32 %v3179, %v3247
          %v3249 = vpop.f32.mrf.mxu0
          %3250 = vdwg.mxu0
          %v3251 = vld [vmem:[%s7] sm:$0xff]
          %v3252 = vld [vmem:[%s7 + $0x8] sm:$0xff]
          %v3253 = vld [vmem:[%s7 + $0x10] sm:$0xff]
          %v3254 = vld [vmem:[%s7 + $0x18] sm:$0xff]
          %v3255 = vld [vmem:[%s7 + $0x20] sm:$0xff]
          %v3256 = vld [vmem:[%s7 + $0x28] sm:$0xff]
          %v3257 = vld [vmem:[%s7 + $0x30] sm:$0xff]
          %v3258 = vld [vmem:[%s7 + $0x38] sm:$0xff]
          %v3259 = vld [vmem:[%s7 + $0x40] sm:$0xff]
          %v3260 = vld [vmem:[%s7 + $0x48] sm:$0xff]
          %v3261 = vld [vmem:[%s7 + $0x50] sm:$0xff]
          %v3262 = vld [vmem:[%s7 + $0x58] sm:$0xff]
          %v3263 = vld [vmem:[%s7 + $0x60] sm:$0xff]
          %v3264 = vld [vmem:[%s7 + $0x68] sm:$0xff]
          %v3265 = vld [vmem:[%s7 + $0x70] sm:$0xff]
          %v3266 = vld [vmem:[%s7 + $0x78] sm:$0xff]
          %v3267 = vld [vmem:[#allocation12] sm:$0x1]
          %v3269 = vlaneseq
          %v3270 = vshrl.u32 %v3269, 7
          %v3271 = vsub.s32 0, %v3270
          %v3272 = vrot.slane %v3267, %v3271
          %3274 = vmatprep.subr.mxu0 0.0
          %3275 = vmatpush1.msra.mxu0 %v3266
          %3276 = vmatprep.subr.mxu0 0.0
          %3277 = vmatpush1.msra.mxu0 %v3265
          %3278 = vmatprep.subr.mxu0 0.0
          %3279 = vmatpush1.msra.mxu0 %v3264
          %3280 = vmatprep.subr.mxu0 0.0
          %3281 = vmatpush1.msra.mxu0 %v3263
          %3282 = vmatprep.subr.mxu0 0.0
          %3283 = vmatpush1.msra.mxu0 %v3262
          %3284 = vmatprep.subr.mxu0 0.0
          %3285 = vmatpush1.msra.mxu0 %v3261
          %3286 = vmatprep.subr.mxu0 0.0
          %3287 = vmatpush1.msra.mxu0 %v3260
          %3288 = vmatprep.subr.mxu0 0.0
          %3289 = vmatpush1.msra.mxu0 %v3259
          %3290 = vmatprep.subr.mxu0 0.0
          %3291 = vmatpush1.msra.mxu0 %v3258
          %3292 = vmatprep.subr.mxu0 0.0
          %3293 = vmatpush1.msra.mxu0 %v3257
          %3294 = vmatprep.subr.mxu0 0.0
          %3295 = vmatpush1.msra.mxu0 %v3256
          %3296 = vmatprep.subr.mxu0 0.0
          %3297 = vmatpush1.msra.mxu0 %v3255
          %3298 = vmatprep.subr.mxu0 0.0
          %3299 = vmatpush1.msra.mxu0 %v3254
          %3300 = vmatprep.subr.mxu0 0.0
          %3301 = vmatpush1.msra.mxu0 %v3253
          %3302 = vmatprep.subr.mxu0 0.0
          %3303 = vmatpush1.msra.mxu0 %v3252
          %3304 = vmatprep.subr.mxu0 0.0
          %3305 = vmatpush1.msra.mxu0 %v3251
          %3306 = vmatprep.subr.mxu0 0.0
          %3307 = vmatpush2.msra.mxu0 0.0
          %3308 = vmatprep.subr.mxu0 0.0
          %3309 = vmatpush2.msra.mxu0 0.0
          %3310 = vmatprep.subr.mxu0 0.0
          %3311 = vmatpush2.msra.mxu0 0.0
          %3312 = vmatprep.subr.mxu0 0.0
          %3313 = vmatpush2.msra.mxu0 0.0
          %3314 = vmatprep.subr.mxu0 0.0
          %3315 = vmatpush2.msra.mxu0 0.0
          %3316 = vmatprep.subr.mxu0 0.0
          %3317 = vmatpush2.msra.mxu0 0.0
          %3318 = vmatprep.subr.mxu0 0.0
          %3319 = vmatpush2.msra.mxu0 0.0
          %3320 = vmatprep.subr.mxu0 0.0
          %3321 = vmatpush2.msra.mxu0 0.0
          %3322 = vmatprep.subr.mxu0 0.0
          %3323 = vmatpush2.msra.mxu0 0.0
          %3324 = vmatprep.subr.mxu0 0.0
          %3325 = vmatpush2.msra.mxu0 0.0
          %3326 = vmatprep.subr.mxu0 0.0
          %3327 = vmatpush2.msra.mxu0 0.0
          %3328 = vmatprep.subr.mxu0 0.0
          %3329 = vmatpush2.msra.mxu0 0.0
          %3330 = vmatprep.subr.mxu0 0.0
          %3331 = vmatpush2.msra.mxu0 0.0
          %3332 = vmatprep.subr.mxu0 0.0
          %3333 = vmatpush2.msra.mxu0 0.0
          %3334 = vmatprep.subr.mxu0 0.0
          %3335 = vmatpush2.msra.mxu0 0.0
          %3336 = vmatprep.subr.mxu0 0.0
          %3337 = vmatpush2.msra.mxu0 0.0
          %3338 = vmatprep.mubr.f32.mxu0 0.0
          %3339 = vmatmul.mubr.f32.gmra.mxu0 %v3157
          %v3340 = vpop.f32.mrf.mxu0
          %v3341 = vadd.f32 %v3272, %v3340
          %v3342 = vpop.f32.mrf.mxu0
          %3343 = vdwg.mxu0
          %vm3344 = vcmask 123904
          %3345 = vst.msk [vmem:[#allocation15] sm:$0x3] %vm3344, %v3248
          %3346 = vst.msk [vmem:[#allocation16] sm:$0x3] %vm3344, %v3341
          %v3347 = vld [vmem:[#allocation14] sm:$0x3]
          %v3348 = vmul.f32 %v3341, 0.5
          %v3349 = vmul.f32 %v3348, 1.442695
          %v3350 = vpow.pop %v3349
          %v3351 = vmul.f32 %v3347, %v3350
          %v3352 = vadd.f32 %v3248, %v3351
          %3353 = vst.msk [vmem:[%s12] sm:$0x3] %vm3344, %v3352
        $region96: #{vae_audio_forward.6} parent=59 // pred_fallthru
          _
        // Predicated region
        $region97: #{vae_audio_forward.6} parent=59 // pred_check
          %p3354 = pneg %p265
        $region98: #{vae_audio_forward.6} parent=59 // pred_check_branch
          %3356 = sbr.rel (%p3354) target = $region100
        $region99: #{vae_audio_forward.6} parent=59 // pred_region
          %s3358 = ssub.s32 32, 32
          %3359 = vsyncadd [#allocation5], %s3358
          %s3361 = sshll.u32 [#allocation15], 4
          %s3362 = int_to_ptr.vmem [resolvable:$true] %s3361
          %3364 = dma.vmem_to_hbm [thread:$0]  %s3362, 32, %s10, [#allocation5]
        $region100: #{vae_audio_forward.6} parent=59 // pred_fallthru
          _
        // Predicated region
        $region101: #{vae_audio_forward.6} parent=59 // pred_check
          %p3365 = pneg %p286
        $region102: #{vae_audio_forward.6} parent=59 // pred_check_branch
          %3367 = sbr.rel (%p3365) target = $region104
        $region103: #{vae_audio_forward.6} parent=59 // pred_region
          %s3369 = ssub.s32 32, 32
          %3370 = vsyncadd [#allocation17], %s3369
          %s3372 = sshll.u32 [#allocation16], 4
          %s3373 = int_to_ptr.vmem [resolvable:$true] %s3372
          %3375 = dma.vmem_to_hbm [thread:$0]  %s3373, 32, %s11, [#allocation17]
        $region104: #{vae_audio_forward.6} parent=59 // pred_fallthru
          _
        // Predicated region
        $region105: #{vae_audio_forward.6} parent=59 // pred_check
          %p3376 = pneg %p307
        $region106: #{vae_audio_forward.6} parent=59 // pred_check_branch
          %3378 = sbr.rel (%p3376) target = $region108
        $region107: #{vae_audio_forward.6} parent=59 // pred_region
          _
        $region108: #{vae_audio_forward.6} parent=59 // pred_fallthru
          _
        // Predicated region
        $region109: #{vae_audio_forward.6} parent=59 // pred_check
          %p3379 = pneg %p265
        $region110: #{vae_audio_forward.6} parent=59 // pred_check_branch
          %3381 = sbr.rel (%p3379) target = $region112
        $region111: #{vae_audio_forward.6} parent=59 // pred_region
          %3382 = dma.done [#allocation5], 32
        $region112: #{vae_audio_forward.6} parent=59 // pred_fallthru
          _
        // Predicated region
        $region113: #{vae_audio_forward.6} parent=59 // pred_check
          %p3383 = pneg %p286
        $region114: #{vae_audio_forward.6} parent=59 // pred_check_branch
          %3385 = sbr.rel (%p3383) target = $region116
        $region115: #{vae_audio_forward.6} parent=59 // pred_region
          %3386 = dma.done [#allocation17], 32
        $region116: #{vae_audio_forward.6} parent=59 // pred_fallthru
          _
        // Predicated region
        $region117: #{vae_audio_forward.6} parent=59 // pred_check
          %p3387 = pneg %p307
        $region118: #{vae_audio_forward.6} parent=59 // pred_check_branch
          %3389 = sbr.rel (%p3387) target = $region120
        $region119: #{vae_audio_forward.6} parent=59 // pred_region
          _
        $region120: #{vae_audio_forward.6} parent=59 // pred_fallthru
          _
      $region60: #{vae_audio_forward.6} parent=5 // pred_fallthru
        _
      %p3390 = scmp.le.s32.totalorder 2, %s27
      // Predicated region
      $region121: #{vae_audio_forward.6} parent=5 // pred_check
        %p3391 = pneg %p3390
      $region122: #{vae_audio_forward.6} parent=5 // pred_check_branch
        %3393 = sbr.rel (%p3391) target = $region124
      $region123: #{vae_audio_forward.6} parent=5 // pred_region
        %s3394 = ssub.s32 %s27, 2
      $region124: #{vae_audio_forward.6} parent=5 // pred_fallthru
        _
    $region6: #{vae_audio_forward.6} parent=1 // loop_footer
      %s31 = sadd.s32 1, %s27
    $region7: #{vae_audio_forward.6} parent=1 // loop_footer_branch
      %26 = sbr.rel target = $region3
    $region8: #{vae_audio_forward.6} parent=1 // loop_exit
      _
    %3395 = vsyncpa [#allocation4], 1
    %s3396 = scalar_lea.sflag [#allocation4], 1
    %3397 = vsyncpa %s3396, 1
    %3398 = vsyncpa [#allocation7], 1
    %3399 = vsyncpa [#allocation10], 1
    %3400 = vsyncpa [#allocation13], 1
    %3401 = vsyncpa [#allocation5], 1
    %s3402 = scalar_lea.sflag [#allocation5], 1
    %3403 = vsyncpa %s3402, 1
    %3404 = vsyncpa [#allocation17], 1

// kernel: vae_audio_forward.8
$region0: #{vae_audio_forward.8}
  #allocation0 [shape = 'u32[]', space=smem, size = 0x4, offset = 0x4, fixed_abs, tag = 'smem constant byte address 0x4 - core index']
  #allocation1 [shape = 'u32[144,128]{1,0:T(1,128)}', space=vmem, size = 0x12000, scoped, tag = 'internal scratch']
  #allocation2 [shape = 'f32[1]{0:T(128)S(6)}', space=smem, size = 0x200, scoped, tag = 'scoped memory for vae_audio_forward.8']
  %s0 = inlined_call_operand.vmem [shape: bf16[2,512,1280], index: 0, kind: input, shape index: {}]
  %s1 = inlined_call_operand.vmem [shape: bf16[1,512], index: 1, kind: input, shape index: {}]
  %s2 = inlined_call_operand.<no memory space> [shape: f32[1], index: 2, kind: input, shape index: {}]
  %s3 = inlined_call_operand.vmem [shape: f32[2,1,1280], index: 3, kind: output, shape index: {}]
  %s4 = sld [smem:[#allocation0]]
  $region45: #{vae_audio_forward.8} parent=0
    _
  %s6 = ssub.s32 1, %s4
  %s7 = scalar_select 0, %s6, %s4
  %8 = sst [smem:[#allocation2]] %s2
  loop: start=0, step=1, limit=4
  $region2: #{vae_audio_forward.8} parent=0 // loop_pre_header
    _
  $region3: #{vae_audio_forward.8} parent=0 // loop_header
    %s10 = sphi 0, %s14
    %p11 = scmp.ge.s32.totalorder %s10, 4
    %s20 = sphi 0, %s22
    %s23 = sphi 0, %s20
    %s24 = sphi 0, %s23
    %s40 = sphi 0, %s24
    %s44 = sphi 0, %s44
    %s46 = sphi 0, %s44
    %s47 = sphi 0, %s46
    %s61 = sphi 0, %s47
    %s65 = sphi 0, %s65
    %s67 = sphi 0, %s65
    %s68 = sphi 0, %s67
    %s82 = sphi 0, %s68
    %s88 = sphi 0, %s90
    %s91 = sphi 0, %s88
    %s92 = sphi 0, %s91
    %s108 = sphi 0, %s92
  $region4: #{vae_audio_forward.8} parent=0 // loop_header_branch
    %13 = sbr.rel (%p11) target = $region8
  $region5: #{vae_audio_forward.8} parent=0 // loop_body
    %s15 = ssub.s32 %s10, 1
    %s16 = ssub.s32 %s10, 2
    %s17 = sadd.s32 %s10, 1
    %s18 = ssub.s32 %s10, %s17
    %p19 = scmp.eq.s32.totalorder %s18, 0
    %s21 = sadd.s32 %s20, 1
    %s22 = scalar_select %p19, %s20, %s21
    %p25 = pneg %p19
    %p26 = scmp.eq.s32.totalorder %s10, 1
    %p27 = por %p25, %p26
    %p28 = scmp.ne.s32.totalorder %s20, %s23
    %p29 = scmp.eq.s32.totalorder %s10, 0
    %p30 = por %p28, %p29
    %p31 = scmp.ne.s32.totalorder %s20, %s23
    %p32 = scmp.eq.s32.totalorder %s15, 1
    %p33 = por %p31, %p32
    %p34 = scmp.ne.s32.totalorder %s23, %s24
    %p35 = scmp.eq.s32.totalorder %s15, 0
    %p36 = por %p34, %p35
    %p37 = scmp.ne.s32.totalorder %s23, %s24
    %p38 = scmp.eq.s32.totalorder %s16, 1
    %p39 = por %p37, %p38
    %p41 = scmp.ne.s32.totalorder %s24, %s40
    %p42 = scmp.eq.s32.totalorder %s16, 0
    %p43 = por %p41, %p42
    %s45 = sadd.s32 %s44, 1
    %p48 = scmp.eq.s32.totalorder %s10, 1
    %p49 = scmp.ne.s32.totalorder %s44, %s46
    %p50 = scmp.eq.s32.totalorder %s10, 0
    %p51 = por %p49, %p50
    %p52 = scmp.ne.s32.totalorder %s44, %s46
    %p53 = scmp.eq.s32.totalorder %s15, 1
    %p54 = por %p52, %p53
    %p55 = scmp.ne.s32.totalorder %s46, %s47
    %p56 = scmp.eq.s32.totalorder %s15, 0
    %p57 = por %p55, %p56
    %p58 = scmp.ne.s32.totalorder %s46, %s47
    %p59 = scmp.eq.s32.totalorder %s16, 1
    %p60 = por %p58, %p59
    %p62 = scmp.ne.s32.totalorder %s47, %s61
    %p63 = scmp.eq.s32.totalorder %s16, 0
    %p64 = por %p62, %p63
    %s66 = sadd.s32 %s65, 1
    %p69 = scmp.eq.s32.totalorder %s10, 1
    %p70 = scmp.ne.s32.totalorder %s65, %s67
    %p71 = scmp.eq.s32.totalorder %s10, 0
    %p72 = por %p70, %p71
    %p73 = scmp.ne.s32.totalorder %s65, %s67
    %p74 = scmp.eq.s32.totalorder %s15, 1
    %p75 = por %p73, %p74
    %p76 = scmp.ne.s32.totalorder %s67, %s68
    %p77 = scmp.eq.s32.totalorder %s15, 0
    %p78 = por %p76, %p77
    %p79 = scmp.ne.s32.totalorder %s67, %s68
    %p80 = scmp.eq.s32.totalorder %s16, 1
    %p81 = por %p79, %p80
    %p83 = scmp.ne.s32.totalorder %s68, %s82
    %p84 = scmp.eq.s32.totalorder %s16, 0
    %p85 = por %p83, %p84
    %s86 = ssub.s32 %s10, %s17
    %p87 = scmp.eq.s32.totalorder %s86, 0
    %s89 = sadd.s32 %s88, 1
    %s90 = scalar_select %p87, %s88, %s89
    %p93 = pneg %p87
    %p94 = scmp.eq.s32.totalorder %s10, 1
    %p95 = por %p93, %p94
    %p96 = scmp.ne.s32.totalorder %s88, %s91
    %p97 = scmp.eq.s32.totalorder %s10, 0
    %p98 = por %p96, %p97
    %p99 = scmp.ne.s32.totalorder %s88, %s91
    %p100 = scmp.eq.s32.totalorder %s15, 1
    %p101 = por %p99, %p100
    %p102 = scmp.ne.s32.totalorder %s91, %s92
    %p103 = scmp.eq.s32.totalorder %s15, 0
    %p104 = por %p102, %p103
    %p105 = scmp.ne.s32.totalorder %s91, %s92
    %p106 = scmp.eq.s32.totalorder %s16, 1
    %p107 = por %p105, %p106
    %p109 = scmp.ne.s32.totalorder %s92, %s108
    %p110 = scmp.eq.s32.totalorder %s16, 0
    %p111 = por %p109, %p110
    %p112 = scmp.le.s32.totalorder 1, %s10
    %p113 = scmp.lt.s32.totalorder %s10, 3
    %p114 = pnand %p112, %p113
    %p115 = pneg %p114
    // Predicated region
    $region9: #{vae_audio_forward.8} parent=5 // pred_check
      _
    $region10: #{vae_audio_forward.8} parent=5 // pred_check_branch
      %117 = sbr.rel (%p114) target = $region12
    $region11: #{vae_audio_forward.8} parent=5 // pred_region
      %s118 = ssub.s32 %s10, 1
      // Predicated region
      $region13: #{vae_audio_forward.8} parent=11 // pred_check
        %p119 = pneg %p57
      $region14: #{vae_audio_forward.8} parent=11 // pred_check_branch
        %121 = sbr.rel (%p119) target = $region16
      $region15: #{vae_audio_forward.8} parent=11 // pred_region
        _
      $region16: #{vae_audio_forward.8} parent=11 // pred_fallthru
        _
      // Predicated region
      $region17: #{vae_audio_forward.8} parent=11 // pred_check
        %p122 = pneg %p78
      $region18: #{vae_audio_forward.8} parent=11 // pred_check_branch
        %124 = sbr.rel (%p122) target = $region20
      $region19: #{vae_audio_forward.8} parent=11 // pred_region
        _
      $region20: #{vae_audio_forward.8} parent=11 // pred_fallthru
        _
    $region12: #{vae_audio_forward.8} parent=5 // pred_fallthru
      _
    %p125 = scmp.lt.s32.totalorder %s10, 2
    // Predicated region
    $region21: #{vae_audio_forward.8} parent=5 // pred_check
      %p126 = pneg %p125
    $region22: #{vae_audio_forward.8} parent=5 // pred_check_branch
      %128 = sbr.rel (%p126) target = $region24
    $region23: #{vae_audio_forward.8} parent=5 // pred_region
      // Predicated region
      $region25: #{vae_audio_forward.8} parent=23 // pred_check
        %p129 = pneg %p30
      $region26: #{vae_audio_forward.8} parent=23 // pred_check_branch
        %131 = sbr.rel (%p129) target = $region28
      $region27: #{vae_audio_forward.8} parent=23 // pred_region
        %p132 = scmp.lt.s32.totalorder %s10, 1
        %s133 = scalar_select %p132, %s10, 1
        %s134 = smul.addr %s133, 640
        %s135 = smul.addr %s134, 4
        %s136 = scalar_lea.vmem %s0, %s135
      $region28: #{vae_audio_forward.8} parent=23 // pred_fallthru
        _
    $region24: #{vae_audio_forward.8} parent=5 // pred_fallthru
      _
    %p137 = scmp.le.s32.totalorder 1, %s10
    %p138 = scmp.lt.s32.totalorder %s10, 3
    %p139 = pnand %p137, %p138
    %p140 = pneg %p139
    // Predicated region
    $region29: #{vae_audio_forward.8} parent=5 // pred_check
      _
    $region30: #{vae_audio_forward.8} parent=5 // pred_check_branch
      %142 = sbr.rel (%p139) target = $region32
    $region31: #{vae_audio_forward.8} parent=5 // pred_region
      %s143 = ssub.s32 %s10, 1
      %p144 = scmp.lt.s32.totalorder %s15, 1
      %s145 = scalar_select %p144, %s15, 1
      %s146 = smul.addr %s145, 640
      %s147 = smul.addr %s146, 4
      %s148 = scalar_lea.vmem %s0, %s147
      %p149 = pneg %p36
      %p150 = pneg %p33
      %p151 = pneg %p57
      %p152 = pneg %p54
      %p153 = pneg %p78
      %p154 = pneg %p75
      %p155 = pneg %p104
      %p156 = pneg %p101
      %p157 = scmp.lt.s32.totalorder %s15, 1
      %s158 = scalar_select %p157, %s15, 1
      %s159 = smul.addr %s158, 10
      %s160 = scalar_lea.vmem %s3, %s159
      %p161 = scmp.lt.s32.totalorder %s15, 1
      %s162 = scalar_select %p161, %s15, 1
      %s163 = smul.addr %s162, 640
      %s164 = smul.addr %s163, 4
      %s165 = scalar_lea.vmem %s0, %s164
      %p166 = scmp.lt.s32.totalorder %s15, 1
      %s167 = scalar_select %p166, %s15, 1
      %s168 = smul.addr %s167, 10
      %s169 = scalar_lea.vmem %s3, %s168
      %v170 = vld [vmem:[%s165] sm:$0xff]
      %v171 = vld [vmem:[%s165 + $0x8] sm:$0xff]
      %v172 = vld [vmem:[%s165 + $0x10] sm:$0xff]
      %v173 = vld [vmem:[%s165 + $0x18] sm:$0xff]
      %v174 = vld [vmem:[%s165 + $0x20] sm:$0xff]
      %v175 = vld [vmem:[%s165 + $0x28] sm:$0xff]
      %v176 = vld [vmem:[%s165 + $0x30] sm:$0xff]
      %v177 = vld [vmem:[%s165 + $0x38] sm:$0xff]
      %v178 = vld [vmem:[%s165 + $0x40] sm:$0xff]
      %v179 = vld [vmem:[%s165 + $0x48] sm:$0xff]
      %v180 = vld [vmem:[%s165 + $0x50] sm:$0xff]
      %v181 = vld [vmem:[%s165 + $0x58] sm:$0xff]
      %v182 = vld [vmem:[%s165 + $0x60] sm:$0xff]
      %v183 = vld [vmem:[%s165 + $0x68] sm:$0xff]
      %v184 = vld [vmem:[%s165 + $0x70] sm:$0xff]
      %v185 = vld [vmem:[%s165 + $0x78] sm:$0xff]
      %v186 = vld [vmem:[%s165 + $0x80] sm:$0xff]
      %v187 = vld [vmem:[%s165 + $0x88] sm:$0xff]
      %v188 = vld [vmem:[%s165 + $0x90] sm:$0xff]
      %v189 = vld [vmem:[%s165 + $0x98] sm:$0xff]
      %v190 = vld [vmem:[%s165 + $0xa0] sm:$0xff]
      %v191 = vld [vmem:[%s165 + $0xa8] sm:$0xff]
      %v192 = vld [vmem:[%s165 + $0xb0] sm:$0xff]
      %v193 = vld [vmem:[%s165 + $0xb8] sm:$0xff]
      %v194 = vld [vmem:[%s165 + $0xc0] sm:$0xff]
      %v195 = vld [vmem:[%s165 + $0xc8] sm:$0xff]
      %v196 = vld [vmem:[%s165 + $0xd0] sm:$0xff]
      %v197 = vld [vmem:[%s165 + $0xd8] sm:$0xff]
      %v198 = vld [vmem:[%s165 + $0xe0] sm:$0xff]
      %v199 = vld [vmem:[%s165 + $0xe8] sm:$0xff]
      %v200 = vld [vmem:[%s165 + $0xf0] sm:$0xff]
      %v201 = vld [vmem:[%s165 + $0xf8] sm:$0xff]
      %v202 = vld [vmem:[%s165 + $0x100] sm:$0xff]
      %v203 = vld [vmem:[%s165 + $0x108] sm:$0xff]
      %v204 = vld [vmem:[%s165 + $0x110] sm:$0xff]
      %v205 = vld [vmem:[%s165 + $0x118] sm:$0xff]
      %v206 = vld [vmem:[%s165 + $0x120] sm:$0xff]
      %v207 = vld [vmem:[%s165 + $0x128] sm:$0xff]
      %v208 = vld [vmem:[%s165 + $0x130] sm:$0xff]
      %v209 = vld [vmem:[%s165 + $0x138] sm:$0xff]
      %v210 = vld [vmem:[%s165 + $0x140] sm:$0xff]
      %v211 = vld [vmem:[%s165 + $0x148] sm:$0xff]
      %v212 = vld [vmem:[%s165 + $0x150] sm:$0xff]
      %v213 = vld [vmem:[%s165 + $0x158] sm:$0xff]
      %v214 = vld [vmem:[%s165 + $0x160] sm:$0xff]
      %v215 = vld [vmem:[%s165 + $0x168] sm:$0xff]
      %v216 = vld [vmem:[%s165 + $0x170] sm:$0xff]
      %v217 = vld [vmem:[%s165 + $0x178] sm:$0xff]
      %v218 = vld [vmem:[%s165 + $0x180] sm:$0xff]
      %v219 = vld [vmem:[%s165 + $0x188] sm:$0xff]
      %v220 = vld [vmem:[%s165 + $0x190] sm:$0xff]
      %v221 = vld [vmem:[%s165 + $0x198] sm:$0xff]
      %v222 = vld [vmem:[%s165 + $0x1a0] sm:$0xff]
      %v223 = vld [vmem:[%s165 + $0x1a8] sm:$0xff]
      %v224 = vld [vmem:[%s165 + $0x1b0] sm:$0xff]
      %v225 = vld [vmem:[%s165 + $0x1b8] sm:$0xff]
      %v226 = vld [vmem:[%s165 + $0x1c0] sm:$0xff]
      %v227 = vld [vmem:[%s165 + $0x1c8] sm:$0xff]
      %v228 = vld [vmem:[%s165 + $0x1d0] sm:$0xff]
      %v229 = vld [vmem:[%s165 + $0x1d8] sm:$0xff]
      %v230 = vld [vmem:[%s165 + $0x1e0] sm:$0xff]
      %v231 = vld [vmem:[%s165 + $0x1e8] sm:$0xff]
      %v232 = vld [vmem:[%s165 + $0x1f0] sm:$0xff]
      %v233 = vld [vmem:[%s165 + $0x1f8] sm:$0xff]
      %v234 = vld [vmem:[%s165 + $0x200] sm:$0xff]
      %v235 = vld [vmem:[%s165 + $0x208] sm:$0xff]
      %v236 = vld [vmem:[%s165 + $0x210] sm:$0xff]
      %v237 = vld [vmem:[%s165 + $0x218] sm:$0xff]
      %v238 = vld [vmem:[%s165 + $0x220] sm:$0xff]
      %v239 = vld [vmem:[%s165 + $0x228] sm:$0xff]
      %v240 = vld [vmem:[%s165 + $0x230] sm:$0xff]
      %v241 = vld [vmem:[%s165 + $0x238] sm:$0xff]
      %v242 = vld [vmem:[%s165 + $0x240] sm:$0xff]
      %v243 = vld [vmem:[%s165 + $0x248] sm:$0xff]
      %v244 = vld [vmem:[%s165 + $0x250] sm:$0xff]
      %v245 = vld [vmem:[%s165 + $0x258] sm:$0xff]
      %v246 = vld [vmem:[%s165 + $0x260] sm:$0xff]
      %v247 = vld [vmem:[%s165 + $0x268] sm:$0xff]
      %v248 = vld [vmem:[%s165 + $0x270] sm:$0xff]
      %v249 = vld [vmem:[%s165 + $0x278] sm:$0xff]
      %v250 = vld [vmem:[%s165 + $0x280] sm:$0xff]
      %v251 = vld [vmem:[%s165 + $0x288] sm:$0xff]
      %v252 = vld [vmem:[%s165 + $0x290] sm:$0xff]
      %v253 = vld [vmem:[%s165 + $0x298] sm:$0xff]
      %v254 = vld [vmem:[%s165 + $0x2a0] sm:$0xff]
      %v255 = vld [vmem:[%s165 + $0x2a8] sm:$0xff]
      %v256 = vld [vmem:[%s165 + $0x2b0] sm:$0xff]
      %v257 = vld [vmem:[%s165 + $0x2b8] sm:$0xff]
      %v258 = vld [vmem:[%s165 + $0x2c0] sm:$0xff]
      %v259 = vld [vmem:[%s165 + $0x2c8] sm:$0xff]
      %v260 = vld [vmem:[%s165 + $0x2d0] sm:$0xff]
      %v261 = vld [vmem:[%s165 + $0x2d8] sm:$0xff]
      %v262 = vld [vmem:[%s165 + $0x2e0] sm:$0xff]
      %v263 = vld [vmem:[%s165 + $0x2e8] sm:$0xff]
      %v264 = vld [vmem:[%s165 + $0x2f0] sm:$0xff]
      %v265 = vld [vmem:[%s165 + $0x2f8] sm:$0xff]
      %v266 = vld [vmem:[%s165 + $0x300] sm:$0xff]
      %v267 = vld [vmem:[%s165 + $0x308] sm:$0xff]
      %v268 = vld [vmem:[%s165 + $0x310] sm:$0xff]
      %v269 = vld [vmem:[%s165 + $0x318] sm:$0xff]
      %v270 = vld [vmem:[%s165 + $0x320] sm:$0xff]
      %v271 = vld [vmem:[%s165 + $0x328] sm:$0xff]
      %v272 = vld [vmem:[%s165 + $0x330] sm:$0xff]
      %v273 = vld [vmem:[%s165 + $0x338] sm:$0xff]
      %v274 = vld [vmem:[%s165 + $0x340] sm:$0xff]
      %v275 = vld [vmem:[%s165 + $0x348] sm:$0xff]
      %v276 = vld [vmem:[%s165 + $0x350] sm:$0xff]
      %v277 = vld [vmem:[%s165 + $0x358] sm:$0xff]
      %v278 = vld [vmem:[%s165 + $0x360] sm:$0xff]
      %v279 = vld [vmem:[%s165 + $0x368] sm:$0xff]
      %v280 = vld [vmem:[%s165 + $0x370] sm:$0xff]
      %v281 = vld [vmem:[%s165 + $0x378] sm:$0xff]
      %v282 = vld [vmem:[%s165 + $0x380] sm:$0xff]
      %v283 = vld [vmem:[%s165 + $0x388] sm:$0xff]
      %v284 = vld [vmem:[%s165 + $0x390] sm:$0xff]
      %v285 = vld [vmem:[%s165 + $0x398] sm:$0xff]
      %v286 = vld [vmem:[%s165 + $0x3a0] sm:$0xff]
      %v287 = vld [vmem:[%s165 + $0x3a8] sm:$0xff]
      %v288 = vld [vmem:[%s165 + $0x3b0] sm:$0xff]
      %v289 = vld [vmem:[%s165 + $0x3b8] sm:$0xff]
      %v290 = vld [vmem:[%s165 + $0x3c0] sm:$0xff]
      %v291 = vld [vmem:[%s165 + $0x3c8] sm:$0xff]
      %v292 = vld [vmem:[%s165 + $0x3d0] sm:$0xff]
      %v293 = vld [vmem:[%s165 + $0x3d8] sm:$0xff]
      %v294 = vld [vmem:[%s165 + $0x3e0] sm:$0xff]
      %v295 = vld [vmem:[%s165 + $0x3e8] sm:$0xff]
      %v296 = vld [vmem:[%s165 + $0x3f0] sm:$0xff]
      %v297 = vld [vmem:[%s165 + $0x3f8] sm:$0xff]
      %v298 = vld [vmem:[%s165 + $0x400] sm:$0xff]
      %v299 = vld [vmem:[%s165 + $0x408] sm:$0xff]
      %v300 = vld [vmem:[%s165 + $0x410] sm:$0xff]
      %v301 = vld [vmem:[%s165 + $0x418] sm:$0xff]
      %v302 = vld [vmem:[%s165 + $0x420] sm:$0xff]
      %v303 = vld [vmem:[%s165 + $0x428] sm:$0xff]
      %v304 = vld [vmem:[%s165 + $0x430] sm:$0xff]
      %v305 = vld [vmem:[%s165 + $0x438] sm:$0xff]
      %v306 = vld [vmem:[%s165 + $0x440] sm:$0xff]
      %v307 = vld [vmem:[%s165 + $0x448] sm:$0xff]
      %v308 = vld [vmem:[%s165 + $0x450] sm:$0xff]
      %v309 = vld [vmem:[%s165 + $0x458] sm:$0xff]
      %v310 = vld [vmem:[%s165 + $0x460] sm:$0xff]
      %v311 = vld [vmem:[%s165 + $0x468] sm:$0xff]
      %v312 = vld [vmem:[%s165 + $0x470] sm:$0xff]
      %v313 = vld [vmem:[%s165 + $0x478] sm:$0xff]
      %v314 = vld [vmem:[%s165 + $0x480] sm:$0xff]
      %v315 = vld [vmem:[%s165 + $0x488] sm:$0xff]
      %v316 = vld [vmem:[%s165 + $0x490] sm:$0xff]
      %v317 = vld [vmem:[%s165 + $0x498] sm:$0xff]
      %v318 = vld [vmem:[%s165 + $0x4a0] sm:$0xff]
      %v319 = vld [vmem:[%s165 + $0x4a8] sm:$0xff]
      %v320 = vld [vmem:[%s165 + $0x4b0] sm:$0xff]
      %v321 = vld [vmem:[%s165 + $0x4b8] sm:$0xff]
      %v322 = vld [vmem:[%s165 + $0x4c0] sm:$0xff]
      %v323 = vld [vmem:[%s165 + $0x4c8] sm:$0xff]
      %v324 = vld [vmem:[%s165 + $0x4d0] sm:$0xff]
      %v325 = vld [vmem:[%s165 + $0x4d8] sm:$0xff]
      %v326 = vld [vmem:[%s165 + $0x4e0] sm:$0xff]
      %v327 = vld [vmem:[%s165 + $0x4e8] sm:$0xff]
      %v328 = vld [vmem:[%s165 + $0x4f0] sm:$0xff]
      %v329 = vld [vmem:[%s165 + $0x4f8] sm:$0xff]
      %v330 = vld [vmem:[%s165 + $0x500] sm:$0xff]
      %v331 = vld [vmem:[%s165 + $0x508] sm:$0xff]
      %v332 = vld [vmem:[%s165 + $0x510] sm:$0xff]
      %v333 = vld [vmem:[%s165 + $0x518] sm:$0xff]
      %v334 = vld [vmem:[%s165 + $0x520] sm:$0xff]
      %v335 = vld [vmem:[%s165 + $0x528] sm:$0xff]
      %v336 = vld [vmem:[%s165 + $0x530] sm:$0xff]
      %v337 = vld [vmem:[%s165 + $0x538] sm:$0xff]
      %v338 = vld [vmem:[%s165 + $0x540] sm:$0xff]
      %v339 = vld [vmem:[%s165 + $0x548] sm:$0xff]
      %v340 = vld [vmem:[%s165 + $0x550] sm:$0xff]
      %v341 = vld [vmem:[%s165 + $0x558] sm:$0xff]
      %v342 = vld [vmem:[%s165 + $0x560] sm:$0xff]
      %v343 = vld [vmem:[%s165 + $0x568] sm:$0xff]
      %v344 = vld [vmem:[%s165 + $0x570] sm:$0xff]
      %v345 = vld [vmem:[%s165 + $0x578] sm:$0xff]
      %v346 = vld [vmem:[%s165 + $0x580] sm:$0xff]
      %v347 = vld [vmem:[%s165 + $0x588] sm:$0xff]
      %v348 = vld [vmem:[%s165 + $0x590] sm:$0xff]
      %v349 = vld [vmem:[%s165 + $0x598] sm:$0xff]
      %v350 = vld [vmem:[%s165 + $0x5a0] sm:$0xff]
      %v351 = vld [vmem:[%s165 + $0x5a8] sm:$0xff]
      %v352 = vld [vmem:[%s165 + $0x5b0] sm:$0xff]
      %v353 = vld [vmem:[%s165 + $0x5b8] sm:$0xff]
      %v354 = vld [vmem:[%s165 + $0x5c0] sm:$0xff]
      %v355 = vld [vmem:[%s165 + $0x5c8] sm:$0xff]
      %v356 = vld [vmem:[%s165 + $0x5d0] sm:$0xff]
      %v357 = vld [vmem:[%s165 + $0x5d8] sm:$0xff]
      %v358 = vld [vmem:[%s165 + $0x5e0] sm:$0xff]
      %v359 = vld [vmem:[%s165 + $0x5e8] sm:$0xff]
      %v360 = vld [vmem:[%s165 + $0x5f0] sm:$0xff]
      %v361 = vld [vmem:[%s165 + $0x5f8] sm:$0xff]
      %v362 = vld [vmem:[%s165 + $0x600] sm:$0xff]
      %v363 = vld [vmem:[%s165 + $0x608] sm:$0xff]
      %v364 = vld [vmem:[%s165 + $0x610] sm:$0xff]
      %v365 = vld [vmem:[%s165 + $0x618] sm:$0xff]
      %v366 = vld [vmem:[%s165 + $0x620] sm:$0xff]
      %v367 = vld [vmem:[%s165 + $0x628] sm:$0xff]
      %v368 = vld [vmem:[%s165 + $0x630] sm:$0xff]
      %v369 = vld [vmem:[%s165 + $0x638] sm:$0xff]
      %v370 = vld [vmem:[%s165 + $0x640] sm:$0xff]
      %v371 = vld [vmem:[%s165 + $0x648] sm:$0xff]
      %v372 = vld [vmem:[%s165 + $0x650] sm:$0xff]
      %v373 = vld [vmem:[%s165 + $0x658] sm:$0xff]
      %v374 = vld [vmem:[%s165 + $0x660] sm:$0xff]
      %v375 = vld [vmem:[%s165 + $0x668] sm:$0xff]
      %v376 = vld [vmem:[%s165 + $0x670] sm:$0xff]
      %v377 = vld [vmem:[%s165 + $0x678] sm:$0xff]
      %v378 = vld [vmem:[%s165 + $0x680] sm:$0xff]
      %v379 = vld [vmem:[%s165 + $0x688] sm:$0xff]
      %v380 = vld [vmem:[%s165 + $0x690] sm:$0xff]
      %v381 = vld [vmem:[%s165 + $0x698] sm:$0xff]
      %v382 = vld [vmem:[%s165 + $0x6a0] sm:$0xff]
      %v383 = vld [vmem:[%s165 + $0x6a8] sm:$0xff]
      %v384 = vld [vmem:[%s165 + $0x6b0] sm:$0xff]
      %v385 = vld [vmem:[%s165 + $0x6b8] sm:$0xff]
      %v386 = vld [vmem:[%s165 + $0x6c0] sm:$0xff]
      %v387 = vld [vmem:[%s165 + $0x6c8] sm:$0xff]
      %v388 = vld [vmem:[%s165 + $0x6d0] sm:$0xff]
      %v389 = vld [vmem:[%s165 + $0x6d8] sm:$0xff]
      %v390 = vld [vmem:[%s165 + $0x6e0] sm:$0xff]
      %v391 = vld [vmem:[%s165 + $0x6e8] sm:$0xff]
      %v392 = vld [vmem:[%s165 + $0x6f0] sm:$0xff]
      %v393 = vld [vmem:[%s165 + $0x6f8] sm:$0xff]
      %v394 = vld [vmem:[%s165 + $0x700] sm:$0xff]
      %v395 = vld [vmem:[%s165 + $0x708] sm:$0xff]
      %v396 = vld [vmem:[%s165 + $0x710] sm:$0xff]
      %v397 = vld [vmem:[%s165 + $0x718] sm:$0xff]
      %v398 = vld [vmem:[%s165 + $0x720] sm:$0xff]
      %v399 = vld [vmem:[%s165 + $0x728] sm:$0xff]
      %v400 = vld [vmem:[%s165 + $0x730] sm:$0xff]
      %v401 = vld [vmem:[%s165 + $0x738] sm:$0xff]
      %v402 = vld [vmem:[%s165 + $0x740] sm:$0xff]
      %v403 = vld [vmem:[%s165 + $0x748] sm:$0xff]
      %v404 = vld [vmem:[%s165 + $0x750] sm:$0xff]
      %v405 = vld [vmem:[%s165 + $0x758] sm:$0xff]
      %v406 = vld [vmem:[%s165 + $0x760] sm:$0xff]
      %v407 = vld [vmem:[%s165 + $0x768] sm:$0xff]
      %v408 = vld [vmem:[%s165 + $0x770] sm:$0xff]
      %v409 = vld [vmem:[%s165 + $0x778] sm:$0xff]
      %v410 = vld [vmem:[%s165 + $0x780] sm:$0xff]
      %v411 = vld [vmem:[%s165 + $0x788] sm:$0xff]
      %v412 = vld [vmem:[%s165 + $0x790] sm:$0xff]
      %v413 = vld [vmem:[%s165 + $0x798] sm:$0xff]
      %v414 = vld [vmem:[%s165 + $0x7a0] sm:$0xff]
      %v415 = vld [vmem:[%s165 + $0x7a8] sm:$0xff]
      %v416 = vld [vmem:[%s165 + $0x7b0] sm:$0xff]
      %v417 = vld [vmem:[%s165 + $0x7b8] sm:$0xff]
      %v418 = vld [vmem:[%s165 + $0x7c0] sm:$0xff]
      %v419 = vld [vmem:[%s165 + $0x7c8] sm:$0xff]
      %v420 = vld [vmem:[%s165 + $0x7d0] sm:$0xff]
      %v421 = vld [vmem:[%s165 + $0x7d8] sm:$0xff]
      %v422 = vld [vmem:[%s165 + $0x7e0] sm:$0xff]
      %v423 = vld [vmem:[%s165 + $0x7e8] sm:$0xff]
      %v424 = vld [vmem:[%s165 + $0x7f0] sm:$0xff]
      %v425 = vld [vmem:[%s165 + $0x7f8] sm:$0xff]
      %v426 = vld [vmem:[%s165 + $0x800] sm:$0xff]
      %v427 = vld [vmem:[%s165 + $0x808] sm:$0xff]
      %v428 = vld [vmem:[%s165 + $0x810] sm:$0xff]
      %v429 = vld [vmem:[%s165 + $0x818] sm:$0xff]
      %v430 = vld [vmem:[%s165 + $0x820] sm:$0xff]
      %v431 = vld [vmem:[%s165 + $0x828] sm:$0xff]
      %v432 = vld [vmem:[%s165 + $0x830] sm:$0xff]
      %v433 = vld [vmem:[%s165 + $0x838] sm:$0xff]
      %v434 = vld [vmem:[%s165 + $0x840] sm:$0xff]
      %v435 = vld [vmem:[%s165 + $0x848] sm:$0xff]
      %v436 = vld [vmem:[%s165 + $0x850] sm:$0xff]
      %v437 = vld [vmem:[%s165 + $0x858] sm:$0xff]
      %v438 = vld [vmem:[%s165 + $0x860] sm:$0xff]
      %v439 = vld [vmem:[%s165 + $0x868] sm:$0xff]
      %v440 = vld [vmem:[%s165 + $0x870] sm:$0xff]
      %v441 = vld [vmem:[%s165 + $0x878] sm:$0xff]
      %v442 = vld [vmem:[%s165 + $0x880] sm:$0xff]
      %v443 = vld [vmem:[%s165 + $0x888] sm:$0xff]
      %v444 = vld [vmem:[%s165 + $0x890] sm:$0xff]
      %v445 = vld [vmem:[%s165 + $0x898] sm:$0xff]
      %v446 = vld [vmem:[%s165 + $0x8a0] sm:$0xff]
      %v447 = vld [vmem:[%s165 + $0x8a8] sm:$0xff]
      %v448 = vld [vmem:[%s165 + $0x8b0] sm:$0xff]
      %v449 = vld [vmem:[%s165 + $0x8b8] sm:$0xff]
      %v450 = vld [vmem:[%s165 + $0x8c0] sm:$0xff]
      %v451 = vld [vmem:[%s165 + $0x8c8] sm:$0xff]
      %v452 = vld [vmem:[%s165 + $0x8d0] sm:$0xff]
      %v453 = vld [vmem:[%s165 + $0x8d8] sm:$0xff]
      %v454 = vld [vmem:[%s165 + $0x8e0] sm:$0xff]
      %v455 = vld [vmem:[%s165 + $0x8e8] sm:$0xff]
      %v456 = vld [vmem:[%s165 + $0x8f0] sm:$0xff]
      %v457 = vld [vmem:[%s165 + $0x8f8] sm:$0xff]
      %v458 = vld [vmem:[%s165 + $0x900] sm:$0xff]
      %v459 = vld [vmem:[%s165 + $0x908] sm:$0xff]
      %v460 = vld [vmem:[%s165 + $0x910] sm:$0xff]
      %v461 = vld [vmem:[%s165 + $0x918] sm:$0xff]
      %v462 = vld [vmem:[%s165 + $0x920] sm:$0xff]
      %v463 = vld [vmem:[%s165 + $0x928] sm:$0xff]
      %v464 = vld [vmem:[%s165 + $0x930] sm:$0xff]
      %v465 = vld [vmem:[%s165 + $0x938] sm:$0xff]
      %v466 = vld [vmem:[%s165 + $0x940] sm:$0xff]
      %v467 = vld [vmem:[%s165 + $0x948] sm:$0xff]
      %v468 = vld [vmem:[%s165 + $0x950] sm:$0xff]
      %v469 = vld [vmem:[%s165 + $0x958] sm:$0xff]
      %v470 = vld [vmem:[%s165 + $0x960] sm:$0xff]
      %v471 = vld [vmem:[%s165 + $0x968] sm:$0xff]
      %v472 = vld [vmem:[%s165 + $0x970] sm:$0xff]
      %v473 = vld [vmem:[%s165 + $0x978] sm:$0xff]
      %v474 = vld [vmem:[%s165 + $0x980] sm:$0xff]
      %v475 = vld [vmem:[%s165 + $0x988] sm:$0xff]
      %v476 = vld [vmem:[%s165 + $0x990] sm:$0xff]
      %v477 = vld [vmem:[%s165 + $0x998] sm:$0xff]
      %v478 = vld [vmem:[%s165 + $0x9a0] sm:$0xff]
      %v479 = vld [vmem:[%s165 + $0x9a8] sm:$0xff]
      %v480 = vld [vmem:[%s165 + $0x9b0] sm:$0xff]
      %v481 = vld [vmem:[%s165 + $0x9b8] sm:$0xff]
      %v482 = vld [vmem:[%s165 + $0x9c0] sm:$0xff]
      %v483 = vld [vmem:[%s165 + $0x9c8] sm:$0xff]
      %v484 = vld [vmem:[%s165 + $0x9d0] sm:$0xff]
      %v485 = vld [vmem:[%s165 + $0x9d8] sm:$0xff]
      %v486 = vld [vmem:[%s165 + $0x9e0] sm:$0xff]
      %v487 = vld [vmem:[%s165 + $0x9e8] sm:$0xff]
      %v488 = vld [vmem:[%s165 + $0x9f0] sm:$0xff]
      %v489 = vld [vmem:[%s165 + $0x9f8] sm:$0xff]
      %v490 = vld [vmem:[%s1] sm:$0xf]
      %s491 = sld [smem:[#allocation2]]
      %v492 = vstv %s491
      %v495 = vunpack.c.l.s4 1966171168
      %v496 = vunpack.c.0.s8 %v495
      %v497 = vlaneseq
      %v498 = vshrl.u32 %v497, 7
      %v499 = vsub.s32 %v496, %v498
      %v500 = vrot.slane %v490, %v499
      %v501 = vcombine.high %v500, %v500
      %v503 = vunpack.c.l.s4 1966171168
      %v504 = vunpack.c.0.s8 %v503
      %v505 = vlaneseq
      %v506 = vshrl.u32 %v505, 7
      %v507 = vsub.s32 %v504, %v506
      %v508 = vrot.slane %v500, %v507
      %v510 = vunpack.c.l.s4 1966171168
      %v511 = vunpack.c.0.s8 %v510
      %v512 = vlaneseq
      %v513 = vshrl.u32 %v512, 7
      %v514 = vsub.s32 %v511, %v513
      %v515 = vrot.slane %v501, %v514
      %v516 = vcombine.high %v508, %v508
      %v517 = vcombine.high %v515, %v515
      %v842 = vunpack.c.l.b16 %v170
      %v843 = vunpack.c.h.b16 %v170
      %v844 = vunpack.c.l.b16 %v171
      %v845 = vunpack.c.h.b16 %v171
      %v846 = vunpack.c.l.b16 %v172
      %v847 = vunpack.c.h.b16 %v172
      %v848 = vunpack.c.l.b16 %v173
      %v849 = vunpack.c.h.b16 %v173
      %v850 = vunpack.c.l.b16 %v174
      %v851 = vunpack.c.h.b16 %v174
      %v852 = vunpack.c.l.b16 %v175
      %v853 = vunpack.c.h.b16 %v175
      %v854 = vunpack.c.l.b16 %v176
      %v855 = vunpack.c.h.b16 %v176
      %v856 = vunpack.c.l.b16 %v177
      %v857 = vunpack.c.h.b16 %v177
      %v858 = vunpack.c.l.b16 %v178
      %v859 = vunpack.c.h.b16 %v178
      %v860 = vunpack.c.l.b16 %v179
      %v861 = vunpack.c.h.b16 %v179
      %v862 = vunpack.c.l.b16 %v180
      %v863 = vunpack.c.h.b16 %v180
      %v864 = vunpack.c.l.b16 %v181
      %v865 = vunpack.c.h.b16 %v181
      %v866 = vunpack.c.l.b16 %v182
      %v867 = vunpack.c.h.b16 %v182
      %v868 = vunpack.c.l.b16 %v183
      %v869 = vunpack.c.h.b16 %v183
      %v870 = vunpack.c.l.b16 %v184
      %v871 = vunpack.c.h.b16 %v184
      %v872 = vunpack.c.l.b16 %v185
      %v873 = vunpack.c.h.b16 %v185
      %v874 = vunpack.c.l.b16 %v186
      %v875 = vunpack.c.h.b16 %v186
      %v876 = vunpack.c.l.b16 %v187
      %v877 = vunpack.c.h.b16 %v187
      %v878 = vunpack.c.l.b16 %v188
      %v879 = vunpack.c.h.b16 %v188
      %v880 = vunpack.c.l.b16 %v189
      %v881 = vunpack.c.h.b16 %v189
      %v882 = vunpack.c.l.b16 %v190
      %v883 = vunpack.c.h.b16 %v190
      %v884 = vunpack.c.l.b16 %v191
      %v885 = vunpack.c.h.b16 %v191
      %v886 = vunpack.c.l.b16 %v192
      %v887 = vunpack.c.h.b16 %v192
      %v888 = vunpack.c.l.b16 %v193
      %v889 = vunpack.c.h.b16 %v193
      %v890 = vunpack.c.l.b16 %v194
      %v891 = vunpack.c.h.b16 %v194
      %v892 = vunpack.c.l.b16 %v195
      %v893 = vunpack.c.h.b16 %v195
      %v894 = vunpack.c.l.b16 %v196
      %v895 = vunpack.c.h.b16 %v196
      %v896 = vunpack.c.l.b16 %v197
      %v897 = vunpack.c.h.b16 %v197
      %v898 = vunpack.c.l.b16 %v198
      %v899 = vunpack.c.h.b16 %v198
      %v900 = vunpack.c.l.b16 %v199
      %v901 = vunpack.c.h.b16 %v199
      %v902 = vunpack.c.l.b16 %v200
      %v903 = vunpack.c.h.b16 %v200
      %v904 = vunpack.c.l.b16 %v201
      %v905 = vunpack.c.h.b16 %v201
      %v906 = vunpack.c.l.b16 %v202
      %v907 = vunpack.c.h.b16 %v202
      %v908 = vunpack.c.l.b16 %v203
      %v909 = vunpack.c.h.b16 %v203
      %v910 = vunpack.c.l.b16 %v204
      %v911 = vunpack.c.h.b16 %v204
      %v912 = vunpack.c.l.b16 %v205
      %v913 = vunpack.c.h.b16 %v205
      %v914 = vunpack.c.l.b16 %v206
      %v915 = vunpack.c.h.b16 %v206
      %v916 = vunpack.c.l.b16 %v207
      %v917 = vunpack.c.h.b16 %v207
      %v918 = vunpack.c.l.b16 %v208
      %v919 = vunpack.c.h.b16 %v208
      %v920 = vunpack.c.l.b16 %v209
      %v921 = vunpack.c.h.b16 %v209
      %v922 = vunpack.c.l.b16 %v210
      %v923 = vunpack.c.h.b16 %v210
      %v924 = vunpack.c.l.b16 %v211
      %v925 = vunpack.c.h.b16 %v211
      %v926 = vunpack.c.l.b16 %v212
      %v927 = vunpack.c.h.b16 %v212
      %v928 = vunpack.c.l.b16 %v213
      %v929 = vunpack.c.h.b16 %v213
      %v930 = vunpack.c.l.b16 %v214
      %v931 = vunpack.c.h.b16 %v214
      %v932 = vunpack.c.l.b16 %v215
      %v933 = vunpack.c.h.b16 %v215
      %v934 = vunpack.c.l.b16 %v216
      %v935 = vunpack.c.h.b16 %v216
      %v936 = vunpack.c.l.b16 %v217
      %v937 = vunpack.c.h.b16 %v217
      %v938 = vunpack.c.l.b16 %v218
      %v939 = vunpack.c.h.b16 %v218
      %v940 = vunpack.c.l.b16 %v219
      %v941 = vunpack.c.h.b16 %v219
      %v942 = vunpack.c.l.b16 %v220
      %v943 = vunpack.c.h.b16 %v220
      %v944 = vunpack.c.l.b16 %v221
      %v945 = vunpack.c.h.b16 %v221
      %v946 = vunpack.c.l.b16 %v222
      %v947 = vunpack.c.h.b16 %v222
      %v948 = vunpack.c.l.b16 %v223
      %v949 = vunpack.c.h.b16 %v223
      %v950 = vunpack.c.l.b16 %v224
      %v951 = vunpack.c.h.b16 %v224
      %v952 = vunpack.c.l.b16 %v225
      %v953 = vunpack.c.h.b16 %v225
      %v954 = vunpack.c.l.b16 %v226
      %v955 = vunpack.c.h.b16 %v226
      %v956 = vunpack.c.l.b16 %v227
      %v957 = vunpack.c.h.b16 %v227
      %v958 = vunpack.c.l.b16 %v228
      %v959 = vunpack.c.h.b16 %v228
      %v960 = vunpack.c.l.b16 %v229
      %v961 = vunpack.c.h.b16 %v229
      %v962 = vunpack.c.l.b16 %v230
      %v963 = vunpack.c.h.b16 %v230
      %v964 = vunpack.c.l.b16 %v231
      %v965 = vunpack.c.h.b16 %v231
      %v966 = vunpack.c.l.b16 %v232
      %v967 = vunpack.c.h.b16 %v232
      %v968 = vunpack.c.l.b16 %v233
      %v969 = vunpack.c.h.b16 %v233
      %v970 = vunpack.c.l.b16 %v234
      %v971 = vunpack.c.h.b16 %v234
      %v972 = vunpack.c.l.b16 %v235
      %v973 = vunpack.c.h.b16 %v235
      %v974 = vunpack.c.l.b16 %v236
      %v975 = vunpack.c.h.b16 %v236
      %v976 = vunpack.c.l.b16 %v237
      %v977 = vunpack.c.h.b16 %v237
      %v978 = vunpack.c.l.b16 %v238
      %v979 = vunpack.c.h.b16 %v238
      %v980 = vunpack.c.l.b16 %v239
      %v981 = vunpack.c.h.b16 %v239
      %v982 = vunpack.c.l.b16 %v240
      %v983 = vunpack.c.h.b16 %v240
      %v984 = vunpack.c.l.b16 %v241
      %v985 = vunpack.c.h.b16 %v241
      %v986 = vunpack.c.l.b16 %v242
      %v987 = vunpack.c.h.b16 %v242
      %v988 = vunpack.c.l.b16 %v243
      %v989 = vunpack.c.h.b16 %v243
      %v990 = vunpack.c.l.b16 %v244
      %v991 = vunpack.c.h.b16 %v244
      %v992 = vunpack.c.l.b16 %v245
      %v993 = vunpack.c.h.b16 %v245
      %v994 = vunpack.c.l.b16 %v246
      %v995 = vunpack.c.h.b16 %v246
      %v996 = vunpack.c.l.b16 %v247
      %v997 = vunpack.c.h.b16 %v247
      %v998 = vunpack.c.l.b16 %v248
      %v999 = vunpack.c.h.b16 %v248
      %v1000 = vunpack.c.l.b16 %v249
      %v1001 = vunpack.c.h.b16 %v249
      %v1002 = vunpack.c.l.b16 %v250
      %v1003 = vunpack.c.h.b16 %v250
      %v1004 = vunpack.c.l.b16 %v251
      %v1005 = vunpack.c.h.b16 %v251
      %v1006 = vunpack.c.l.b16 %v252
      %v1007 = vunpack.c.h.b16 %v252
      %v1008 = vunpack.c.l.b16 %v253
      %v1009 = vunpack.c.h.b16 %v253
      %v1010 = vunpack.c.l.b16 %v254
      %v1011 = vunpack.c.h.b16 %v254
      %v1012 = vunpack.c.l.b16 %v255
      %v1013 = vunpack.c.h.b16 %v255
      %v1014 = vunpack.c.l.b16 %v256
      %v1015 = vunpack.c.h.b16 %v256
      %v1016 = vunpack.c.l.b16 %v257
      %v1017 = vunpack.c.h.b16 %v257
      %v1018 = vunpack.c.l.b16 %v258
      %v1019 = vunpack.c.h.b16 %v258
      %v1020 = vunpack.c.l.b16 %v259
      %v1021 = vunpack.c.h.b16 %v259
      %v1022 = vunpack.c.l.b16 %v260
      %v1023 = vunpack.c.h.b16 %v260
      %v1024 = vunpack.c.l.b16 %v261
      %v1025 = vunpack.c.h.b16 %v261
      %v1026 = vunpack.c.l.b16 %v262
      %v1027 = vunpack.c.h.b16 %v262
      %v1028 = vunpack.c.l.b16 %v263
      %v1029 = vunpack.c.h.b16 %v263
      %v1030 = vunpack.c.l.b16 %v264
      %v1031 = vunpack.c.h.b16 %v264
      %v1032 = vunpack.c.l.b16 %v265
      %v1033 = vunpack.c.h.b16 %v265
      %v1034 = vunpack.c.l.b16 %v266
      %v1035 = vunpack.c.h.b16 %v266
      %v1036 = vunpack.c.l.b16 %v267
      %v1037 = vunpack.c.h.b16 %v267
      %v1038 = vunpack.c.l.b16 %v268
      %v1039 = vunpack.c.h.b16 %v268
      %v1040 = vunpack.c.l.b16 %v269
      %v1041 = vunpack.c.h.b16 %v269
      %v1042 = vunpack.c.l.b16 %v270
      %v1043 = vunpack.c.h.b16 %v270
      %v1044 = vunpack.c.l.b16 %v271
      %v1045 = vunpack.c.h.b16 %v271
      %v1046 = vunpack.c.l.b16 %v272
      %v1047 = vunpack.c.h.b16 %v272
      %v1048 = vunpack.c.l.b16 %v273
      %v1049 = vunpack.c.h.b16 %v273
      %v1050 = vunpack.c.l.b16 %v274
      %v1051 = vunpack.c.h.b16 %v274
      %v1052 = vunpack.c.l.b16 %v275
      %v1053 = vunpack.c.h.b16 %v275
      %v1054 = vunpack.c.l.b16 %v276
      %v1055 = vunpack.c.h.b16 %v276
      %v1056 = vunpack.c.l.b16 %v277
      %v1057 = vunpack.c.h.b16 %v277
      %v1058 = vunpack.c.l.b16 %v278
      %v1059 = vunpack.c.h.b16 %v278
      %v1060 = vunpack.c.l.b16 %v279
      %v1061 = vunpack.c.h.b16 %v279
      %v1062 = vunpack.c.l.b16 %v280
      %v1063 = vunpack.c.h.b16 %v280
      %v1064 = vunpack.c.l.b16 %v281
      %v1065 = vunpack.c.h.b16 %v281
      %v1066 = vunpack.c.l.b16 %v282
      %v1067 = vunpack.c.h.b16 %v282
      %v1068 = vunpack.c.l.b16 %v283
      %v1069 = vunpack.c.h.b16 %v283
      %v1070 = vunpack.c.l.b16 %v284
      %v1071 = vunpack.c.h.b16 %v284
      %v1072 = vunpack.c.l.b16 %v285
      %v1073 = vunpack.c.h.b16 %v285
      %v1074 = vunpack.c.l.b16 %v286
      %v1075 = vunpack.c.h.b16 %v286
      %v1076 = vunpack.c.l.b16 %v287
      %v1077 = vunpack.c.h.b16 %v287
      %v1078 = vunpack.c.l.b16 %v288
      %v1079 = vunpack.c.h.b16 %v288
      %v1080 = vunpack.c.l.b16 %v289
      %v1081 = vunpack.c.h.b16 %v289
      %v1082 = vunpack.c.l.b16 %v290
      %v1083 = vunpack.c.h.b16 %v290
      %v1084 = vunpack.c.l.b16 %v291
      %v1085 = vunpack.c.h.b16 %v291
      %v1086 = vunpack.c.l.b16 %v292
      %v1087 = vunpack.c.h.b16 %v292
      %v1088 = vunpack.c.l.b16 %v293
      %v1089 = vunpack.c.h.b16 %v293
      %v1090 = vunpack.c.l.b16 %v294
      %v1091 = vunpack.c.h.b16 %v294
      %v1092 = vunpack.c.l.b16 %v295
      %v1093 = vunpack.c.h.b16 %v295
      %v1094 = vunpack.c.l.b16 %v296
      %v1095 = vunpack.c.h.b16 %v296
      %v1096 = vunpack.c.l.b16 %v297
      %v1097 = vunpack.c.h.b16 %v297
      %v1098 = vunpack.c.l.b16 %v298
      %v1099 = vunpack.c.h.b16 %v298
      %v1100 = vunpack.c.l.b16 %v299
      %v1101 = vunpack.c.h.b16 %v299
      %v1102 = vunpack.c.l.b16 %v300
      %v1103 = vunpack.c.h.b16 %v300
      %v1104 = vunpack.c.l.b16 %v301
      %v1105 = vunpack.c.h.b16 %v301
      %v1106 = vunpack.c.l.b16 %v302
      %v1107 = vunpack.c.h.b16 %v302
      %v1108 = vunpack.c.l.b16 %v303
      %v1109 = vunpack.c.h.b16 %v303
      %v1110 = vunpack.c.l.b16 %v304
      %v1111 = vunpack.c.h.b16 %v304
      %v1112 = vunpack.c.l.b16 %v305
      %v1113 = vunpack.c.h.b16 %v305
      %v1114 = vunpack.c.l.b16 %v306
      %v1115 = vunpack.c.h.b16 %v306
      %v1116 = vunpack.c.l.b16 %v307
      %v1117 = vunpack.c.h.b16 %v307
      %v1118 = vunpack.c.l.b16 %v308
      %v1119 = vunpack.c.h.b16 %v308
      %v1120 = vunpack.c.l.b16 %v309
      %v1121 = vunpack.c.h.b16 %v309
      %v1122 = vunpack.c.l.b16 %v310
      %v1123 = vunpack.c.h.b16 %v310
      %v1124 = vunpack.c.l.b16 %v311
      %v1125 = vunpack.c.h.b16 %v311
      %v1126 = vunpack.c.l.b16 %v312
      %v1127 = vunpack.c.h.b16 %v312
      %v1128 = vunpack.c.l.b16 %v313
      %v1129 = vunpack.c.h.b16 %v313
      %v1130 = vunpack.c.l.b16 %v314
      %v1131 = vunpack.c.h.b16 %v314
      %v1132 = vunpack.c.l.b16 %v315
      %v1133 = vunpack.c.h.b16 %v315
      %v1134 = vunpack.c.l.b16 %v316
      %v1135 = vunpack.c.h.b16 %v316
      %v1136 = vunpack.c.l.b16 %v317
      %v1137 = vunpack.c.h.b16 %v317
      %v1138 = vunpack.c.l.b16 %v318
      %v1139 = vunpack.c.h.b16 %v318
      %v1140 = vunpack.c.l.b16 %v319
      %v1141 = vunpack.c.h.b16 %v319
      %v1142 = vunpack.c.l.b16 %v320
      %v1143 = vunpack.c.h.b16 %v320
      %v1144 = vunpack.c.l.b16 %v321
      %v1145 = vunpack.c.h.b16 %v321
      %v1146 = vunpack.c.l.b16 %v322
      %v1147 = vunpack.c.h.b16 %v322
      %v1148 = vunpack.c.l.b16 %v323
      %v1149 = vunpack.c.h.b16 %v323
      %v1150 = vunpack.c.l.b16 %v324
      %v1151 = vunpack.c.h.b16 %v324
      %v1152 = vunpack.c.l.b16 %v325
      %v1153 = vunpack.c.h.b16 %v325
      %v1154 = vunpack.c.l.b16 %v326
      %v1155 = vunpack.c.h.b16 %v326
      %v1156 = vunpack.c.l.b16 %v327
      %v1157 = vunpack.c.h.b16 %v327
      %v1158 = vunpack.c.l.b16 %v328
      %v1159 = vunpack.c.h.b16 %v328
      %v1160 = vunpack.c.l.b16 %v329
      %v1161 = vunpack.c.h.b16 %v329
      %v1162 = vunpack.c.l.b16 %v330
      %v1163 = vunpack.c.h.b16 %v330
      %v1164 = vunpack.c.l.b16 %v331
      %v1165 = vunpack.c.h.b16 %v331
      %v1166 = vunpack.c.l.b16 %v332
      %v1167 = vunpack.c.h.b16 %v332
      %v1168 = vunpack.c.l.b16 %v333
      %v1169 = vunpack.c.h.b16 %v333
      %v1170 = vunpack.c.l.b16 %v334
      %v1171 = vunpack.c.h.b16 %v334
      %v1172 = vunpack.c.l.b16 %v335
      %v1173 = vunpack.c.h.b16 %v335
      %v1174 = vunpack.c.l.b16 %v336
      %v1175 = vunpack.c.h.b16 %v336
      %v1176 = vunpack.c.l.b16 %v337
      %v1177 = vunpack.c.h.b16 %v337
      %v1178 = vunpack.c.l.b16 %v338
      %v1179 = vunpack.c.h.b16 %v338
      %v1180 = vunpack.c.l.b16 %v339
      %v1181 = vunpack.c.h.b16 %v339
      %v1182 = vunpack.c.l.b16 %v340
      %v1183 = vunpack.c.h.b16 %v340
      %v1184 = vunpack.c.l.b16 %v341
      %v1185 = vunpack.c.h.b16 %v341
      %v1186 = vunpack.c.l.b16 %v342
      %v1187 = vunpack.c.h.b16 %v342
      %v1188 = vunpack.c.l.b16 %v343
      %v1189 = vunpack.c.h.b16 %v343
      %v1190 = vunpack.c.l.b16 %v344
      %v1191 = vunpack.c.h.b16 %v344
      %v1192 = vunpack.c.l.b16 %v345
      %v1193 = vunpack.c.h.b16 %v345
      %v1194 = vunpack.c.l.b16 %v346
      %v1195 = vunpack.c.h.b16 %v346
      %v1196 = vunpack.c.l.b16 %v347
      %v1197 = vunpack.c.h.b16 %v347
      %v1198 = vunpack.c.l.b16 %v348
      %v1199 = vunpack.c.h.b16 %v348
      %v1200 = vunpack.c.l.b16 %v349
      %v1201 = vunpack.c.h.b16 %v349
      %v1202 = vunpack.c.l.b16 %v350
      %v1203 = vunpack.c.h.b16 %v350
      %v1204 = vunpack.c.l.b16 %v351
      %v1205 = vunpack.c.h.b16 %v351
      %v1206 = vunpack.c.l.b16 %v352
      %v1207 = vunpack.c.h.b16 %v352
      %v1208 = vunpack.c.l.b16 %v353
      %v1209 = vunpack.c.h.b16 %v353
      %v1210 = vunpack.c.l.b16 %v354
      %v1211 = vunpack.c.h.b16 %v354
      %v1212 = vunpack.c.l.b16 %v355
      %v1213 = vunpack.c.h.b16 %v355
      %v1214 = vunpack.c.l.b16 %v356
      %v1215 = vunpack.c.h.b16 %v356
      %v1216 = vunpack.c.l.b16 %v357
      %v1217 = vunpack.c.h.b16 %v357
      %v1218 = vunpack.c.l.b16 %v358
      %v1219 = vunpack.c.h.b16 %v358
      %v1220 = vunpack.c.l.b16 %v359
      %v1221 = vunpack.c.h.b16 %v359
      %v1222 = vunpack.c.l.b16 %v360
      %v1223 = vunpack.c.h.b16 %v360
      %v1224 = vunpack.c.l.b16 %v361
      %v1225 = vunpack.c.h.b16 %v361
      %v1226 = vunpack.c.l.b16 %v362
      %v1227 = vunpack.c.h.b16 %v362
      %v1228 = vunpack.c.l.b16 %v363
      %v1229 = vunpack.c.h.b16 %v363
      %v1230 = vunpack.c.l.b16 %v364
      %v1231 = vunpack.c.h.b16 %v364
      %v1232 = vunpack.c.l.b16 %v365
      %v1233 = vunpack.c.h.b16 %v365
      %v1234 = vunpack.c.l.b16 %v366
      %v1235 = vunpack.c.h.b16 %v366
      %v1236 = vunpack.c.l.b16 %v367
      %v1237 = vunpack.c.h.b16 %v367
      %v1238 = vunpack.c.l.b16 %v368
      %v1239 = vunpack.c.h.b16 %v368
      %v1240 = vunpack.c.l.b16 %v369
      %v1241 = vunpack.c.h.b16 %v369
      %v1242 = vunpack.c.l.b16 %v370
      %v1243 = vunpack.c.h.b16 %v370
      %v1244 = vunpack.c.l.b16 %v371
      %v1245 = vunpack.c.h.b16 %v371
      %v1246 = vunpack.c.l.b16 %v372
      %v1247 = vunpack.c.h.b16 %v372
      %v1248 = vunpack.c.l.b16 %v373
      %v1249 = vunpack.c.h.b16 %v373
      %v1250 = vunpack.c.l.b16 %v374
      %v1251 = vunpack.c.h.b16 %v374
      %v1252 = vunpack.c.l.b16 %v375
      %v1253 = vunpack.c.h.b16 %v375
      %v1254 = vunpack.c.l.b16 %v376
      %v1255 = vunpack.c.h.b16 %v376
      %v1256 = vunpack.c.l.b16 %v377
      %v1257 = vunpack.c.h.b16 %v377
      %v1258 = vunpack.c.l.b16 %v378
      %v1259 = vunpack.c.h.b16 %v378
      %v1260 = vunpack.c.l.b16 %v379
      %v1261 = vunpack.c.h.b16 %v379
      %v1262 = vunpack.c.l.b16 %v380
      %v1263 = vunpack.c.h.b16 %v380
      %v1264 = vunpack.c.l.b16 %v381
      %v1265 = vunpack.c.h.b16 %v381
      %v1266 = vunpack.c.l.b16 %v382
      %v1267 = vunpack.c.h.b16 %v382
      %v1268 = vunpack.c.l.b16 %v383
      %v1269 = vunpack.c.h.b16 %v383
      %v1270 = vunpack.c.l.b16 %v384
      %v1271 = vunpack.c.h.b16 %v384
      %v1272 = vunpack.c.l.b16 %v385
      %v1273 = vunpack.c.h.b16 %v385
      %v1274 = vunpack.c.l.b16 %v386
      %v1275 = vunpack.c.h.b16 %v386
      %v1276 = vunpack.c.l.b16 %v387
      %v1277 = vunpack.c.h.b16 %v387
      %v1278 = vunpack.c.l.b16 %v388
      %v1279 = vunpack.c.h.b16 %v388
      %v1280 = vunpack.c.l.b16 %v389
      %v1281 = vunpack.c.h.b16 %v389
      %v1282 = vunpack.c.l.b16 %v390
      %v1283 = vunpack.c.h.b16 %v390
      %v1284 = vunpack.c.l.b16 %v391
      %v1285 = vunpack.c.h.b16 %v391
      %v1286 = vunpack.c.l.b16 %v392
      %v1287 = vunpack.c.h.b16 %v392
      %v1288 = vunpack.c.l.b16 %v393
      %v1289 = vunpack.c.h.b16 %v393
      %v1290 = vunpack.c.l.b16 %v394
      %v1291 = vunpack.c.h.b16 %v394
      %v1292 = vunpack.c.l.b16 %v395
      %v1293 = vunpack.c.h.b16 %v395
      %v1294 = vunpack.c.l.b16 %v396
      %v1295 = vunpack.c.h.b16 %v396
      %v1296 = vunpack.c.l.b16 %v397
      %v1297 = vunpack.c.h.b16 %v397
      %v1298 = vunpack.c.l.b16 %v398
      %v1299 = vunpack.c.h.b16 %v398
      %v1300 = vunpack.c.l.b16 %v399
      %v1301 = vunpack.c.h.b16 %v399
      %v1302 = vunpack.c.l.b16 %v400
      %v1303 = vunpack.c.h.b16 %v400
      %v1304 = vunpack.c.l.b16 %v401
      %v1305 = vunpack.c.h.b16 %v401
      %v1306 = vunpack.c.l.b16 %v402
      %v1307 = vunpack.c.h.b16 %v402
      %v1308 = vunpack.c.l.b16 %v403
      %v1309 = vunpack.c.h.b16 %v403
      %v1310 = vunpack.c.l.b16 %v404
      %v1311 = vunpack.c.h.b16 %v404
      %v1312 = vunpack.c.l.b16 %v405
      %v1313 = vunpack.c.h.b16 %v405
      %v1314 = vunpack.c.l.b16 %v406
      %v1315 = vunpack.c.h.b16 %v406
      %v1316 = vunpack.c.l.b16 %v407
      %v1317 = vunpack.c.h.b16 %v407
      %v1318 = vunpack.c.l.b16 %v408
      %v1319 = vunpack.c.h.b16 %v408
      %v1320 = vunpack.c.l.b16 %v409
      %v1321 = vunpack.c.h.b16 %v409
      %v1322 = vunpack.c.l.b16 %v410
      %v1323 = vunpack.c.h.b16 %v410
      %v1324 = vunpack.c.l.b16 %v411
      %v1325 = vunpack.c.h.b16 %v411
      %v1326 = vunpack.c.l.b16 %v412
      %v1327 = vunpack.c.h.b16 %v412
      %v1328 = vunpack.c.l.b16 %v413
      %v1329 = vunpack.c.h.b16 %v413
      %v1330 = vunpack.c.l.b16 %v414
      %v1331 = vunpack.c.h.b16 %v414
      %v1332 = vunpack.c.l.b16 %v415
      %v1333 = vunpack.c.h.b16 %v415
      %v1334 = vunpack.c.l.b16 %v416
      %v1335 = vunpack.c.h.b16 %v416
      %v1336 = vunpack.c.l.b16 %v417
      %v1337 = vunpack.c.h.b16 %v417
      %v1338 = vunpack.c.l.b16 %v418
      %v1339 = vunpack.c.h.b16 %v418
      %v1340 = vunpack.c.l.b16 %v419
      %v1341 = vunpack.c.h.b16 %v419
      %v1342 = vunpack.c.l.b16 %v420
      %v1343 = vunpack.c.h.b16 %v420
      %v1344 = vunpack.c.l.b16 %v421
      %v1345 = vunpack.c.h.b16 %v421
      %v1346 = vunpack.c.l.b16 %v422
      %v1347 = vunpack.c.h.b16 %v422
      %v1348 = vunpack.c.l.b16 %v423
      %v1349 = vunpack.c.h.b16 %v423
      %v1350 = vunpack.c.l.b16 %v424
      %v1351 = vunpack.c.h.b16 %v424
      %v1352 = vunpack.c.l.b16 %v425
      %v1353 = vunpack.c.h.b16 %v425
      %v1354 = vunpack.c.l.b16 %v426
      %v1355 = vunpack.c.h.b16 %v426
      %v1356 = vunpack.c.l.b16 %v427
      %v1357 = vunpack.c.h.b16 %v427
      %v1358 = vunpack.c.l.b16 %v428
      %v1359 = vunpack.c.h.b16 %v428
      %v1360 = vunpack.c.l.b16 %v429
      %v1361 = vunpack.c.h.b16 %v429
      %v1362 = vunpack.c.l.b16 %v430
      %v1363 = vunpack.c.h.b16 %v430
      %v1364 = vunpack.c.l.b16 %v431
      %v1365 = vunpack.c.h.b16 %v431
      %v1366 = vunpack.c.l.b16 %v432
      %v1367 = vunpack.c.h.b16 %v432
      %v1368 = vunpack.c.l.b16 %v433
      %v1369 = vunpack.c.h.b16 %v433
      %v1370 = vunpack.c.l.b16 %v434
      %v1371 = vunpack.c.h.b16 %v434
      %v1372 = vunpack.c.l.b16 %v435
      %v1373 = vunpack.c.h.b16 %v435
      %v1374 = vunpack.c.l.b16 %v436
      %v1375 = vunpack.c.h.b16 %v436
      %v1376 = vunpack.c.l.b16 %v437
      %v1377 = vunpack.c.h.b16 %v437
      %v1378 = vunpack.c.l.b16 %v438
      %v1379 = vunpack.c.h.b16 %v438
      %v1380 = vunpack.c.l.b16 %v439
      %v1381 = vunpack.c.h.b16 %v439
      %v1382 = vunpack.c.l.b16 %v440
      %v1383 = vunpack.c.h.b16 %v440
      %v1384 = vunpack.c.l.b16 %v441
      %v1385 = vunpack.c.h.b16 %v441
      %v1386 = vunpack.c.l.b16 %v442
      %v1387 = vunpack.c.h.b16 %v442
      %v1388 = vunpack.c.l.b16 %v443
      %v1389 = vunpack.c.h.b16 %v443
      %v1390 = vunpack.c.l.b16 %v444
      %v1391 = vunpack.c.h.b16 %v444
      %v1392 = vunpack.c.l.b16 %v445
      %v1393 = vunpack.c.h.b16 %v445
      %v1394 = vunpack.c.l.b16 %v446
      %v1395 = vunpack.c.h.b16 %v446
      %v1396 = vunpack.c.l.b16 %v447
      %v1397 = vunpack.c.h.b16 %v447
      %v1398 = vunpack.c.l.b16 %v448
      %v1399 = vunpack.c.h.b16 %v448
      %v1400 = vunpack.c.l.b16 %v449
      %v1401 = vunpack.c.h.b16 %v449
      %v1402 = vunpack.c.l.b16 %v450
      %v1403 = vunpack.c.h.b16 %v450
      %v1404 = vunpack.c.l.b16 %v451
      %v1405 = vunpack.c.h.b16 %v451
      %v1406 = vunpack.c.l.b16 %v452
      %v1407 = vunpack.c.h.b16 %v452
      %v1408 = vunpack.c.l.b16 %v453
      %v1409 = vunpack.c.h.b16 %v453
      %v1410 = vunpack.c.l.b16 %v454
      %v1411 = vunpack.c.h.b16 %v454
      %v1412 = vunpack.c.l.b16 %v455
      %v1413 = vunpack.c.h.b16 %v455
      %v1414 = vunpack.c.l.b16 %v456
      %v1415 = vunpack.c.h.b16 %v456
      %v1416 = vunpack.c.l.b16 %v457
      %v1417 = vunpack.c.h.b16 %v457
      %v1418 = vunpack.c.l.b16 %v458
      %v1419 = vunpack.c.h.b16 %v458
      %v1420 = vunpack.c.l.b16 %v459
      %v1421 = vunpack.c.h.b16 %v459
      %v1422 = vunpack.c.l.b16 %v460
      %v1423 = vunpack.c.h.b16 %v460
      %v1424 = vunpack.c.l.b16 %v461
      %v1425 = vunpack.c.h.b16 %v461
      %v1426 = vunpack.c.l.b16 %v462
      %v1427 = vunpack.c.h.b16 %v462
      %v1428 = vunpack.c.l.b16 %v463
      %v1429 = vunpack.c.h.b16 %v463
      %v1430 = vunpack.c.l.b16 %v464
      %v1431 = vunpack.c.h.b16 %v464
      %v1432 = vunpack.c.l.b16 %v465
      %v1433 = vunpack.c.h.b16 %v465
      %v1434 = vunpack.c.l.b16 %v466
      %v1435 = vunpack.c.h.b16 %v466
      %v1436 = vunpack.c.l.b16 %v467
      %v1437 = vunpack.c.h.b16 %v467
      %v1438 = vunpack.c.l.b16 %v468
      %v1439 = vunpack.c.h.b16 %v468
      %v1440 = vunpack.c.l.b16 %v469
      %v1441 = vunpack.c.h.b16 %v469
      %v1442 = vunpack.c.l.b16 %v470
      %v1443 = vunpack.c.h.b16 %v470
      %v1444 = vunpack.c.l.b16 %v471
      %v1445 = vunpack.c.h.b16 %v471
      %v1446 = vunpack.c.l.b16 %v472
      %v1447 = vunpack.c.h.b16 %v472
      %v1448 = vunpack.c.l.b16 %v473
      %v1449 = vunpack.c.h.b16 %v473
      %v1450 = vunpack.c.l.b16 %v474
      %v1451 = vunpack.c.h.b16 %v474
      %v1452 = vunpack.c.l.b16 %v475
      %v1453 = vunpack.c.h.b16 %v475
      %v1454 = vunpack.c.l.b16 %v476
      %v1455 = vunpack.c.h.b16 %v476
      %v1456 = vunpack.c.l.b16 %v477
      %v1457 = vunpack.c.h.b16 %v477
      %v1458 = vunpack.c.l.b16 %v478
      %v1459 = vunpack.c.h.b16 %v478
      %v1460 = vunpack.c.l.b16 %v479
      %v1461 = vunpack.c.h.b16 %v479
      %v1462 = vunpack.c.l.b16 %v480
      %v1463 = vunpack.c.h.b16 %v480
      %v1464 = vunpack.c.l.b16 %v481
      %v1465 = vunpack.c.h.b16 %v481
      %v1466 = vunpack.c.l.b16 %v482
      %v1467 = vunpack.c.h.b16 %v482
      %v1468 = vunpack.c.l.b16 %v483
      %v1469 = vunpack.c.h.b16 %v483
      %v1470 = vunpack.c.l.b16 %v484
      %v1471 = vunpack.c.h.b16 %v484
      %v1472 = vunpack.c.l.b16 %v485
      %v1473 = vunpack.c.h.b16 %v485
      %v1474 = vunpack.c.l.b16 %v486
      %v1475 = vunpack.c.h.b16 %v486
      %v1476 = vunpack.c.l.b16 %v487
      %v1477 = vunpack.c.h.b16 %v487
      %v1478 = vunpack.c.l.b16 %v488
      %v1479 = vunpack.c.h.b16 %v488
      %v1480 = vunpack.c.l.b16 %v489
      %v1481 = vunpack.c.h.b16 %v489
      %v1482 = vpack.c.b16 %v852, %v842
      %v1483 = vpack.c.b16 %v853, %v843
      %v1484 = vpack.c.b16 %v854, %v844
      %v1485 = vpack.c.b16 %v855, %v845
      %v1486 = vpack.c.b16 %v856, %v846
      %v1487 = vpack.c.b16 %v857, %v847
      %v1488 = vpack.c.b16 %v858, %v848
      %v1489 = vpack.c.b16 %v859, %v849
      %v1490 = vpack.c.b16 %v860, %v850
      %v1491 = vpack.c.b16 %v861, %v851
      %v1492 = vpack.c.b16 %v872, %v862
      %v1493 = vpack.c.b16 %v873, %v863
      %v1494 = vpack.c.b16 %v874, %v864
      %v1495 = vpack.c.b16 %v875, %v865
      %v1496 = vpack.c.b16 %v876, %v866
      %v1497 = vpack.c.b16 %v877, %v867
      %v1498 = vpack.c.b16 %v878, %v868
      %v1499 = vpack.c.b16 %v879, %v869
      %v1500 = vpack.c.b16 %v880, %v870
      %v1501 = vpack.c.b16 %v881, %v871
      %v1502 = vpack.c.b16 %v892, %v882
      %v1503 = vpack.c.b16 %v893, %v883
      %v1504 = vpack.c.b16 %v894, %v884
      %v1505 = vpack.c.b16 %v895, %v885
      %v1506 = vpack.c.b16 %v896, %v886
      %v1507 = vpack.c.b16 %v897, %v887
      %v1508 = vpack.c.b16 %v898, %v888
      %v1509 = vpack.c.b16 %v899, %v889
      %v1510 = vpack.c.b16 %v900, %v890
      %v1511 = vpack.c.b16 %v901, %v891
      %v1512 = vpack.c.b16 %v912, %v902
      %v1513 = vpack.c.b16 %v913, %v903
      %v1514 = vpack.c.b16 %v914, %v904
      %v1515 = vpack.c.b16 %v915, %v905
      %v1516 = vpack.c.b16 %v916, %v906
      %v1517 = vpack.c.b16 %v917, %v907
      %v1518 = vpack.c.b16 %v918, %v908
      %v1519 = vpack.c.b16 %v919, %v909
      %v1520 = vpack.c.b16 %v920, %v910
      %v1521 = vpack.c.b16 %v921, %v911
      %v1522 = vpack.c.b16 %v932, %v922
      %v1523 = vpack.c.b16 %v933, %v923
      %v1524 = vpack.c.b16 %v934, %v924
      %v1525 = vpack.c.b16 %v935, %v925
      %v1526 = vpack.c.b16 %v936, %v926
      %v1527 = vpack.c.b16 %v937, %v927
      %v1528 = vpack.c.b16 %v938, %v928
      %v1529 = vpack.c.b16 %v939, %v929
      %v1530 = vpack.c.b16 %v940, %v930
      %v1531 = vpack.c.b16 %v941, %v931
      %v1532 = vpack.c.b16 %v952, %v942
      %v1533 = vpack.c.b16 %v953, %v943
      %v1534 = vpack.c.b16 %v954, %v944
      %v1535 = vpack.c.b16 %v955, %v945
      %v1536 = vpack.c.b16 %v956, %v946
      %v1537 = vpack.c.b16 %v957, %v947
      %v1538 = vpack.c.b16 %v958, %v948
      %v1539 = vpack.c.b16 %v959, %v949
      %v1540 = vpack.c.b16 %v960, %v950
      %v1541 = vpack.c.b16 %v961, %v951
      %v1542 = vpack.c.b16 %v972, %v962
      %v1543 = vpack.c.b16 %v973, %v963
      %v1544 = vpack.c.b16 %v974, %v964
      %v1545 = vpack.c.b16 %v975, %v965
      %v1546 = vpack.c.b16 %v976, %v966
      %v1547 = vpack.c.b16 %v977, %v967
      %v1548 = vpack.c.b16 %v978, %v968
      %v1549 = vpack.c.b16 %v979, %v969
      %v1550 = vpack.c.b16 %v980, %v970
      %v1551 = vpack.c.b16 %v981, %v971
      %v1552 = vpack.c.b16 %v992, %v982
      %v1553 = vpack.c.b16 %v993, %v983
      %v1554 = vpack.c.b16 %v994, %v984
      %v1555 = vpack.c.b16 %v995, %v985
      %v1556 = vpack.c.b16 %v996, %v986
      %v1557 = vpack.c.b16 %v997, %v987
      %v1558 = vpack.c.b16 %v998, %v988
      %v1559 = vpack.c.b16 %v999, %v989
      %v1560 = vpack.c.b16 %v1000, %v990
      %v1561 = vpack.c.b16 %v1001, %v991
      %v1562 = vpack.c.b16 %v1012, %v1002
      %v1563 = vpack.c.b16 %v1013, %v1003
      %v1564 = vpack.c.b16 %v1014, %v1004
      %v1565 = vpack.c.b16 %v1015, %v1005
      %v1566 = vpack.c.b16 %v1016, %v1006
      %v1567 = vpack.c.b16 %v1017, %v1007
      %v1568 = vpack.c.b16 %v1018, %v1008
      %v1569 = vpack.c.b16 %v1019, %v1009
      %v1570 = vpack.c.b16 %v1020, %v1010
      %v1571 = vpack.c.b16 %v1021, %v1011
      %v1572 = vpack.c.b16 %v1032, %v1022
      %v1573 = vpack.c.b16 %v1033, %v1023
      %v1574 = vpack.c.b16 %v1034, %v1024
      %v1575 = vpack.c.b16 %v1035, %v1025
      %v1576 = vpack.c.b16 %v1036, %v1026
      %v1577 = vpack.c.b16 %v1037, %v1027
      %v1578 = vpack.c.b16 %v1038, %v1028
      %v1579 = vpack.c.b16 %v1039, %v1029
      %v1580 = vpack.c.b16 %v1040, %v1030
      %v1581 = vpack.c.b16 %v1041, %v1031
      %v1582 = vpack.c.b16 %v1052, %v1042
      %v1583 = vpack.c.b16 %v1053, %v1043
      %v1584 = vpack.c.b16 %v1054, %v1044
      %v1585 = vpack.c.b16 %v1055, %v1045
      %v1586 = vpack.c.b16 %v1056, %v1046
      %v1587 = vpack.c.b16 %v1057, %v1047
      %v1588 = vpack.c.b16 %v1058, %v1048
      %v1589 = vpack.c.b16 %v1059, %v1049
      %v1590 = vpack.c.b16 %v1060, %v1050
      %v1591 = vpack.c.b16 %v1061, %v1051
      %v1592 = vpack.c.b16 %v1072, %v1062
      %v1593 = vpack.c.b16 %v1073, %v1063
      %v1594 = vpack.c.b16 %v1074, %v1064
      %v1595 = vpack.c.b16 %v1075, %v1065
      %v1596 = vpack.c.b16 %v1076, %v1066
      %v1597 = vpack.c.b16 %v1077, %v1067
      %v1598 = vpack.c.b16 %v1078, %v1068
      %v1599 = vpack.c.b16 %v1079, %v1069
      %v1600 = vpack.c.b16 %v1080, %v1070
      %v1601 = vpack.c.b16 %v1081, %v1071
      %v1602 = vpack.c.b16 %v1092, %v1082
      %v1603 = vpack.c.b16 %v1093, %v1083
      %v1604 = vpack.c.b16 %v1094, %v1084
      %v1605 = vpack.c.b16 %v1095, %v1085
      %v1606 = vpack.c.b16 %v1096, %v1086
      %v1607 = vpack.c.b16 %v1097, %v1087
      %v1608 = vpack.c.b16 %v1098, %v1088
      %v1609 = vpack.c.b16 %v1099, %v1089
      %v1610 = vpack.c.b16 %v1100, %v1090
      %v1611 = vpack.c.b16 %v1101, %v1091
      %v1612 = vpack.c.b16 %v1112, %v1102
      %v1613 = vpack.c.b16 %v1113, %v1103
      %v1614 = vpack.c.b16 %v1114, %v1104
      %v1615 = vpack.c.b16 %v1115, %v1105
      %v1616 = vpack.c.b16 %v1116, %v1106
      %v1617 = vpack.c.b16 %v1117, %v1107
      %v1618 = vpack.c.b16 %v1118, %v1108
      %v1619 = vpack.c.b16 %v1119, %v1109
      %v1620 = vpack.c.b16 %v1120, %v1110
      %v1621 = vpack.c.b16 %v1121, %v1111
      %v1622 = vpack.c.b16 %v1132, %v1122
      %v1623 = vpack.c.b16 %v1133, %v1123
      %v1624 = vpack.c.b16 %v1134, %v1124
      %v1625 = vpack.c.b16 %v1135, %v1125
      %v1626 = vpack.c.b16 %v1136, %v1126
      %v1627 = vpack.c.b16 %v1137, %v1127
      %v1628 = vpack.c.b16 %v1138, %v1128
      %v1629 = vpack.c.b16 %v1139, %v1129
      %v1630 = vpack.c.b16 %v1140, %v1130
      %v1631 = vpack.c.b16 %v1141, %v1131
      %v1632 = vpack.c.b16 %v1152, %v1142
      %v1633 = vpack.c.b16 %v1153, %v1143
      %v1634 = vpack.c.b16 %v1154, %v1144
      %v1635 = vpack.c.b16 %v1155, %v1145
      %v1636 = vpack.c.b16 %v1156, %v1146
      %v1637 = vpack.c.b16 %v1157, %v1147
      %v1638 = vpack.c.b16 %v1158, %v1148
      %v1639 = vpack.c.b16 %v1159, %v1149
      %v1640 = vpack.c.b16 %v1160, %v1150
      %v1641 = vpack.c.b16 %v1161, %v1151
      %v1642 = vpack.c.b16 %v1172, %v1162
      %v1643 = vpack.c.b16 %v1173, %v1163
      %v1644 = vpack.c.b16 %v1174, %v1164
      %v1645 = vpack.c.b16 %v1175, %v1165
      %v1646 = vpack.c.b16 %v1176, %v1166
      %v1647 = vpack.c.b16 %v1177, %v1167
      %v1648 = vpack.c.b16 %v1178, %v1168
      %v1649 = vpack.c.b16 %v1179, %v1169
      %v1650 = vpack.c.b16 %v1180, %v1170
      %v1651 = vpack.c.b16 %v1181, %v1171
      %v1652 = vpack.c.b16 %v1192, %v1182
      %v1653 = vpack.c.b16 %v1193, %v1183
      %v1654 = vpack.c.b16 %v1194, %v1184
      %v1655 = vpack.c.b16 %v1195, %v1185
      %v1656 = vpack.c.b16 %v1196, %v1186
      %v1657 = vpack.c.b16 %v1197, %v1187
      %v1658 = vpack.c.b16 %v1198, %v1188
      %v1659 = vpack.c.b16 %v1199, %v1189
      %v1660 = vpack.c.b16 %v1200, %v1190
      %v1661 = vpack.c.b16 %v1201, %v1191
      %v1662 = vpack.c.b16 %v1212, %v1202
      %v1663 = vpack.c.b16 %v1213, %v1203
      %v1664 = vpack.c.b16 %v1214, %v1204
      %v1665 = vpack.c.b16 %v1215, %v1205
      %v1666 = vpack.c.b16 %v1216, %v1206
      %v1667 = vpack.c.b16 %v1217, %v1207
      %v1668 = vpack.c.b16 %v1218, %v1208
      %v1669 = vpack.c.b16 %v1219, %v1209
      %v1670 = vpack.c.b16 %v1220, %v1210
      %v1671 = vpack.c.b16 %v1221, %v1211
      %v1672 = vpack.c.b16 %v1232, %v1222
      %v1673 = vpack.c.b16 %v1233, %v1223
      %v1674 = vpack.c.b16 %v1234, %v1224
      %v1675 = vpack.c.b16 %v1235, %v1225
      %v1676 = vpack.c.b16 %v1236, %v1226
      %v1677 = vpack.c.b16 %v1237, %v1227
      %v1678 = vpack.c.b16 %v1238, %v1228
      %v1679 = vpack.c.b16 %v1239, %v1229
      %v1680 = vpack.c.b16 %v1240, %v1230
      %v1681 = vpack.c.b16 %v1241, %v1231
      %v1682 = vpack.c.b16 %v1252, %v1242
      %v1683 = vpack.c.b16 %v1253, %v1243
      %v1684 = vpack.c.b16 %v1254, %v1244
      %v1685 = vpack.c.b16 %v1255, %v1245
      %v1686 = vpack.c.b16 %v1256, %v1246
      %v1687 = vpack.c.b16 %v1257, %v1247
      %v1688 = vpack.c.b16 %v1258, %v1248
      %v1689 = vpack.c.b16 %v1259, %v1249
      %v1690 = vpack.c.b16 %v1260, %v1250
      %v1691 = vpack.c.b16 %v1261, %v1251
      %v1692 = vpack.c.b16 %v1272, %v1262
      %v1693 = vpack.c.b16 %v1273, %v1263
      %v1694 = vpack.c.b16 %v1274, %v1264
      %v1695 = vpack.c.b16 %v1275, %v1265
      %v1696 = vpack.c.b16 %v1276, %v1266
      %v1697 = vpack.c.b16 %v1277, %v1267
      %v1698 = vpack.c.b16 %v1278, %v1268
      %v1699 = vpack.c.b16 %v1279, %v1269
      %v1700 = vpack.c.b16 %v1280, %v1270
      %v1701 = vpack.c.b16 %v1281, %v1271
      %v1702 = vpack.c.b16 %v1292, %v1282
      %v1703 = vpack.c.b16 %v1293, %v1283
      %v1704 = vpack.c.b16 %v1294, %v1284
      %v1705 = vpack.c.b16 %v1295, %v1285
      %v1706 = vpack.c.b16 %v1296, %v1286
      %v1707 = vpack.c.b16 %v1297, %v1287
      %v1708 = vpack.c.b16 %v1298, %v1288
      %v1709 = vpack.c.b16 %v1299, %v1289
      %v1710 = vpack.c.b16 %v1300, %v1290
      %v1711 = vpack.c.b16 %v1301, %v1291
      %v1712 = vpack.c.b16 %v1312, %v1302
      %v1713 = vpack.c.b16 %v1313, %v1303
      %v1714 = vpack.c.b16 %v1314, %v1304
      %v1715 = vpack.c.b16 %v1315, %v1305
      %v1716 = vpack.c.b16 %v1316, %v1306
      %v1717 = vpack.c.b16 %v1317, %v1307
      %v1718 = vpack.c.b16 %v1318, %v1308
      %v1719 = vpack.c.b16 %v1319, %v1309
      %v1720 = vpack.c.b16 %v1320, %v1310
      %v1721 = vpack.c.b16 %v1321, %v1311
      %v1722 = vpack.c.b16 %v1332, %v1322
      %v1723 = vpack.c.b16 %v1333, %v1323
      %v1724 = vpack.c.b16 %v1334, %v1324
      %v1725 = vpack.c.b16 %v1335, %v1325
      %v1726 = vpack.c.b16 %v1336, %v1326
      %v1727 = vpack.c.b16 %v1337, %v1327
      %v1728 = vpack.c.b16 %v1338, %v1328
      %v1729 = vpack.c.b16 %v1339, %v1329
      %v1730 = vpack.c.b16 %v1340, %v1330
      %v1731 = vpack.c.b16 %v1341, %v1331
      %v1732 = vpack.c.b16 %v1352, %v1342
      %v1733 = vpack.c.b16 %v1353, %v1343
      %v1734 = vpack.c.b16 %v1354, %v1344
      %v1735 = vpack.c.b16 %v1355, %v1345
      %v1736 = vpack.c.b16 %v1356, %v1346
      %v1737 = vpack.c.b16 %v1357, %v1347
      %v1738 = vpack.c.b16 %v1358, %v1348
      %v1739 = vpack.c.b16 %v1359, %v1349
      %v1740 = vpack.c.b16 %v1360, %v1350
      %v1741 = vpack.c.b16 %v1361, %v1351
      %v1742 = vpack.c.b16 %v1372, %v1362
      %v1743 = vpack.c.b16 %v1373, %v1363
      %v1744 = vpack.c.b16 %v1374, %v1364
      %v1745 = vpack.c.b16 %v1375, %v1365
      %v1746 = vpack.c.b16 %v1376, %v1366
      %v1747 = vpack.c.b16 %v1377, %v1367
      %v1748 = vpack.c.b16 %v1378, %v1368
      %v1749 = vpack.c.b16 %v1379, %v1369
      %v1750 = vpack.c.b16 %v1380, %v1370
      %v1751 = vpack.c.b16 %v1381, %v1371
      %v1752 = vpack.c.b16 %v1392, %v1382
      %v1753 = vpack.c.b16 %v1393, %v1383
      %v1754 = vpack.c.b16 %v1394, %v1384
      %v1755 = vpack.c.b16 %v1395, %v1385
      %v1756 = vpack.c.b16 %v1396, %v1386
      %v1757 = vpack.c.b16 %v1397, %v1387
      %v1758 = vpack.c.b16 %v1398, %v1388
      %v1759 = vpack.c.b16 %v1399, %v1389
      %v1760 = vpack.c.b16 %v1400, %v1390
      %v1761 = vpack.c.b16 %v1401, %v1391
      %v1762 = vpack.c.b16 %v1412, %v1402
      %v1763 = vpack.c.b16 %v1413, %v1403
      %v1764 = vpack.c.b16 %v1414, %v1404
      %v1765 = vpack.c.b16 %v1415, %v1405
      %v1766 = vpack.c.b16 %v1416, %v1406
      %v1767 = vpack.c.b16 %v1417, %v1407
      %v1768 = vpack.c.b16 %v1418, %v1408
      %v1769 = vpack.c.b16 %v1419, %v1409
      %v1770 = vpack.c.b16 %v1420, %v1410
      %v1771 = vpack.c.b16 %v1421, %v1411
      %v1772 = vpack.c.b16 %v1432, %v1422
      %v1773 = vpack.c.b16 %v1433, %v1423
      %v1774 = vpack.c.b16 %v1434, %v1424
      %v1775 = vpack.c.b16 %v1435, %v1425
      %v1776 = vpack.c.b16 %v1436, %v1426
      %v1777 = vpack.c.b16 %v1437, %v1427
      %v1778 = vpack.c.b16 %v1438, %v1428
      %v1779 = vpack.c.b16 %v1439, %v1429
      %v1780 = vpack.c.b16 %v1440, %v1430
      %v1781 = vpack.c.b16 %v1441, %v1431
      %v1782 = vpack.c.b16 %v1452, %v1442
      %v1783 = vpack.c.b16 %v1453, %v1443
      %v1784 = vpack.c.b16 %v1454, %v1444
      %v1785 = vpack.c.b16 %v1455, %v1445
      %v1786 = vpack.c.b16 %v1456, %v1446
      %v1787 = vpack.c.b16 %v1457, %v1447
      %v1788 = vpack.c.b16 %v1458, %v1448
      %v1789 = vpack.c.b16 %v1459, %v1449
      %v1790 = vpack.c.b16 %v1460, %v1450
      %v1791 = vpack.c.b16 %v1461, %v1451
      %v1792 = vpack.c.b16 %v1472, %v1462
      %v1793 = vpack.c.b16 %v1473, %v1463
      %v1794 = vpack.c.b16 %v1474, %v1464
      %v1795 = vpack.c.b16 %v1475, %v1465
      %v1796 = vpack.c.b16 %v1476, %v1466
      %v1797 = vpack.c.b16 %v1477, %v1467
      %v1798 = vpack.c.b16 %v1478, %v1468
      %v1799 = vpack.c.b16 %v1479, %v1469
      %v1800 = vpack.c.b16 %v1480, %v1470
      %v1801 = vpack.c.b16 %v1481, %v1471
      %2122 = vmatprep.subr.bf16.mxu0 %v1553
      %2123 = vmatpush1.bf16.msra.mxu0 %v1552
      %2124 = vmatprep.subr.bf16.mxu0 %v1543
      %2125 = vmatpush1.bf16.msra.mxu0 %v1542
      %2126 = vmatprep.subr.bf16.mxu0 %v1533
      %2127 = vmatpush1.bf16.msra.mxu0 %v1532
      %2128 = vmatprep.subr.bf16.mxu0 %v1523
      %2129 = vmatpush1.bf16.msra.mxu0 %v1522
      %2130 = vmatprep.subr.bf16.mxu0 %v1513
      %2131 = vmatpush1.bf16.msra.mxu0 %v1512
      %2132 = vmatprep.subr.bf16.mxu0 %v1503
      %2133 = vmatpush1.bf16.msra.mxu0 %v1502
      %2134 = vmatprep.subr.bf16.mxu0 %v1493
      %2135 = vmatpush1.bf16.msra.mxu0 %v1492
      %2136 = vmatprep.subr.bf16.mxu0 %v1483
      %2137 = vmatpush1.bf16.msra.mxu0 %v1482
      %2138 = vmatprep.subr.bf16.mxu0 %v1633
      %2139 = vmatpush2.bf16.msra.mxu0 %v1632
      %2140 = vmatprep.subr.bf16.mxu0 %v1623
      %2141 = vmatpush2.bf16.msra.mxu0 %v1622
      %2142 = vmatprep.subr.bf16.mxu0 %v1613
      %2143 = vmatpush2.bf16.msra.mxu0 %v1612
      %2144 = vmatprep.subr.bf16.mxu0 %v1603
      %2145 = vmatpush2.bf16.msra.mxu0 %v1602
      %2146 = vmatprep.subr.bf16.mxu0 %v1593
      %2147 = vmatpush2.bf16.msra.mxu0 %v1592
      %2148 = vmatprep.subr.bf16.mxu0 %v1583
      %2149 = vmatpush2.bf16.msra.mxu0 %v1582
      %2150 = vmatprep.subr.bf16.mxu0 %v1573
      %2151 = vmatpush2.bf16.msra.mxu0 %v1572
      %2152 = vmatprep.subr.bf16.mxu0 %v1563
      %2153 = vmatpush2.bf16.msra.mxu0 %v1562
      %2154 = vmatprep.mubr.bf16.mxu0 %v515
      %2155 = vmatmul.mubr.bf16.gmra.mxu0 %v508
      %v2156 = vpop.f32.mrf.mxu0
      %v2157 = vadd.f32 %v492, %v2156
      %v2158 = vpop.f32.mrf.mxu0
      %v2159 = vadd.f32 %v492, %v2158
      %v2160 = vpop.f32.mrf.mxu0
      %v2161 = vpop.f32.mrf.mxu0
      %2162 = vdwg.mxu0
      %2163 = vmatprep.subr.bf16.mxu0 %v1713
      %2164 = vmatpush1.bf16.msra.mxu0 %v1712
      %2165 = vmatprep.subr.bf16.mxu0 %v1703
      %2166 = vmatpush1.bf16.msra.mxu0 %v1702
      %2167 = vmatprep.subr.bf16.mxu0 %v1693
      %2168 = vmatpush1.bf16.msra.mxu0 %v1692
      %2169 = vmatprep.subr.bf16.mxu0 %v1683
      %2170 = vmatpush1.bf16.msra.mxu0 %v1682
      %2171 = vmatprep.subr.bf16.mxu0 %v1673
      %2172 = vmatpush1.bf16.msra.mxu0 %v1672
      %2173 = vmatprep.subr.bf16.mxu0 %v1663
      %2174 = vmatpush1.bf16.msra.mxu0 %v1662
      %2175 = vmatprep.subr.bf16.mxu0 %v1653
      %2176 = vmatpush1.bf16.msra.mxu0 %v1652
      %2177 = vmatprep.subr.bf16.mxu0 %v1643
      %2178 = vmatpush1.bf16.msra.mxu0 %v1642
      %2179 = vmatprep.subr.bf16.mxu0 %v1793
      %2180 = vmatpush2.bf16.msra.mxu0 %v1792
      %2181 = vmatprep.subr.bf16.mxu0 %v1783
      %2182 = vmatpush2.bf16.msra.mxu0 %v1782
      %2183 = vmatprep.subr.bf16.mxu0 %v1773
      %2184 = vmatpush2.bf16.msra.mxu0 %v1772
      %2185 = vmatprep.subr.bf16.mxu0 %v1763
      %2186 = vmatpush2.bf16.msra.mxu0 %v1762
      %2187 = vmatprep.subr.bf16.mxu0 %v1753
      %2188 = vmatpush2.bf16.msra.mxu0 %v1752
      %2189 = vmatprep.subr.bf16.mxu0 %v1743
      %2190 = vmatpush2.bf16.msra.mxu0 %v1742
      %2191 = vmatprep.subr.bf16.mxu0 %v1733
      %2192 = vmatpush2.bf16.msra.mxu0 %v1732
      %2193 = vmatprep.subr.bf16.mxu0 %v1723
      %2194 = vmatpush2.bf16.msra.mxu0 %v1722
      %2195 = vmatprep.mubr.bf16.mxu0 %v517
      %2196 = vmatmul.mubr.bf16.gmra.mxu0 %v516
      %v2197 = vpop.f32.mrf.mxu0
      %v2198 = vadd.f32 %v2157, %v2197
      %v2199 = vpop.f32.mrf.mxu0
      %v2200 = vadd.f32 %v2159, %v2199
      %v2201 = vpop.f32.mrf.mxu0
      %v2202 = vpop.f32.mrf.mxu0
      %2203 = vdwg.mxu0
      %2204 = vmatprep.subr.bf16.mxu0 %v1555
      %2205 = vmatpush1.bf16.msra.mxu0 %v1554
      %2206 = vmatprep.subr.bf16.mxu0 %v1545
      %2207 = vmatpush1.bf16.msra.mxu0 %v1544
      %2208 = vmatprep.subr.bf16.mxu0 %v1535
      %2209 = vmatpush1.bf16.msra.mxu0 %v1534
      %2210 = vmatprep.subr.bf16.mxu0 %v1525
      %2211 = vmatpush1.bf16.msra.mxu0 %v1524
      %2212 = vmatprep.subr.bf16.mxu0 %v1515
      %2213 = vmatpush1.bf16.msra.mxu0 %v1514
      %2214 = vmatprep.subr.bf16.mxu0 %v1505
      %2215 = vmatpush1.bf16.msra.mxu0 %v1504
      %2216 = vmatprep.subr.bf16.mxu0 %v1495
      %2217 = vmatpush1.bf16.msra.mxu0 %v1494
      %2218 = vmatprep.subr.bf16.mxu0 %v1485
      %2219 = vmatpush1.bf16.msra.mxu0 %v1484
      %2220 = vmatprep.subr.bf16.mxu0 %v1635
      %2221 = vmatpush2.bf16.msra.mxu0 %v1634
      %2222 = vmatprep.subr.bf16.mxu0 %v1625
      %2223 = vmatpush2.bf16.msra.mxu0 %v1624
      %2224 = vmatprep.subr.bf16.mxu0 %v1615
      %2225 = vmatpush2.bf16.msra.mxu0 %v1614
      %2226 = vmatprep.subr.bf16.mxu0 %v1605
      %2227 = vmatpush2.bf16.msra.mxu0 %v1604
      %2228 = vmatprep.subr.bf16.mxu0 %v1595
      %2229 = vmatpush2.bf16.msra.mxu0 %v1594
      %2230 = vmatprep.subr.bf16.mxu0 %v1585
      %2231 = vmatpush2.bf16.msra.mxu0 %v1584
      %2232 = vmatprep.subr.bf16.mxu0 %v1575
      %2233 = vmatpush2.bf16.msra.mxu0 %v1574
      %2234 = vmatprep.subr.bf16.mxu0 %v1565
      %2235 = vmatpush2.bf16.msra.mxu0 %v1564
      %2236 = vmatprep.mubr.bf16.mxu0 %v515
      %2237 = vmatmul.mubr.bf16.gmra.mxu0 %v508
      %v2238 = vpop.f32.mrf.mxu0
      %v2239 = vadd.f32 %v492, %v2238
      %v2240 = vpop.f32.mrf.mxu0
      %v2241 = vadd.f32 %v492, %v2240
      %v2242 = vpop.f32.mrf.mxu0
      %v2243 = vpop.f32.mrf.mxu0
      %2244 = vdwg.mxu0
      %2245 = vmatprep.subr.bf16.mxu0 %v1715
      %2246 = vmatpush1.bf16.msra.mxu0 %v1714
      %2247 = vmatprep.subr.bf16.mxu0 %v1705
      %2248 = vmatpush1.bf16.msra.mxu0 %v1704
      %2249 = vmatprep.subr.bf16.mxu0 %v1695
      %2250 = vmatpush1.bf16.msra.mxu0 %v1694
      %2251 = vmatprep.subr.bf16.mxu0 %v1685
      %2252 = vmatpush1.bf16.msra.mxu0 %v1684
      %2253 = vmatprep.subr.bf16.mxu0 %v1675
      %2254 = vmatpush1.bf16.msra.mxu0 %v1674
      %2255 = vmatprep.subr.bf16.mxu0 %v1665
      %2256 = vmatpush1.bf16.msra.mxu0 %v1664
      %2257 = vmatprep.subr.bf16.mxu0 %v1655
      %2258 = vmatpush1.bf16.msra.mxu0 %v1654
      %2259 = vmatprep.subr.bf16.mxu0 %v1645
      %2260 = vmatpush1.bf16.msra.mxu0 %v1644
      %2261 = vmatprep.subr.bf16.mxu0 %v1795
      %2262 = vmatpush2.bf16.msra.mxu0 %v1794
      %2263 = vmatprep.subr.bf16.mxu0 %v1785
      %2264 = vmatpush2.bf16.msra.mxu0 %v1784
      %2265 = vmatprep.subr.bf16.mxu0 %v1775
      %2266 = vmatpush2.bf16.msra.mxu0 %v1774
      %2267 = vmatprep.subr.bf16.mxu0 %v1765
      %2268 = vmatpush2.bf16.msra.mxu0 %v1764
      %2269 = vmatprep.subr.bf16.mxu0 %v1755
      %2270 = vmatpush2.bf16.msra.mxu0 %v1754
      %2271 = vmatprep.subr.bf16.mxu0 %v1745
      %2272 = vmatpush2.bf16.msra.mxu0 %v1744
      %2273 = vmatprep.subr.bf16.mxu0 %v1735
      %2274 = vmatpush2.bf16.msra.mxu0 %v1734
      %2275 = vmatprep.subr.bf16.mxu0 %v1725
      %2276 = vmatpush2.bf16.msra.mxu0 %v1724
      %2277 = vmatprep.mubr.bf16.mxu0 %v517
      %2278 = vmatmul.mubr.bf16.gmra.mxu0 %v516
      %v2279 = vpop.f32.mrf.mxu0
      %v2280 = vadd.f32 %v2239, %v2279
      %v2281 = vpop.f32.mrf.mxu0
      %v2282 = vadd.f32 %v2241, %v2281
      %v2283 = vpop.f32.mrf.mxu0
      %v2284 = vpop.f32.mrf.mxu0
      %2285 = vdwg.mxu0
      %2286 = vmatprep.subr.bf16.mxu0 %v1557
      %2287 = vmatpush1.bf16.msra.mxu0 %v1556
      %2288 = vmatprep.subr.bf16.mxu0 %v1547
      %2289 = vmatpush1.bf16.msra.mxu0 %v1546
      %2290 = vmatprep.subr.bf16.mxu0 %v1537
      %2291 = vmatpush1.bf16.msra.mxu0 %v1536
      %2292 = vmatprep.subr.bf16.mxu0 %v1527
      %2293 = vmatpush1.bf16.msra.mxu0 %v1526
      %2294 = vmatprep.subr.bf16.mxu0 %v1517
      %2295 = vmatpush1.bf16.msra.mxu0 %v1516
      %2296 = vmatprep.subr.bf16.mxu0 %v1507
      %2297 = vmatpush1.bf16.msra.mxu0 %v1506
      %2298 = vmatprep.subr.bf16.mxu0 %v1497
      %2299 = vmatpush1.bf16.msra.mxu0 %v1496
      %2300 = vmatprep.subr.bf16.mxu0 %v1487
      %2301 = vmatpush1.bf16.msra.mxu0 %v1486
      %2302 = vmatprep.subr.bf16.mxu0 %v1637
      %2303 = vmatpush2.bf16.msra.mxu0 %v1636
      %2304 = vmatprep.subr.bf16.mxu0 %v1627
      %2305 = vmatpush2.bf16.msra.mxu0 %v1626
      %2306 = vmatprep.subr.bf16.mxu0 %v1617
      %2307 = vmatpush2.bf16.msra.mxu0 %v1616
      %2308 = vmatprep.subr.bf16.mxu0 %v1607
      %2309 = vmatpush2.bf16.msra.mxu0 %v1606
      %2310 = vmatprep.subr.bf16.mxu0 %v1597
      %2311 = vmatpush2.bf16.msra.mxu0 %v1596
      %2312 = vmatprep.subr.bf16.mxu0 %v1587
      %2313 = vmatpush2.bf16.msra.mxu0 %v1586
      %2314 = vmatprep.subr.bf16.mxu0 %v1577
      %2315 = vmatpush2.bf16.msra.mxu0 %v1576
      %2316 = vmatprep.subr.bf16.mxu0 %v1567
      %2317 = vmatpush2.bf16.msra.mxu0 %v1566
      %2318 = vmatprep.mubr.bf16.mxu0 %v515
      %2319 = vmatmul.mubr.bf16.gmra.mxu0 %v508
      %v2320 = vpop.f32.mrf.mxu0
      %v2321 = vadd.f32 %v492, %v2320
      %v2322 = vpop.f32.mrf.mxu0
      %v2323 = vadd.f32 %v492, %v2322
      %v2324 = vpop.f32.mrf.mxu0
      %v2325 = vpop.f32.mrf.mxu0
      %2326 = vdwg.mxu0
      %2327 = vmatprep.subr.bf16.mxu0 %v1717
      %2328 = vmatpush1.bf16.msra.mxu0 %v1716
      %2329 = vmatprep.subr.bf16.mxu0 %v1707
      %2330 = vmatpush1.bf16.msra.mxu0 %v1706
      %2331 = vmatprep.subr.bf16.mxu0 %v1697
      %2332 = vmatpush1.bf16.msra.mxu0 %v1696
      %2333 = vmatprep.subr.bf16.mxu0 %v1687
      %2334 = vmatpush1.bf16.msra.mxu0 %v1686
      %2335 = vmatprep.subr.bf16.mxu0 %v1677
      %2336 = vmatpush1.bf16.msra.mxu0 %v1676
      %2337 = vmatprep.subr.bf16.mxu0 %v1667
      %2338 = vmatpush1.bf16.msra.mxu0 %v1666
      %2339 = vmatprep.subr.bf16.mxu0 %v1657
      %2340 = vmatpush1.bf16.msra.mxu0 %v1656
      %2341 = vmatprep.subr.bf16.mxu0 %v1647
      %2342 = vmatpush1.bf16.msra.mxu0 %v1646
      %2343 = vmatprep.subr.bf16.mxu0 %v1797
      %2344 = vmatpush2.bf16.msra.mxu0 %v1796
      %2345 = vmatprep.subr.bf16.mxu0 %v1787
      %2346 = vmatpush2.bf16.msra.mxu0 %v1786
      %2347 = vmatprep.subr.bf16.mxu0 %v1777
      %2348 = vmatpush2.bf16.msra.mxu0 %v1776
      %2349 = vmatprep.subr.bf16.mxu0 %v1767
      %2350 = vmatpush2.bf16.msra.mxu0 %v1766
      %2351 = vmatprep.subr.bf16.mxu0 %v1757
      %2352 = vmatpush2.bf16.msra.mxu0 %v1756
      %2353 = vmatprep.subr.bf16.mxu0 %v1747
      %2354 = vmatpush2.bf16.msra.mxu0 %v1746
      %2355 = vmatprep.subr.bf16.mxu0 %v1737
      %2356 = vmatpush2.bf16.msra.mxu0 %v1736
      %2357 = vmatprep.subr.bf16.mxu0 %v1727
      %2358 = vmatpush2.bf16.msra.mxu0 %v1726
      %2359 = vmatprep.mubr.bf16.mxu0 %v517
      %2360 = vmatmul.mubr.bf16.gmra.mxu0 %v516
      %v2361 = vpop.f32.mrf.mxu0
      %v2362 = vadd.f32 %v2321, %v2361
      %v2363 = vpop.f32.mrf.mxu0
      %v2364 = vadd.f32 %v2323, %v2363
      %v2365 = vpop.f32.mrf.mxu0
      %v2366 = vpop.f32.mrf.mxu0
      %2367 = vdwg.mxu0
      %2368 = vmatprep.subr.bf16.mxu0 %v1559
      %2369 = vmatpush1.bf16.msra.mxu0 %v1558
      %2370 = vmatprep.subr.bf16.mxu0 %v1549
      %2371 = vmatpush1.bf16.msra.mxu0 %v1548
      %2372 = vmatprep.subr.bf16.mxu0 %v1539
      %2373 = vmatpush1.bf16.msra.mxu0 %v1538
      %2374 = vmatprep.subr.bf16.mxu0 %v1529
      %2375 = vmatpush1.bf16.msra.mxu0 %v1528
      %2376 = vmatprep.subr.bf16.mxu0 %v1519
      %2377 = vmatpush1.bf16.msra.mxu0 %v1518
      %2378 = vmatprep.subr.bf16.mxu0 %v1509
      %2379 = vmatpush1.bf16.msra.mxu0 %v1508
      %2380 = vmatprep.subr.bf16.mxu0 %v1499
      %2381 = vmatpush1.bf16.msra.mxu0 %v1498
      %2382 = vmatprep.subr.bf16.mxu0 %v1489
      %2383 = vmatpush1.bf16.msra.mxu0 %v1488
      %2384 = vmatprep.subr.bf16.mxu0 %v1639
      %2385 = vmatpush2.bf16.msra.mxu0 %v1638
      %2386 = vmatprep.subr.bf16.mxu0 %v1629
      %2387 = vmatpush2.bf16.msra.mxu0 %v1628
      %2388 = vmatprep.subr.bf16.mxu0 %v1619
      %2389 = vmatpush2.bf16.msra.mxu0 %v1618
      %2390 = vmatprep.subr.bf16.mxu0 %v1609
      %2391 = vmatpush2.bf16.msra.mxu0 %v1608
      %2392 = vmatprep.subr.bf16.mxu0 %v1599
      %2393 = vmatpush2.bf16.msra.mxu0 %v1598
      %2394 = vmatprep.subr.bf16.mxu0 %v1589
      %2395 = vmatpush2.bf16.msra.mxu0 %v1588
      %2396 = vmatprep.subr.bf16.mxu0 %v1579
      %2397 = vmatpush2.bf16.msra.mxu0 %v1578
      %2398 = vmatprep.subr.bf16.mxu0 %v1569
      %2399 = vmatpush2.bf16.msra.mxu0 %v1568
      %2400 = vmatprep.mubr.bf16.mxu0 %v515
      %2401 = vmatmul.mubr.bf16.gmra.mxu0 %v508
      %v2402 = vpop.f32.mrf.mxu0
      %v2403 = vadd.f32 %v492, %v2402
      %v2404 = vpop.f32.mrf.mxu0
      %v2405 = vadd.f32 %v492, %v2404
      %v2406 = vpop.f32.mrf.mxu0
      %v2407 = vpop.f32.mrf.mxu0
      %2408 = vdwg.mxu0
      %2409 = vmatprep.subr.bf16.mxu0 %v1719
      %2410 = vmatpush1.bf16.msra.mxu0 %v1718
      %2411 = vmatprep.subr.bf16.mxu0 %v1709
      %2412 = vmatpush1.bf16.msra.mxu0 %v1708
      %2413 = vmatprep.subr.bf16.mxu0 %v1699
      %2414 = vmatpush1.bf16.msra.mxu0 %v1698
      %2415 = vmatprep.subr.bf16.mxu0 %v1689
      %2416 = vmatpush1.bf16.msra.mxu0 %v1688
      %2417 = vmatprep.subr.bf16.mxu0 %v1679
      %2418 = vmatpush1.bf16.msra.mxu0 %v1678
      %2419 = vmatprep.subr.bf16.mxu0 %v1669
      %2420 = vmatpush1.bf16.msra.mxu0 %v1668
      %2421 = vmatprep.subr.bf16.mxu0 %v1659
      %2422 = vmatpush1.bf16.msra.mxu0 %v1658
      %2423 = vmatprep.subr.bf16.mxu0 %v1649
      %2424 = vmatpush1.bf16.msra.mxu0 %v1648
      %2425 = vmatprep.subr.bf16.mxu0 %v1799
      %2426 = vmatpush2.bf16.msra.mxu0 %v1798
      %2427 = vmatprep.subr.bf16.mxu0 %v1789
      %2428 = vmatpush2.bf16.msra.mxu0 %v1788
      %2429 = vmatprep.subr.bf16.mxu0 %v1779
      %2430 = vmatpush2.bf16.msra.mxu0 %v1778
      %2431 = vmatprep.subr.bf16.mxu0 %v1769
      %2432 = vmatpush2.bf16.msra.mxu0 %v1768
      %2433 = vmatprep.subr.bf16.mxu0 %v1759
      %2434 = vmatpush2.bf16.msra.mxu0 %v1758
      %2435 = vmatprep.subr.bf16.mxu0 %v1749
      %2436 = vmatpush2.bf16.msra.mxu0 %v1748
      %2437 = vmatprep.subr.bf16.mxu0 %v1739
      %2438 = vmatpush2.bf16.msra.mxu0 %v1738
      %2439 = vmatprep.subr.bf16.mxu0 %v1729
      %2440 = vmatpush2.bf16.msra.mxu0 %v1728
      %2441 = vmatprep.mubr.bf16.mxu0 %v517
      %2442 = vmatmul.mubr.bf16.gmra.mxu0 %v516
      %v2443 = vpop.f32.mrf.mxu0
      %v2444 = vadd.f32 %v2403, %v2443
      %v2445 = vpop.f32.mrf.mxu0
      %v2446 = vadd.f32 %v2405, %v2445
      %v2447 = vpop.f32.mrf.mxu0
      %v2448 = vpop.f32.mrf.mxu0
      %2449 = vdwg.mxu0
      %2450 = vmatprep.subr.bf16.mxu0 %v1561
      %2451 = vmatpush1.bf16.msra.mxu0 %v1560
      %2452 = vmatprep.subr.bf16.mxu0 %v1551
      %2453 = vmatpush1.bf16.msra.mxu0 %v1550
      %2454 = vmatprep.subr.bf16.mxu0 %v1541
      %2455 = vmatpush1.bf16.msra.mxu0 %v1540
      %2456 = vmatprep.subr.bf16.mxu0 %v1531
      %2457 = vmatpush1.bf16.msra.mxu0 %v1530
      %2458 = vmatprep.subr.bf16.mxu0 %v1521
      %2459 = vmatpush1.bf16.msra.mxu0 %v1520
      %2460 = vmatprep.subr.bf16.mxu0 %v1511
      %2461 = vmatpush1.bf16.msra.mxu0 %v1510
      %2462 = vmatprep.subr.bf16.mxu0 %v1501
      %2463 = vmatpush1.bf16.msra.mxu0 %v1500
      %2464 = vmatprep.subr.bf16.mxu0 %v1491
      %2465 = vmatpush1.bf16.msra.mxu0 %v1490
      %2466 = vmatprep.subr.bf16.mxu0 %v1641
      %2467 = vmatpush2.bf16.msra.mxu0 %v1640
      %2468 = vmatprep.subr.bf16.mxu0 %v1631
      %2469 = vmatpush2.bf16.msra.mxu0 %v1630
      %2470 = vmatprep.subr.bf16.mxu0 %v1621
      %2471 = vmatpush2.bf16.msra.mxu0 %v1620
      %2472 = vmatprep.subr.bf16.mxu0 %v1611
      %2473 = vmatpush2.bf16.msra.mxu0 %v1610
      %2474 = vmatprep.subr.bf16.mxu0 %v1601
      %2475 = vmatpush2.bf16.msra.mxu0 %v1600
      %2476 = vmatprep.subr.bf16.mxu0 %v1591
      %2477 = vmatpush2.bf16.msra.mxu0 %v1590
      %2478 = vmatprep.subr.bf16.mxu0 %v1581
      %2479 = vmatpush2.bf16.msra.mxu0 %v1580
      %2480 = vmatprep.subr.bf16.mxu0 %v1571
      %2481 = vmatpush2.bf16.msra.mxu0 %v1570
      %2482 = vmatprep.mubr.bf16.mxu0 %v515
      %2483 = vmatmul.mubr.bf16.gmra.mxu0 %v508
      %v2484 = vpop.f32.mrf.mxu0
      %v2485 = vadd.f32 %v492, %v2484
      %v2486 = vpop.f32.mrf.mxu0
      %v2487 = vadd.f32 %v492, %v2486
      %v2488 = vpop.f32.mrf.mxu0
      %v2489 = vpop.f32.mrf.mxu0
      %2490 = vdwg.mxu0
      %2491 = vmatprep.subr.bf16.mxu0 %v1721
      %2492 = vmatpush1.bf16.msra.mxu0 %v1720
      %2493 = vmatprep.subr.bf16.mxu0 %v1711
      %2494 = vmatpush1.bf16.msra.mxu0 %v1710
      %2495 = vmatprep.subr.bf16.mxu0 %v1701
      %2496 = vmatpush1.bf16.msra.mxu0 %v1700
      %2497 = vmatprep.subr.bf16.mxu0 %v1691
      %2498 = vmatpush1.bf16.msra.mxu0 %v1690
      %2499 = vmatprep.subr.bf16.mxu0 %v1681
      %2500 = vmatpush1.bf16.msra.mxu0 %v1680
      %2501 = vmatprep.subr.bf16.mxu0 %v1671
      %2502 = vmatpush1.bf16.msra.mxu0 %v1670
      %2503 = vmatprep.subr.bf16.mxu0 %v1661
      %2504 = vmatpush1.bf16.msra.mxu0 %v1660
      %2505 = vmatprep.subr.bf16.mxu0 %v1651
      %2506 = vmatpush1.bf16.msra.mxu0 %v1650
      %2507 = vmatprep.subr.bf16.mxu0 %v1801
      %2508 = vmatpush2.bf16.msra.mxu0 %v1800
      %2509 = vmatprep.subr.bf16.mxu0 %v1791
      %2510 = vmatpush2.bf16.msra.mxu0 %v1790
      %2511 = vmatprep.subr.bf16.mxu0 %v1781
      %2512 = vmatpush2.bf16.msra.mxu0 %v1780
      %2513 = vmatprep.subr.bf16.mxu0 %v1771
      %2514 = vmatpush2.bf16.msra.mxu0 %v1770
      %2515 = vmatprep.subr.bf16.mxu0 %v1761
      %2516 = vmatpush2.bf16.msra.mxu0 %v1760
      %2517 = vmatprep.subr.bf16.mxu0 %v1751
      %2518 = vmatpush2.bf16.msra.mxu0 %v1750
      %2519 = vmatprep.subr.bf16.mxu0 %v1741
      %2520 = vmatpush2.bf16.msra.mxu0 %v1740
      %2521 = vmatprep.subr.bf16.mxu0 %v1731
      %2522 = vmatpush2.bf16.msra.mxu0 %v1730
      %2523 = vmatprep.mubr.bf16.mxu0 %v517
      %2524 = vmatmul.mubr.bf16.gmra.mxu0 %v516
      %v2525 = vpop.f32.mrf.mxu0
      %v2526 = vadd.f32 %v2485, %v2525
      %v2527 = vpop.f32.mrf.mxu0
      %v2528 = vadd.f32 %v2487, %v2527
      %v2529 = vpop.f32.mrf.mxu0
      %v2530 = vpop.f32.mrf.mxu0
      %2531 = vdwg.mxu0
      %v2532 = vmax.f32 %v2198, 0.0
      %v2533 = vmax.f32 %v2200, 0.0
      %v2534 = vmax.f32 %v2280, 0.0
      %v2535 = vmax.f32 %v2282, 0.0
      %v2536 = vmax.f32 %v2362, 0.0
      %v2537 = vmax.f32 %v2364, 0.0
      %v2538 = vmax.f32 %v2444, 0.0
      %v2539 = vmax.f32 %v2446, 0.0
      %v2540 = vmax.f32 %v2526, 0.0
      %v2541 = vmax.f32 %v2528, 0.0
      %v2552 = vcombine.low %v2532, %v2533
      %v2553 = vcombine.low %v2534, %v2535
      %v2554 = vcombine.low %v2536, %v2537
      %v2555 = vcombine.low %v2538, %v2539
      %v2557 = vunpack.c.l.s4 1966171168
      %v2558 = vunpack.c.0.s8 %v2557
      %v2559 = vlaneseq
      %v2560 = vshrl.u32 %v2559, 7
      %v2561 = vsub.s32 %v2558, %v2560
      %v2562 = vrot.slane %v2552, %v2561
      %v2564 = vunpack.c.l.s4 1966171168
      %v2565 = vunpack.c.0.s8 %v2564
      %v2566 = vlaneseq
      %v2567 = vshrl.u32 %v2566, 7
      %v2568 = vsub.s32 %v2565, %v2567
      %v2569 = vrot.slane %v2553, %v2568
      %v2571 = vunpack.c.l.s4 1966171168
      %v2572 = vunpack.c.0.s8 %v2571
      %v2573 = vlaneseq
      %v2574 = vshrl.u32 %v2573, 7
      %v2575 = vsub.s32 %v2572, %v2574
      %v2576 = vrot.slane %v2554, %v2575
      %v2578 = vunpack.c.l.s4 1966171168
      %v2579 = vunpack.c.0.s8 %v2578
      %v2580 = vlaneseq
      %v2581 = vshrl.u32 %v2580, 7
      %v2582 = vsub.s32 %v2579, %v2581
      %v2583 = vrot.slane %v2555, %v2582
      %v2584 = vcombine.low %v2562, %v2569
      %v2585 = vcombine.low %v2576, %v2583
      %v2587 = vunpack.c.l.s4 1966171168
      %v2588 = vunpack.c.0.s8 %v2587
      %v2589 = vlaneseq
      %v2590 = vshrl.u32 %v2589, 7
      %v2591 = vsub.s32 %v2588, %v2590
      %v2592 = vrot.slane %v2584, %v2591
      %v2594 = vunpack.c.l.s4 1966171168
      %v2595 = vunpack.c.0.s8 %v2594
      %v2596 = vlaneseq
      %v2597 = vshrl.u32 %v2596, 7
      %v2598 = vsub.s32 %v2595, %v2597
      %v2599 = vrot.slane %v2585, %v2598
      %v2600 = vcombine.low %v2592, %v2599
      %v2601 = vcombine.low %v2540, %v2541
      %v2603 = vunpack.c.l.s4 1966171168
      %v2604 = vunpack.c.0.s8 %v2603
      %v2605 = vlaneseq
      %v2606 = vshrl.u32 %v2605, 7
      %v2607 = vsub.s32 %v2604, %v2606
      %v2608 = vrot.slane %v2601, %v2607
      %v2610 = vunpack.c.l.s4 1966171168
      %v2611 = vunpack.c.0.s8 %v2610
      %v2612 = vlaneseq
      %v2613 = vshrl.u32 %v2612, 7
      %v2614 = vsub.s32 %v2611, %v2613
      %v2615 = vrot.slane %v2608, %v2614
      %2618 = vst [vmem:[%s169] sm:$0xff] %v2600
      %v2619 = vlaneseq
      %vm2620 = vcmp.ge.s32.totalorder %v2619, 0
      %vm2621 = vcmp.lt.s32.totalorder %v2619, 256
      %vm2622 = vmand %vm2620, %vm2621
      %2623 = vst.msk [vmem:[%s169 + $0x8] sm:$0x3] %vm2622, %v2615
      %p2624 = scmp.lt.s32.totalorder %s15, 1
      %s2625 = scalar_select %p2624, %s15, 1
      %s2626 = smul.addr %s2625, 10
      %s2627 = scalar_lea.vmem %s3, %s2626
      // Predicated region
      $region33: #{vae_audio_forward.8} parent=31 // pred_check
        %p2628 = pneg %p101
      $region34: #{vae_audio_forward.8} parent=31 // pred_check_branch
        %2630 = sbr.rel (%p2628) target = $region36
      $region35: #{vae_audio_forward.8} parent=31 // pred_region
        _
      $region36: #{vae_audio_forward.8} parent=31 // pred_fallthru
        _
    $region32: #{vae_audio_forward.8} parent=5 // pred_fallthru
      _
    %p2631 = scmp.le.s32.totalorder 2, %s10
    // Predicated region
    $region37: #{vae_audio_forward.8} parent=5 // pred_check
      %p2632 = pneg %p2631
    $region38: #{vae_audio_forward.8} parent=5 // pred_check_branch
      %2634 = sbr.rel (%p2632) target = $region40
    $region39: #{vae_audio_forward.8} parent=5 // pred_region
      %s2635 = ssub.s32 %s10, 2
      // Predicated region
      $region41: #{vae_audio_forward.8} parent=39 // pred_check
        %p2636 = pneg %p107
      $region42: #{vae_audio_forward.8} parent=39 // pred_check_branch
        %2638 = sbr.rel (%p2636) target = $region44
      $region43: #{vae_audio_forward.8} parent=39 // pred_region
        %p2639 = scmp.lt.s32.totalorder %s16, 1
        %s2640 = scalar_select %p2639, %s16, 1
        %s2641 = smul.addr %s2640, 10
        %s2642 = scalar_lea.vmem %s3, %s2641
      $region44: #{vae_audio_forward.8} parent=39 // pred_fallthru
        _
    $region40: #{vae_audio_forward.8} parent=5 // pred_fallthru
      _
  $region6: #{vae_audio_forward.8} parent=0 // loop_footer
    %s14 = sadd.s32 1, %s10
  $region7: #{vae_audio_forward.8} parent=0 // loop_footer_branch
    %9 = sbr.rel target = $region3
  $region8: #{vae_audio_forward.8} parent=0 // loop_exit
    _

// kernel: vae_audio_forward.9
$region0: #{vae_audio_forward.9}
  #allocation0 [shape = 'u32[]', space=smem, size = 0x4, offset = 0x4, fixed_abs, tag = 'smem constant byte address 0x4 - core index']
  #allocation1 [shape = 'u32[144,128]{1,0:T(1,128)}', space=vmem, size = 0x12000, scoped, tag = 'internal scratch']
  %s0 = inlined_call_operand.vmem [shape: f32[2,55,1280], index: 0, kind: input, shape index: {}]
  %s1 = inlined_call_operand.vmem [shape: f32[2,55], index: 1, kind: input, shape index: {}]
  %s2 = inlined_call_operand.vmem [shape: f32[2], index: 2, kind: input, shape index: {}]
  %s3 = inlined_call_operand.vmem [shape: f32[2,1,1280], index: 3, kind: output, shape index: {0}]
  %s4 = inlined_call_operand.vmem [shape: f32[2,1,1280], index: 4, kind: output, shape index: {1}]
  %5 = xla_tuple %s3, %s4
  %s6 = sld [smem:[#allocation0]]
  $region57: #{vae_audio_forward.9} parent=0
    _
  %s8 = ssub.s32 1, %s6
  %s9 = scalar_select 0, %s8, %s6
  $region1: #{vae_audio_forward.9} parent=0
    #allocation2 [shape = 'u8[512]{0}', space=smem, size = 0x200, scoped, tag = 'input window, operand 2, single buffered']
    #allocation3 [shape = 's32[2]{0}', space=sflag, size = 0x8, scoped, tag = 'scoped memory for vae_audio_forward.9']
    %10 = vsyncpa [#allocation3], 0
    loop: start=0, step=1, limit=4
    $region2: #{vae_audio_forward.9} parent=1 // loop_pre_header
      _
    $region3: #{vae_audio_forward.9} parent=1 // loop_header
      %s12 = sphi 0, %s16
      %p13 = scmp.ge.s32.totalorder %s12, 4
      %s22 = sphi 0, %s24
      %s25 = sphi 0, %s22
      %s26 = sphi 0, %s25
      %s42 = sphi 0, %s26
      %s46 = sphi 0, %s46
      %s48 = sphi 0, %s46
      %s49 = sphi 0, %s48
      %s63 = sphi 0, %s49
      %s67 = sphi 0, %s67
      %s69 = sphi 0, %s67
      %s70 = sphi 0, %s69
      %s84 = sphi 0, %s70
      %s90 = sphi 0, %s92
      %s93 = sphi 0, %s90
      %s94 = sphi 0, %s93
      %s110 = sphi 0, %s94
      %s116 = sphi 0, %s118
      %s119 = sphi 0, %s116
      %s120 = sphi 0, %s119
      %s136 = sphi 0, %s120
    $region4: #{vae_audio_forward.9} parent=1 // loop_header_branch
      %15 = sbr.rel (%p13) target = $region8
    $region5: #{vae_audio_forward.9} parent=1 // loop_body
      %s17 = ssub.s32 %s12, 1
      %s18 = ssub.s32 %s12, 2
      %s19 = sadd.s32 %s12, 1
      %s20 = ssub.s32 %s12, %s19
      %p21 = scmp.eq.s32.totalorder %s20, 0
      %s23 = sadd.s32 %s22, 1
      %s24 = scalar_select %p21, %s22, %s23
      %p27 = pneg %p21
      %p28 = scmp.eq.s32.totalorder %s12, 1
      %p29 = por %p27, %p28
      %p30 = scmp.ne.s32.totalorder %s22, %s25
      %p31 = scmp.eq.s32.totalorder %s12, 0
      %p32 = por %p30, %p31
      %p33 = scmp.ne.s32.totalorder %s22, %s25
      %p34 = scmp.eq.s32.totalorder %s17, 1
      %p35 = por %p33, %p34
      %p36 = scmp.ne.s32.totalorder %s25, %s26
      %p37 = scmp.eq.s32.totalorder %s17, 0
      %p38 = por %p36, %p37
      %p39 = scmp.ne.s32.totalorder %s25, %s26
      %p40 = scmp.eq.s32.totalorder %s18, 1
      %p41 = por %p39, %p40
      %p43 = scmp.ne.s32.totalorder %s26, %s42
      %p44 = scmp.eq.s32.totalorder %s18, 0
      %p45 = por %p43, %p44
      %s47 = sadd.s32 %s46, 1
      %p50 = scmp.eq.s32.totalorder %s12, 1
      %p51 = scmp.ne.s32.totalorder %s46, %s48
      %p52 = scmp.eq.s32.totalorder %s12, 0
      %p53 = por %p51, %p52
      %p54 = scmp.ne.s32.totalorder %s46, %s48
      %p55 = scmp.eq.s32.totalorder %s17, 1
      %p56 = por %p54, %p55
      %p57 = scmp.ne.s32.totalorder %s48, %s49
      %p58 = scmp.eq.s32.totalorder %s17, 0
      %p59 = por %p57, %p58
      %p60 = scmp.ne.s32.totalorder %s48, %s49
      %p61 = scmp.eq.s32.totalorder %s18, 1
      %p62 = por %p60, %p61
      %p64 = scmp.ne.s32.totalorder %s49, %s63
      %p65 = scmp.eq.s32.totalorder %s18, 0
      %p66 = por %p64, %p65
      %s68 = sadd.s32 %s67, 1
      %p71 = scmp.eq.s32.totalorder %s12, 1
      %p72 = scmp.ne.s32.totalorder %s67, %s69
      %p73 = scmp.eq.s32.totalorder %s12, 0
      %p74 = por %p72, %p73
      %p75 = scmp.ne.s32.totalorder %s67, %s69
      %p76 = scmp.eq.s32.totalorder %s17, 1
      %p77 = por %p75, %p76
      %p78 = scmp.ne.s32.totalorder %s69, %s70
      %p79 = scmp.eq.s32.totalorder %s17, 0
      %p80 = por %p78, %p79
      %p81 = scmp.ne.s32.totalorder %s69, %s70
      %p82 = scmp.eq.s32.totalorder %s18, 1
      %p83 = por %p81, %p82
      %p85 = scmp.ne.s32.totalorder %s70, %s84
      %p86 = scmp.eq.s32.totalorder %s18, 0
      %p87 = por %p85, %p86
      %s88 = ssub.s32 %s12, %s19
      %p89 = scmp.eq.s32.totalorder %s88, 0
      %s91 = sadd.s32 %s90, 1
      %s92 = scalar_select %p89, %s90, %s91
      %p95 = pneg %p89
      %p96 = scmp.eq.s32.totalorder %s12, 1
      %p97 = por %p95, %p96
      %p98 = scmp.ne.s32.totalorder %s90, %s93
      %p99 = scmp.eq.s32.totalorder %s12, 0
      %p100 = por %p98, %p99
      %p101 = scmp.ne.s32.totalorder %s90, %s93
      %p102 = scmp.eq.s32.totalorder %s17, 1
      %p103 = por %p101, %p102
      %p104 = scmp.ne.s32.totalorder %s93, %s94
      %p105 = scmp.eq.s32.totalorder %s17, 0
      %p106 = por %p104, %p105
      %p107 = scmp.ne.s32.totalorder %s93, %s94
      %p108 = scmp.eq.s32.totalorder %s18, 1
      %p109 = por %p107, %p108
      %p111 = scmp.ne.s32.totalorder %s94, %s110
      %p112 = scmp.eq.s32.totalorder %s18, 0
      %p113 = por %p111, %p112
      %s114 = ssub.s32 %s12, %s19
      %p115 = scmp.eq.s32.totalorder %s114, 0
      %s117 = sadd.s32 %s116, 1
      %s118 = scalar_select %p115, %s116, %s117
      %p121 = pneg %p115
      %p122 = scmp.eq.s32.totalorder %s12, 1
      %p123 = por %p121, %p122
      %p124 = scmp.ne.s32.totalorder %s116, %s119
      %p125 = scmp.eq.s32.totalorder %s12, 0
      %p126 = por %p124, %p125
      %p127 = scmp.ne.s32.totalorder %s116, %s119
      %p128 = scmp.eq.s32.totalorder %s17, 1
      %p129 = por %p127, %p128
      %p130 = scmp.ne.s32.totalorder %s119, %s120
      %p131 = scmp.eq.s32.totalorder %s17, 0
      %p132 = por %p130, %p131
      %p133 = scmp.ne.s32.totalorder %s119, %s120
      %p134 = scmp.eq.s32.totalorder %s18, 1
      %p135 = por %p133, %p134
      %p137 = scmp.ne.s32.totalorder %s120, %s136
      %p138 = scmp.eq.s32.totalorder %s18, 0
      %p139 = por %p137, %p138
      %p140 = scmp.le.s32.totalorder 1, %s12
      %p141 = scmp.lt.s32.totalorder %s12, 3
      %p142 = pnand %p140, %p141
      %p143 = pneg %p142
      // Predicated region
      $region9: #{vae_audio_forward.9} parent=5 // pred_check
        _
      $region10: #{vae_audio_forward.9} parent=5 // pred_check_branch
        %145 = sbr.rel (%p142) target = $region12
      $region11: #{vae_audio_forward.9} parent=5 // pred_region
        %s146 = ssub.s32 %s12, 1
        // Predicated region
        $region13: #{vae_audio_forward.9} parent=11 // pred_check
          %p147 = pneg %p59
        $region14: #{vae_audio_forward.9} parent=11 // pred_check_branch
          %149 = sbr.rel (%p147) target = $region16
        $region15: #{vae_audio_forward.9} parent=11 // pred_region
          _
        $region16: #{vae_audio_forward.9} parent=11 // pred_fallthru
          _
        // Predicated region
        $region17: #{vae_audio_forward.9} parent=11 // pred_check
          %p150 = pneg %p80
        $region18: #{vae_audio_forward.9} parent=11 // pred_check_branch
          %152 = sbr.rel (%p150) target = $region20
        $region19: #{vae_audio_forward.9} parent=11 // pred_region
          %s154 = ssub.s32 16, 16
          %155 = vsyncadd [#allocation3], %s154
          %s157 = sshll.u32 %s2, 4
          %s158 = int_to_ptr.vmem [resolvable:$true] %s157
          %160 = dma.vmem_to_smem %s158, 16, [#allocation2], [#allocation3]
        $region20: #{vae_audio_forward.9} parent=11 // pred_fallthru
          _
      $region12: #{vae_audio_forward.9} parent=5 // pred_fallthru
        _
      %p161 = scmp.lt.s32.totalorder %s12, 2
      // Predicated region
      $region21: #{vae_audio_forward.9} parent=5 // pred_check
        %p162 = pneg %p161
      $region22: #{vae_audio_forward.9} parent=5 // pred_check_branch
        %164 = sbr.rel (%p162) target = $region24
      $region23: #{vae_audio_forward.9} parent=5 // pred_region
        // Predicated region
        $region25: #{vae_audio_forward.9} parent=23 // pred_check
          %p165 = pneg %p32
        $region26: #{vae_audio_forward.9} parent=23 // pred_check_branch
          %167 = sbr.rel (%p165) target = $region28
        $region27: #{vae_audio_forward.9} parent=23 // pred_region
          %p168 = scmp.lt.s32.totalorder %s12, 1
          %s169 = scalar_select %p168, %s12, 1
          %s170 = smul.addr %s169, 70
          %s171 = smul.addr %s170, 8
          %s172 = scalar_lea.vmem %s0, %s171
        $region28: #{vae_audio_forward.9} parent=23 // pred_fallthru
          _
      $region24: #{vae_audio_forward.9} parent=5 // pred_fallthru
        _
      %p173 = scmp.le.s32.totalorder 1, %s12
      %p174 = scmp.lt.s32.totalorder %s12, 3
      %p175 = pnand %p173, %p174
      %p176 = pneg %p175
      // Predicated region
      $region29: #{vae_audio_forward.9} parent=5 // pred_check
        _
      $region30: #{vae_audio_forward.9} parent=5 // pred_check_branch
        %178 = sbr.rel (%p175) target = $region32
      $region31: #{vae_audio_forward.9} parent=5 // pred_region
        %s179 = ssub.s32 %s12, 1
        // Predicated region
        $region33: #{vae_audio_forward.9} parent=31 // pred_check
          %p180 = pneg %p80
        $region34: #{vae_audio_forward.9} parent=31 // pred_check_branch
          %182 = sbr.rel (%p180) target = $region36
        $region35: #{vae_audio_forward.9} parent=31 // pred_region
          %183 = dma.done [#allocation3], 16
        $region36: #{vae_audio_forward.9} parent=31 // pred_fallthru
          _
        %184 = sfence
        %p185 = scmp.lt.s32.totalorder %s17, 1
        %s186 = scalar_select %p185, %s17, 1
        %s187 = smul.addr %s186, 70
        %s188 = smul.addr %s187, 8
        %s189 = scalar_lea.vmem %s0, %s188
        %p190 = pneg %p38
        %p191 = pneg %p35
        %p192 = pneg %p59
        %p193 = pneg %p56
        %p194 = pneg %p80
        %p195 = pneg %p77
        %p196 = pneg %p106
        %p197 = pneg %p103
        %p198 = scmp.lt.s32.totalorder %s17, 1
        %s199 = scalar_select %p198, %s17, 1
        %s200 = smul.addr %s199, 10
        %s201 = scalar_lea.vmem %s3, %s200
        %p202 = pneg %p132
        %p203 = pneg %p129
        %p204 = scmp.lt.s32.totalorder %s17, 1
        %s205 = scalar_select %p204, %s17, 1
        %s206 = smul.addr %s205, 10
        %s207 = scalar_lea.vmem %s4, %s206
        %p208 = scmp.lt.s32.totalorder %s17, 1
        %s209 = scalar_select %p208, %s17, 1
        %s210 = smul.addr %s209, 70
        %s211 = smul.addr %s210, 8
        %s212 = scalar_lea.vmem %s0, %s211
        %p213 = scmp.lt.s32.totalorder %s17, 1
        %s214 = scalar_select %p213, %s17, 1
        %s215 = smul.addr %s214, 10
        %s216 = scalar_lea.vmem %s3, %s215
        %p217 = scmp.lt.s32.totalorder %s17, 1
        %s218 = scalar_select %p217, %s17, 1
        %s219 = smul.addr %s218, 10
        %s220 = scalar_lea.vmem %s4, %s219
        %v221 = vld [vmem:[%s212] sm:$0xff]
        %v222 = vld [vmem:[%s212 + $0x8] sm:$0xff]
        %v223 = vld [vmem:[%s212 + $0x10] sm:$0xff]
        %v224 = vld [vmem:[%s212 + $0x18] sm:$0xff]
        %v225 = vld [vmem:[%s212 + $0x20] sm:$0xff]
        %v226 = vld [vmem:[%s212 + $0x28] sm:$0xff]
        %v227 = vld [vmem:[%s212 + $0x30] sm:$0xff]
        %v228 = vld [vmem:[%s212 + $0x38] sm:$0xff]
        %v229 = vld [vmem:[%s212 + $0x40] sm:$0xff]
        %v230 = vld [vmem:[%s212 + $0x48] sm:$0xff]
        %v231 = vld [vmem:[%s212 + $0x50] sm:$0xff]
        %v232 = vld [vmem:[%s212 + $0x58] sm:$0xff]
        %v233 = vld [vmem:[%s212 + $0x60] sm:$0xff]
        %v234 = vld [vmem:[%s212 + $0x68] sm:$0xff]
        %v235 = vld [vmem:[%s212 + $0x70] sm:$0xff]
        %v236 = vld [vmem:[%s212 + $0x78] sm:$0xff]
        %v237 = vld [vmem:[%s212 + $0x80] sm:$0xff]
        %v238 = vld [vmem:[%s212 + $0x88] sm:$0xff]
        %v239 = vld [vmem:[%s212 + $0x90] sm:$0xff]
        %v240 = vld [vmem:[%s212 + $0x98] sm:$0xff]
        %v241 = vld [vmem:[%s212 + $0xa0] sm:$0xff]
        %v242 = vld [vmem:[%s212 + $0xa8] sm:$0xff]
        %v243 = vld [vmem:[%s212 + $0xb0] sm:$0xff]
        %v244 = vld [vmem:[%s212 + $0xb8] sm:$0xff]
        %v245 = vld [vmem:[%s212 + $0xc0] sm:$0xff]
        %v246 = vld [vmem:[%s212 + $0xc8] sm:$0xff]
        %v247 = vld [vmem:[%s212 + $0xd0] sm:$0xff]
        %v248 = vld [vmem:[%s212 + $0xd8] sm:$0xff]
        %v249 = vld [vmem:[%s212 + $0xe0] sm:$0xff]
        %v250 = vld [vmem:[%s212 + $0xe8] sm:$0xff]
        %v251 = vld [vmem:[%s212 + $0xf0] sm:$0xff]
        %v252 = vld [vmem:[%s212 + $0xf8] sm:$0xff]
        %v253 = vld [vmem:[%s212 + $0x100] sm:$0xff]
        %v254 = vld [vmem:[%s212 + $0x108] sm:$0xff]
        %v255 = vld [vmem:[%s212 + $0x110] sm:$0xff]
        %v256 = vld [vmem:[%s212 + $0x118] sm:$0xff]
        %v257 = vld [vmem:[%s212 + $0x120] sm:$0xff]
        %v258 = vld [vmem:[%s212 + $0x128] sm:$0xff]
        %v259 = vld [vmem:[%s212 + $0x130] sm:$0xff]
        %v260 = vld [vmem:[%s212 + $0x138] sm:$0xff]
        %v261 = vld [vmem:[%s212 + $0x140] sm:$0xff]
        %v262 = vld [vmem:[%s212 + $0x148] sm:$0xff]
        %v263 = vld [vmem:[%s212 + $0x150] sm:$0xff]
        %v264 = vld [vmem:[%s212 + $0x158] sm:$0xff]
        %v265 = vld [vmem:[%s212 + $0x160] sm:$0xff]
        %v266 = vld [vmem:[%s212 + $0x168] sm:$0xff]
        %v267 = vld [vmem:[%s212 + $0x170] sm:$0xff]
        %v268 = vld [vmem:[%s212 + $0x178] sm:$0xff]
        %v269 = vld [vmem:[%s212 + $0x180] sm:$0xff]
        %v270 = vld [vmem:[%s212 + $0x188] sm:$0xff]
        %v271 = vld [vmem:[%s212 + $0x190] sm:$0xff]
        %v272 = vld [vmem:[%s212 + $0x198] sm:$0xff]
        %v273 = vld [vmem:[%s212 + $0x1a0] sm:$0xff]
        %v274 = vld [vmem:[%s212 + $0x1a8] sm:$0xff]
        %v275 = vld [vmem:[%s212 + $0x1b0] sm:$0xff]
        %v276 = vld [vmem:[%s212 + $0x1b8] sm:$0xff]
        %v277 = vld [vmem:[%s212 + $0x1c0] sm:$0xff]
        %v278 = vld [vmem:[%s212 + $0x1c8] sm:$0xff]
        %v279 = vld [vmem:[%s212 + $0x1d0] sm:$0xff]
        %v280 = vld [vmem:[%s212 + $0x1d8] sm:$0xff]
        %v281 = vld [vmem:[%s212 + $0x1e0] sm:$0x7f]
        %v282 = vld [vmem:[%s212 + $0x1e8] sm:$0x7f]
        %v283 = vld [vmem:[%s212 + $0x1f0] sm:$0x7f]
        %v284 = vld [vmem:[%s212 + $0x1f8] sm:$0x7f]
        %v285 = vld [vmem:[%s212 + $0x200] sm:$0x7f]
        %v286 = vld [vmem:[%s212 + $0x208] sm:$0x7f]
        %v287 = vld [vmem:[%s212 + $0x210] sm:$0x7f]
        %v288 = vld [vmem:[%s212 + $0x218] sm:$0x7f]
        %v289 = vld [vmem:[%s212 + $0x220] sm:$0x7f]
        %v290 = vld [vmem:[%s212 + $0x228] sm:$0x7f]
        %v291 = vld [vmem:[%s1] sm:$0x3]
        %vm292 = vcmask 449536
        %v294 = vsel %vm292, %v291, 0
        %vm296 = vcmask 1046528
        %v298 = vsel %vm296, %v281, 0
        %v301 = vsel %vm296, %v282, 0
        %v304 = vsel %vm296, %v283, 0
        %v307 = vsel %vm296, %v284, 0
        %v310 = vsel %vm296, %v285, 0
        %v313 = vsel %vm296, %v286, 0
        %v316 = vsel %vm296, %v287, 0
        %v319 = vsel %vm296, %v288, 0
        %v322 = vsel %vm296, %v289, 0
        %v325 = vsel %vm296, %v290, 0
        %327 = vmatprep.subr.mxu0 0.0
        %328 = vmatpush1.msra.mxu0 0.0
        %329 = vmatprep.subr.mxu0 0.0
        %330 = vmatpush1.msra.mxu0 0.0
        %331 = vmatprep.subr.mxu0 0.0
        %332 = vmatpush1.msra.mxu0 0.0
        %333 = vmatprep.subr.mxu0 0.0
        %334 = vmatpush1.msra.mxu0 0.0
        %335 = vmatprep.subr.mxu0 0.0
        %336 = vmatpush1.msra.mxu0 0.0
        %337 = vmatprep.subr.mxu0 0.0
        %338 = vmatpush1.msra.mxu0 0.0
        %339 = vmatprep.subr.mxu0 0.0
        %340 = vmatpush1.msra.mxu0 0.0
        %341 = vmatprep.subr.mxu0 0.0
        %342 = vmatpush1.msra.mxu0 0.0
        %343 = vmatprep.subr.mxu0 0.0
        %344 = vmatpush1.msra.mxu0 0.0
        %345 = vmatprep.subr.mxu0 %v301
        %346 = vmatpush1.msra.mxu0 %v298
        %347 = vmatprep.subr.mxu0 %v272
        %348 = vmatpush1.msra.mxu0 %v271
        %349 = vmatprep.subr.mxu0 %v262
        %350 = vmatpush1.msra.mxu0 %v261
        %351 = vmatprep.subr.mxu0 %v252
        %352 = vmatpush1.msra.mxu0 %v251
        %353 = vmatprep.subr.mxu0 %v242
        %354 = vmatpush1.msra.mxu0 %v241
        %355 = vmatprep.subr.mxu0 %v232
        %356 = vmatpush1.msra.mxu0 %v231
        %357 = vmatprep.subr.mxu0 %v222
        %358 = vmatpush1.msra.mxu0 %v221
        %359 = vmatprep.subr.mxu0 0.0
        %360 = vmatpush2.msra.mxu0 0.0
        %361 = vmatprep.subr.mxu0 0.0
        %362 = vmatpush2.msra.mxu0 0.0
        %363 = vmatprep.subr.mxu0 0.0
        %364 = vmatpush2.msra.mxu0 0.0
        %365 = vmatprep.subr.mxu0 0.0
        %366 = vmatpush2.msra.mxu0 0.0
        %367 = vmatprep.subr.mxu0 0.0
        %368 = vmatpush2.msra.mxu0 0.0
        %369 = vmatprep.subr.mxu0 0.0
        %370 = vmatpush2.msra.mxu0 0.0
        %371 = vmatprep.subr.mxu0 0.0
        %372 = vmatpush2.msra.mxu0 0.0
        %373 = vmatprep.subr.mxu0 0.0
        %374 = vmatpush2.msra.mxu0 0.0
        %375 = vmatprep.subr.mxu0 0.0
        %376 = vmatpush2.msra.mxu0 0.0
        %377 = vmatprep.subr.mxu0 0.0
        %378 = vmatpush2.msra.mxu0 0.0
        %379 = vmatprep.subr.mxu0 0.0
        %380 = vmatpush2.msra.mxu0 0.0
        %381 = vmatprep.subr.mxu0 0.0
        %382 = vmatpush2.msra.mxu0 0.0
        %383 = vmatprep.subr.mxu0 0.0
        %384 = vmatpush2.msra.mxu0 0.0
        %385 = vmatprep.subr.mxu0 0.0
        %386 = vmatpush2.msra.mxu0 0.0
        %387 = vmatprep.subr.mxu0 0.0
        %388 = vmatpush2.msra.mxu0 0.0
        %389 = vmatprep.subr.mxu0 0.0
        %390 = vmatpush2.msra.mxu0 0.0
        %391 = vmatprep.mubr.f32.mxu0 0.0
        %392 = vmatmul.mubr.f32.gmra.mxu0 %v294
        %v393 = vpop.f32.mrf.mxu0
        %v394 = vadd.f32 0.0, %v393
        %v395 = vpop.f32.mrf.mxu0
        %v396 = vadd.f32 0.0, %v395
        %397 = vdwg.mxu0
        %398 = vmatprep.subr.mxu0 0.0
        %399 = vmatpush1.msra.mxu0 0.0
        %400 = vmatprep.subr.mxu0 0.0
        %401 = vmatpush1.msra.mxu0 0.0
        %402 = vmatprep.subr.mxu0 0.0
        %403 = vmatpush1.msra.mxu0 0.0
        %404 = vmatprep.subr.mxu0 0.0
        %405 = vmatpush1.msra.mxu0 0.0
        %406 = vmatprep.subr.mxu0 0.0
        %407 = vmatpush1.msra.mxu0 0.0
        %408 = vmatprep.subr.mxu0 0.0
        %409 = vmatpush1.msra.mxu0 0.0
        %410 = vmatprep.subr.mxu0 0.0
        %411 = vmatpush1.msra.mxu0 0.0
        %412 = vmatprep.subr.mxu0 0.0
        %413 = vmatpush1.msra.mxu0 0.0
        %414 = vmatprep.subr.mxu0 0.0
        %415 = vmatpush1.msra.mxu0 0.0
        %416 = vmatprep.subr.mxu0 %v307
        %417 = vmatpush1.msra.mxu0 %v304
        %418 = vmatprep.subr.mxu0 %v274
        %419 = vmatpush1.msra.mxu0 %v273
        %420 = vmatprep.subr.mxu0 %v264
        %421 = vmatpush1.msra.mxu0 %v263
        %422 = vmatprep.subr.mxu0 %v254
        %423 = vmatpush1.msra.mxu0 %v253
        %424 = vmatprep.subr.mxu0 %v244
        %425 = vmatpush1.msra.mxu0 %v243
        %426 = vmatprep.subr.mxu0 %v234
        %427 = vmatpush1.msra.mxu0 %v233
        %428 = vmatprep.subr.mxu0 %v224
        %429 = vmatpush1.msra.mxu0 %v223
        %430 = vmatprep.subr.mxu0 0.0
        %431 = vmatpush2.msra.mxu0 0.0
        %432 = vmatprep.subr.mxu0 0.0
        %433 = vmatpush2.msra.mxu0 0.0
        %434 = vmatprep.subr.mxu0 0.0
        %435 = vmatpush2.msra.mxu0 0.0
        %436 = vmatprep.subr.mxu0 0.0
        %437 = vmatpush2.msra.mxu0 0.0
        %438 = vmatprep.subr.mxu0 0.0
        %439 = vmatpush2.msra.mxu0 0.0
        %440 = vmatprep.subr.mxu0 0.0
        %441 = vmatpush2.msra.mxu0 0.0
        %442 = vmatprep.subr.mxu0 0.0
        %443 = vmatpush2.msra.mxu0 0.0
        %444 = vmatprep.subr.mxu0 0.0
        %445 = vmatpush2.msra.mxu0 0.0
        %446 = vmatprep.subr.mxu0 0.0
        %447 = vmatpush2.msra.mxu0 0.0
        %448 = vmatprep.subr.mxu0 0.0
        %449 = vmatpush2.msra.mxu0 0.0
        %450 = vmatprep.subr.mxu0 0.0
        %451 = vmatpush2.msra.mxu0 0.0
        %452 = vmatprep.subr.mxu0 0.0
        %453 = vmatpush2.msra.mxu0 0.0
        %454 = vmatprep.subr.mxu0 0.0
        %455 = vmatpush2.msra.mxu0 0.0
        %456 = vmatprep.subr.mxu0 0.0
        %457 = vmatpush2.msra.mxu0 0.0
        %458 = vmatprep.subr.mxu0 0.0
        %459 = vmatpush2.msra.mxu0 0.0
        %460 = vmatprep.subr.mxu0 0.0
        %461 = vmatpush2.msra.mxu0 0.0
        %462 = vmatprep.mubr.f32.mxu0 0.0
        %463 = vmatmul.mubr.f32.gmra.mxu0 %v294
        %v464 = vpop.f32.mrf.mxu0
        %v465 = vadd.f32 0.0, %v464
        %v466 = vpop.f32.mrf.mxu0
        %v467 = vadd.f32 0.0, %v466
        %468 = vdwg.mxu0
        %469 = vmatprep.subr.mxu0 0.0
        %470 = vmatpush1.msra.mxu0 0.0
        %471 = vmatprep.subr.mxu0 0.0
        %472 = vmatpush1.msra.mxu0 0.0
        %473 = vmatprep.subr.mxu0 0.0
        %474 = vmatpush1.msra.mxu0 0.0
        %475 = vmatprep.subr.mxu0 0.0
        %476 = vmatpush1.msra.mxu0 0.0
        %477 = vmatprep.subr.mxu0 0.0
        %478 = vmatpush1.msra.mxu0 0.0
        %479 = vmatprep.subr.mxu0 0.0
        %480 = vmatpush1.msra.mxu0 0.0
        %481 = vmatprep.subr.mxu0 0.0
        %482 = vmatpush1.msra.mxu0 0.0
        %483 = vmatprep.subr.mxu0 0.0
        %484 = vmatpush1.msra.mxu0 0.0
        %485 = vmatprep.subr.mxu0 0.0
        %486 = vmatpush1.msra.mxu0 0.0
        %487 = vmatprep.subr.mxu0 %v313
        %488 = vmatpush1.msra.mxu0 %v310
        %489 = vmatprep.subr.mxu0 %v276
        %490 = vmatpush1.msra.mxu0 %v275
        %491 = vmatprep.subr.mxu0 %v266
        %492 = vmatpush1.msra.mxu0 %v265
        %493 = vmatprep.subr.mxu0 %v256
        %494 = vmatpush1.msra.mxu0 %v255
        %495 = vmatprep.subr.mxu0 %v246
        %496 = vmatpush1.msra.mxu0 %v245
        %497 = vmatprep.subr.mxu0 %v236
        %498 = vmatpush1.msra.mxu0 %v235
        %499 = vmatprep.subr.mxu0 %v226
        %500 = vmatpush1.msra.mxu0 %v225
        %501 = vmatprep.subr.mxu0 0.0
        %502 = vmatpush2.msra.mxu0 0.0
        %503 = vmatprep.subr.mxu0 0.0
        %504 = vmatpush2.msra.mxu0 0.0
        %505 = vmatprep.subr.mxu0 0.0
        %506 = vmatpush2.msra.mxu0 0.0
        %507 = vmatprep.subr.mxu0 0.0
        %508 = vmatpush2.msra.mxu0 0.0
        %509 = vmatprep.subr.mxu0 0.0
        %510 = vmatpush2.msra.mxu0 0.0
        %511 = vmatprep.subr.mxu0 0.0
        %512 = vmatpush2.msra.mxu0 0.0
        %513 = vmatprep.subr.mxu0 0.0
        %514 = vmatpush2.msra.mxu0 0.0
        %515 = vmatprep.subr.mxu0 0.0
        %516 = vmatpush2.msra.mxu0 0.0
        %517 = vmatprep.subr.mxu0 0.0
        %518 = vmatpush2.msra.mxu0 0.0
        %519 = vmatprep.subr.mxu0 0.0
        %520 = vmatpush2.msra.mxu0 0.0
        %521 = vmatprep.subr.mxu0 0.0
        %522 = vmatpush2.msra.mxu0 0.0
        %523 = vmatprep.subr.mxu0 0.0
        %524 = vmatpush2.msra.mxu0 0.0
        %525 = vmatprep.subr.mxu0 0.0
        %526 = vmatpush2.msra.mxu0 0.0
        %527 = vmatprep.subr.mxu0 0.0
        %528 = vmatpush2.msra.mxu0 0.0
        %529 = vmatprep.subr.mxu0 0.0
        %530 = vmatpush2.msra.mxu0 0.0
        %531 = vmatprep.subr.mxu0 0.0
        %532 = vmatpush2.msra.mxu0 0.0
        %533 = vmatprep.mubr.f32.mxu0 0.0
        %534 = vmatmul.mubr.f32.gmra.mxu0 %v294
        %v535 = vpop.f32.mrf.mxu0
        %v536 = vadd.f32 0.0, %v535
        %v537 = vpop.f32.mrf.mxu0
        %v538 = vadd.f32 0.0, %v537
        %539 = vdwg.mxu0
        %540 = vmatprep.subr.mxu0 0.0
        %541 = vmatpush1.msra.mxu0 0.0
        %542 = vmatprep.subr.mxu0 0.0
        %543 = vmatpush1.msra.mxu0 0.0
        %544 = vmatprep.subr.mxu0 0.0
        %545 = vmatpush1.msra.mxu0 0.0
        %546 = vmatprep.subr.mxu0 0.0
        %547 = vmatpush1.msra.mxu0 0.0
        %548 = vmatprep.subr.mxu0 0.0
        %549 = vmatpush1.msra.mxu0 0.0
        %550 = vmatprep.subr.mxu0 0.0
        %551 = vmatpush1.msra.mxu0 0.0
        %552 = vmatprep.subr.mxu0 0.0
        %553 = vmatpush1.msra.mxu0 0.0
        %554 = vmatprep.subr.mxu0 0.0
        %555 = vmatpush1.msra.mxu0 0.0
        %556 = vmatprep.subr.mxu0 0.0
        %557 = vmatpush1.msra.mxu0 0.0
        %558 = vmatprep.subr.mxu0 %v319
        %559 = vmatpush1.msra.mxu0 %v316
        %560 = vmatprep.subr.mxu0 %v278
        %561 = vmatpush1.msra.mxu0 %v277
        %562 = vmatprep.subr.mxu0 %v268
        %563 = vmatpush1.msra.mxu0 %v267
        %564 = vmatprep.subr.mxu0 %v258
        %565 = vmatpush1.msra.mxu0 %v257
        %566 = vmatprep.subr.mxu0 %v248
        %567 = vmatpush1.msra.mxu0 %v247
        %568 = vmatprep.subr.mxu0 %v238
        %569 = vmatpush1.msra.mxu0 %v237
        %570 = vmatprep.subr.mxu0 %v228
        %571 = vmatpush1.msra.mxu0 %v227
        %572 = vmatprep.subr.mxu0 0.0
        %573 = vmatpush2.msra.mxu0 0.0
        %574 = vmatprep.subr.mxu0 0.0
        %575 = vmatpush2.msra.mxu0 0.0
        %576 = vmatprep.subr.mxu0 0.0
        %577 = vmatpush2.msra.mxu0 0.0
        %578 = vmatprep.subr.mxu0 0.0
        %579 = vmatpush2.msra.mxu0 0.0
        %580 = vmatprep.subr.mxu0 0.0
        %581 = vmatpush2.msra.mxu0 0.0
        %582 = vmatprep.subr.mxu0 0.0
        %583 = vmatpush2.msra.mxu0 0.0
        %584 = vmatprep.subr.mxu0 0.0
        %585 = vmatpush2.msra.mxu0 0.0
        %586 = vmatprep.subr.mxu0 0.0
        %587 = vmatpush2.msra.mxu0 0.0
        %588 = vmatprep.subr.mxu0 0.0
        %589 = vmatpush2.msra.mxu0 0.0
        %590 = vmatprep.subr.mxu0 0.0
        %591 = vmatpush2.msra.mxu0 0.0
        %592 = vmatprep.subr.mxu0 0.0
        %593 = vmatpush2.msra.mxu0 0.0
        %594 = vmatprep.subr.mxu0 0.0
        %595 = vmatpush2.msra.mxu0 0.0
        %596 = vmatprep.subr.mxu0 0.0
        %597 = vmatpush2.msra.mxu0 0.0
        %598 = vmatprep.subr.mxu0 0.0
        %599 = vmatpush2.msra.mxu0 0.0
        %600 = vmatprep.subr.mxu0 0.0
        %601 = vmatpush2.msra.mxu0 0.0
        %602 = vmatprep.subr.mxu0 0.0
        %603 = vmatpush2.msra.mxu0 0.0
        %604 = vmatprep.mubr.f32.mxu0 0.0
        %605 = vmatmul.mubr.f32.gmra.mxu0 %v294
        %v606 = vpop.f32.mrf.mxu0
        %v607 = vadd.f32 0.0, %v606
        %v608 = vpop.f32.mrf.mxu0
        %v609 = vadd.f32 0.0, %v608
        %610 = vdwg.mxu0
        %611 = vmatprep.subr.mxu0 0.0
        %612 = vmatpush1.msra.mxu0 0.0
        %613 = vmatprep.subr.mxu0 0.0
        %614 = vmatpush1.msra.mxu0 0.0
        %615 = vmatprep.subr.mxu0 0.0
        %616 = vmatpush1.msra.mxu0 0.0
        %617 = vmatprep.subr.mxu0 0.0
        %618 = vmatpush1.msra.mxu0 0.0
        %619 = vmatprep.subr.mxu0 0.0
        %620 = vmatpush1.msra.mxu0 0.0
        %621 = vmatprep.subr.mxu0 0.0
        %622 = vmatpush1.msra.mxu0 0.0
        %623 = vmatprep.subr.mxu0 0.0
        %624 = vmatpush1.msra.mxu0 0.0
        %625 = vmatprep.subr.mxu0 0.0
        %626 = vmatpush1.msra.mxu0 0.0
        %627 = vmatprep.subr.mxu0 0.0
        %628 = vmatpush1.msra.mxu0 0.0
        %629 = vmatprep.subr.mxu0 %v325
        %630 = vmatpush1.msra.mxu0 %v322
        %631 = vmatprep.subr.mxu0 %v280
        %632 = vmatpush1.msra.mxu0 %v279
        %633 = vmatprep.subr.mxu0 %v270
        %634 = vmatpush1.msra.mxu0 %v269
        %635 = vmatprep.subr.mxu0 %v260
        %636 = vmatpush1.msra.mxu0 %v259
        %637 = vmatprep.subr.mxu0 %v250
        %638 = vmatpush1.msra.mxu0 %v249
        %639 = vmatprep.subr.mxu0 %v240
        %640 = vmatpush1.msra.mxu0 %v239
        %641 = vmatprep.subr.mxu0 %v230
        %642 = vmatpush1.msra.mxu0 %v229
        %643 = vmatprep.subr.mxu0 0.0
        %644 = vmatpush2.msra.mxu0 0.0
        %645 = vmatprep.subr.mxu0 0.0
        %646 = vmatpush2.msra.mxu0 0.0
        %647 = vmatprep.subr.mxu0 0.0
        %648 = vmatpush2.msra.mxu0 0.0
        %649 = vmatprep.subr.mxu0 0.0
        %650 = vmatpush2.msra.mxu0 0.0
        %651 = vmatprep.subr.mxu0 0.0
        %652 = vmatpush2.msra.mxu0 0.0
        %653 = vmatprep.subr.mxu0 0.0
        %654 = vmatpush2.msra.mxu0 0.0
        %655 = vmatprep.subr.mxu0 0.0
        %656 = vmatpush2.msra.mxu0 0.0
        %657 = vmatprep.subr.mxu0 0.0
        %658 = vmatpush2.msra.mxu0 0.0
        %659 = vmatprep.subr.mxu0 0.0
        %660 = vmatpush2.msra.mxu0 0.0
        %661 = vmatprep.subr.mxu0 0.0
        %662 = vmatpush2.msra.mxu0 0.0
        %663 = vmatprep.subr.mxu0 0.0
        %664 = vmatpush2.msra.mxu0 0.0
        %665 = vmatprep.subr.mxu0 0.0
        %666 = vmatpush2.msra.mxu0 0.0
        %667 = vmatprep.subr.mxu0 0.0
        %668 = vmatpush2.msra.mxu0 0.0
        %669 = vmatprep.subr.mxu0 0.0
        %670 = vmatpush2.msra.mxu0 0.0
        %671 = vmatprep.subr.mxu0 0.0
        %672 = vmatpush2.msra.mxu0 0.0
        %673 = vmatprep.subr.mxu0 0.0
        %674 = vmatpush2.msra.mxu0 0.0
        %675 = vmatprep.mubr.f32.mxu0 0.0
        %676 = vmatmul.mubr.f32.gmra.mxu0 %v294
        %v677 = vpop.f32.mrf.mxu0
        %v678 = vadd.f32 0.0, %v677
        %v679 = vpop.f32.mrf.mxu0
        %v680 = vadd.f32 0.0, %v679
        %681 = vdwg.mxu0
        %s682 = sld [smem:[#allocation2]]
        %v683 = vstv %s682
        %v684 = vadd.f32 %v394, %v683
        %v685 = vadd.f32 %v396, %v683
        %v686 = vadd.f32 %v465, %v683
        %v687 = vadd.f32 %v467, %v683
        %v688 = vadd.f32 %v536, %v683
        %v689 = vadd.f32 %v538, %v683
        %v690 = vadd.f32 %v607, %v683
        %v691 = vadd.f32 %v609, %v683
        %v692 = vadd.f32 %v678, %v683
        %v693 = vadd.f32 %v680, %v683
        %v704 = vcombine.low %v684, %v685
        %v705 = vcombine.low %v686, %v687
        %v706 = vcombine.low %v688, %v689
        %v707 = vcombine.low %v690, %v691
        %v709 = vunpack.c.l.s4 1966171168
        %v710 = vunpack.c.0.s8 %v709
        %v711 = vlaneseq
        %v712 = vshrl.u32 %v711, 7
        %v713 = vsub.s32 %v710, %v712
        %v714 = vrot.slane %v704, %v713
        %v716 = vunpack.c.l.s4 1966171168
        %v717 = vunpack.c.0.s8 %v716
        %v718 = vlaneseq
        %v719 = vshrl.u32 %v718, 7
        %v720 = vsub.s32 %v717, %v719
        %v721 = vrot.slane %v705, %v720
        %v723 = vunpack.c.l.s4 1966171168
        %v724 = vunpack.c.0.s8 %v723
        %v725 = vlaneseq
        %v726 = vshrl.u32 %v725, 7
        %v727 = vsub.s32 %v724, %v726
        %v728 = vrot.slane %v706, %v727
        %v730 = vunpack.c.l.s4 1966171168
        %v731 = vunpack.c.0.s8 %v730
        %v732 = vlaneseq
        %v733 = vshrl.u32 %v732, 7
        %v734 = vsub.s32 %v731, %v733
        %v735 = vrot.slane %v707, %v734
        %v736 = vcombine.low %v714, %v721
        %v737 = vcombine.low %v728, %v735
        %v739 = vunpack.c.l.s4 1966171168
        %v740 = vunpack.c.0.s8 %v739
        %v741 = vlaneseq
        %v742 = vshrl.u32 %v741, 7
        %v743 = vsub.s32 %v740, %v742
        %v744 = vrot.slane %v736, %v743
        %v746 = vunpack.c.l.s4 1966171168
        %v747 = vunpack.c.0.s8 %v746
        %v748 = vlaneseq
        %v749 = vshrl.u32 %v748, 7
        %v750 = vsub.s32 %v747, %v749
        %v751 = vrot.slane %v737, %v750
        %v752 = vcombine.low %v744, %v751
        %v753 = vcombine.low %v692, %v693
        %v755 = vunpack.c.l.s4 1966171168
        %v756 = vunpack.c.0.s8 %v755
        %v757 = vlaneseq
        %v758 = vshrl.u32 %v757, 7
        %v759 = vsub.s32 %v756, %v758
        %v760 = vrot.slane %v753, %v759
        %v762 = vunpack.c.l.s4 1966171168
        %v763 = vunpack.c.0.s8 %v762
        %v764 = vlaneseq
        %v765 = vshrl.u32 %v764, 7
        %v766 = vsub.s32 %v763, %v765
        %v767 = vrot.slane %v760, %v766
        %770 = vst [vmem:[%s216] sm:$0xff] %v752
        %v771 = vlaneseq
        %vm772 = vcmp.ge.s32.totalorder %v771, 0
        %vm773 = vcmp.lt.s32.totalorder %v771, 256
        %vm774 = vmand %vm772, %vm773
        %775 = vst.msk [vmem:[%s216 + $0x8] sm:$0x3] %vm774, %v767
        %s776 = sld [smem:[#allocation2 + $0x1]]
        %v777 = vstv %s776
        %v778 = vadd.f32 %v394, %v777
        %v779 = vadd.f32 %v396, %v777
        %v780 = vadd.f32 %v465, %v777
        %v781 = vadd.f32 %v467, %v777
        %v782 = vadd.f32 %v536, %v777
        %v783 = vadd.f32 %v538, %v777
        %v784 = vadd.f32 %v607, %v777
        %v785 = vadd.f32 %v609, %v777
        %v786 = vadd.f32 %v678, %v777
        %v787 = vadd.f32 %v680, %v777
        %v798 = vcombine.low %v778, %v779
        %v799 = vcombine.low %v780, %v781
        %v800 = vcombine.low %v782, %v783
        %v801 = vcombine.low %v784, %v785
        %v803 = vunpack.c.l.s4 1966171168
        %v804 = vunpack.c.0.s8 %v803
        %v805 = vlaneseq
        %v806 = vshrl.u32 %v805, 7
        %v807 = vsub.s32 %v804, %v806
        %v808 = vrot.slane %v798, %v807
        %v810 = vunpack.c.l.s4 1966171168
        %v811 = vunpack.c.0.s8 %v810
        %v812 = vlaneseq
        %v813 = vshrl.u32 %v812, 7
        %v814 = vsub.s32 %v811, %v813
        %v815 = vrot.slane %v799, %v814
        %v817 = vunpack.c.l.s4 1966171168
        %v818 = vunpack.c.0.s8 %v817
        %v819 = vlaneseq
        %v820 = vshrl.u32 %v819, 7
        %v821 = vsub.s32 %v818, %v820
        %v822 = vrot.slane %v800, %v821
        %v824 = vunpack.c.l.s4 1966171168
        %v825 = vunpack.c.0.s8 %v824
        %v826 = vlaneseq
        %v827 = vshrl.u32 %v826, 7
        %v828 = vsub.s32 %v825, %v827
        %v829 = vrot.slane %v801, %v828
        %v830 = vcombine.high %v808, %v815
        %v831 = vcombine.high %v822, %v829
        %v833 = vunpack.c.l.s4 1966171168
        %v834 = vunpack.c.0.s8 %v833
        %v835 = vlaneseq
        %v836 = vshrl.u32 %v835, 7
        %v837 = vsub.s32 %v834, %v836
        %v838 = vrot.slane %v830, %v837
        %v840 = vunpack.c.l.s4 1966171168
        %v841 = vunpack.c.0.s8 %v840
        %v842 = vlaneseq
        %v843 = vshrl.u32 %v842, 7
        %v844 = vsub.s32 %v841, %v843
        %v845 = vrot.slane %v831, %v844
        %v846 = vcombine.low %v838, %v845
        %v847 = vcombine.low %v786, %v787
        %v849 = vunpack.c.l.s4 1966171168
        %v850 = vunpack.c.0.s8 %v849
        %v851 = vlaneseq
        %v852 = vshrl.u32 %v851, 7
        %v853 = vsub.s32 %v850, %v852
        %v854 = vrot.slane %v847, %v853
        %v855 = vcombine.high %v854, %v854
        %v857 = vunpack.c.l.s4 1966171168
        %v858 = vunpack.c.0.s8 %v857
        %v859 = vlaneseq
        %v860 = vshrl.u32 %v859, 7
        %v861 = vsub.s32 %v858, %v860
        %v862 = vrot.slane %v855, %v861
        %865 = vst [vmem:[%s220] sm:$0xff] %v846
        %866 = vst.msk [vmem:[%s220 + $0x8] sm:$0x3] %vm774, %v862
        %p867 = scmp.lt.s32.totalorder %s17, 1
        %s868 = scalar_select %p867, %s17, 1
        %s869 = smul.addr %s868, 10
        %s870 = scalar_lea.vmem %s3, %s869
        %p871 = scmp.lt.s32.totalorder %s17, 1
        %s872 = scalar_select %p871, %s17, 1
        %s873 = smul.addr %s872, 10
        %s874 = scalar_lea.vmem %s4, %s873
        // Predicated region
        $region37: #{vae_audio_forward.9} parent=31 // pred_check
          %p875 = pneg %p103
        $region38: #{vae_audio_forward.9} parent=31 // pred_check_branch
          %877 = sbr.rel (%p875) target = $region40
        $region39: #{vae_audio_forward.9} parent=31 // pred_region
          _
        $region40: #{vae_audio_forward.9} parent=31 // pred_fallthru
          _
        // Predicated region
        $region41: #{vae_audio_forward.9} parent=31 // pred_check
          %p878 = pneg %p129
        $region42: #{vae_audio_forward.9} parent=31 // pred_check_branch
          %880 = sbr.rel (%p878) target = $region44
        $region43: #{vae_audio_forward.9} parent=31 // pred_region
          _
        $region44: #{vae_audio_forward.9} parent=31 // pred_fallthru
          _
      $region32: #{vae_audio_forward.9} parent=5 // pred_fallthru
        _
      %p881 = scmp.le.s32.totalorder 2, %s12
      // Predicated region
      $region45: #{vae_audio_forward.9} parent=5 // pred_check
        %p882 = pneg %p881
      $region46: #{vae_audio_forward.9} parent=5 // pred_check_branch
        %884 = sbr.rel (%p882) target = $region48
      $region47: #{vae_audio_forward.9} parent=5 // pred_region
        %s885 = ssub.s32 %s12, 2
        // Predicated region
        $region49: #{vae_audio_forward.9} parent=47 // pred_check
          %p886 = pneg %p109
        $region50: #{vae_audio_forward.9} parent=47 // pred_check_branch
          %888 = sbr.rel (%p886) target = $region52
        $region51: #{vae_audio_forward.9} parent=47 // pred_region
          %p889 = scmp.lt.s32.totalorder %s18, 1
          %s890 = scalar_select %p889, %s18, 1
          %s891 = smul.addr %s890, 10
          %s892 = scalar_lea.vmem %s3, %s891
        $region52: #{vae_audio_forward.9} parent=47 // pred_fallthru
          _
        // Predicated region
        $region53: #{vae_audio_forward.9} parent=47 // pred_check
          %p893 = pneg %p135
        $region54: #{vae_audio_forward.9} parent=47 // pred_check_branch
          %895 = sbr.rel (%p893) target = $region56
        $region55: #{vae_audio_forward.9} parent=47 // pred_region
          %p896 = scmp.lt.s32.totalorder %s18, 1
          %s897 = scalar_select %p896, %s18, 1
          %s898 = smul.addr %s897, 10
          %s899 = scalar_lea.vmem %s4, %s898
        $region56: #{vae_audio_forward.9} parent=47 // pred_fallthru
          _
      $region48: #{vae_audio_forward.9} parent=5 // pred_fallthru
        _
    $region6: #{vae_audio_forward.9} parent=1 // loop_footer
      %s16 = sadd.s32 1, %s12
    $region7: #{vae_audio_forward.9} parent=1 // loop_footer_branch
      %11 = sbr.rel target = $region3
    $region8: #{vae_audio_forward.9} parent=1 // loop_exit
      _
    %900 = vsyncpa [#allocation3], 1
    %s901 = scalar_lea.sflag [#allocation3], 1
    %902 = vsyncpa %s901, 1

</llo_original>
